<compile_context>
chip_gen: v6e
topology: v6e:2x2x1
jax: 0.10.0
libtpu: 0.0.40
codegen_flags: <defaults>
</compile_context>

<pallas_src>
import functools
import math

import jax
import jax.numpy as jnp
from jax import lax
from jax.experimental import pallas as pl
from jax.experimental.pallas import tpu as pltpu

F32 = jnp.float32


def _vmem():
    return pl.BlockSpec(memory_space=pltpu.MemorySpace.VMEM)


def _smem():
    return pl.BlockSpec(memory_space=pltpu.MemorySpace.SMEM)


# --------------------------- in-kernel helpers ---------------------------
# Activations inside the kernels are kept as Python lists of per-channel
# (N, L) float32 slabs with the spatial axis L (~128) on the TPU lane axis.

def _pad_lanes(slab, pad):
    if pad == 0:
        return slab
    n = slab.shape[0]
    z = jnp.zeros((n, pad), F32)
    return jnp.concatenate([z, slab, z], axis=1)


def _conv1d_slabs(slabs, w_ref, b_ref, c_out, K, pad):
    """PyTorch Conv1d as K-shifted VPU MACs; weights are scalars in SMEM.

    slabs: list (len c_in) of (N, L) slabs.  w_ref: SMEM (c_out*c_in*K,)
    flattened in (c_out, c_in, K) row-major order.  Returns list (len c_out)
    of (N, L + 2*pad - K + 1) slabs.
    """
    c_in = len(slabs)
    n, L = slabs[0].shape
    L_out = L + 2 * pad - K + 1
    padded = [_pad_lanes(s, pad) for s in slabs]
    # Window slices are shared by all output channels -> hoist them.
    wins = [[p[:, k:k + L_out] for k in range(K)] for p in padded]
    outs = []
    for co in range(c_out):
        acc = jnp.zeros((n, L_out), F32)
        for ci in range(c_in):
            base = (co * c_in + ci) * K
            for k in range(K):
                acc = acc + w_ref[base + k] * wins[ci][k]
        if b_ref is not None:
            acc = acc + b_ref[co]
        outs.append(acc)
    return outs


def _bn_slabs(slabs, g_ref, b_ref, act, eps=1e-5):
    """BatchNorm1d in training mode (batch statistics over (N, L) per channel)
    fused with ReLU / tanh.  gamma/beta are scalars in SMEM."""
    outs = []
    for c, s in enumerate(slabs):
        m = jnp.mean(jnp.mean(s, axis=1, keepdims=True), axis=0, keepdims=True)
        d = s - m
        v = jnp.mean(jnp.mean(d * d, axis=1, keepdims=True), axis=0, keepdims=True)
        y = d * lax.rsqrt(v + eps) * g_ref[c] + b_ref[c]
        if act == "relu":
            y = jnp.maximum(y, 0.0)
        elif act == "tanh":
            y = jnp.tanh(y)
        outs.append(y)
    return outs


# ----------------------------- fused kernels -----------------------------

def _encoder_kernel(*refs, enc_cout, K0, nF0, C_red):
    it = iter(refs)
    x_ref = next(it)
    w0, b0 = next(it), next(it)
    enc_p = [(next(it), next(it), next(it)) for _ in enc_cout]
    tg, tb, tw = next(it), next(it), next(it)
    fg, fb = next(it), next(it)
    w1f, b1 = next(it), next(it)
    w2t, b2 = next(it), next(it)
    w3t, b3 = next(it), next(it)
    outfin_ref, pidx_ref = next(it), next(it)

    # initialConv: (N, 1, 128) -> nF0 slabs of (N, 129)
    slabs = _conv1d_slabs([x_ref[:, 0, :]], w0, b0, c_out=nF0, K=K0, pad=6)

    # dense blocks: BN -> ReLU -> Conv(k=2, pad=1), 128 -> 129
    for cout, (g, be, w) in zip(enc_cout, enc_p):
        act = _bn_slabs([s[:, :-1] for s in slabs], g, be, act="relu")
        slabs = _conv1d_slabs(act, w, None, c_out=cout, K=2, pad=1)

    # transition: BN -> ReLU -> Conv(k=3, pad=2), 127 -> 129
    act = _bn_slabs([s[:, 0:127] for s in slabs], tg, tb, act="relu")
    slabs = _conv1d_slabs(act, tw, None, c_out=C_red, K=3, pad=2)

    # MaxPool1d(2, return_indices=True) on the first 128 positions.  Even/odd
    # lanes are extracted with one-hot matmuls (tiny MXU work, no strided load).
    pe = lax.broadcasted_iota(jnp.int32, (128, 64), 0)
    je = lax.broadcasted_iota(jnp.int32, (128, 64), 1)
    E = (pe == 2 * je).astype(F32)
    O = (pe == 2 * je + 1).astype(F32)
    n = slabs[0].shape[0]
    j64 = lax.broadcasted_iota(jnp.int32, (n, 64), 1)
    pooled = []
    for c in range(C_red):
        s = slabs[c][:, :-1]
        a = jnp.dot(s, E, preferred_element_type=F32)
        b = jnp.dot(s, O, preferred_element_type=F32)
        take_a = a >= b
        pooled.append(jnp.where(take_a, a, b))
        pidx_ref[:, c, :] = jnp.where(take_a, 2 * j64, 2 * j64 + 1)

    # final BN + tanh, then linear1(relu) -> linear2(relu) -> linear3,
    # with the (N, C_red, 64) -> (N, 64*C_red) flatten folded into per-channel
    # chunks of W1 (avoids any in-kernel reshape/relayout).
    fin = _bn_slabs(pooled, fg, fb, act="tanh")
    acc = None
    for c in range(C_red):
        t = jnp.dot(fin[c], w1f[c], preferred_element_type=F32)
        acc = t if acc is None else acc + t
    h1 = jnp.maximum(acc + b1[...], 0.0)
    h2 = jnp.maximum(jnp.dot(h1, w2t[...], preferred_element_type=F32) + b2[...], 0.0)
    outfin_ref[...] = jnp.dot(h2, w3t[...], preferred_element_type=F32) + b3[...]


def _sequence_kernel(*refs, rho, n_lstm):
    it = iter(refs)
    outfin_ref = next(it)
    wm_t, bm, uw = next(it), next(it), next(it)
    lstm_p = [tuple(next(it) for _ in range(6)) for _ in range(n_lstm)]
    w4t, b4 = next(it), next(it)
    W3, W2, W1inv = next(it), next(it), next(it)
    alpha_ref, outinv_ref = next(it), next(it)

    N, D = outfin_ref.shape
    B2 = N - rho + 1
    C_red = outinv_ref.shape[1]
    outfin = outfin_ref[...]

    # sliding windows decod_in[:, r, :] = outfin[r:r+B2, :] and attention scores
    xs, s_cols = [], []
    for r in range(rho):
        x_r = outfin[r:r + B2, :]
        u_r = jnp.tanh(jnp.dot(x_r, wm_t[...], preferred_element_type=F32) + bm[...])
        s_cols.append(jnp.sum(u_r * uw[...], axis=1, keepdims=True))     # (B2, 1)
        xs.append(x_r)

    # softmax over rho (columnar; divide on the EUP via approx reciprocal)
    m = s_cols[0]
    for s_r in s_cols[1:]:
        m = jnp.maximum(m, s_r)
    e_cols = [jnp.exp(s_r - m) for s_r in s_cols]
    denom = e_cols[0]
    for e_r in e_cols[1:]:
        denom = denom + e_r
    inv = pl.reciprocal(denom, approx=True)

    # legacy reduction of the original module (intentionally reproduced):
    #   out[j] = sum_i sum_k alpha[i, k] * X[j, k, :]
    attn = jnp.zeros((B2, D), F32)
    for r in range(rho):
        a_r = e_cols[r] * inv                                            # (B2, 1)
        alpha_ref[:, r:r + 1] = a_r
        attn = attn + jnp.sum(a_r, axis=0, keepdims=True) * xs[r]

    # 2-layer LSTM, sequence length 1, zero initial state (W_hh and the forget
    # gate contribute nothing and are dropped).
    h = attn
    for (wi, wg, wo, bi, bg, bo) in lstm_p:
        gi = jax.nn.sigmoid(jnp.dot(h, wi[...], preferred_element_type=F32) + bi[...])
        gg = jnp.tanh(jnp.dot(h, wg[...], preferred_element_type=F32) + bg[...])
        go = jax.nn.sigmoid(jnp.dot(h, wo[...], preferred_element_type=F32) + bo[...])
        h = go * jnp.tanh(gi * gg)

    out4 = jnp.dot(h, w4t[...], preferred_element_type=F32) + b4[...]

    # inverse projection through the encoder linear weights; the final flatten
    # inverse is written channel-chunk-wise directly into the (B2, C_red, 64)
    # output layout expected by the decoder.
    t = jnp.dot(out4, W3[...], preferred_element_type=F32)
    t = jnp.dot(t, W2[...], preferred_element_type=F32)
    for c in range(C_red):
        outinv_ref[:, c, :] = jnp.dot(t, W1inv[c], preferred_element_type=F32)


def _decoder_kernel(*refs, dec_cout, tb_cout, C_red, K0, deconv_pad):
    it = iter(refs)
    v_ref, idx_ref = next(it), next(it)
    tbg, tbb, tbw = next(it), next(it), next(it)
    dec_p = [(next(it), next(it), next(it)) for _ in dec_cout]
    dw, db = next(it), next(it)
    out_ref = next(it)

    B2 = v_ref.shape[0]

    # MaxUnpool1d(2): scatter pooled values to their recorded positions via
    # one-hot expansion matmuls (64 -> 128 lanes), all in-kernel.
    jrow = lax.broadcasted_iota(jnp.int32, (64, 128), 0)
    pcol = lax.broadcasted_iota(jnp.int32, (64, 128), 1)
    Et = (pcol == 2 * jrow).astype(F32)
    Ot = (pcol == 2 * jrow + 1).astype(F32)
    j64 = lax.broadcasted_iota(jnp.int32, (B2, 64), 1)
    slabs = []
    for c in range(C_red):
        v = v_ref[:, c, :]
        ix = idx_ref[:, c, :]
        even = jnp.where(ix == 2 * j64, v, 0.0)
        odd = jnp.where(ix == 2 * j64 + 1, v, 0.0)
        slabs.append(jnp.dot(even, Et, preferred_element_type=F32) +
                     jnp.dot(odd, Ot, preferred_element_type=F32))       # (B2, 128)

    # transition back: BN -> ReLU -> Conv(k=2, pad=1): 128 -> 129
    act = _bn_slabs(slabs, tbg, tbb, act="relu")
    slabs = _conv1d_slabs(act, tbw, None, c_out=tb_cout, K=2, pad=1)

    # dense decode blocks
    for cout, (g, be, w) in zip(dec_cout, dec_p):
        act = _bn_slabs([s[:, :-1] for s in slabs], g, be, act="relu")
        slabs = _conv1d_slabs(act, w, None, c_out=cout, K=2, pad=1)

    # deconv1 = ConvTranspose1d(K0, pad=5) on [:, 0:127]  ==  Conv1d with the
    # flipped/transposed kernel and pad = K0-1-5; then sigmoid.
    out = _conv1d_slabs([s[:, 0:127] for s in slabs], dw, db,
                        c_out=1, K=K0, pad=deconv_pad)[0]
    out_ref[:, 0, :] = jax.nn.sigmoid(out)


# ----------------------------- host-side wrappers -----------------------------

def _flat_smem(a):
    return jnp.asarray(a, F32).reshape(-1)


def _run_encoder(params, x, cfg):
    N = x.shape[0]
    nF0, K0 = cfg["nFilters"], cfg["KerSize"]
    fh, D = cfg["fullyhiddensize"], cfg["Dim_embed"]
    enc_cout = tuple(lyr["w"].shape[0] for lyr in params["enc_layers"])
    C_red = params["transition"]["w"].shape[0]

    inputs, specs = [jnp.asarray(x, F32)], [_vmem()]

    def smem(a):
        inputs.append(_flat_smem(a)); specs.append(_smem())

    def vmem(a):
        inputs.append(jnp.asarray(a, F32)); specs.append(_vmem())

    w0, b0 = params["initialConv"]
    smem(w0); smem(b0)
    for lyr in params["enc_layers"]:
        smem(lyr["gamma"]); smem(lyr["beta"]); smem(lyr["w"])
    tr = params["transition"]
    smem(tr["gamma"]); smem(tr["beta"]); smem(tr["w"])
    fbn = params["finalbn"]
    smem(fbn["gamma"]); smem(fbn["beta"])
    W1, b1 = params["linear1"]
    vmem(jnp.transpose(W1.reshape(fh[0], C_red, 64), (1, 2, 0)))   # (C_red, 64, fh0)
    vmem(b1.reshape(1, -1))
    W2, b2 = params["linear2"]
    vmem(W2.T); vmem(b2.reshape(1, -1))
    W3, b3 = params["linear3"]
    vmem(W3.T); vmem(b3.reshape(1, -1))

    kernel = functools.partial(_encoder_kernel, enc_cout=enc_cout, K0=K0,
                               nF0=nF0, C_red=C_red)
    outfin, pool_idx = pl.pallas_call(
        kernel,
        out_shape=(jax.ShapeDtypeStruct((N, D), F32),
                   jax.ShapeDtypeStruct((N, C_red, 64), jnp.int32)),
        in_specs=specs,
        out_specs=(_vmem(), _vmem()),
    )(*inputs)
    return outfin, pool_idx, C_red


def _run_sequence(params, outfin, rho, C_red, cfg):
    N, _ = outfin.shape
    B2 = N - rho + 1
    fh = cfg["fullyhiddensize"]

    inputs, specs = [outfin], [_vmem()]

    def vmem(a):
        inputs.append(jnp.asarray(a, F32)); specs.append(_vmem())

    wm, bm = params["attn_mlp"]
    vmem(wm.T); vmem(bm.reshape(1, -1)); vmem(params["attn_uw"].reshape(1, -1))
    for lp in params["lstm"]:
        W_ih, bias = lp["W_ih"], lp["b_ih"] + lp["b_hh"]
        H = W_ih.shape[0] // 4
        for gate in (0, 2, 3):          # i, g, o  (forget gate is dead: c0 == 0)
            vmem(W_ih[gate * H:(gate + 1) * H, :].T)
        for gate in (0, 2, 3):
            vmem(bias[gate * H:(gate + 1) * H].reshape(1, -1))
    w4, b4 = params["linear4"]
    vmem(w4.T); vmem(b4.reshape(1, -1))
    vmem(params["linear3"][0])          # W3: (D, fh1)
    vmem(params["linear2"][0])          # W2: (fh1, fh0)
    W1 = params["linear1"][0]
    vmem(jnp.transpose(W1.reshape(fh[0], C_red, 64), (1, 0, 2)))   # (C_red, fh0, 64)

    kernel = functools.partial(_sequence_kernel, rho=rho, n_lstm=len(params["lstm"]))
    alpha, outinv = pl.pallas_call(
        kernel,
        out_shape=(jax.ShapeDtypeStruct((B2, rho), F32),
                   jax.ShapeDtypeStruct((B2, C_red, 64), F32)),
        in_specs=specs,
        out_specs=(_vmem(), _vmem()),
    )(*inputs)
    return alpha, outinv


def _run_decoder(params, outinv, pool_idx_win, cfg, C_red):
    B2 = outinv.shape[0]
    K0 = cfg["KerSize"]
    dec_cout = tuple(lyr["w"].shape[0] for lyr in params["dec_layers"])
    tb_cout = params["transback"]["w"].shape[0]

    inputs, specs = [outinv, pool_idx_win], [_vmem(), _vmem()]

    def smem(a):
        inputs.append(_flat_smem(a)); specs.append(_smem())

    tb = params["transback"]
    smem(tb["gamma"]); smem(tb["beta"]); smem(tb["w"])
    for lyr in params["dec_layers"]:
        smem(lyr["gamma"]); smem(lyr["beta"]); smem(lyr["w"])
    wd, bd = params["deconv1"]                           # ConvTranspose1d: (C_in, 1, K)
    w_conv = jnp.transpose(wd[:, :, ::-1], (1, 0, 2))    # conv-equivalent (1, C_in, K)
    smem(w_conv); smem(bd)

    kernel = functools.partial(_decoder_kernel, dec_cout=dec_cout, tb_cout=tb_cout,
                               C_red=C_red, K0=K0, deconv_pad=K0 - 1 - 5)
    return pl.pallas_call(
        kernel,
        out_shape=jax.ShapeDtypeStruct((B2, 1, 128), F32),
        in_specs=specs,
        out_specs=_vmem(),
    )(*inputs)


# ----------------------------- parameters -----------------------------

CFG = dict(nFilters=4, KerSize=12, fullyhiddensize=(32, 24), Dim_embed=16,
           lstmhiddensize=20, nreclayer=2, nblock=2, growthRate=2,
           reduction=0.5, dropout=0.0, attention=True)


def init_params(key, cfg=CFG):
    keys = iter(jax.random.split(key, 128))

    def nrm(shape, scale=0.1):
        return scale * jax.random.normal(next(keys), shape, F32)

    def uni(shape):
        return jax.random.uniform(next(keys), shape, dtype=F32)

    nF0, K = cfg["nFilters"], cfg["KerSize"]
    fh, D = cfg["fullyhiddensize"], cfg["Dim_embed"]
    H, nlayers, nblock = cfg["lstmhiddensize"], cfg["nreclayer"], cfg["nblock"]
    g, red = cfg["growthRate"], cfg["reduction"]

    p = {}
    p["initialConv"] = (nrm((nF0, 1, K)), nrm((nF0,)))
    nF = nF0
    enc = []
    for _ in range(nblock):
        cin, cout = nF, nF + g
        enc.append(dict(gamma=1.0 + nrm((cin,)), beta=nrm((cin,)), w=nrm((cout, cin, 2))))
        nF = cout
    p["enc_layers"] = enc
    nF_red = int(math.floor(nF * red))
    p["transition"] = dict(gamma=1.0 + nrm((nF,)), beta=nrm((nF,)),
                           w=nrm((nF_red, nF, 3)))
    p["finalbn"] = dict(gamma=1.0 + nrm((nF_red,)), beta=nrm((nF_red,)))
    p["linear1"] = (nrm((fh[0], 64 * nF_red)), nrm((fh[0],)))
    p["linear2"] = (nrm((fh[1], fh[0])), nrm((fh[1],)))
    p["linear3"] = (nrm((D, fh[1])), nrm((D,)))
    p["attn_mlp"] = (nrm((D, D)), nrm((D,)))
    p["attn_uw"] = uni((D,))
    lstm = []
    in_dim = D
    for _ in range(nlayers):
        # W_hh kept for parameter fidelity; it never contributes (h0 = 0, seq len 1).
        lstm.append(dict(W_ih=nrm((4 * H, in_dim)), W_hh=nrm((4 * H, H)),
                         b_ih=nrm((4 * H,)), b_hh=nrm((4 * H,))))
        in_dim = H
    p["lstm"] = lstm
    p["linear4"] = (nrm((D, H)), nrm((D,)))
    nF_back = int(math.floor(nF_red / red))
    p["transback"] = dict(gamma=1.0 + nrm((nF_red,)), beta=nrm((nF_red,)),
                          w=nrm((nF_back, nF_red, 2)))
    nF = nF_back
    dec = []
    for _ in range(nblock):
        cin, cout = nF, nF + g
        dec.append(dict(gamma=1.0 + nrm((cin,)), beta=nrm((cin,)), w=nrm((cout, cin, 2))))
        nF = cout
    p["dec_layers"] = dec
    p["deconv1"] = (nrm((nF, 1, K)), nrm((1,)))
    return p


# ----------------------------- forward -----------------------------

def embed_densenet_forward(params, x, rho, cfg=CFG):
    """x: (N, 1, 128) float32, 0 < rho < N (batch must exceed sequence length)."""
    assert rho > 0 and x.shape[0] > rho
    outfin, pool_idx, C_red = _run_encoder(params, x, cfg)
    alpha, outinv = _run_sequence(params, outfin, rho, C_red, cfg)
    out = _run_decoder(params, outinv, pool_idx[rho - 1:], cfg, C_red)
    return out, outfin, alpha


# ----------------------------- main -----------------------------

if __name__ == "__main__":
    key = jax.random.PRNGKey(0)
    pkey, xkey = jax.random.split(key)
    params = init_params(pkey)

    N, rho = 8, 3                     # batch of 8 piano-roll frames, sequence length 3
    x = (jax.random.uniform(xkey, (N, 1, 128), dtype=jnp.float32) > 0.8).astype(jnp.float32)

    out, outfin, attn_w = embed_densenet_forward(params, x, rho)
    jax.block_until_ready((out, outfin, attn_w))

    assert out.shape == (N - rho + 1, 1, 128)
    assert outfin.shape == (N, CFG["Dim_embed"])
    assert attn_w.shape == (N - rho + 1, rho)
    print("KERNEL_OK")
</pallas_src>

<mosaic_0001>
module attributes {stable_mosaic.version = 11 : i64} {
  func.func @_encoder_kernel(%arg0: memref<8x1x128xf32, #tpu.memory_space<vmem>>, %arg1: memref<48xf32, #tpu.memory_space<smem>>, %arg2: memref<4xf32, #tpu.memory_space<smem>>, %arg3: memref<4xf32, #tpu.memory_space<smem>>, %arg4: memref<4xf32, #tpu.memory_space<smem>>, %arg5: memref<48xf32, #tpu.memory_space<smem>>, %arg6: memref<6xf32, #tpu.memory_space<smem>>, %arg7: memref<6xf32, #tpu.memory_space<smem>>, %arg8: memref<96xf32, #tpu.memory_space<smem>>, %arg9: memref<8xf32, #tpu.memory_space<smem>>, %arg10: memref<8xf32, #tpu.memory_space<smem>>, %arg11: memref<96xf32, #tpu.memory_space<smem>>, %arg12: memref<4xf32, #tpu.memory_space<smem>>, %arg13: memref<4xf32, #tpu.memory_space<smem>>, %arg14: memref<4x64x32xf32, #tpu.memory_space<vmem>>, %arg15: memref<1x32xf32, #tpu.memory_space<vmem>>, %arg16: memref<32x24xf32, #tpu.memory_space<vmem>>, %arg17: memref<1x24xf32, #tpu.memory_space<vmem>>, %arg18: memref<24x16xf32, #tpu.memory_space<vmem>>, %arg19: memref<1x16xf32, #tpu.memory_space<vmem>>, %arg20: memref<8x16xf32, #tpu.memory_space<vmem>>, %arg21: memref<8x4x64xi32, #tpu.memory_space<vmem>>) attributes {dimension_semantics = [], scalar_prefetch = 0 : i64, scratch_operands = 0 : i64, tpu.core_type = #tpu.core_type<tc>} {
    %c0 = arith.constant 0 : index
    %c0_0 = arith.constant 0 : index
    %c0_1 = arith.constant 0 : index
    %0 = vector.load %arg0[%c0, %c0_0, %c0_1] : memref<8x1x128xf32, #tpu.memory_space<vmem>>, vector<8x1x128xf32>
    %1 = vector.shape_cast %0 : vector<8x1x128xf32> to vector<8x128xf32>
    %cst = arith.constant 0.000000e+00 : f32
    %2 = vector.broadcast %cst : f32 to vector<8x6xf32>
    %3 = tpu.concatenate %2, %1, %2 in 1 : vector<8x6xf32>, vector<8x128xf32>, vector<8x6xf32> -> vector<8x140xf32>
    %4 = vector.extract_strided_slice %3 {offsets = [0, 0], sizes = [8, 129], strides = [1, 1]} : vector<8x140xf32> to vector<8x129xf32>
    %5 = vector.extract_strided_slice %3 {offsets = [0, 1], sizes = [8, 129], strides = [1, 1]} : vector<8x140xf32> to vector<8x129xf32>
    %6 = vector.extract_strided_slice %3 {offsets = [0, 2], sizes = [8, 129], strides = [1, 1]} : vector<8x140xf32> to vector<8x129xf32>
    %7 = vector.extract_strided_slice %3 {offsets = [0, 3], sizes = [8, 129], strides = [1, 1]} : vector<8x140xf32> to vector<8x129xf32>
    %8 = vector.extract_strided_slice %3 {offsets = [0, 4], sizes = [8, 129], strides = [1, 1]} : vector<8x140xf32> to vector<8x129xf32>
    %9 = vector.extract_strided_slice %3 {offsets = [0, 5], sizes = [8, 129], strides = [1, 1]} : vector<8x140xf32> to vector<8x129xf32>
    %10 = vector.extract_strided_slice %3 {offsets = [0, 6], sizes = [8, 129], strides = [1, 1]} : vector<8x140xf32> to vector<8x129xf32>
    %11 = vector.extract_strided_slice %3 {offsets = [0, 7], sizes = [8, 129], strides = [1, 1]} : vector<8x140xf32> to vector<8x129xf32>
    %12 = vector.extract_strided_slice %3 {offsets = [0, 8], sizes = [8, 129], strides = [1, 1]} : vector<8x140xf32> to vector<8x129xf32>
    %13 = vector.extract_strided_slice %3 {offsets = [0, 9], sizes = [8, 129], strides = [1, 1]} : vector<8x140xf32> to vector<8x129xf32>
    %14 = vector.extract_strided_slice %3 {offsets = [0, 10], sizes = [8, 129], strides = [1, 1]} : vector<8x140xf32> to vector<8x129xf32>
    %15 = vector.extract_strided_slice %3 {offsets = [0, 11], sizes = [8, 129], strides = [1, 1]} : vector<8x140xf32> to vector<8x129xf32>
    %cst_2 = arith.constant 0.000000e+00 : f32
    %16 = vector.broadcast %cst_2 : f32 to vector<8x129xf32>
    %c0_3 = arith.constant 0 : index
    %17 = memref.load %arg1[%c0_3] : memref<48xf32, #tpu.memory_space<smem>>
    %18 = vector.broadcast %17 : f32 to vector<8x129xf32>
    %19 = arith.mulf %18, %4 : vector<8x129xf32>
    %20 = arith.addf %16, %19 : vector<8x129xf32>
    %c1 = arith.constant 1 : index
    %21 = memref.load %arg1[%c1] : memref<48xf32, #tpu.memory_space<smem>>
    %22 = vector.broadcast %21 : f32 to vector<8x129xf32>
    %23 = arith.mulf %22, %5 : vector<8x129xf32>
    %24 = arith.addf %20, %23 : vector<8x129xf32>
    %c2 = arith.constant 2 : index
    %25 = memref.load %arg1[%c2] : memref<48xf32, #tpu.memory_space<smem>>
    %26 = vector.broadcast %25 : f32 to vector<8x129xf32>
    %27 = arith.mulf %26, %6 : vector<8x129xf32>
    %28 = arith.addf %24, %27 : vector<8x129xf32>
    %c3 = arith.constant 3 : index
    %29 = memref.load %arg1[%c3] : memref<48xf32, #tpu.memory_space<smem>>
    %30 = vector.broadcast %29 : f32 to vector<8x129xf32>
    %31 = arith.mulf %30, %7 : vector<8x129xf32>
    %32 = arith.addf %28, %31 : vector<8x129xf32>
    %c4 = arith.constant 4 : index
    %33 = memref.load %arg1[%c4] : memref<48xf32, #tpu.memory_space<smem>>
    %34 = vector.broadcast %33 : f32 to vector<8x129xf32>
    %35 = arith.mulf %34, %8 : vector<8x129xf32>
    %36 = arith.addf %32, %35 : vector<8x129xf32>
    %c5 = arith.constant 5 : index
    %37 = memref.load %arg1[%c5] : memref<48xf32, #tpu.memory_space<smem>>
    %38 = vector.broadcast %37 : f32 to vector<8x129xf32>
    %39 = arith.mulf %38, %9 : vector<8x129xf32>
    %40 = arith.addf %36, %39 : vector<8x129xf32>
    %c6 = arith.constant 6 : index
    %41 = memref.load %arg1[%c6] : memref<48xf32, #tpu.memory_space<smem>>
    %42 = vector.broadcast %41 : f32 to vector<8x129xf32>
    %43 = arith.mulf %42, %10 : vector<8x129xf32>
    %44 = arith.addf %40, %43 : vector<8x129xf32>
    %c7 = arith.constant 7 : index
    %45 = memref.load %arg1[%c7] : memref<48xf32, #tpu.memory_space<smem>>
    %46 = vector.broadcast %45 : f32 to vector<8x129xf32>
    %47 = arith.mulf %46, %11 : vector<8x129xf32>
    %48 = arith.addf %44, %47 : vector<8x129xf32>
    %c8 = arith.constant 8 : index
    %49 = memref.load %arg1[%c8] : memref<48xf32, #tpu.memory_space<smem>>
    %50 = vector.broadcast %49 : f32 to vector<8x129xf32>
    %51 = arith.mulf %50, %12 : vector<8x129xf32>
    %52 = arith.addf %48, %51 : vector<8x129xf32>
    %c9 = arith.constant 9 : index
    %53 = memref.load %arg1[%c9] : memref<48xf32, #tpu.memory_space<smem>>
    %54 = vector.broadcast %53 : f32 to vector<8x129xf32>
    %55 = arith.mulf %54, %13 : vector<8x129xf32>
    %56 = arith.addf %52, %55 : vector<8x129xf32>
    %c10 = arith.constant 10 : index
    %57 = memref.load %arg1[%c10] : memref<48xf32, #tpu.memory_space<smem>>
    %58 = vector.broadcast %57 : f32 to vector<8x129xf32>
    %59 = arith.mulf %58, %14 : vector<8x129xf32>
    %60 = arith.addf %56, %59 : vector<8x129xf32>
    %c11 = arith.constant 11 : index
    %61 = memref.load %arg1[%c11] : memref<48xf32, #tpu.memory_space<smem>>
    %62 = vector.broadcast %61 : f32 to vector<8x129xf32>
    %63 = arith.mulf %62, %15 : vector<8x129xf32>
    %64 = arith.addf %60, %63 : vector<8x129xf32>
    %c0_4 = arith.constant 0 : index
    %65 = memref.load %arg2[%c0_4] : memref<4xf32, #tpu.memory_space<smem>>
    %66 = vector.broadcast %65 : f32 to vector<8x129xf32>
    %67 = arith.addf %64, %66 : vector<8x129xf32>
    %cst_5 = arith.constant 0.000000e+00 : f32
    %68 = vector.broadcast %cst_5 : f32 to vector<8x129xf32>
    %c12 = arith.constant 12 : index
    %69 = memref.load %arg1[%c12] : memref<48xf32, #tpu.memory_space<smem>>
    %70 = vector.broadcast %69 : f32 to vector<8x129xf32>
    %71 = arith.mulf %70, %4 : vector<8x129xf32>
    %72 = arith.addf %68, %71 : vector<8x129xf32>
    %c13 = arith.constant 13 : index
    %73 = memref.load %arg1[%c13] : memref<48xf32, #tpu.memory_space<smem>>
    %74 = vector.broadcast %73 : f32 to vector<8x129xf32>
    %75 = arith.mulf %74, %5 : vector<8x129xf32>
    %76 = arith.addf %72, %75 : vector<8x129xf32>
    %c14 = arith.constant 14 : index
    %77 = memref.load %arg1[%c14] : memref<48xf32, #tpu.memory_space<smem>>
    %78 = vector.broadcast %77 : f32 to vector<8x129xf32>
    %79 = arith.mulf %78, %6 : vector<8x129xf32>
    %80 = arith.addf %76, %79 : vector<8x129xf32>
    %c15 = arith.constant 15 : index
    %81 = memref.load %arg1[%c15] : memref<48xf32, #tpu.memory_space<smem>>
    %82 = vector.broadcast %81 : f32 to vector<8x129xf32>
    %83 = arith.mulf %82, %7 : vector<8x129xf32>
    %84 = arith.addf %80, %83 : vector<8x129xf32>
    %c16 = arith.constant 16 : index
    %85 = memref.load %arg1[%c16] : memref<48xf32, #tpu.memory_space<smem>>
    %86 = vector.broadcast %85 : f32 to vector<8x129xf32>
    %87 = arith.mulf %86, %8 : vector<8x129xf32>
    %88 = arith.addf %84, %87 : vector<8x129xf32>
    %c17 = arith.constant 17 : index
    %89 = memref.load %arg1[%c17] : memref<48xf32, #tpu.memory_space<smem>>
    %90 = vector.broadcast %89 : f32 to vector<8x129xf32>
    %91 = arith.mulf %90, %9 : vector<8x129xf32>
    %92 = arith.addf %88, %91 : vector<8x129xf32>
    %c18 = arith.constant 18 : index
    %93 = memref.load %arg1[%c18] : memref<48xf32, #tpu.memory_space<smem>>
    %94 = vector.broadcast %93 : f32 to vector<8x129xf32>
    %95 = arith.mulf %94, %10 : vector<8x129xf32>
    %96 = arith.addf %92, %95 : vector<8x129xf32>
    %c19 = arith.constant 19 : index
    %97 = memref.load %arg1[%c19] : memref<48xf32, #tpu.memory_space<smem>>
    %98 = vector.broadcast %97 : f32 to vector<8x129xf32>
    %99 = arith.mulf %98, %11 : vector<8x129xf32>
    %100 = arith.addf %96, %99 : vector<8x129xf32>
    %c20 = arith.constant 20 : index
    %101 = memref.load %arg1[%c20] : memref<48xf32, #tpu.memory_space<smem>>
    %102 = vector.broadcast %101 : f32 to vector<8x129xf32>
    %103 = arith.mulf %102, %12 : vector<8x129xf32>
    %104 = arith.addf %100, %103 : vector<8x129xf32>
    %c21 = arith.constant 21 : index
    %105 = memref.load %arg1[%c21] : memref<48xf32, #tpu.memory_space<smem>>
    %106 = vector.broadcast %105 : f32 to vector<8x129xf32>
    %107 = arith.mulf %106, %13 : vector<8x129xf32>
    %108 = arith.addf %104, %107 : vector<8x129xf32>
    %c22 = arith.constant 22 : index
    %109 = memref.load %arg1[%c22] : memref<48xf32, #tpu.memory_space<smem>>
    %110 = vector.broadcast %109 : f32 to vector<8x129xf32>
    %111 = arith.mulf %110, %14 : vector<8x129xf32>
    %112 = arith.addf %108, %111 : vector<8x129xf32>
    %c23 = arith.constant 23 : index
    %113 = memref.load %arg1[%c23] : memref<48xf32, #tpu.memory_space<smem>>
    %114 = vector.broadcast %113 : f32 to vector<8x129xf32>
    %115 = arith.mulf %114, %15 : vector<8x129xf32>
    %116 = arith.addf %112, %115 : vector<8x129xf32>
    %c1_6 = arith.constant 1 : index
    %117 = memref.load %arg2[%c1_6] : memref<4xf32, #tpu.memory_space<smem>>
    %118 = vector.broadcast %117 : f32 to vector<8x129xf32>
    %119 = arith.addf %116, %118 : vector<8x129xf32>
    %cst_7 = arith.constant 0.000000e+00 : f32
    %120 = vector.broadcast %cst_7 : f32 to vector<8x129xf32>
    %c24 = arith.constant 24 : index
    %121 = memref.load %arg1[%c24] : memref<48xf32, #tpu.memory_space<smem>>
    %122 = vector.broadcast %121 : f32 to vector<8x129xf32>
    %123 = arith.mulf %122, %4 : vector<8x129xf32>
    %124 = arith.addf %120, %123 : vector<8x129xf32>
    %c25 = arith.constant 25 : index
    %125 = memref.load %arg1[%c25] : memref<48xf32, #tpu.memory_space<smem>>
    %126 = vector.broadcast %125 : f32 to vector<8x129xf32>
    %127 = arith.mulf %126, %5 : vector<8x129xf32>
    %128 = arith.addf %124, %127 : vector<8x129xf32>
    %c26 = arith.constant 26 : index
    %129 = memref.load %arg1[%c26] : memref<48xf32, #tpu.memory_space<smem>>
    %130 = vector.broadcast %129 : f32 to vector<8x129xf32>
    %131 = arith.mulf %130, %6 : vector<8x129xf32>
    %132 = arith.addf %128, %131 : vector<8x129xf32>
    %c27 = arith.constant 27 : index
    %133 = memref.load %arg1[%c27] : memref<48xf32, #tpu.memory_space<smem>>
    %134 = vector.broadcast %133 : f32 to vector<8x129xf32>
    %135 = arith.mulf %134, %7 : vector<8x129xf32>
    %136 = arith.addf %132, %135 : vector<8x129xf32>
    %c28 = arith.constant 28 : index
    %137 = memref.load %arg1[%c28] : memref<48xf32, #tpu.memory_space<smem>>
    %138 = vector.broadcast %137 : f32 to vector<8x129xf32>
    %139 = arith.mulf %138, %8 : vector<8x129xf32>
    %140 = arith.addf %136, %139 : vector<8x129xf32>
    %c29 = arith.constant 29 : index
    %141 = memref.load %arg1[%c29] : memref<48xf32, #tpu.memory_space<smem>>
    %142 = vector.broadcast %141 : f32 to vector<8x129xf32>
    %143 = arith.mulf %142, %9 : vector<8x129xf32>
    %144 = arith.addf %140, %143 : vector<8x129xf32>
    %c30 = arith.constant 30 : index
    %145 = memref.load %arg1[%c30] : memref<48xf32, #tpu.memory_space<smem>>
    %146 = vector.broadcast %145 : f32 to vector<8x129xf32>
    %147 = arith.mulf %146, %10 : vector<8x129xf32>
    %148 = arith.addf %144, %147 : vector<8x129xf32>
    %c31 = arith.constant 31 : index
    %149 = memref.load %arg1[%c31] : memref<48xf32, #tpu.memory_space<smem>>
    %150 = vector.broadcast %149 : f32 to vector<8x129xf32>
    %151 = arith.mulf %150, %11 : vector<8x129xf32>
    %152 = arith.addf %148, %151 : vector<8x129xf32>
    %c32 = arith.constant 32 : index
    %153 = memref.load %arg1[%c32] : memref<48xf32, #tpu.memory_space<smem>>
    %154 = vector.broadcast %153 : f32 to vector<8x129xf32>
    %155 = arith.mulf %154, %12 : vector<8x129xf32>
    %156 = arith.addf %152, %155 : vector<8x129xf32>
    %c33 = arith.constant 33 : index
    %157 = memref.load %arg1[%c33] : memref<48xf32, #tpu.memory_space<smem>>
    %158 = vector.broadcast %157 : f32 to vector<8x129xf32>
    %159 = arith.mulf %158, %13 : vector<8x129xf32>
    %160 = arith.addf %156, %159 : vector<8x129xf32>
    %c34 = arith.constant 34 : index
    %161 = memref.load %arg1[%c34] : memref<48xf32, #tpu.memory_space<smem>>
    %162 = vector.broadcast %161 : f32 to vector<8x129xf32>
    %163 = arith.mulf %162, %14 : vector<8x129xf32>
    %164 = arith.addf %160, %163 : vector<8x129xf32>
    %c35 = arith.constant 35 : index
    %165 = memref.load %arg1[%c35] : memref<48xf32, #tpu.memory_space<smem>>
    %166 = vector.broadcast %165 : f32 to vector<8x129xf32>
    %167 = arith.mulf %166, %15 : vector<8x129xf32>
    %168 = arith.addf %164, %167 : vector<8x129xf32>
    %c2_8 = arith.constant 2 : index
    %169 = memref.load %arg2[%c2_8] : memref<4xf32, #tpu.memory_space<smem>>
    %170 = vector.broadcast %169 : f32 to vector<8x129xf32>
    %171 = arith.addf %168, %170 : vector<8x129xf32>
    %cst_9 = arith.constant 0.000000e+00 : f32
    %172 = vector.broadcast %cst_9 : f32 to vector<8x129xf32>
    %c36 = arith.constant 36 : index
    %173 = memref.load %arg1[%c36] : memref<48xf32, #tpu.memory_space<smem>>
    %174 = vector.broadcast %173 : f32 to vector<8x129xf32>
    %175 = arith.mulf %174, %4 : vector<8x129xf32>
    %176 = arith.addf %172, %175 : vector<8x129xf32>
    %c37 = arith.constant 37 : index
    %177 = memref.load %arg1[%c37] : memref<48xf32, #tpu.memory_space<smem>>
    %178 = vector.broadcast %177 : f32 to vector<8x129xf32>
    %179 = arith.mulf %178, %5 : vector<8x129xf32>
    %180 = arith.addf %176, %179 : vector<8x129xf32>
    %c38 = arith.constant 38 : index
    %181 = memref.load %arg1[%c38] : memref<48xf32, #tpu.memory_space<smem>>
    %182 = vector.broadcast %181 : f32 to vector<8x129xf32>
    %183 = arith.mulf %182, %6 : vector<8x129xf32>
    %184 = arith.addf %180, %183 : vector<8x129xf32>
    %c39 = arith.constant 39 : index
    %185 = memref.load %arg1[%c39] : memref<48xf32, #tpu.memory_space<smem>>
    %186 = vector.broadcast %185 : f32 to vector<8x129xf32>
    %187 = arith.mulf %186, %7 : vector<8x129xf32>
    %188 = arith.addf %184, %187 : vector<8x129xf32>
    %c40 = arith.constant 40 : index
    %189 = memref.load %arg1[%c40] : memref<48xf32, #tpu.memory_space<smem>>
    %190 = vector.broadcast %189 : f32 to vector<8x129xf32>
    %191 = arith.mulf %190, %8 : vector<8x129xf32>
    %192 = arith.addf %188, %191 : vector<8x129xf32>
    %c41 = arith.constant 41 : index
    %193 = memref.load %arg1[%c41] : memref<48xf32, #tpu.memory_space<smem>>
    %194 = vector.broadcast %193 : f32 to vector<8x129xf32>
    %195 = arith.mulf %194, %9 : vector<8x129xf32>
    %196 = arith.addf %192, %195 : vector<8x129xf32>
    %c42 = arith.constant 42 : index
    %197 = memref.load %arg1[%c42] : memref<48xf32, #tpu.memory_space<smem>>
    %198 = vector.broadcast %197 : f32 to vector<8x129xf32>
    %199 = arith.mulf %198, %10 : vector<8x129xf32>
    %200 = arith.addf %196, %199 : vector<8x129xf32>
    %c43 = arith.constant 43 : index
    %201 = memref.load %arg1[%c43] : memref<48xf32, #tpu.memory_space<smem>>
    %202 = vector.broadcast %201 : f32 to vector<8x129xf32>
    %203 = arith.mulf %202, %11 : vector<8x129xf32>
    %204 = arith.addf %200, %203 : vector<8x129xf32>
    %c44 = arith.constant 44 : index
    %205 = memref.load %arg1[%c44] : memref<48xf32, #tpu.memory_space<smem>>
    %206 = vector.broadcast %205 : f32 to vector<8x129xf32>
    %207 = arith.mulf %206, %12 : vector<8x129xf32>
    %208 = arith.addf %204, %207 : vector<8x129xf32>
    %c45 = arith.constant 45 : index
    %209 = memref.load %arg1[%c45] : memref<48xf32, #tpu.memory_space<smem>>
    %210 = vector.broadcast %209 : f32 to vector<8x129xf32>
    %211 = arith.mulf %210, %13 : vector<8x129xf32>
    %212 = arith.addf %208, %211 : vector<8x129xf32>
    %c46 = arith.constant 46 : index
    %213 = memref.load %arg1[%c46] : memref<48xf32, #tpu.memory_space<smem>>
    %214 = vector.broadcast %213 : f32 to vector<8x129xf32>
    %215 = arith.mulf %214, %14 : vector<8x129xf32>
    %216 = arith.addf %212, %215 : vector<8x129xf32>
    %c47 = arith.constant 47 : index
    %217 = memref.load %arg1[%c47] : memref<48xf32, #tpu.memory_space<smem>>
    %218 = vector.broadcast %217 : f32 to vector<8x129xf32>
    %219 = arith.mulf %218, %15 : vector<8x129xf32>
    %220 = arith.addf %216, %219 : vector<8x129xf32>
    %c3_10 = arith.constant 3 : index
    %221 = memref.load %arg2[%c3_10] : memref<4xf32, #tpu.memory_space<smem>>
    %222 = vector.broadcast %221 : f32 to vector<8x129xf32>
    %223 = arith.addf %220, %222 : vector<8x129xf32>
    %224 = vector.extract_strided_slice %67 {offsets = [0, 0], sizes = [8, 128], strides = [1, 1]} : vector<8x129xf32> to vector<8x128xf32>
    %225 = vector.extract_strided_slice %119 {offsets = [0, 0], sizes = [8, 128], strides = [1, 1]} : vector<8x129xf32> to vector<8x128xf32>
    %226 = vector.extract_strided_slice %171 {offsets = [0, 0], sizes = [8, 128], strides = [1, 1]} : vector<8x129xf32> to vector<8x128xf32>
    %227 = vector.extract_strided_slice %223 {offsets = [0, 0], sizes = [8, 128], strides = [1, 1]} : vector<8x129xf32> to vector<8x128xf32>
    %cst_11 = arith.constant dense<0.000000e+00> : vector<8xf32>
    %228 = vector.multi_reduction <add>, %224, %cst_11 [1] : vector<8x128xf32> to vector<8xf32>
    %229 = vector.shape_cast %228 : vector<8xf32> to vector<8x1xf32>
    %cst_12 = arith.constant 1.280000e+02 : f32
    %230 = vector.broadcast %cst_12 : f32 to vector<8x1xf32>
    %231 = arith.divf %229, %230 : vector<8x1xf32>
    %cst_13 = arith.constant dense<0.000000e+00> : vector<1xf32>
    %232 = vector.multi_reduction <add>, %231, %cst_13 [0] : vector<8x1xf32> to vector<1xf32>
    %233 = vector.shape_cast %232 : vector<1xf32> to vector<1x1xf32>
    %cst_14 = arith.constant 8.000000e+00 : f32
    %234 = vector.broadcast %cst_14 : f32 to vector<1x1xf32>
    %235 = arith.divf %233, %234 : vector<1x1xf32>
    %236 = vector.broadcast %235 : vector<1x1xf32> to vector<8x128xf32>
    %237 = arith.subf %224, %236 : vector<8x128xf32>
    %238 = arith.mulf %237, %237 : vector<8x128xf32>
    %cst_15 = arith.constant dense<0.000000e+00> : vector<8xf32>
    %239 = vector.multi_reduction <add>, %238, %cst_15 [1] : vector<8x128xf32> to vector<8xf32>
    %240 = vector.shape_cast %239 : vector<8xf32> to vector<8x1xf32>
    %cst_16 = arith.constant 1.280000e+02 : f32
    %241 = vector.broadcast %cst_16 : f32 to vector<8x1xf32>
    %242 = arith.divf %240, %241 : vector<8x1xf32>
    %cst_17 = arith.constant dense<0.000000e+00> : vector<1xf32>
    %243 = vector.multi_reduction <add>, %242, %cst_17 [0] : vector<8x1xf32> to vector<1xf32>
    %244 = vector.shape_cast %243 : vector<1xf32> to vector<1x1xf32>
    %cst_18 = arith.constant 8.000000e+00 : f32
    %245 = vector.broadcast %cst_18 : f32 to vector<1x1xf32>
    %246 = arith.divf %244, %245 : vector<1x1xf32>
    %cst_19 = arith.constant 9.99999974E-6 : f32
    %247 = vector.broadcast %cst_19 : f32 to vector<1x1xf32>
    %248 = arith.addf %246, %247 : vector<1x1xf32>
    %249 = math.rsqrt %248 : vector<1x1xf32>
    %250 = vector.broadcast %249 : vector<1x1xf32> to vector<8x128xf32>
    %251 = arith.mulf %237, %250 : vector<8x128xf32>
    %c0_20 = arith.constant 0 : index
    %252 = memref.load %arg3[%c0_20] : memref<4xf32, #tpu.memory_space<smem>>
    %253 = vector.broadcast %252 : f32 to vector<8x128xf32>
    %254 = arith.mulf %251, %253 : vector<8x128xf32>
    %c0_21 = arith.constant 0 : index
    %255 = memref.load %arg4[%c0_21] : memref<4xf32, #tpu.memory_space<smem>>
    %256 = vector.broadcast %255 : f32 to vector<8x128xf32>
    %257 = arith.addf %254, %256 : vector<8x128xf32>
    %cst_22 = arith.constant 0.000000e+00 : f32
    %258 = vector.broadcast %cst_22 : f32 to vector<8x128xf32>
    %259 = arith.maximumf %257, %258 : vector<8x128xf32>
    %cst_23 = arith.constant dense<0.000000e+00> : vector<8xf32>
    %260 = vector.multi_reduction <add>, %225, %cst_23 [1] : vector<8x128xf32> to vector<8xf32>
    %261 = vector.shape_cast %260 : vector<8xf32> to vector<8x1xf32>
    %cst_24 = arith.constant 1.280000e+02 : f32
    %262 = vector.broadcast %cst_24 : f32 to vector<8x1xf32>
    %263 = arith.divf %261, %262 : vector<8x1xf32>
    %cst_25 = arith.constant dense<0.000000e+00> : vector<1xf32>
    %264 = vector.multi_reduction <add>, %263, %cst_25 [0] : vector<8x1xf32> to vector<1xf32>
    %265 = vector.shape_cast %264 : vector<1xf32> to vector<1x1xf32>
    %cst_26 = arith.constant 8.000000e+00 : f32
    %266 = vector.broadcast %cst_26 : f32 to vector<1x1xf32>
    %267 = arith.divf %265, %266 : vector<1x1xf32>
    %268 = vector.broadcast %267 : vector<1x1xf32> to vector<8x128xf32>
    %269 = arith.subf %225, %268 : vector<8x128xf32>
    %270 = arith.mulf %269, %269 : vector<8x128xf32>
    %cst_27 = arith.constant dense<0.000000e+00> : vector<8xf32>
    %271 = vector.multi_reduction <add>, %270, %cst_27 [1] : vector<8x128xf32> to vector<8xf32>
    %272 = vector.shape_cast %271 : vector<8xf32> to vector<8x1xf32>
    %cst_28 = arith.constant 1.280000e+02 : f32
    %273 = vector.broadcast %cst_28 : f32 to vector<8x1xf32>
    %274 = arith.divf %272, %273 : vector<8x1xf32>
    %cst_29 = arith.constant dense<0.000000e+00> : vector<1xf32>
    %275 = vector.multi_reduction <add>, %274, %cst_29 [0] : vector<8x1xf32> to vector<1xf32>
    %276 = vector.shape_cast %275 : vector<1xf32> to vector<1x1xf32>
    %cst_30 = arith.constant 8.000000e+00 : f32
    %277 = vector.broadcast %cst_30 : f32 to vector<1x1xf32>
    %278 = arith.divf %276, %277 : vector<1x1xf32>
    %cst_31 = arith.constant 9.99999974E-6 : f32
    %279 = vector.broadcast %cst_31 : f32 to vector<1x1xf32>
    %280 = arith.addf %278, %279 : vector<1x1xf32>
    %281 = math.rsqrt %280 : vector<1x1xf32>
    %282 = vector.broadcast %281 : vector<1x1xf32> to vector<8x128xf32>
    %283 = arith.mulf %269, %282 : vector<8x128xf32>
    %c1_32 = arith.constant 1 : index
    %284 = memref.load %arg3[%c1_32] : memref<4xf32, #tpu.memory_space<smem>>
    %285 = vector.broadcast %284 : f32 to vector<8x128xf32>
    %286 = arith.mulf %283, %285 : vector<8x128xf32>
    %c1_33 = arith.constant 1 : index
    %287 = memref.load %arg4[%c1_33] : memref<4xf32, #tpu.memory_space<smem>>
    %288 = vector.broadcast %287 : f32 to vector<8x128xf32>
    %289 = arith.addf %286, %288 : vector<8x128xf32>
    %cst_34 = arith.constant 0.000000e+00 : f32
    %290 = vector.broadcast %cst_34 : f32 to vector<8x128xf32>
    %291 = arith.maximumf %289, %290 : vector<8x128xf32>
    %cst_35 = arith.constant dense<0.000000e+00> : vector<8xf32>
    %292 = vector.multi_reduction <add>, %226, %cst_35 [1] : vector<8x128xf32> to vector<8xf32>
    %293 = vector.shape_cast %292 : vector<8xf32> to vector<8x1xf32>
    %cst_36 = arith.constant 1.280000e+02 : f32
    %294 = vector.broadcast %cst_36 : f32 to vector<8x1xf32>
    %295 = arith.divf %293, %294 : vector<8x1xf32>
    %cst_37 = arith.constant dense<0.000000e+00> : vector<1xf32>
    %296 = vector.multi_reduction <add>, %295, %cst_37 [0] : vector<8x1xf32> to vector<1xf32>
    %297 = vector.shape_cast %296 : vector<1xf32> to vector<1x1xf32>
    %cst_38 = arith.constant 8.000000e+00 : f32
    %298 = vector.broadcast %cst_38 : f32 to vector<1x1xf32>
    %299 = arith.divf %297, %298 : vector<1x1xf32>
    %300 = vector.broadcast %299 : vector<1x1xf32> to vector<8x128xf32>
    %301 = arith.subf %226, %300 : vector<8x128xf32>
    %302 = arith.mulf %301, %301 : vector<8x128xf32>
    %cst_39 = arith.constant dense<0.000000e+00> : vector<8xf32>
    %303 = vector.multi_reduction <add>, %302, %cst_39 [1] : vector<8x128xf32> to vector<8xf32>
    %304 = vector.shape_cast %303 : vector<8xf32> to vector<8x1xf32>
    %cst_40 = arith.constant 1.280000e+02 : f32
    %305 = vector.broadcast %cst_40 : f32 to vector<8x1xf32>
    %306 = arith.divf %304, %305 : vector<8x1xf32>
    %cst_41 = arith.constant dense<0.000000e+00> : vector<1xf32>
    %307 = vector.multi_reduction <add>, %306, %cst_41 [0] : vector<8x1xf32> to vector<1xf32>
    %308 = vector.shape_cast %307 : vector<1xf32> to vector<1x1xf32>
    %cst_42 = arith.constant 8.000000e+00 : f32
    %309 = vector.broadcast %cst_42 : f32 to vector<1x1xf32>
    %310 = arith.divf %308, %309 : vector<1x1xf32>
    %cst_43 = arith.constant 9.99999974E-6 : f32
    %311 = vector.broadcast %cst_43 : f32 to vector<1x1xf32>
    %312 = arith.addf %310, %311 : vector<1x1xf32>
    %313 = math.rsqrt %312 : vector<1x1xf32>
    %314 = vector.broadcast %313 : vector<1x1xf32> to vector<8x128xf32>
    %315 = arith.mulf %301, %314 : vector<8x128xf32>
    %c2_44 = arith.constant 2 : index
    %316 = memref.load %arg3[%c2_44] : memref<4xf32, #tpu.memory_space<smem>>
    %317 = vector.broadcast %316 : f32 to vector<8x128xf32>
    %318 = arith.mulf %315, %317 : vector<8x128xf32>
    %c2_45 = arith.constant 2 : index
    %319 = memref.load %arg4[%c2_45] : memref<4xf32, #tpu.memory_space<smem>>
    %320 = vector.broadcast %319 : f32 to vector<8x128xf32>
    %321 = arith.addf %318, %320 : vector<8x128xf32>
    %cst_46 = arith.constant 0.000000e+00 : f32
    %322 = vector.broadcast %cst_46 : f32 to vector<8x128xf32>
    %323 = arith.maximumf %321, %322 : vector<8x128xf32>
    %cst_47 = arith.constant dense<0.000000e+00> : vector<8xf32>
    %324 = vector.multi_reduction <add>, %227, %cst_47 [1] : vector<8x128xf32> to vector<8xf32>
    %325 = vector.shape_cast %324 : vector<8xf32> to vector<8x1xf32>
    %cst_48 = arith.constant 1.280000e+02 : f32
    %326 = vector.broadcast %cst_48 : f32 to vector<8x1xf32>
    %327 = arith.divf %325, %326 : vector<8x1xf32>
    %cst_49 = arith.constant dense<0.000000e+00> : vector<1xf32>
    %328 = vector.multi_reduction <add>, %327, %cst_49 [0] : vector<8x1xf32> to vector<1xf32>
    %329 = vector.shape_cast %328 : vector<1xf32> to vector<1x1xf32>
    %cst_50 = arith.constant 8.000000e+00 : f32
    %330 = vector.broadcast %cst_50 : f32 to vector<1x1xf32>
    %331 = arith.divf %329, %330 : vector<1x1xf32>
    %332 = vector.broadcast %331 : vector<1x1xf32> to vector<8x128xf32>
    %333 = arith.subf %227, %332 : vector<8x128xf32>
    %334 = arith.mulf %333, %333 : vector<8x128xf32>
    %cst_51 = arith.constant dense<0.000000e+00> : vector<8xf32>
    %335 = vector.multi_reduction <add>, %334, %cst_51 [1] : vector<8x128xf32> to vector<8xf32>
    %336 = vector.shape_cast %335 : vector<8xf32> to vector<8x1xf32>
    %cst_52 = arith.constant 1.280000e+02 : f32
    %337 = vector.broadcast %cst_52 : f32 to vector<8x1xf32>
    %338 = arith.divf %336, %337 : vector<8x1xf32>
    %cst_53 = arith.constant dense<0.000000e+00> : vector<1xf32>
    %339 = vector.multi_reduction <add>, %338, %cst_53 [0] : vector<8x1xf32> to vector<1xf32>
    %340 = vector.shape_cast %339 : vector<1xf32> to vector<1x1xf32>
    %cst_54 = arith.constant 8.000000e+00 : f32
    %341 = vector.broadcast %cst_54 : f32 to vector<1x1xf32>
    %342 = arith.divf %340, %341 : vector<1x1xf32>
    %cst_55 = arith.constant 9.99999974E-6 : f32
    %343 = vector.broadcast %cst_55 : f32 to vector<1x1xf32>
    %344 = arith.addf %342, %343 : vector<1x1xf32>
    %345 = math.rsqrt %344 : vector<1x1xf32>
    %346 = vector.broadcast %345 : vector<1x1xf32> to vector<8x128xf32>
    %347 = arith.mulf %333, %346 : vector<8x128xf32>
    %c3_56 = arith.constant 3 : index
    %348 = memref.load %arg3[%c3_56] : memref<4xf32, #tpu.memory_space<smem>>
    %349 = vector.broadcast %348 : f32 to vector<8x128xf32>
    %350 = arith.mulf %347, %349 : vector<8x128xf32>
    %c3_57 = arith.constant 3 : index
    %351 = memref.load %arg4[%c3_57] : memref<4xf32, #tpu.memory_space<smem>>
    %352 = vector.broadcast %351 : f32 to vector<8x128xf32>
    %353 = arith.addf %350, %352 : vector<8x128xf32>
    %cst_58 = arith.constant 0.000000e+00 : f32
    %354 = vector.broadcast %cst_58 : f32 to vector<8x128xf32>
    %355 = arith.maximumf %353, %354 : vector<8x128xf32>
    %cst_59 = arith.constant 0.000000e+00 : f32
    %356 = vector.broadcast %cst_59 : f32 to vector<8x1xf32>
    %357 = tpu.concatenate %356, %259, %356 in 1 : vector<8x1xf32>, vector<8x128xf32>, vector<8x1xf32> -> vector<8x130xf32>
    %cst_60 = arith.constant 0.000000e+00 : f32
    %358 = vector.broadcast %cst_60 : f32 to vector<8x1xf32>
    %359 = tpu.concatenate %358, %291, %358 in 1 : vector<8x1xf32>, vector<8x128xf32>, vector<8x1xf32> -> vector<8x130xf32>
    %cst_61 = arith.constant 0.000000e+00 : f32
    %360 = vector.broadcast %cst_61 : f32 to vector<8x1xf32>
    %361 = tpu.concatenate %360, %323, %360 in 1 : vector<8x1xf32>, vector<8x128xf32>, vector<8x1xf32> -> vector<8x130xf32>
    %cst_62 = arith.constant 0.000000e+00 : f32
    %362 = vector.broadcast %cst_62 : f32 to vector<8x1xf32>
    %363 = tpu.concatenate %362, %355, %362 in 1 : vector<8x1xf32>, vector<8x128xf32>, vector<8x1xf32> -> vector<8x130xf32>
    %364 = vector.extract_strided_slice %357 {offsets = [0, 0], sizes = [8, 129], strides = [1, 1]} : vector<8x130xf32> to vector<8x129xf32>
    %365 = vector.extract_strided_slice %357 {offsets = [0, 1], sizes = [8, 129], strides = [1, 1]} : vector<8x130xf32> to vector<8x129xf32>
    %366 = vector.extract_strided_slice %359 {offsets = [0, 0], sizes = [8, 129], strides = [1, 1]} : vector<8x130xf32> to vector<8x129xf32>
    %367 = vector.extract_strided_slice %359 {offsets = [0, 1], sizes = [8, 129], strides = [1, 1]} : vector<8x130xf32> to vector<8x129xf32>
    %368 = vector.extract_strided_slice %361 {offsets = [0, 0], sizes = [8, 129], strides = [1, 1]} : vector<8x130xf32> to vector<8x129xf32>
    %369 = vector.extract_strided_slice %361 {offsets = [0, 1], sizes = [8, 129], strides = [1, 1]} : vector<8x130xf32> to vector<8x129xf32>
    %370 = vector.extract_strided_slice %363 {offsets = [0, 0], sizes = [8, 129], strides = [1, 1]} : vector<8x130xf32> to vector<8x129xf32>
    %371 = vector.extract_strided_slice %363 {offsets = [0, 1], sizes = [8, 129], strides = [1, 1]} : vector<8x130xf32> to vector<8x129xf32>
    %cst_63 = arith.constant 0.000000e+00 : f32
    %372 = vector.broadcast %cst_63 : f32 to vector<8x129xf32>
    %c0_64 = arith.constant 0 : index
    %373 = memref.load %arg5[%c0_64] : memref<48xf32, #tpu.memory_space<smem>>
    %374 = vector.broadcast %373 : f32 to vector<8x129xf32>
    %375 = arith.mulf %374, %364 : vector<8x129xf32>
    %376 = arith.addf %372, %375 : vector<8x129xf32>
    %c1_65 = arith.constant 1 : index
    %377 = memref.load %arg5[%c1_65] : memref<48xf32, #tpu.memory_space<smem>>
    %378 = vector.broadcast %377 : f32 to vector<8x129xf32>
    %379 = arith.mulf %378, %365 : vector<8x129xf32>
    %380 = arith.addf %376, %379 : vector<8x129xf32>
    %c2_66 = arith.constant 2 : index
    %381 = memref.load %arg5[%c2_66] : memref<48xf32, #tpu.memory_space<smem>>
    %382 = vector.broadcast %381 : f32 to vector<8x129xf32>
    %383 = arith.mulf %382, %366 : vector<8x129xf32>
    %384 = arith.addf %380, %383 : vector<8x129xf32>
    %c3_67 = arith.constant 3 : index
    %385 = memref.load %arg5[%c3_67] : memref<48xf32, #tpu.memory_space<smem>>
    %386 = vector.broadcast %385 : f32 to vector<8x129xf32>
    %387 = arith.mulf %386, %367 : vector<8x129xf32>
    %388 = arith.addf %384, %387 : vector<8x129xf32>
    %c4_68 = arith.constant 4 : index
    %389 = memref.load %arg5[%c4_68] : memref<48xf32, #tpu.memory_space<smem>>
    %390 = vector.broadcast %389 : f32 to vector<8x129xf32>
    %391 = arith.mulf %390, %368 : vector<8x129xf32>
    %392 = arith.addf %388, %391 : vector<8x129xf32>
    %c5_69 = arith.constant 5 : index
    %393 = memref.load %arg5[%c5_69] : memref<48xf32, #tpu.memory_space<smem>>
    %394 = vector.broadcast %393 : f32 to vector<8x129xf32>
    %395 = arith.mulf %394, %369 : vector<8x129xf32>
    %396 = arith.addf %392, %395 : vector<8x129xf32>
    %c6_70 = arith.constant 6 : index
    %397 = memref.load %arg5[%c6_70] : memref<48xf32, #tpu.memory_space<smem>>
    %398 = vector.broadcast %397 : f32 to vector<8x129xf32>
    %399 = arith.mulf %398, %370 : vector<8x129xf32>
    %400 = arith.addf %396, %399 : vector<8x129xf32>
    %c7_71 = arith.constant 7 : index
    %401 = memref.load %arg5[%c7_71] : memref<48xf32, #tpu.memory_space<smem>>
    %402 = vector.broadcast %401 : f32 to vector<8x129xf32>
    %403 = arith.mulf %402, %371 : vector<8x129xf32>
    %404 = arith.addf %400, %403 : vector<8x129xf32>
    %cst_72 = arith.constant 0.000000e+00 : f32
    %405 = vector.broadcast %cst_72 : f32 to vector<8x129xf32>
    %c8_73 = arith.constant 8 : index
    %406 = memref.load %arg5[%c8_73] : memref<48xf32, #tpu.memory_space<smem>>
    %407 = vector.broadcast %406 : f32 to vector<8x129xf32>
    %408 = arith.mulf %407, %364 : vector<8x129xf32>
    %409 = arith.addf %405, %408 : vector<8x129xf32>
    %c9_74 = arith.constant 9 : index
    %410 = memref.load %arg5[%c9_74] : memref<48xf32, #tpu.memory_space<smem>>
    %411 = vector.broadcast %410 : f32 to vector<8x129xf32>
    %412 = arith.mulf %411, %365 : vector<8x129xf32>
    %413 = arith.addf %409, %412 : vector<8x129xf32>
    %c10_75 = arith.constant 10 : index
    %414 = memref.load %arg5[%c10_75] : memref<48xf32, #tpu.memory_space<smem>>
    %415 = vector.broadcast %414 : f32 to vector<8x129xf32>
    %416 = arith.mulf %415, %366 : vector<8x129xf32>
    %417 = arith.addf %413, %416 : vector<8x129xf32>
    %c11_76 = arith.constant 11 : index
    %418 = memref.load %arg5[%c11_76] : memref<48xf32, #tpu.memory_space<smem>>
    %419 = vector.broadcast %418 : f32 to vector<8x129xf32>
    %420 = arith.mulf %419, %367 : vector<8x129xf32>
    %421 = arith.addf %417, %420 : vector<8x129xf32>
    %c12_77 = arith.constant 12 : index
    %422 = memref.load %arg5[%c12_77] : memref<48xf32, #tpu.memory_space<smem>>
    %423 = vector.broadcast %422 : f32 to vector<8x129xf32>
    %424 = arith.mulf %423, %368 : vector<8x129xf32>
    %425 = arith.addf %421, %424 : vector<8x129xf32>
    %c13_78 = arith.constant 13 : index
    %426 = memref.load %arg5[%c13_78] : memref<48xf32, #tpu.memory_space<smem>>
    %427 = vector.broadcast %426 : f32 to vector<8x129xf32>
    %428 = arith.mulf %427, %369 : vector<8x129xf32>
    %429 = arith.addf %425, %428 : vector<8x129xf32>
    %c14_79 = arith.constant 14 : index
    %430 = memref.load %arg5[%c14_79] : memref<48xf32, #tpu.memory_space<smem>>
    %431 = vector.broadcast %430 : f32 to vector<8x129xf32>
    %432 = arith.mulf %431, %370 : vector<8x129xf32>
    %433 = arith.addf %429, %432 : vector<8x129xf32>
    %c15_80 = arith.constant 15 : index
    %434 = memref.load %arg5[%c15_80] : memref<48xf32, #tpu.memory_space<smem>>
    %435 = vector.broadcast %434 : f32 to vector<8x129xf32>
    %436 = arith.mulf %435, %371 : vector<8x129xf32>
    %437 = arith.addf %433, %436 : vector<8x129xf32>
    %cst_81 = arith.constant 0.000000e+00 : f32
    %438 = vector.broadcast %cst_81 : f32 to vector<8x129xf32>
    %c16_82 = arith.constant 16 : index
    %439 = memref.load %arg5[%c16_82] : memref<48xf32, #tpu.memory_space<smem>>
    %440 = vector.broadcast %439 : f32 to vector<8x129xf32>
    %441 = arith.mulf %440, %364 : vector<8x129xf32>
    %442 = arith.addf %438, %441 : vector<8x129xf32>
    %c17_83 = arith.constant 17 : index
    %443 = memref.load %arg5[%c17_83] : memref<48xf32, #tpu.memory_space<smem>>
    %444 = vector.broadcast %443 : f32 to vector<8x129xf32>
    %445 = arith.mulf %444, %365 : vector<8x129xf32>
    %446 = arith.addf %442, %445 : vector<8x129xf32>
    %c18_84 = arith.constant 18 : index
    %447 = memref.load %arg5[%c18_84] : memref<48xf32, #tpu.memory_space<smem>>
    %448 = vector.broadcast %447 : f32 to vector<8x129xf32>
    %449 = arith.mulf %448, %366 : vector<8x129xf32>
    %450 = arith.addf %446, %449 : vector<8x129xf32>
    %c19_85 = arith.constant 19 : index
    %451 = memref.load %arg5[%c19_85] : memref<48xf32, #tpu.memory_space<smem>>
    %452 = vector.broadcast %451 : f32 to vector<8x129xf32>
    %453 = arith.mulf %452, %367 : vector<8x129xf32>
    %454 = arith.addf %450, %453 : vector<8x129xf32>
    %c20_86 = arith.constant 20 : index
    %455 = memref.load %arg5[%c20_86] : memref<48xf32, #tpu.memory_space<smem>>
    %456 = vector.broadcast %455 : f32 to vector<8x129xf32>
    %457 = arith.mulf %456, %368 : vector<8x129xf32>
    %458 = arith.addf %454, %457 : vector<8x129xf32>
    %c21_87 = arith.constant 21 : index
    %459 = memref.load %arg5[%c21_87] : memref<48xf32, #tpu.memory_space<smem>>
    %460 = vector.broadcast %459 : f32 to vector<8x129xf32>
    %461 = arith.mulf %460, %369 : vector<8x129xf32>
    %462 = arith.addf %458, %461 : vector<8x129xf32>
    %c22_88 = arith.constant 22 : index
    %463 = memref.load %arg5[%c22_88] : memref<48xf32, #tpu.memory_space<smem>>
    %464 = vector.broadcast %463 : f32 to vector<8x129xf32>
    %465 = arith.mulf %464, %370 : vector<8x129xf32>
    %466 = arith.addf %462, %465 : vector<8x129xf32>
    %c23_89 = arith.constant 23 : index
    %467 = memref.load %arg5[%c23_89] : memref<48xf32, #tpu.memory_space<smem>>
    %468 = vector.broadcast %467 : f32 to vector<8x129xf32>
    %469 = arith.mulf %468, %371 : vector<8x129xf32>
    %470 = arith.addf %466, %469 : vector<8x129xf32>
    %cst_90 = arith.constant 0.000000e+00 : f32
    %471 = vector.broadcast %cst_90 : f32 to vector<8x129xf32>
    %c24_91 = arith.constant 24 : index
    %472 = memref.load %arg5[%c24_91] : memref<48xf32, #tpu.memory_space<smem>>
    %473 = vector.broadcast %472 : f32 to vector<8x129xf32>
    %474 = arith.mulf %473, %364 : vector<8x129xf32>
    %475 = arith.addf %471, %474 : vector<8x129xf32>
    %c25_92 = arith.constant 25 : index
    %476 = memref.load %arg5[%c25_92] : memref<48xf32, #tpu.memory_space<smem>>
    %477 = vector.broadcast %476 : f32 to vector<8x129xf32>
    %478 = arith.mulf %477, %365 : vector<8x129xf32>
    %479 = arith.addf %475, %478 : vector<8x129xf32>
    %c26_93 = arith.constant 26 : index
    %480 = memref.load %arg5[%c26_93] : memref<48xf32, #tpu.memory_space<smem>>
    %481 = vector.broadcast %480 : f32 to vector<8x129xf32>
    %482 = arith.mulf %481, %366 : vector<8x129xf32>
    %483 = arith.addf %479, %482 : vector<8x129xf32>
    %c27_94 = arith.constant 27 : index
    %484 = memref.load %arg5[%c27_94] : memref<48xf32, #tpu.memory_space<smem>>
    %485 = vector.broadcast %484 : f32 to vector<8x129xf32>
    %486 = arith.mulf %485, %367 : vector<8x129xf32>
    %487 = arith.addf %483, %486 : vector<8x129xf32>
    %c28_95 = arith.constant 28 : index
    %488 = memref.load %arg5[%c28_95] : memref<48xf32, #tpu.memory_space<smem>>
    %489 = vector.broadcast %488 : f32 to vector<8x129xf32>
    %490 = arith.mulf %489, %368 : vector<8x129xf32>
    %491 = arith.addf %487, %490 : vector<8x129xf32>
    %c29_96 = arith.constant 29 : index
    %492 = memref.load %arg5[%c29_96] : memref<48xf32, #tpu.memory_space<smem>>
    %493 = vector.broadcast %492 : f32 to vector<8x129xf32>
    %494 = arith.mulf %493, %369 : vector<8x129xf32>
    %495 = arith.addf %491, %494 : vector<8x129xf32>
    %c30_97 = arith.constant 30 : index
    %496 = memref.load %arg5[%c30_97] : memref<48xf32, #tpu.memory_space<smem>>
    %497 = vector.broadcast %496 : f32 to vector<8x129xf32>
    %498 = arith.mulf %497, %370 : vector<8x129xf32>
    %499 = arith.addf %495, %498 : vector<8x129xf32>
    %c31_98 = arith.constant 31 : index
    %500 = memref.load %arg5[%c31_98] : memref<48xf32, #tpu.memory_space<smem>>
    %501 = vector.broadcast %500 : f32 to vector<8x129xf32>
    %502 = arith.mulf %501, %371 : vector<8x129xf32>
    %503 = arith.addf %499, %502 : vector<8x129xf32>
    %cst_99 = arith.constant 0.000000e+00 : f32
    %504 = vector.broadcast %cst_99 : f32 to vector<8x129xf32>
    %c32_100 = arith.constant 32 : index
    %505 = memref.load %arg5[%c32_100] : memref<48xf32, #tpu.memory_space<smem>>
    %506 = vector.broadcast %505 : f32 to vector<8x129xf32>
    %507 = arith.mulf %506, %364 : vector<8x129xf32>
    %508 = arith.addf %504, %507 : vector<8x129xf32>
    %c33_101 = arith.constant 33 : index
    %509 = memref.load %arg5[%c33_101] : memref<48xf32, #tpu.memory_space<smem>>
    %510 = vector.broadcast %509 : f32 to vector<8x129xf32>
    %511 = arith.mulf %510, %365 : vector<8x129xf32>
    %512 = arith.addf %508, %511 : vector<8x129xf32>
    %c34_102 = arith.constant 34 : index
    %513 = memref.load %arg5[%c34_102] : memref<48xf32, #tpu.memory_space<smem>>
    %514 = vector.broadcast %513 : f32 to vector<8x129xf32>
    %515 = arith.mulf %514, %366 : vector<8x129xf32>
    %516 = arith.addf %512, %515 : vector<8x129xf32>
    %c35_103 = arith.constant 35 : index
    %517 = memref.load %arg5[%c35_103] : memref<48xf32, #tpu.memory_space<smem>>
    %518 = vector.broadcast %517 : f32 to vector<8x129xf32>
    %519 = arith.mulf %518, %367 : vector<8x129xf32>
    %520 = arith.addf %516, %519 : vector<8x129xf32>
    %c36_104 = arith.constant 36 : index
    %521 = memref.load %arg5[%c36_104] : memref<48xf32, #tpu.memory_space<smem>>
    %522 = vector.broadcast %521 : f32 to vector<8x129xf32>
    %523 = arith.mulf %522, %368 : vector<8x129xf32>
    %524 = arith.addf %520, %523 : vector<8x129xf32>
    %c37_105 = arith.constant 37 : index
    %525 = memref.load %arg5[%c37_105] : memref<48xf32, #tpu.memory_space<smem>>
    %526 = vector.broadcast %525 : f32 to vector<8x129xf32>
    %527 = arith.mulf %526, %369 : vector<8x129xf32>
    %528 = arith.addf %524, %527 : vector<8x129xf32>
    %c38_106 = arith.constant 38 : index
    %529 = memref.load %arg5[%c38_106] : memref<48xf32, #tpu.memory_space<smem>>
    %530 = vector.broadcast %529 : f32 to vector<8x129xf32>
    %531 = arith.mulf %530, %370 : vector<8x129xf32>
    %532 = arith.addf %528, %531 : vector<8x129xf32>
    %c39_107 = arith.constant 39 : index
    %533 = memref.load %arg5[%c39_107] : memref<48xf32, #tpu.memory_space<smem>>
    %534 = vector.broadcast %533 : f32 to vector<8x129xf32>
    %535 = arith.mulf %534, %371 : vector<8x129xf32>
    %536 = arith.addf %532, %535 : vector<8x129xf32>
    %cst_108 = arith.constant 0.000000e+00 : f32
    %537 = vector.broadcast %cst_108 : f32 to vector<8x129xf32>
    %c40_109 = arith.constant 40 : index
    %538 = memref.load %arg5[%c40_109] : memref<48xf32, #tpu.memory_space<smem>>
    %539 = vector.broadcast %538 : f32 to vector<8x129xf32>
    %540 = arith.mulf %539, %364 : vector<8x129xf32>
    %541 = arith.addf %537, %540 : vector<8x129xf32>
    %c41_110 = arith.constant 41 : index
    %542 = memref.load %arg5[%c41_110] : memref<48xf32, #tpu.memory_space<smem>>
    %543 = vector.broadcast %542 : f32 to vector<8x129xf32>
    %544 = arith.mulf %543, %365 : vector<8x129xf32>
    %545 = arith.addf %541, %544 : vector<8x129xf32>
    %c42_111 = arith.constant 42 : index
    %546 = memref.load %arg5[%c42_111] : memref<48xf32, #tpu.memory_space<smem>>
    %547 = vector.broadcast %546 : f32 to vector<8x129xf32>
    %548 = arith.mulf %547, %366 : vector<8x129xf32>
    %549 = arith.addf %545, %548 : vector<8x129xf32>
    %c43_112 = arith.constant 43 : index
    %550 = memref.load %arg5[%c43_112] : memref<48xf32, #tpu.memory_space<smem>>
    %551 = vector.broadcast %550 : f32 to vector<8x129xf32>
    %552 = arith.mulf %551, %367 : vector<8x129xf32>
    %553 = arith.addf %549, %552 : vector<8x129xf32>
    %c44_113 = arith.constant 44 : index
    %554 = memref.load %arg5[%c44_113] : memref<48xf32, #tpu.memory_space<smem>>
    %555 = vector.broadcast %554 : f32 to vector<8x129xf32>
    %556 = arith.mulf %555, %368 : vector<8x129xf32>
    %557 = arith.addf %553, %556 : vector<8x129xf32>
    %c45_114 = arith.constant 45 : index
    %558 = memref.load %arg5[%c45_114] : memref<48xf32, #tpu.memory_space<smem>>
    %559 = vector.broadcast %558 : f32 to vector<8x129xf32>
    %560 = arith.mulf %559, %369 : vector<8x129xf32>
    %561 = arith.addf %557, %560 : vector<8x129xf32>
    %c46_115 = arith.constant 46 : index
    %562 = memref.load %arg5[%c46_115] : memref<48xf32, #tpu.memory_space<smem>>
    %563 = vector.broadcast %562 : f32 to vector<8x129xf32>
    %564 = arith.mulf %563, %370 : vector<8x129xf32>
    %565 = arith.addf %561, %564 : vector<8x129xf32>
    %c47_116 = arith.constant 47 : index
    %566 = memref.load %arg5[%c47_116] : memref<48xf32, #tpu.memory_space<smem>>
    %567 = vector.broadcast %566 : f32 to vector<8x129xf32>
    %568 = arith.mulf %567, %371 : vector<8x129xf32>
    %569 = arith.addf %565, %568 : vector<8x129xf32>
    %570 = vector.extract_strided_slice %404 {offsets = [0, 0], sizes = [8, 128], strides = [1, 1]} : vector<8x129xf32> to vector<8x128xf32>
    %571 = vector.extract_strided_slice %437 {offsets = [0, 0], sizes = [8, 128], strides = [1, 1]} : vector<8x129xf32> to vector<8x128xf32>
    %572 = vector.extract_strided_slice %470 {offsets = [0, 0], sizes = [8, 128], strides = [1, 1]} : vector<8x129xf32> to vector<8x128xf32>
    %573 = vector.extract_strided_slice %503 {offsets = [0, 0], sizes = [8, 128], strides = [1, 1]} : vector<8x129xf32> to vector<8x128xf32>
    %574 = vector.extract_strided_slice %536 {offsets = [0, 0], sizes = [8, 128], strides = [1, 1]} : vector<8x129xf32> to vector<8x128xf32>
    %575 = vector.extract_strided_slice %569 {offsets = [0, 0], sizes = [8, 128], strides = [1, 1]} : vector<8x129xf32> to vector<8x128xf32>
    %cst_117 = arith.constant dense<0.000000e+00> : vector<8xf32>
    %576 = vector.multi_reduction <add>, %570, %cst_117 [1] : vector<8x128xf32> to vector<8xf32>
    %577 = vector.shape_cast %576 : vector<8xf32> to vector<8x1xf32>
    %cst_118 = arith.constant 1.280000e+02 : f32
    %578 = vector.broadcast %cst_118 : f32 to vector<8x1xf32>
    %579 = arith.divf %577, %578 : vector<8x1xf32>
    %cst_119 = arith.constant dense<0.000000e+00> : vector<1xf32>
    %580 = vector.multi_reduction <add>, %579, %cst_119 [0] : vector<8x1xf32> to vector<1xf32>
    %581 = vector.shape_cast %580 : vector<1xf32> to vector<1x1xf32>
    %cst_120 = arith.constant 8.000000e+00 : f32
    %582 = vector.broadcast %cst_120 : f32 to vector<1x1xf32>
    %583 = arith.divf %581, %582 : vector<1x1xf32>
    %584 = vector.broadcast %583 : vector<1x1xf32> to vector<8x128xf32>
    %585 = arith.subf %570, %584 : vector<8x128xf32>
    %586 = arith.mulf %585, %585 : vector<8x128xf32>
    %cst_121 = arith.constant dense<0.000000e+00> : vector<8xf32>
    %587 = vector.multi_reduction <add>, %586, %cst_121 [1] : vector<8x128xf32> to vector<8xf32>
    %588 = vector.shape_cast %587 : vector<8xf32> to vector<8x1xf32>
    %cst_122 = arith.constant 1.280000e+02 : f32
    %589 = vector.broadcast %cst_122 : f32 to vector<8x1xf32>
    %590 = arith.divf %588, %589 : vector<8x1xf32>
    %cst_123 = arith.constant dense<0.000000e+00> : vector<1xf32>
    %591 = vector.multi_reduction <add>, %590, %cst_123 [0] : vector<8x1xf32> to vector<1xf32>
    %592 = vector.shape_cast %591 : vector<1xf32> to vector<1x1xf32>
    %cst_124 = arith.constant 8.000000e+00 : f32
    %593 = vector.broadcast %cst_124 : f32 to vector<1x1xf32>
    %594 = arith.divf %592, %593 : vector<1x1xf32>
    %cst_125 = arith.constant 9.99999974E-6 : f32
    %595 = vector.broadcast %cst_125 : f32 to vector<1x1xf32>
    %596 = arith.addf %594, %595 : vector<1x1xf32>
    %597 = math.rsqrt %596 : vector<1x1xf32>
    %598 = vector.broadcast %597 : vector<1x1xf32> to vector<8x128xf32>
    %599 = arith.mulf %585, %598 : vector<8x128xf32>
    %c0_126 = arith.constant 0 : index
    %600 = memref.load %arg6[%c0_126] : memref<6xf32, #tpu.memory_space<smem>>
    %601 = vector.broadcast %600 : f32 to vector<8x128xf32>
    %602 = arith.mulf %599, %601 : vector<8x128xf32>
    %c0_127 = arith.constant 0 : index
    %603 = memref.load %arg7[%c0_127] : memref<6xf32, #tpu.memory_space<smem>>
    %604 = vector.broadcast %603 : f32 to vector<8x128xf32>
    %605 = arith.addf %602, %604 : vector<8x128xf32>
    %cst_128 = arith.constant 0.000000e+00 : f32
    %606 = vector.broadcast %cst_128 : f32 to vector<8x128xf32>
    %607 = arith.maximumf %605, %606 : vector<8x128xf32>
    %cst_129 = arith.constant dense<0.000000e+00> : vector<8xf32>
    %608 = vector.multi_reduction <add>, %571, %cst_129 [1] : vector<8x128xf32> to vector<8xf32>
    %609 = vector.shape_cast %608 : vector<8xf32> to vector<8x1xf32>
    %cst_130 = arith.constant 1.280000e+02 : f32
    %610 = vector.broadcast %cst_130 : f32 to vector<8x1xf32>
    %611 = arith.divf %609, %610 : vector<8x1xf32>
    %cst_131 = arith.constant dense<0.000000e+00> : vector<1xf32>
    %612 = vector.multi_reduction <add>, %611, %cst_131 [0] : vector<8x1xf32> to vector<1xf32>
    %613 = vector.shape_cast %612 : vector<1xf32> to vector<1x1xf32>
    %cst_132 = arith.constant 8.000000e+00 : f32
    %614 = vector.broadcast %cst_132 : f32 to vector<1x1xf32>
    %615 = arith.divf %613, %614 : vector<1x1xf32>
    %616 = vector.broadcast %615 : vector<1x1xf32> to vector<8x128xf32>
    %617 = arith.subf %571, %616 : vector<8x128xf32>
    %618 = arith.mulf %617, %617 : vector<8x128xf32>
    %cst_133 = arith.constant dense<0.000000e+00> : vector<8xf32>
    %619 = vector.multi_reduction <add>, %618, %cst_133 [1] : vector<8x128xf32> to vector<8xf32>
    %620 = vector.shape_cast %619 : vector<8xf32> to vector<8x1xf32>
    %cst_134 = arith.constant 1.280000e+02 : f32
    %621 = vector.broadcast %cst_134 : f32 to vector<8x1xf32>
    %622 = arith.divf %620, %621 : vector<8x1xf32>
    %cst_135 = arith.constant dense<0.000000e+00> : vector<1xf32>
    %623 = vector.multi_reduction <add>, %622, %cst_135 [0] : vector<8x1xf32> to vector<1xf32>
    %624 = vector.shape_cast %623 : vector<1xf32> to vector<1x1xf32>
    %cst_136 = arith.constant 8.000000e+00 : f32
    %625 = vector.broadcast %cst_136 : f32 to vector<1x1xf32>
    %626 = arith.divf %624, %625 : vector<1x1xf32>
    %cst_137 = arith.constant 9.99999974E-6 : f32
    %627 = vector.broadcast %cst_137 : f32 to vector<1x1xf32>
    %628 = arith.addf %626, %627 : vector<1x1xf32>
    %629 = math.rsqrt %628 : vector<1x1xf32>
    %630 = vector.broadcast %629 : vector<1x1xf32> to vector<8x128xf32>
    %631 = arith.mulf %617, %630 : vector<8x128xf32>
    %c1_138 = arith.constant 1 : index
    %632 = memref.load %arg6[%c1_138] : memref<6xf32, #tpu.memory_space<smem>>
    %633 = vector.broadcast %632 : f32 to vector<8x128xf32>
    %634 = arith.mulf %631, %633 : vector<8x128xf32>
    %c1_139 = arith.constant 1 : index
    %635 = memref.load %arg7[%c1_139] : memref<6xf32, #tpu.memory_space<smem>>
    %636 = vector.broadcast %635 : f32 to vector<8x128xf32>
    %637 = arith.addf %634, %636 : vector<8x128xf32>
    %cst_140 = arith.constant 0.000000e+00 : f32
    %638 = vector.broadcast %cst_140 : f32 to vector<8x128xf32>
    %639 = arith.maximumf %637, %638 : vector<8x128xf32>
    %cst_141 = arith.constant dense<0.000000e+00> : vector<8xf32>
    %640 = vector.multi_reduction <add>, %572, %cst_141 [1] : vector<8x128xf32> to vector<8xf32>
    %641 = vector.shape_cast %640 : vector<8xf32> to vector<8x1xf32>
    %cst_142 = arith.constant 1.280000e+02 : f32
    %642 = vector.broadcast %cst_142 : f32 to vector<8x1xf32>
    %643 = arith.divf %641, %642 : vector<8x1xf32>
    %cst_143 = arith.constant dense<0.000000e+00> : vector<1xf32>
    %644 = vector.multi_reduction <add>, %643, %cst_143 [0] : vector<8x1xf32> to vector<1xf32>
    %645 = vector.shape_cast %644 : vector<1xf32> to vector<1x1xf32>
    %cst_144 = arith.constant 8.000000e+00 : f32
    %646 = vector.broadcast %cst_144 : f32 to vector<1x1xf32>
    %647 = arith.divf %645, %646 : vector<1x1xf32>
    %648 = vector.broadcast %647 : vector<1x1xf32> to vector<8x128xf32>
    %649 = arith.subf %572, %648 : vector<8x128xf32>
    %650 = arith.mulf %649, %649 : vector<8x128xf32>
    %cst_145 = arith.constant dense<0.000000e+00> : vector<8xf32>
    %651 = vector.multi_reduction <add>, %650, %cst_145 [1] : vector<8x128xf32> to vector<8xf32>
    %652 = vector.shape_cast %651 : vector<8xf32> to vector<8x1xf32>
    %cst_146 = arith.constant 1.280000e+02 : f32
    %653 = vector.broadcast %cst_146 : f32 to vector<8x1xf32>
    %654 = arith.divf %652, %653 : vector<8x1xf32>
    %cst_147 = arith.constant dense<0.000000e+00> : vector<1xf32>
    %655 = vector.multi_reduction <add>, %654, %cst_147 [0] : vector<8x1xf32> to vector<1xf32>
    %656 = vector.shape_cast %655 : vector<1xf32> to vector<1x1xf32>
    %cst_148 = arith.constant 8.000000e+00 : f32
    %657 = vector.broadcast %cst_148 : f32 to vector<1x1xf32>
    %658 = arith.divf %656, %657 : vector<1x1xf32>
    %cst_149 = arith.constant 9.99999974E-6 : f32
    %659 = vector.broadcast %cst_149 : f32 to vector<1x1xf32>
    %660 = arith.addf %658, %659 : vector<1x1xf32>
    %661 = math.rsqrt %660 : vector<1x1xf32>
    %662 = vector.broadcast %661 : vector<1x1xf32> to vector<8x128xf32>
    %663 = arith.mulf %649, %662 : vector<8x128xf32>
    %c2_150 = arith.constant 2 : index
    %664 = memref.load %arg6[%c2_150] : memref<6xf32, #tpu.memory_space<smem>>
    %665 = vector.broadcast %664 : f32 to vector<8x128xf32>
    %666 = arith.mulf %663, %665 : vector<8x128xf32>
    %c2_151 = arith.constant 2 : index
    %667 = memref.load %arg7[%c2_151] : memref<6xf32, #tpu.memory_space<smem>>
    %668 = vector.broadcast %667 : f32 to vector<8x128xf32>
    %669 = arith.addf %666, %668 : vector<8x128xf32>
    %cst_152 = arith.constant 0.000000e+00 : f32
    %670 = vector.broadcast %cst_152 : f32 to vector<8x128xf32>
    %671 = arith.maximumf %669, %670 : vector<8x128xf32>
    %cst_153 = arith.constant dense<0.000000e+00> : vector<8xf32>
    %672 = vector.multi_reduction <add>, %573, %cst_153 [1] : vector<8x128xf32> to vector<8xf32>
    %673 = vector.shape_cast %672 : vector<8xf32> to vector<8x1xf32>
    %cst_154 = arith.constant 1.280000e+02 : f32
    %674 = vector.broadcast %cst_154 : f32 to vector<8x1xf32>
    %675 = arith.divf %673, %674 : vector<8x1xf32>
    %cst_155 = arith.constant dense<0.000000e+00> : vector<1xf32>
    %676 = vector.multi_reduction <add>, %675, %cst_155 [0] : vector<8x1xf32> to vector<1xf32>
    %677 = vector.shape_cast %676 : vector<1xf32> to vector<1x1xf32>
    %cst_156 = arith.constant 8.000000e+00 : f32
    %678 = vector.broadcast %cst_156 : f32 to vector<1x1xf32>
    %679 = arith.divf %677, %678 : vector<1x1xf32>
    %680 = vector.broadcast %679 : vector<1x1xf32> to vector<8x128xf32>
    %681 = arith.subf %573, %680 : vector<8x128xf32>
    %682 = arith.mulf %681, %681 : vector<8x128xf32>
    %cst_157 = arith.constant dense<0.000000e+00> : vector<8xf32>
    %683 = vector.multi_reduction <add>, %682, %cst_157 [1] : vector<8x128xf32> to vector<8xf32>
    %684 = vector.shape_cast %683 : vector<8xf32> to vector<8x1xf32>
    %cst_158 = arith.constant 1.280000e+02 : f32
    %685 = vector.broadcast %cst_158 : f32 to vector<8x1xf32>
    %686 = arith.divf %684, %685 : vector<8x1xf32>
    %cst_159 = arith.constant dense<0.000000e+00> : vector<1xf32>
    %687 = vector.multi_reduction <add>, %686, %cst_159 [0] : vector<8x1xf32> to vector<1xf32>
    %688 = vector.shape_cast %687 : vector<1xf32> to vector<1x1xf32>
    %cst_160 = arith.constant 8.000000e+00 : f32
    %689 = vector.broadcast %cst_160 : f32 to vector<1x1xf32>
    %690 = arith.divf %688, %689 : vector<1x1xf32>
    %cst_161 = arith.constant 9.99999974E-6 : f32
    %691 = vector.broadcast %cst_161 : f32 to vector<1x1xf32>
    %692 = arith.addf %690, %691 : vector<1x1xf32>
    %693 = math.rsqrt %692 : vector<1x1xf32>
    %694 = vector.broadcast %693 : vector<1x1xf32> to vector<8x128xf32>
    %695 = arith.mulf %681, %694 : vector<8x128xf32>
    %c3_162 = arith.constant 3 : index
    %696 = memref.load %arg6[%c3_162] : memref<6xf32, #tpu.memory_space<smem>>
    %697 = vector.broadcast %696 : f32 to vector<8x128xf32>
    %698 = arith.mulf %695, %697 : vector<8x128xf32>
    %c3_163 = arith.constant 3 : index
    %699 = memref.load %arg7[%c3_163] : memref<6xf32, #tpu.memory_space<smem>>
    %700 = vector.broadcast %699 : f32 to vector<8x128xf32>
    %701 = arith.addf %698, %700 : vector<8x128xf32>
    %cst_164 = arith.constant 0.000000e+00 : f32
    %702 = vector.broadcast %cst_164 : f32 to vector<8x128xf32>
    %703 = arith.maximumf %701, %702 : vector<8x128xf32>
    %cst_165 = arith.constant dense<0.000000e+00> : vector<8xf32>
    %704 = vector.multi_reduction <add>, %574, %cst_165 [1] : vector<8x128xf32> to vector<8xf32>
    %705 = vector.shape_cast %704 : vector<8xf32> to vector<8x1xf32>
    %cst_166 = arith.constant 1.280000e+02 : f32
    %706 = vector.broadcast %cst_166 : f32 to vector<8x1xf32>
    %707 = arith.divf %705, %706 : vector<8x1xf32>
    %cst_167 = arith.constant dense<0.000000e+00> : vector<1xf32>
    %708 = vector.multi_reduction <add>, %707, %cst_167 [0] : vector<8x1xf32> to vector<1xf32>
    %709 = vector.shape_cast %708 : vector<1xf32> to vector<1x1xf32>
    %cst_168 = arith.constant 8.000000e+00 : f32
    %710 = vector.broadcast %cst_168 : f32 to vector<1x1xf32>
    %711 = arith.divf %709, %710 : vector<1x1xf32>
    %712 = vector.broadcast %711 : vector<1x1xf32> to vector<8x128xf32>
    %713 = arith.subf %574, %712 : vector<8x128xf32>
    %714 = arith.mulf %713, %713 : vector<8x128xf32>
    %cst_169 = arith.constant dense<0.000000e+00> : vector<8xf32>
    %715 = vector.multi_reduction <add>, %714, %cst_169 [1] : vector<8x128xf32> to vector<8xf32>
    %716 = vector.shape_cast %715 : vector<8xf32> to vector<8x1xf32>
    %cst_170 = arith.constant 1.280000e+02 : f32
    %717 = vector.broadcast %cst_170 : f32 to vector<8x1xf32>
    %718 = arith.divf %716, %717 : vector<8x1xf32>
    %cst_171 = arith.constant dense<0.000000e+00> : vector<1xf32>
    %719 = vector.multi_reduction <add>, %718, %cst_171 [0] : vector<8x1xf32> to vector<1xf32>
    %720 = vector.shape_cast %719 : vector<1xf32> to vector<1x1xf32>
    %cst_172 = arith.constant 8.000000e+00 : f32
    %721 = vector.broadcast %cst_172 : f32 to vector<1x1xf32>
    %722 = arith.divf %720, %721 : vector<1x1xf32>
    %cst_173 = arith.constant 9.99999974E-6 : f32
    %723 = vector.broadcast %cst_173 : f32 to vector<1x1xf32>
    %724 = arith.addf %722, %723 : vector<1x1xf32>
    %725 = math.rsqrt %724 : vector<1x1xf32>
    %726 = vector.broadcast %725 : vector<1x1xf32> to vector<8x128xf32>
    %727 = arith.mulf %713, %726 : vector<8x128xf32>
    %c4_174 = arith.constant 4 : index
    %728 = memref.load %arg6[%c4_174] : memref<6xf32, #tpu.memory_space<smem>>
    %729 = vector.broadcast %728 : f32 to vector<8x128xf32>
    %730 = arith.mulf %727, %729 : vector<8x128xf32>
    %c4_175 = arith.constant 4 : index
    %731 = memref.load %arg7[%c4_175] : memref<6xf32, #tpu.memory_space<smem>>
    %732 = vector.broadcast %731 : f32 to vector<8x128xf32>
    %733 = arith.addf %730, %732 : vector<8x128xf32>
    %cst_176 = arith.constant 0.000000e+00 : f32
    %734 = vector.broadcast %cst_176 : f32 to vector<8x128xf32>
    %735 = arith.maximumf %733, %734 : vector<8x128xf32>
    %cst_177 = arith.constant dense<0.000000e+00> : vector<8xf32>
    %736 = vector.multi_reduction <add>, %575, %cst_177 [1] : vector<8x128xf32> to vector<8xf32>
    %737 = vector.shape_cast %736 : vector<8xf32> to vector<8x1xf32>
    %cst_178 = arith.constant 1.280000e+02 : f32
    %738 = vector.broadcast %cst_178 : f32 to vector<8x1xf32>
    %739 = arith.divf %737, %738 : vector<8x1xf32>
    %cst_179 = arith.constant dense<0.000000e+00> : vector<1xf32>
    %740 = vector.multi_reduction <add>, %739, %cst_179 [0] : vector<8x1xf32> to vector<1xf32>
    %741 = vector.shape_cast %740 : vector<1xf32> to vector<1x1xf32>
    %cst_180 = arith.constant 8.000000e+00 : f32
    %742 = vector.broadcast %cst_180 : f32 to vector<1x1xf32>
    %743 = arith.divf %741, %742 : vector<1x1xf32>
    %744 = vector.broadcast %743 : vector<1x1xf32> to vector<8x128xf32>
    %745 = arith.subf %575, %744 : vector<8x128xf32>
    %746 = arith.mulf %745, %745 : vector<8x128xf32>
    %cst_181 = arith.constant dense<0.000000e+00> : vector<8xf32>
    %747 = vector.multi_reduction <add>, %746, %cst_181 [1] : vector<8x128xf32> to vector<8xf32>
    %748 = vector.shape_cast %747 : vector<8xf32> to vector<8x1xf32>
    %cst_182 = arith.constant 1.280000e+02 : f32
    %749 = vector.broadcast %cst_182 : f32 to vector<8x1xf32>
    %750 = arith.divf %748, %749 : vector<8x1xf32>
    %cst_183 = arith.constant dense<0.000000e+00> : vector<1xf32>
    %751 = vector.multi_reduction <add>, %750, %cst_183 [0] : vector<8x1xf32> to vector<1xf32>
    %752 = vector.shape_cast %751 : vector<1xf32> to vector<1x1xf32>
    %cst_184 = arith.constant 8.000000e+00 : f32
    %753 = vector.broadcast %cst_184 : f32 to vector<1x1xf32>
    %754 = arith.divf %752, %753 : vector<1x1xf32>
    %cst_185 = arith.constant 9.99999974E-6 : f32
    %755 = vector.broadcast %cst_185 : f32 to vector<1x1xf32>
    %756 = arith.addf %754, %755 : vector<1x1xf32>
    %757 = math.rsqrt %756 : vector<1x1xf32>
    %758 = vector.broadcast %757 : vector<1x1xf32> to vector<8x128xf32>
    %759 = arith.mulf %745, %758 : vector<8x128xf32>
    %c5_186 = arith.constant 5 : index
    %760 = memref.load %arg6[%c5_186] : memref<6xf32, #tpu.memory_space<smem>>
    %761 = vector.broadcast %760 : f32 to vector<8x128xf32>
    %762 = arith.mulf %759, %761 : vector<8x128xf32>
    %c5_187 = arith.constant 5 : index
    %763 = memref.load %arg7[%c5_187] : memref<6xf32, #tpu.memory_space<smem>>
    %764 = vector.broadcast %763 : f32 to vector<8x128xf32>
    %765 = arith.addf %762, %764 : vector<8x128xf32>
    %cst_188 = arith.constant 0.000000e+00 : f32
    %766 = vector.broadcast %cst_188 : f32 to vector<8x128xf32>
    %767 = arith.maximumf %765, %766 : vector<8x128xf32>
    %cst_189 = arith.constant 0.000000e+00 : f32
    %768 = vector.broadcast %cst_189 : f32 to vector<8x1xf32>
    %769 = tpu.concatenate %768, %607, %768 in 1 : vector<8x1xf32>, vector<8x128xf32>, vector<8x1xf32> -> vector<8x130xf32>
    %cst_190 = arith.constant 0.000000e+00 : f32
    %770 = vector.broadcast %cst_190 : f32 to vector<8x1xf32>
    %771 = tpu.concatenate %770, %639, %770 in 1 : vector<8x1xf32>, vector<8x128xf32>, vector<8x1xf32> -> vector<8x130xf32>
    %cst_191 = arith.constant 0.000000e+00 : f32
    %772 = vector.broadcast %cst_191 : f32 to vector<8x1xf32>
    %773 = tpu.concatenate %772, %671, %772 in 1 : vector<8x1xf32>, vector<8x128xf32>, vector<8x1xf32> -> vector<8x130xf32>
    %cst_192 = arith.constant 0.000000e+00 : f32
    %774 = vector.broadcast %cst_192 : f32 to vector<8x1xf32>
    %775 = tpu.concatenate %774, %703, %774 in 1 : vector<8x1xf32>, vector<8x128xf32>, vector<8x1xf32> -> vector<8x130xf32>
    %cst_193 = arith.constant 0.000000e+00 : f32
    %776 = vector.broadcast %cst_193 : f32 to vector<8x1xf32>
    %777 = tpu.concatenate %776, %735, %776 in 1 : vector<8x1xf32>, vector<8x128xf32>, vector<8x1xf32> -> vector<8x130xf32>
    %cst_194 = arith.constant 0.000000e+00 : f32
    %778 = vector.broadcast %cst_194 : f32 to vector<8x1xf32>
    %779 = tpu.concatenate %778, %767, %778 in 1 : vector<8x1xf32>, vector<8x128xf32>, vector<8x1xf32> -> vector<8x130xf32>
    %780 = vector.extract_strided_slice %769 {offsets = [0, 0], sizes = [8, 129], strides = [1, 1]} : vector<8x130xf32> to vector<8x129xf32>
    %781 = vector.extract_strided_slice %769 {offsets = [0, 1], sizes = [8, 129], strides = [1, 1]} : vector<8x130xf32> to vector<8x129xf32>
    %782 = vector.extract_strided_slice %771 {offsets = [0, 0], sizes = [8, 129], strides = [1, 1]} : vector<8x130xf32> to vector<8x129xf32>
    %783 = vector.extract_strided_slice %771 {offsets = [0, 1], sizes = [8, 129], strides = [1, 1]} : vector<8x130xf32> to vector<8x129xf32>
    %784 = vector.extract_strided_slice %773 {offsets = [0, 0], sizes = [8, 129], strides = [1, 1]} : vector<8x130xf32> to vector<8x129xf32>
    %785 = vector.extract_strided_slice %773 {offsets = [0, 1], sizes = [8, 129], strides = [1, 1]} : vector<8x130xf32> to vector<8x129xf32>
    %786 = vector.extract_strided_slice %775 {offsets = [0, 0], sizes = [8, 129], strides = [1, 1]} : vector<8x130xf32> to vector<8x129xf32>
    %787 = vector.extract_strided_slice %775 {offsets = [0, 1], sizes = [8, 129], strides = [1, 1]} : vector<8x130xf32> to vector<8x129xf32>
    %788 = vector.extract_strided_slice %777 {offsets = [0, 0], sizes = [8, 129], strides = [1, 1]} : vector<8x130xf32> to vector<8x129xf32>
    %789 = vector.extract_strided_slice %777 {offsets = [0, 1], sizes = [8, 129], strides = [1, 1]} : vector<8x130xf32> to vector<8x129xf32>
    %790 = vector.extract_strided_slice %779 {offsets = [0, 0], sizes = [8, 129], strides = [1, 1]} : vector<8x130xf32> to vector<8x129xf32>
    %791 = vector.extract_strided_slice %779 {offsets = [0, 1], sizes = [8, 129], strides = [1, 1]} : vector<8x130xf32> to vector<8x129xf32>
    %cst_195 = arith.constant 0.000000e+00 : f32
    %792 = vector.broadcast %cst_195 : f32 to vector<8x129xf32>
    %c0_196 = arith.constant 0 : index
    %793 = memref.load %arg8[%c0_196] : memref<96xf32, #tpu.memory_space<smem>>
    %794 = vector.broadcast %793 : f32 to vector<8x129xf32>
    %795 = arith.mulf %794, %780 : vector<8x129xf32>
    %796 = arith.addf %792, %795 : vector<8x129xf32>
    %c1_197 = arith.constant 1 : index
    %797 = memref.load %arg8[%c1_197] : memref<96xf32, #tpu.memory_space<smem>>
    %798 = vector.broadcast %797 : f32 to vector<8x129xf32>
    %799 = arith.mulf %798, %781 : vector<8x129xf32>
    %800 = arith.addf %796, %799 : vector<8x129xf32>
    %c2_198 = arith.constant 2 : index
    %801 = memref.load %arg8[%c2_198] : memref<96xf32, #tpu.memory_space<smem>>
    %802 = vector.broadcast %801 : f32 to vector<8x129xf32>
    %803 = arith.mulf %802, %782 : vector<8x129xf32>
    %804 = arith.addf %800, %803 : vector<8x129xf32>
    %c3_199 = arith.constant 3 : index
    %805 = memref.load %arg8[%c3_199] : memref<96xf32, #tpu.memory_space<smem>>
    %806 = vector.broadcast %805 : f32 to vector<8x129xf32>
    %807 = arith.mulf %806, %783 : vector<8x129xf32>
    %808 = arith.addf %804, %807 : vector<8x129xf32>
    %c4_200 = arith.constant 4 : index
    %809 = memref.load %arg8[%c4_200] : memref<96xf32, #tpu.memory_space<smem>>
    %810 = vector.broadcast %809 : f32 to vector<8x129xf32>
    %811 = arith.mulf %810, %784 : vector<8x129xf32>
    %812 = arith.addf %808, %811 : vector<8x129xf32>
    %c5_201 = arith.constant 5 : index
    %813 = memref.load %arg8[%c5_201] : memref<96xf32, #tpu.memory_space<smem>>
    %814 = vector.broadcast %813 : f32 to vector<8x129xf32>
    %815 = arith.mulf %814, %785 : vector<8x129xf32>
    %816 = arith.addf %812, %815 : vector<8x129xf32>
    %c6_202 = arith.constant 6 : index
    %817 = memref.load %arg8[%c6_202] : memref<96xf32, #tpu.memory_space<smem>>
    %818 = vector.broadcast %817 : f32 to vector<8x129xf32>
    %819 = arith.mulf %818, %786 : vector<8x129xf32>
    %820 = arith.addf %816, %819 : vector<8x129xf32>
    %c7_203 = arith.constant 7 : index
    %821 = memref.load %arg8[%c7_203] : memref<96xf32, #tpu.memory_space<smem>>
    %822 = vector.broadcast %821 : f32 to vector<8x129xf32>
    %823 = arith.mulf %822, %787 : vector<8x129xf32>
    %824 = arith.addf %820, %823 : vector<8x129xf32>
    %c8_204 = arith.constant 8 : index
    %825 = memref.load %arg8[%c8_204] : memref<96xf32, #tpu.memory_space<smem>>
    %826 = vector.broadcast %825 : f32 to vector<8x129xf32>
    %827 = arith.mulf %826, %788 : vector<8x129xf32>
    %828 = arith.addf %824, %827 : vector<8x129xf32>
    %c9_205 = arith.constant 9 : index
    %829 = memref.load %arg8[%c9_205] : memref<96xf32, #tpu.memory_space<smem>>
    %830 = vector.broadcast %829 : f32 to vector<8x129xf32>
    %831 = arith.mulf %830, %789 : vector<8x129xf32>
    %832 = arith.addf %828, %831 : vector<8x129xf32>
    %c10_206 = arith.constant 10 : index
    %833 = memref.load %arg8[%c10_206] : memref<96xf32, #tpu.memory_space<smem>>
    %834 = vector.broadcast %833 : f32 to vector<8x129xf32>
    %835 = arith.mulf %834, %790 : vector<8x129xf32>
    %836 = arith.addf %832, %835 : vector<8x129xf32>
    %c11_207 = arith.constant 11 : index
    %837 = memref.load %arg8[%c11_207] : memref<96xf32, #tpu.memory_space<smem>>
    %838 = vector.broadcast %837 : f32 to vector<8x129xf32>
    %839 = arith.mulf %838, %791 : vector<8x129xf32>
    %840 = arith.addf %836, %839 : vector<8x129xf32>
    %cst_208 = arith.constant 0.000000e+00 : f32
    %841 = vector.broadcast %cst_208 : f32 to vector<8x129xf32>
    %c12_209 = arith.constant 12 : index
    %842 = memref.load %arg8[%c12_209] : memref<96xf32, #tpu.memory_space<smem>>
    %843 = vector.broadcast %842 : f32 to vector<8x129xf32>
    %844 = arith.mulf %843, %780 : vector<8x129xf32>
    %845 = arith.addf %841, %844 : vector<8x129xf32>
    %c13_210 = arith.constant 13 : index
    %846 = memref.load %arg8[%c13_210] : memref<96xf32, #tpu.memory_space<smem>>
    %847 = vector.broadcast %846 : f32 to vector<8x129xf32>
    %848 = arith.mulf %847, %781 : vector<8x129xf32>
    %849 = arith.addf %845, %848 : vector<8x129xf32>
    %c14_211 = arith.constant 14 : index
    %850 = memref.load %arg8[%c14_211] : memref<96xf32, #tpu.memory_space<smem>>
    %851 = vector.broadcast %850 : f32 to vector<8x129xf32>
    %852 = arith.mulf %851, %782 : vector<8x129xf32>
    %853 = arith.addf %849, %852 : vector<8x129xf32>
    %c15_212 = arith.constant 15 : index
    %854 = memref.load %arg8[%c15_212] : memref<96xf32, #tpu.memory_space<smem>>
    %855 = vector.broadcast %854 : f32 to vector<8x129xf32>
    %856 = arith.mulf %855, %783 : vector<8x129xf32>
    %857 = arith.addf %853, %856 : vector<8x129xf32>
    %c16_213 = arith.constant 16 : index
    %858 = memref.load %arg8[%c16_213] : memref<96xf32, #tpu.memory_space<smem>>
    %859 = vector.broadcast %858 : f32 to vector<8x129xf32>
    %860 = arith.mulf %859, %784 : vector<8x129xf32>
    %861 = arith.addf %857, %860 : vector<8x129xf32>
    %c17_214 = arith.constant 17 : index
    %862 = memref.load %arg8[%c17_214] : memref<96xf32, #tpu.memory_space<smem>>
    %863 = vector.broadcast %862 : f32 to vector<8x129xf32>
    %864 = arith.mulf %863, %785 : vector<8x129xf32>
    %865 = arith.addf %861, %864 : vector<8x129xf32>
    %c18_215 = arith.constant 18 : index
    %866 = memref.load %arg8[%c18_215] : memref<96xf32, #tpu.memory_space<smem>>
    %867 = vector.broadcast %866 : f32 to vector<8x129xf32>
    %868 = arith.mulf %867, %786 : vector<8x129xf32>
    %869 = arith.addf %865, %868 : vector<8x129xf32>
    %c19_216 = arith.constant 19 : index
    %870 = memref.load %arg8[%c19_216] : memref<96xf32, #tpu.memory_space<smem>>
    %871 = vector.broadcast %870 : f32 to vector<8x129xf32>
    %872 = arith.mulf %871, %787 : vector<8x129xf32>
    %873 = arith.addf %869, %872 : vector<8x129xf32>
    %c20_217 = arith.constant 20 : index
    %874 = memref.load %arg8[%c20_217] : memref<96xf32, #tpu.memory_space<smem>>
    %875 = vector.broadcast %874 : f32 to vector<8x129xf32>
    %876 = arith.mulf %875, %788 : vector<8x129xf32>
    %877 = arith.addf %873, %876 : vector<8x129xf32>
    %c21_218 = arith.constant 21 : index
    %878 = memref.load %arg8[%c21_218] : memref<96xf32, #tpu.memory_space<smem>>
    %879 = vector.broadcast %878 : f32 to vector<8x129xf32>
    %880 = arith.mulf %879, %789 : vector<8x129xf32>
    %881 = arith.addf %877, %880 : vector<8x129xf32>
    %c22_219 = arith.constant 22 : index
    %882 = memref.load %arg8[%c22_219] : memref<96xf32, #tpu.memory_space<smem>>
    %883 = vector.broadcast %882 : f32 to vector<8x129xf32>
    %884 = arith.mulf %883, %790 : vector<8x129xf32>
    %885 = arith.addf %881, %884 : vector<8x129xf32>
    %c23_220 = arith.constant 23 : index
    %886 = memref.load %arg8[%c23_220] : memref<96xf32, #tpu.memory_space<smem>>
    %887 = vector.broadcast %886 : f32 to vector<8x129xf32>
    %888 = arith.mulf %887, %791 : vector<8x129xf32>
    %889 = arith.addf %885, %888 : vector<8x129xf32>
    %cst_221 = arith.constant 0.000000e+00 : f32
    %890 = vector.broadcast %cst_221 : f32 to vector<8x129xf32>
    %c24_222 = arith.constant 24 : index
    %891 = memref.load %arg8[%c24_222] : memref<96xf32, #tpu.memory_space<smem>>
    %892 = vector.broadcast %891 : f32 to vector<8x129xf32>
    %893 = arith.mulf %892, %780 : vector<8x129xf32>
    %894 = arith.addf %890, %893 : vector<8x129xf32>
    %c25_223 = arith.constant 25 : index
    %895 = memref.load %arg8[%c25_223] : memref<96xf32, #tpu.memory_space<smem>>
    %896 = vector.broadcast %895 : f32 to vector<8x129xf32>
    %897 = arith.mulf %896, %781 : vector<8x129xf32>
    %898 = arith.addf %894, %897 : vector<8x129xf32>
    %c26_224 = arith.constant 26 : index
    %899 = memref.load %arg8[%c26_224] : memref<96xf32, #tpu.memory_space<smem>>
    %900 = vector.broadcast %899 : f32 to vector<8x129xf32>
    %901 = arith.mulf %900, %782 : vector<8x129xf32>
    %902 = arith.addf %898, %901 : vector<8x129xf32>
    %c27_225 = arith.constant 27 : index
    %903 = memref.load %arg8[%c27_225] : memref<96xf32, #tpu.memory_space<smem>>
    %904 = vector.broadcast %903 : f32 to vector<8x129xf32>
    %905 = arith.mulf %904, %783 : vector<8x129xf32>
    %906 = arith.addf %902, %905 : vector<8x129xf32>
    %c28_226 = arith.constant 28 : index
    %907 = memref.load %arg8[%c28_226] : memref<96xf32, #tpu.memory_space<smem>>
    %908 = vector.broadcast %907 : f32 to vector<8x129xf32>
    %909 = arith.mulf %908, %784 : vector<8x129xf32>
    %910 = arith.addf %906, %909 : vector<8x129xf32>
    %c29_227 = arith.constant 29 : index
    %911 = memref.load %arg8[%c29_227] : memref<96xf32, #tpu.memory_space<smem>>
    %912 = vector.broadcast %911 : f32 to vector<8x129xf32>
    %913 = arith.mulf %912, %785 : vector<8x129xf32>
    %914 = arith.addf %910, %913 : vector<8x129xf32>
    %c30_228 = arith.constant 30 : index
    %915 = memref.load %arg8[%c30_228] : memref<96xf32, #tpu.memory_space<smem>>
    %916 = vector.broadcast %915 : f32 to vector<8x129xf32>
    %917 = arith.mulf %916, %786 : vector<8x129xf32>
    %918 = arith.addf %914, %917 : vector<8x129xf32>
    %c31_229 = arith.constant 31 : index
    %919 = memref.load %arg8[%c31_229] : memref<96xf32, #tpu.memory_space<smem>>
    %920 = vector.broadcast %919 : f32 to vector<8x129xf32>
    %921 = arith.mulf %920, %787 : vector<8x129xf32>
    %922 = arith.addf %918, %921 : vector<8x129xf32>
    %c32_230 = arith.constant 32 : index
    %923 = memref.load %arg8[%c32_230] : memref<96xf32, #tpu.memory_space<smem>>
    %924 = vector.broadcast %923 : f32 to vector<8x129xf32>
    %925 = arith.mulf %924, %788 : vector<8x129xf32>
    %926 = arith.addf %922, %925 : vector<8x129xf32>
    %c33_231 = arith.constant 33 : index
    %927 = memref.load %arg8[%c33_231] : memref<96xf32, #tpu.memory_space<smem>>
    %928 = vector.broadcast %927 : f32 to vector<8x129xf32>
    %929 = arith.mulf %928, %789 : vector<8x129xf32>
    %930 = arith.addf %926, %929 : vector<8x129xf32>
    %c34_232 = arith.constant 34 : index
    %931 = memref.load %arg8[%c34_232] : memref<96xf32, #tpu.memory_space<smem>>
    %932 = vector.broadcast %931 : f32 to vector<8x129xf32>
    %933 = arith.mulf %932, %790 : vector<8x129xf32>
    %934 = arith.addf %930, %933 : vector<8x129xf32>
    %c35_233 = arith.constant 35 : index
    %935 = memref.load %arg8[%c35_233] : memref<96xf32, #tpu.memory_space<smem>>
    %936 = vector.broadcast %935 : f32 to vector<8x129xf32>
    %937 = arith.mulf %936, %791 : vector<8x129xf32>
    %938 = arith.addf %934, %937 : vector<8x129xf32>
    %cst_234 = arith.constant 0.000000e+00 : f32
    %939 = vector.broadcast %cst_234 : f32 to vector<8x129xf32>
    %c36_235 = arith.constant 36 : index
    %940 = memref.load %arg8[%c36_235] : memref<96xf32, #tpu.memory_space<smem>>
    %941 = vector.broadcast %940 : f32 to vector<8x129xf32>
    %942 = arith.mulf %941, %780 : vector<8x129xf32>
    %943 = arith.addf %939, %942 : vector<8x129xf32>
    %c37_236 = arith.constant 37 : index
    %944 = memref.load %arg8[%c37_236] : memref<96xf32, #tpu.memory_space<smem>>
    %945 = vector.broadcast %944 : f32 to vector<8x129xf32>
    %946 = arith.mulf %945, %781 : vector<8x129xf32>
    %947 = arith.addf %943, %946 : vector<8x129xf32>
    %c38_237 = arith.constant 38 : index
    %948 = memref.load %arg8[%c38_237] : memref<96xf32, #tpu.memory_space<smem>>
    %949 = vector.broadcast %948 : f32 to vector<8x129xf32>
    %950 = arith.mulf %949, %782 : vector<8x129xf32>
    %951 = arith.addf %947, %950 : vector<8x129xf32>
    %c39_238 = arith.constant 39 : index
    %952 = memref.load %arg8[%c39_238] : memref<96xf32, #tpu.memory_space<smem>>
    %953 = vector.broadcast %952 : f32 to vector<8x129xf32>
    %954 = arith.mulf %953, %783 : vector<8x129xf32>
    %955 = arith.addf %951, %954 : vector<8x129xf32>
    %c40_239 = arith.constant 40 : index
    %956 = memref.load %arg8[%c40_239] : memref<96xf32, #tpu.memory_space<smem>>
    %957 = vector.broadcast %956 : f32 to vector<8x129xf32>
    %958 = arith.mulf %957, %784 : vector<8x129xf32>
    %959 = arith.addf %955, %958 : vector<8x129xf32>
    %c41_240 = arith.constant 41 : index
    %960 = memref.load %arg8[%c41_240] : memref<96xf32, #tpu.memory_space<smem>>
    %961 = vector.broadcast %960 : f32 to vector<8x129xf32>
    %962 = arith.mulf %961, %785 : vector<8x129xf32>
    %963 = arith.addf %959, %962 : vector<8x129xf32>
    %c42_241 = arith.constant 42 : index
    %964 = memref.load %arg8[%c42_241] : memref<96xf32, #tpu.memory_space<smem>>
    %965 = vector.broadcast %964 : f32 to vector<8x129xf32>
    %966 = arith.mulf %965, %786 : vector<8x129xf32>
    %967 = arith.addf %963, %966 : vector<8x129xf32>
    %c43_242 = arith.constant 43 : index
    %968 = memref.load %arg8[%c43_242] : memref<96xf32, #tpu.memory_space<smem>>
    %969 = vector.broadcast %968 : f32 to vector<8x129xf32>
    %970 = arith.mulf %969, %787 : vector<8x129xf32>
    %971 = arith.addf %967, %970 : vector<8x129xf32>
    %c44_243 = arith.constant 44 : index
    %972 = memref.load %arg8[%c44_243] : memref<96xf32, #tpu.memory_space<smem>>
    %973 = vector.broadcast %972 : f32 to vector<8x129xf32>
    %974 = arith.mulf %973, %788 : vector<8x129xf32>
    %975 = arith.addf %971, %974 : vector<8x129xf32>
    %c45_244 = arith.constant 45 : index
    %976 = memref.load %arg8[%c45_244] : memref<96xf32, #tpu.memory_space<smem>>
    %977 = vector.broadcast %976 : f32 to vector<8x129xf32>
    %978 = arith.mulf %977, %789 : vector<8x129xf32>
    %979 = arith.addf %975, %978 : vector<8x129xf32>
    %c46_245 = arith.constant 46 : index
    %980 = memref.load %arg8[%c46_245] : memref<96xf32, #tpu.memory_space<smem>>
    %981 = vector.broadcast %980 : f32 to vector<8x129xf32>
    %982 = arith.mulf %981, %790 : vector<8x129xf32>
    %983 = arith.addf %979, %982 : vector<8x129xf32>
    %c47_246 = arith.constant 47 : index
    %984 = memref.load %arg8[%c47_246] : memref<96xf32, #tpu.memory_space<smem>>
    %985 = vector.broadcast %984 : f32 to vector<8x129xf32>
    %986 = arith.mulf %985, %791 : vector<8x129xf32>
    %987 = arith.addf %983, %986 : vector<8x129xf32>
    %cst_247 = arith.constant 0.000000e+00 : f32
    %988 = vector.broadcast %cst_247 : f32 to vector<8x129xf32>
    %c48 = arith.constant 48 : index
    %989 = memref.load %arg8[%c48] : memref<96xf32, #tpu.memory_space<smem>>
    %990 = vector.broadcast %989 : f32 to vector<8x129xf32>
    %991 = arith.mulf %990, %780 : vector<8x129xf32>
    %992 = arith.addf %988, %991 : vector<8x129xf32>
    %c49 = arith.constant 49 : index
    %993 = memref.load %arg8[%c49] : memref<96xf32, #tpu.memory_space<smem>>
    %994 = vector.broadcast %993 : f32 to vector<8x129xf32>
    %995 = arith.mulf %994, %781 : vector<8x129xf32>
    %996 = arith.addf %992, %995 : vector<8x129xf32>
    %c50 = arith.constant 50 : index
    %997 = memref.load %arg8[%c50] : memref<96xf32, #tpu.memory_space<smem>>
    %998 = vector.broadcast %997 : f32 to vector<8x129xf32>
    %999 = arith.mulf %998, %782 : vector<8x129xf32>
    %1000 = arith.addf %996, %999 : vector<8x129xf32>
    %c51 = arith.constant 51 : index
    %1001 = memref.load %arg8[%c51] : memref<96xf32, #tpu.memory_space<smem>>
    %1002 = vector.broadcast %1001 : f32 to vector<8x129xf32>
    %1003 = arith.mulf %1002, %783 : vector<8x129xf32>
    %1004 = arith.addf %1000, %1003 : vector<8x129xf32>
    %c52 = arith.constant 52 : index
    %1005 = memref.load %arg8[%c52] : memref<96xf32, #tpu.memory_space<smem>>
    %1006 = vector.broadcast %1005 : f32 to vector<8x129xf32>
    %1007 = arith.mulf %1006, %784 : vector<8x129xf32>
    %1008 = arith.addf %1004, %1007 : vector<8x129xf32>
    %c53 = arith.constant 53 : index
    %1009 = memref.load %arg8[%c53] : memref<96xf32, #tpu.memory_space<smem>>
    %1010 = vector.broadcast %1009 : f32 to vector<8x129xf32>
    %1011 = arith.mulf %1010, %785 : vector<8x129xf32>
    %1012 = arith.addf %1008, %1011 : vector<8x129xf32>
    %c54 = arith.constant 54 : index
    %1013 = memref.load %arg8[%c54] : memref<96xf32, #tpu.memory_space<smem>>
    %1014 = vector.broadcast %1013 : f32 to vector<8x129xf32>
    %1015 = arith.mulf %1014, %786 : vector<8x129xf32>
    %1016 = arith.addf %1012, %1015 : vector<8x129xf32>
    %c55 = arith.constant 55 : index
    %1017 = memref.load %arg8[%c55] : memref<96xf32, #tpu.memory_space<smem>>
    %1018 = vector.broadcast %1017 : f32 to vector<8x129xf32>
    %1019 = arith.mulf %1018, %787 : vector<8x129xf32>
    %1020 = arith.addf %1016, %1019 : vector<8x129xf32>
    %c56 = arith.constant 56 : index
    %1021 = memref.load %arg8[%c56] : memref<96xf32, #tpu.memory_space<smem>>
    %1022 = vector.broadcast %1021 : f32 to vector<8x129xf32>
    %1023 = arith.mulf %1022, %788 : vector<8x129xf32>
    %1024 = arith.addf %1020, %1023 : vector<8x129xf32>
    %c57 = arith.constant 57 : index
    %1025 = memref.load %arg8[%c57] : memref<96xf32, #tpu.memory_space<smem>>
    %1026 = vector.broadcast %1025 : f32 to vector<8x129xf32>
    %1027 = arith.mulf %1026, %789 : vector<8x129xf32>
    %1028 = arith.addf %1024, %1027 : vector<8x129xf32>
    %c58 = arith.constant 58 : index
    %1029 = memref.load %arg8[%c58] : memref<96xf32, #tpu.memory_space<smem>>
    %1030 = vector.broadcast %1029 : f32 to vector<8x129xf32>
    %1031 = arith.mulf %1030, %790 : vector<8x129xf32>
    %1032 = arith.addf %1028, %1031 : vector<8x129xf32>
    %c59 = arith.constant 59 : index
    %1033 = memref.load %arg8[%c59] : memref<96xf32, #tpu.memory_space<smem>>
    %1034 = vector.broadcast %1033 : f32 to vector<8x129xf32>
    %1035 = arith.mulf %1034, %791 : vector<8x129xf32>
    %1036 = arith.addf %1032, %1035 : vector<8x129xf32>
    %cst_248 = arith.constant 0.000000e+00 : f32
    %1037 = vector.broadcast %cst_248 : f32 to vector<8x129xf32>
    %c60 = arith.constant 60 : index
    %1038 = memref.load %arg8[%c60] : memref<96xf32, #tpu.memory_space<smem>>
    %1039 = vector.broadcast %1038 : f32 to vector<8x129xf32>
    %1040 = arith.mulf %1039, %780 : vector<8x129xf32>
    %1041 = arith.addf %1037, %1040 : vector<8x129xf32>
    %c61 = arith.constant 61 : index
    %1042 = memref.load %arg8[%c61] : memref<96xf32, #tpu.memory_space<smem>>
    %1043 = vector.broadcast %1042 : f32 to vector<8x129xf32>
    %1044 = arith.mulf %1043, %781 : vector<8x129xf32>
    %1045 = arith.addf %1041, %1044 : vector<8x129xf32>
    %c62 = arith.constant 62 : index
    %1046 = memref.load %arg8[%c62] : memref<96xf32, #tpu.memory_space<smem>>
    %1047 = vector.broadcast %1046 : f32 to vector<8x129xf32>
    %1048 = arith.mulf %1047, %782 : vector<8x129xf32>
    %1049 = arith.addf %1045, %1048 : vector<8x129xf32>
    %c63 = arith.constant 63 : index
    %1050 = memref.load %arg8[%c63] : memref<96xf32, #tpu.memory_space<smem>>
    %1051 = vector.broadcast %1050 : f32 to vector<8x129xf32>
    %1052 = arith.mulf %1051, %783 : vector<8x129xf32>
    %1053 = arith.addf %1049, %1052 : vector<8x129xf32>
    %c64 = arith.constant 64 : index
    %1054 = memref.load %arg8[%c64] : memref<96xf32, #tpu.memory_space<smem>>
    %1055 = vector.broadcast %1054 : f32 to vector<8x129xf32>
    %1056 = arith.mulf %1055, %784 : vector<8x129xf32>
    %1057 = arith.addf %1053, %1056 : vector<8x129xf32>
    %c65 = arith.constant 65 : index
    %1058 = memref.load %arg8[%c65] : memref<96xf32, #tpu.memory_space<smem>>
    %1059 = vector.broadcast %1058 : f32 to vector<8x129xf32>
    %1060 = arith.mulf %1059, %785 : vector<8x129xf32>
    %1061 = arith.addf %1057, %1060 : vector<8x129xf32>
    %c66 = arith.constant 66 : index
    %1062 = memref.load %arg8[%c66] : memref<96xf32, #tpu.memory_space<smem>>
    %1063 = vector.broadcast %1062 : f32 to vector<8x129xf32>
    %1064 = arith.mulf %1063, %786 : vector<8x129xf32>
    %1065 = arith.addf %1061, %1064 : vector<8x129xf32>
    %c67 = arith.constant 67 : index
    %1066 = memref.load %arg8[%c67] : memref<96xf32, #tpu.memory_space<smem>>
    %1067 = vector.broadcast %1066 : f32 to vector<8x129xf32>
    %1068 = arith.mulf %1067, %787 : vector<8x129xf32>
    %1069 = arith.addf %1065, %1068 : vector<8x129xf32>
    %c68 = arith.constant 68 : index
    %1070 = memref.load %arg8[%c68] : memref<96xf32, #tpu.memory_space<smem>>
    %1071 = vector.broadcast %1070 : f32 to vector<8x129xf32>
    %1072 = arith.mulf %1071, %788 : vector<8x129xf32>
    %1073 = arith.addf %1069, %1072 : vector<8x129xf32>
    %c69 = arith.constant 69 : index
    %1074 = memref.load %arg8[%c69] : memref<96xf32, #tpu.memory_space<smem>>
    %1075 = vector.broadcast %1074 : f32 to vector<8x129xf32>
    %1076 = arith.mulf %1075, %789 : vector<8x129xf32>
    %1077 = arith.addf %1073, %1076 : vector<8x129xf32>
    %c70 = arith.constant 70 : index
    %1078 = memref.load %arg8[%c70] : memref<96xf32, #tpu.memory_space<smem>>
    %1079 = vector.broadcast %1078 : f32 to vector<8x129xf32>
    %1080 = arith.mulf %1079, %790 : vector<8x129xf32>
    %1081 = arith.addf %1077, %1080 : vector<8x129xf32>
    %c71 = arith.constant 71 : index
    %1082 = memref.load %arg8[%c71] : memref<96xf32, #tpu.memory_space<smem>>
    %1083 = vector.broadcast %1082 : f32 to vector<8x129xf32>
    %1084 = arith.mulf %1083, %791 : vector<8x129xf32>
    %1085 = arith.addf %1081, %1084 : vector<8x129xf32>
    %cst_249 = arith.constant 0.000000e+00 : f32
    %1086 = vector.broadcast %cst_249 : f32 to vector<8x129xf32>
    %c72 = arith.constant 72 : index
    %1087 = memref.load %arg8[%c72] : memref<96xf32, #tpu.memory_space<smem>>
    %1088 = vector.broadcast %1087 : f32 to vector<8x129xf32>
    %1089 = arith.mulf %1088, %780 : vector<8x129xf32>
    %1090 = arith.addf %1086, %1089 : vector<8x129xf32>
    %c73 = arith.constant 73 : index
    %1091 = memref.load %arg8[%c73] : memref<96xf32, #tpu.memory_space<smem>>
    %1092 = vector.broadcast %1091 : f32 to vector<8x129xf32>
    %1093 = arith.mulf %1092, %781 : vector<8x129xf32>
    %1094 = arith.addf %1090, %1093 : vector<8x129xf32>
    %c74 = arith.constant 74 : index
    %1095 = memref.load %arg8[%c74] : memref<96xf32, #tpu.memory_space<smem>>
    %1096 = vector.broadcast %1095 : f32 to vector<8x129xf32>
    %1097 = arith.mulf %1096, %782 : vector<8x129xf32>
    %1098 = arith.addf %1094, %1097 : vector<8x129xf32>
    %c75 = arith.constant 75 : index
    %1099 = memref.load %arg8[%c75] : memref<96xf32, #tpu.memory_space<smem>>
    %1100 = vector.broadcast %1099 : f32 to vector<8x129xf32>
    %1101 = arith.mulf %1100, %783 : vector<8x129xf32>
    %1102 = arith.addf %1098, %1101 : vector<8x129xf32>
    %c76 = arith.constant 76 : index
    %1103 = memref.load %arg8[%c76] : memref<96xf32, #tpu.memory_space<smem>>
    %1104 = vector.broadcast %1103 : f32 to vector<8x129xf32>
    %1105 = arith.mulf %1104, %784 : vector<8x129xf32>
    %1106 = arith.addf %1102, %1105 : vector<8x129xf32>
    %c77 = arith.constant 77 : index
    %1107 = memref.load %arg8[%c77] : memref<96xf32, #tpu.memory_space<smem>>
    %1108 = vector.broadcast %1107 : f32 to vector<8x129xf32>
    %1109 = arith.mulf %1108, %785 : vector<8x129xf32>
    %1110 = arith.addf %1106, %1109 : vector<8x129xf32>
    %c78 = arith.constant 78 : index
    %1111 = memref.load %arg8[%c78] : memref<96xf32, #tpu.memory_space<smem>>
    %1112 = vector.broadcast %1111 : f32 to vector<8x129xf32>
    %1113 = arith.mulf %1112, %786 : vector<8x129xf32>
    %1114 = arith.addf %1110, %1113 : vector<8x129xf32>
    %c79 = arith.constant 79 : index
    %1115 = memref.load %arg8[%c79] : memref<96xf32, #tpu.memory_space<smem>>
    %1116 = vector.broadcast %1115 : f32 to vector<8x129xf32>
    %1117 = arith.mulf %1116, %787 : vector<8x129xf32>
    %1118 = arith.addf %1114, %1117 : vector<8x129xf32>
    %c80 = arith.constant 80 : index
    %1119 = memref.load %arg8[%c80] : memref<96xf32, #tpu.memory_space<smem>>
    %1120 = vector.broadcast %1119 : f32 to vector<8x129xf32>
    %1121 = arith.mulf %1120, %788 : vector<8x129xf32>
    %1122 = arith.addf %1118, %1121 : vector<8x129xf32>
    %c81 = arith.constant 81 : index
    %1123 = memref.load %arg8[%c81] : memref<96xf32, #tpu.memory_space<smem>>
    %1124 = vector.broadcast %1123 : f32 to vector<8x129xf32>
    %1125 = arith.mulf %1124, %789 : vector<8x129xf32>
    %1126 = arith.addf %1122, %1125 : vector<8x129xf32>
    %c82 = arith.constant 82 : index
    %1127 = memref.load %arg8[%c82] : memref<96xf32, #tpu.memory_space<smem>>
    %1128 = vector.broadcast %1127 : f32 to vector<8x129xf32>
    %1129 = arith.mulf %1128, %790 : vector<8x129xf32>
    %1130 = arith.addf %1126, %1129 : vector<8x129xf32>
    %c83 = arith.constant 83 : index
    %1131 = memref.load %arg8[%c83] : memref<96xf32, #tpu.memory_space<smem>>
    %1132 = vector.broadcast %1131 : f32 to vector<8x129xf32>
    %1133 = arith.mulf %1132, %791 : vector<8x129xf32>
    %1134 = arith.addf %1130, %1133 : vector<8x129xf32>
    %cst_250 = arith.constant 0.000000e+00 : f32
    %1135 = vector.broadcast %cst_250 : f32 to vector<8x129xf32>
    %c84 = arith.constant 84 : index
    %1136 = memref.load %arg8[%c84] : memref<96xf32, #tpu.memory_space<smem>>
    %1137 = vector.broadcast %1136 : f32 to vector<8x129xf32>
    %1138 = arith.mulf %1137, %780 : vector<8x129xf32>
    %1139 = arith.addf %1135, %1138 : vector<8x129xf32>
    %c85 = arith.constant 85 : index
    %1140 = memref.load %arg8[%c85] : memref<96xf32, #tpu.memory_space<smem>>
    %1141 = vector.broadcast %1140 : f32 to vector<8x129xf32>
    %1142 = arith.mulf %1141, %781 : vector<8x129xf32>
    %1143 = arith.addf %1139, %1142 : vector<8x129xf32>
    %c86 = arith.constant 86 : index
    %1144 = memref.load %arg8[%c86] : memref<96xf32, #tpu.memory_space<smem>>
    %1145 = vector.broadcast %1144 : f32 to vector<8x129xf32>
    %1146 = arith.mulf %1145, %782 : vector<8x129xf32>
    %1147 = arith.addf %1143, %1146 : vector<8x129xf32>
    %c87 = arith.constant 87 : index
    %1148 = memref.load %arg8[%c87] : memref<96xf32, #tpu.memory_space<smem>>
    %1149 = vector.broadcast %1148 : f32 to vector<8x129xf32>
    %1150 = arith.mulf %1149, %783 : vector<8x129xf32>
    %1151 = arith.addf %1147, %1150 : vector<8x129xf32>
    %c88 = arith.constant 88 : index
    %1152 = memref.load %arg8[%c88] : memref<96xf32, #tpu.memory_space<smem>>
    %1153 = vector.broadcast %1152 : f32 to vector<8x129xf32>
    %1154 = arith.mulf %1153, %784 : vector<8x129xf32>
    %1155 = arith.addf %1151, %1154 : vector<8x129xf32>
    %c89 = arith.constant 89 : index
    %1156 = memref.load %arg8[%c89] : memref<96xf32, #tpu.memory_space<smem>>
    %1157 = vector.broadcast %1156 : f32 to vector<8x129xf32>
    %1158 = arith.mulf %1157, %785 : vector<8x129xf32>
    %1159 = arith.addf %1155, %1158 : vector<8x129xf32>
    %c90 = arith.constant 90 : index
    %1160 = memref.load %arg8[%c90] : memref<96xf32, #tpu.memory_space<smem>>
    %1161 = vector.broadcast %1160 : f32 to vector<8x129xf32>
    %1162 = arith.mulf %1161, %786 : vector<8x129xf32>
    %1163 = arith.addf %1159, %1162 : vector<8x129xf32>
    %c91 = arith.constant 91 : index
    %1164 = memref.load %arg8[%c91] : memref<96xf32, #tpu.memory_space<smem>>
    %1165 = vector.broadcast %1164 : f32 to vector<8x129xf32>
    %1166 = arith.mulf %1165, %787 : vector<8x129xf32>
    %1167 = arith.addf %1163, %1166 : vector<8x129xf32>
    %c92 = arith.constant 92 : index
    %1168 = memref.load %arg8[%c92] : memref<96xf32, #tpu.memory_space<smem>>
    %1169 = vector.broadcast %1168 : f32 to vector<8x129xf32>
    %1170 = arith.mulf %1169, %788 : vector<8x129xf32>
    %1171 = arith.addf %1167, %1170 : vector<8x129xf32>
    %c93 = arith.constant 93 : index
    %1172 = memref.load %arg8[%c93] : memref<96xf32, #tpu.memory_space<smem>>
    %1173 = vector.broadcast %1172 : f32 to vector<8x129xf32>
    %1174 = arith.mulf %1173, %789 : vector<8x129xf32>
    %1175 = arith.addf %1171, %1174 : vector<8x129xf32>
    %c94 = arith.constant 94 : index
    %1176 = memref.load %arg8[%c94] : memref<96xf32, #tpu.memory_space<smem>>
    %1177 = vector.broadcast %1176 : f32 to vector<8x129xf32>
    %1178 = arith.mulf %1177, %790 : vector<8x129xf32>
    %1179 = arith.addf %1175, %1178 : vector<8x129xf32>
    %c95 = arith.constant 95 : index
    %1180 = memref.load %arg8[%c95] : memref<96xf32, #tpu.memory_space<smem>>
    %1181 = vector.broadcast %1180 : f32 to vector<8x129xf32>
    %1182 = arith.mulf %1181, %791 : vector<8x129xf32>
    %1183 = arith.addf %1179, %1182 : vector<8x129xf32>
    %1184 = vector.extract_strided_slice %840 {offsets = [0, 0], sizes = [8, 127], strides = [1, 1]} : vector<8x129xf32> to vector<8x127xf32>
    %1185 = vector.extract_strided_slice %889 {offsets = [0, 0], sizes = [8, 127], strides = [1, 1]} : vector<8x129xf32> to vector<8x127xf32>
    %1186 = vector.extract_strided_slice %938 {offsets = [0, 0], sizes = [8, 127], strides = [1, 1]} : vector<8x129xf32> to vector<8x127xf32>
    %1187 = vector.extract_strided_slice %987 {offsets = [0, 0], sizes = [8, 127], strides = [1, 1]} : vector<8x129xf32> to vector<8x127xf32>
    %1188 = vector.extract_strided_slice %1036 {offsets = [0, 0], sizes = [8, 127], strides = [1, 1]} : vector<8x129xf32> to vector<8x127xf32>
    %1189 = vector.extract_strided_slice %1085 {offsets = [0, 0], sizes = [8, 127], strides = [1, 1]} : vector<8x129xf32> to vector<8x127xf32>
    %1190 = vector.extract_strided_slice %1134 {offsets = [0, 0], sizes = [8, 127], strides = [1, 1]} : vector<8x129xf32> to vector<8x127xf32>
    %1191 = vector.extract_strided_slice %1183 {offsets = [0, 0], sizes = [8, 127], strides = [1, 1]} : vector<8x129xf32> to vector<8x127xf32>
    %cst_251 = arith.constant dense<0.000000e+00> : vector<8xf32>
    %1192 = vector.multi_reduction <add>, %1184, %cst_251 [1] : vector<8x127xf32> to vector<8xf32>
    %1193 = vector.shape_cast %1192 : vector<8xf32> to vector<8x1xf32>
    %cst_252 = arith.constant 1.270000e+02 : f32
    %1194 = vector.broadcast %cst_252 : f32 to vector<8x1xf32>
    %1195 = arith.divf %1193, %1194 : vector<8x1xf32>
    %cst_253 = arith.constant dense<0.000000e+00> : vector<1xf32>
    %1196 = vector.multi_reduction <add>, %1195, %cst_253 [0] : vector<8x1xf32> to vector<1xf32>
    %1197 = vector.shape_cast %1196 : vector<1xf32> to vector<1x1xf32>
    %cst_254 = arith.constant 8.000000e+00 : f32
    %1198 = vector.broadcast %cst_254 : f32 to vector<1x1xf32>
    %1199 = arith.divf %1197, %1198 : vector<1x1xf32>
    %1200 = vector.broadcast %1199 : vector<1x1xf32> to vector<8x127xf32>
    %1201 = arith.subf %1184, %1200 : vector<8x127xf32>
    %1202 = arith.mulf %1201, %1201 : vector<8x127xf32>
    %cst_255 = arith.constant dense<0.000000e+00> : vector<8xf32>
    %1203 = vector.multi_reduction <add>, %1202, %cst_255 [1] : vector<8x127xf32> to vector<8xf32>
    %1204 = vector.shape_cast %1203 : vector<8xf32> to vector<8x1xf32>
    %cst_256 = arith.constant 1.270000e+02 : f32
    %1205 = vector.broadcast %cst_256 : f32 to vector<8x1xf32>
    %1206 = arith.divf %1204, %1205 : vector<8x1xf32>
    %cst_257 = arith.constant dense<0.000000e+00> : vector<1xf32>
    %1207 = vector.multi_reduction <add>, %1206, %cst_257 [0] : vector<8x1xf32> to vector<1xf32>
    %1208 = vector.shape_cast %1207 : vector<1xf32> to vector<1x1xf32>
    %cst_258 = arith.constant 8.000000e+00 : f32
    %1209 = vector.broadcast %cst_258 : f32 to vector<1x1xf32>
    %1210 = arith.divf %1208, %1209 : vector<1x1xf32>
    %cst_259 = arith.constant 9.99999974E-6 : f32
    %1211 = vector.broadcast %cst_259 : f32 to vector<1x1xf32>
    %1212 = arith.addf %1210, %1211 : vector<1x1xf32>
    %1213 = math.rsqrt %1212 : vector<1x1xf32>
    %1214 = vector.broadcast %1213 : vector<1x1xf32> to vector<8x127xf32>
    %1215 = arith.mulf %1201, %1214 : vector<8x127xf32>
    %c0_260 = arith.constant 0 : index
    %1216 = memref.load %arg9[%c0_260] : memref<8xf32, #tpu.memory_space<smem>>
    %1217 = vector.broadcast %1216 : f32 to vector<8x127xf32>
    %1218 = arith.mulf %1215, %1217 : vector<8x127xf32>
    %c0_261 = arith.constant 0 : index
    %1219 = memref.load %arg10[%c0_261] : memref<8xf32, #tpu.memory_space<smem>>
    %1220 = vector.broadcast %1219 : f32 to vector<8x127xf32>
    %1221 = arith.addf %1218, %1220 : vector<8x127xf32>
    %cst_262 = arith.constant 0.000000e+00 : f32
    %1222 = vector.broadcast %cst_262 : f32 to vector<8x127xf32>
    %1223 = arith.maximumf %1221, %1222 : vector<8x127xf32>
    %cst_263 = arith.constant dense<0.000000e+00> : vector<8xf32>
    %1224 = vector.multi_reduction <add>, %1185, %cst_263 [1] : vector<8x127xf32> to vector<8xf32>
    %1225 = vector.shape_cast %1224 : vector<8xf32> to vector<8x1xf32>
    %cst_264 = arith.constant 1.270000e+02 : f32
    %1226 = vector.broadcast %cst_264 : f32 to vector<8x1xf32>
    %1227 = arith.divf %1225, %1226 : vector<8x1xf32>
    %cst_265 = arith.constant dense<0.000000e+00> : vector<1xf32>
    %1228 = vector.multi_reduction <add>, %1227, %cst_265 [0] : vector<8x1xf32> to vector<1xf32>
    %1229 = vector.shape_cast %1228 : vector<1xf32> to vector<1x1xf32>
    %cst_266 = arith.constant 8.000000e+00 : f32
    %1230 = vector.broadcast %cst_266 : f32 to vector<1x1xf32>
    %1231 = arith.divf %1229, %1230 : vector<1x1xf32>
    %1232 = vector.broadcast %1231 : vector<1x1xf32> to vector<8x127xf32>
    %1233 = arith.subf %1185, %1232 : vector<8x127xf32>
    %1234 = arith.mulf %1233, %1233 : vector<8x127xf32>
    %cst_267 = arith.constant dense<0.000000e+00> : vector<8xf32>
    %1235 = vector.multi_reduction <add>, %1234, %cst_267 [1] : vector<8x127xf32> to vector<8xf32>
    %1236 = vector.shape_cast %1235 : vector<8xf32> to vector<8x1xf32>
    %cst_268 = arith.constant 1.270000e+02 : f32
    %1237 = vector.broadcast %cst_268 : f32 to vector<8x1xf32>
    %1238 = arith.divf %1236, %1237 : vector<8x1xf32>
    %cst_269 = arith.constant dense<0.000000e+00> : vector<1xf32>
    %1239 = vector.multi_reduction <add>, %1238, %cst_269 [0] : vector<8x1xf32> to vector<1xf32>
    %1240 = vector.shape_cast %1239 : vector<1xf32> to vector<1x1xf32>
    %cst_270 = arith.constant 8.000000e+00 : f32
    %1241 = vector.broadcast %cst_270 : f32 to vector<1x1xf32>
    %1242 = arith.divf %1240, %1241 : vector<1x1xf32>
    %cst_271 = arith.constant 9.99999974E-6 : f32
    %1243 = vector.broadcast %cst_271 : f32 to vector<1x1xf32>
    %1244 = arith.addf %1242, %1243 : vector<1x1xf32>
    %1245 = math.rsqrt %1244 : vector<1x1xf32>
    %1246 = vector.broadcast %1245 : vector<1x1xf32> to vector<8x127xf32>
    %1247 = arith.mulf %1233, %1246 : vector<8x127xf32>
    %c1_272 = arith.constant 1 : index
    %1248 = memref.load %arg9[%c1_272] : memref<8xf32, #tpu.memory_space<smem>>
    %1249 = vector.broadcast %1248 : f32 to vector<8x127xf32>
    %1250 = arith.mulf %1247, %1249 : vector<8x127xf32>
    %c1_273 = arith.constant 1 : index
    %1251 = memref.load %arg10[%c1_273] : memref<8xf32, #tpu.memory_space<smem>>
    %1252 = vector.broadcast %1251 : f32 to vector<8x127xf32>
    %1253 = arith.addf %1250, %1252 : vector<8x127xf32>
    %cst_274 = arith.constant 0.000000e+00 : f32
    %1254 = vector.broadcast %cst_274 : f32 to vector<8x127xf32>
    %1255 = arith.maximumf %1253, %1254 : vector<8x127xf32>
    %cst_275 = arith.constant dense<0.000000e+00> : vector<8xf32>
    %1256 = vector.multi_reduction <add>, %1186, %cst_275 [1] : vector<8x127xf32> to vector<8xf32>
    %1257 = vector.shape_cast %1256 : vector<8xf32> to vector<8x1xf32>
    %cst_276 = arith.constant 1.270000e+02 : f32
    %1258 = vector.broadcast %cst_276 : f32 to vector<8x1xf32>
    %1259 = arith.divf %1257, %1258 : vector<8x1xf32>
    %cst_277 = arith.constant dense<0.000000e+00> : vector<1xf32>
    %1260 = vector.multi_reduction <add>, %1259, %cst_277 [0] : vector<8x1xf32> to vector<1xf32>
    %1261 = vector.shape_cast %1260 : vector<1xf32> to vector<1x1xf32>
    %cst_278 = arith.constant 8.000000e+00 : f32
    %1262 = vector.broadcast %cst_278 : f32 to vector<1x1xf32>
    %1263 = arith.divf %1261, %1262 : vector<1x1xf32>
    %1264 = vector.broadcast %1263 : vector<1x1xf32> to vector<8x127xf32>
    %1265 = arith.subf %1186, %1264 : vector<8x127xf32>
    %1266 = arith.mulf %1265, %1265 : vector<8x127xf32>
    %cst_279 = arith.constant dense<0.000000e+00> : vector<8xf32>
    %1267 = vector.multi_reduction <add>, %1266, %cst_279 [1] : vector<8x127xf32> to vector<8xf32>
    %1268 = vector.shape_cast %1267 : vector<8xf32> to vector<8x1xf32>
    %cst_280 = arith.constant 1.270000e+02 : f32
    %1269 = vector.broadcast %cst_280 : f32 to vector<8x1xf32>
    %1270 = arith.divf %1268, %1269 : vector<8x1xf32>
    %cst_281 = arith.constant dense<0.000000e+00> : vector<1xf32>
    %1271 = vector.multi_reduction <add>, %1270, %cst_281 [0] : vector<8x1xf32> to vector<1xf32>
    %1272 = vector.shape_cast %1271 : vector<1xf32> to vector<1x1xf32>
    %cst_282 = arith.constant 8.000000e+00 : f32
    %1273 = vector.broadcast %cst_282 : f32 to vector<1x1xf32>
    %1274 = arith.divf %1272, %1273 : vector<1x1xf32>
    %cst_283 = arith.constant 9.99999974E-6 : f32
    %1275 = vector.broadcast %cst_283 : f32 to vector<1x1xf32>
    %1276 = arith.addf %1274, %1275 : vector<1x1xf32>
    %1277 = math.rsqrt %1276 : vector<1x1xf32>
    %1278 = vector.broadcast %1277 : vector<1x1xf32> to vector<8x127xf32>
    %1279 = arith.mulf %1265, %1278 : vector<8x127xf32>
    %c2_284 = arith.constant 2 : index
    %1280 = memref.load %arg9[%c2_284] : memref<8xf32, #tpu.memory_space<smem>>
    %1281 = vector.broadcast %1280 : f32 to vector<8x127xf32>
    %1282 = arith.mulf %1279, %1281 : vector<8x127xf32>
    %c2_285 = arith.constant 2 : index
    %1283 = memref.load %arg10[%c2_285] : memref<8xf32, #tpu.memory_space<smem>>
    %1284 = vector.broadcast %1283 : f32 to vector<8x127xf32>
    %1285 = arith.addf %1282, %1284 : vector<8x127xf32>
    %cst_286 = arith.constant 0.000000e+00 : f32
    %1286 = vector.broadcast %cst_286 : f32 to vector<8x127xf32>
    %1287 = arith.maximumf %1285, %1286 : vector<8x127xf32>
    %cst_287 = arith.constant dense<0.000000e+00> : vector<8xf32>
    %1288 = vector.multi_reduction <add>, %1187, %cst_287 [1] : vector<8x127xf32> to vector<8xf32>
    %1289 = vector.shape_cast %1288 : vector<8xf32> to vector<8x1xf32>
    %cst_288 = arith.constant 1.270000e+02 : f32
    %1290 = vector.broadcast %cst_288 : f32 to vector<8x1xf32>
    %1291 = arith.divf %1289, %1290 : vector<8x1xf32>
    %cst_289 = arith.constant dense<0.000000e+00> : vector<1xf32>
    %1292 = vector.multi_reduction <add>, %1291, %cst_289 [0] : vector<8x1xf32> to vector<1xf32>
    %1293 = vector.shape_cast %1292 : vector<1xf32> to vector<1x1xf32>
    %cst_290 = arith.constant 8.000000e+00 : f32
    %1294 = vector.broadcast %cst_290 : f32 to vector<1x1xf32>
    %1295 = arith.divf %1293, %1294 : vector<1x1xf32>
    %1296 = vector.broadcast %1295 : vector<1x1xf32> to vector<8x127xf32>
    %1297 = arith.subf %1187, %1296 : vector<8x127xf32>
    %1298 = arith.mulf %1297, %1297 : vector<8x127xf32>
    %cst_291 = arith.constant dense<0.000000e+00> : vector<8xf32>
    %1299 = vector.multi_reduction <add>, %1298, %cst_291 [1] : vector<8x127xf32> to vector<8xf32>
    %1300 = vector.shape_cast %1299 : vector<8xf32> to vector<8x1xf32>
    %cst_292 = arith.constant 1.270000e+02 : f32
    %1301 = vector.broadcast %cst_292 : f32 to vector<8x1xf32>
    %1302 = arith.divf %1300, %1301 : vector<8x1xf32>
    %cst_293 = arith.constant dense<0.000000e+00> : vector<1xf32>
    %1303 = vector.multi_reduction <add>, %1302, %cst_293 [0] : vector<8x1xf32> to vector<1xf32>
    %1304 = vector.shape_cast %1303 : vector<1xf32> to vector<1x1xf32>
    %cst_294 = arith.constant 8.000000e+00 : f32
    %1305 = vector.broadcast %cst_294 : f32 to vector<1x1xf32>
    %1306 = arith.divf %1304, %1305 : vector<1x1xf32>
    %cst_295 = arith.constant 9.99999974E-6 : f32
    %1307 = vector.broadcast %cst_295 : f32 to vector<1x1xf32>
    %1308 = arith.addf %1306, %1307 : vector<1x1xf32>
    %1309 = math.rsqrt %1308 : vector<1x1xf32>
    %1310 = vector.broadcast %1309 : vector<1x1xf32> to vector<8x127xf32>
    %1311 = arith.mulf %1297, %1310 : vector<8x127xf32>
    %c3_296 = arith.constant 3 : index
    %1312 = memref.load %arg9[%c3_296] : memref<8xf32, #tpu.memory_space<smem>>
    %1313 = vector.broadcast %1312 : f32 to vector<8x127xf32>
    %1314 = arith.mulf %1311, %1313 : vector<8x127xf32>
    %c3_297 = arith.constant 3 : index
    %1315 = memref.load %arg10[%c3_297] : memref<8xf32, #tpu.memory_space<smem>>
    %1316 = vector.broadcast %1315 : f32 to vector<8x127xf32>
    %1317 = arith.addf %1314, %1316 : vector<8x127xf32>
    %cst_298 = arith.constant 0.000000e+00 : f32
    %1318 = vector.broadcast %cst_298 : f32 to vector<8x127xf32>
    %1319 = arith.maximumf %1317, %1318 : vector<8x127xf32>
    %cst_299 = arith.constant dense<0.000000e+00> : vector<8xf32>
    %1320 = vector.multi_reduction <add>, %1188, %cst_299 [1] : vector<8x127xf32> to vector<8xf32>
    %1321 = vector.shape_cast %1320 : vector<8xf32> to vector<8x1xf32>
    %cst_300 = arith.constant 1.270000e+02 : f32
    %1322 = vector.broadcast %cst_300 : f32 to vector<8x1xf32>
    %1323 = arith.divf %1321, %1322 : vector<8x1xf32>
    %cst_301 = arith.constant dense<0.000000e+00> : vector<1xf32>
    %1324 = vector.multi_reduction <add>, %1323, %cst_301 [0] : vector<8x1xf32> to vector<1xf32>
    %1325 = vector.shape_cast %1324 : vector<1xf32> to vector<1x1xf32>
    %cst_302 = arith.constant 8.000000e+00 : f32
    %1326 = vector.broadcast %cst_302 : f32 to vector<1x1xf32>
    %1327 = arith.divf %1325, %1326 : vector<1x1xf32>
    %1328 = vector.broadcast %1327 : vector<1x1xf32> to vector<8x127xf32>
    %1329 = arith.subf %1188, %1328 : vector<8x127xf32>
    %1330 = arith.mulf %1329, %1329 : vector<8x127xf32>
    %cst_303 = arith.constant dense<0.000000e+00> : vector<8xf32>
    %1331 = vector.multi_reduction <add>, %1330, %cst_303 [1] : vector<8x127xf32> to vector<8xf32>
    %1332 = vector.shape_cast %1331 : vector<8xf32> to vector<8x1xf32>
    %cst_304 = arith.constant 1.270000e+02 : f32
    %1333 = vector.broadcast %cst_304 : f32 to vector<8x1xf32>
    %1334 = arith.divf %1332, %1333 : vector<8x1xf32>
    %cst_305 = arith.constant dense<0.000000e+00> : vector<1xf32>
    %1335 = vector.multi_reduction <add>, %1334, %cst_305 [0] : vector<8x1xf32> to vector<1xf32>
    %1336 = vector.shape_cast %1335 : vector<1xf32> to vector<1x1xf32>
    %cst_306 = arith.constant 8.000000e+00 : f32
    %1337 = vector.broadcast %cst_306 : f32 to vector<1x1xf32>
    %1338 = arith.divf %1336, %1337 : vector<1x1xf32>
    %cst_307 = arith.constant 9.99999974E-6 : f32
    %1339 = vector.broadcast %cst_307 : f32 to vector<1x1xf32>
    %1340 = arith.addf %1338, %1339 : vector<1x1xf32>
    %1341 = math.rsqrt %1340 : vector<1x1xf32>
    %1342 = vector.broadcast %1341 : vector<1x1xf32> to vector<8x127xf32>
    %1343 = arith.mulf %1329, %1342 : vector<8x127xf32>
    %c4_308 = arith.constant 4 : index
    %1344 = memref.load %arg9[%c4_308] : memref<8xf32, #tpu.memory_space<smem>>
    %1345 = vector.broadcast %1344 : f32 to vector<8x127xf32>
    %1346 = arith.mulf %1343, %1345 : vector<8x127xf32>
    %c4_309 = arith.constant 4 : index
    %1347 = memref.load %arg10[%c4_309] : memref<8xf32, #tpu.memory_space<smem>>
    %1348 = vector.broadcast %1347 : f32 to vector<8x127xf32>
    %1349 = arith.addf %1346, %1348 : vector<8x127xf32>
    %cst_310 = arith.constant 0.000000e+00 : f32
    %1350 = vector.broadcast %cst_310 : f32 to vector<8x127xf32>
    %1351 = arith.maximumf %1349, %1350 : vector<8x127xf32>
    %cst_311 = arith.constant dense<0.000000e+00> : vector<8xf32>
    %1352 = vector.multi_reduction <add>, %1189, %cst_311 [1] : vector<8x127xf32> to vector<8xf32>
    %1353 = vector.shape_cast %1352 : vector<8xf32> to vector<8x1xf32>
    %cst_312 = arith.constant 1.270000e+02 : f32
    %1354 = vector.broadcast %cst_312 : f32 to vector<8x1xf32>
    %1355 = arith.divf %1353, %1354 : vector<8x1xf32>
    %cst_313 = arith.constant dense<0.000000e+00> : vector<1xf32>
    %1356 = vector.multi_reduction <add>, %1355, %cst_313 [0] : vector<8x1xf32> to vector<1xf32>
    %1357 = vector.shape_cast %1356 : vector<1xf32> to vector<1x1xf32>
    %cst_314 = arith.constant 8.000000e+00 : f32
    %1358 = vector.broadcast %cst_314 : f32 to vector<1x1xf32>
    %1359 = arith.divf %1357, %1358 : vector<1x1xf32>
    %1360 = vector.broadcast %1359 : vector<1x1xf32> to vector<8x127xf32>
    %1361 = arith.subf %1189, %1360 : vector<8x127xf32>
    %1362 = arith.mulf %1361, %1361 : vector<8x127xf32>
    %cst_315 = arith.constant dense<0.000000e+00> : vector<8xf32>
    %1363 = vector.multi_reduction <add>, %1362, %cst_315 [1] : vector<8x127xf32> to vector<8xf32>
    %1364 = vector.shape_cast %1363 : vector<8xf32> to vector<8x1xf32>
    %cst_316 = arith.constant 1.270000e+02 : f32
    %1365 = vector.broadcast %cst_316 : f32 to vector<8x1xf32>
    %1366 = arith.divf %1364, %1365 : vector<8x1xf32>
    %cst_317 = arith.constant dense<0.000000e+00> : vector<1xf32>
    %1367 = vector.multi_reduction <add>, %1366, %cst_317 [0] : vector<8x1xf32> to vector<1xf32>
    %1368 = vector.shape_cast %1367 : vector<1xf32> to vector<1x1xf32>
    %cst_318 = arith.constant 8.000000e+00 : f32
    %1369 = vector.broadcast %cst_318 : f32 to vector<1x1xf32>
    %1370 = arith.divf %1368, %1369 : vector<1x1xf32>
    %cst_319 = arith.constant 9.99999974E-6 : f32
    %1371 = vector.broadcast %cst_319 : f32 to vector<1x1xf32>
    %1372 = arith.addf %1370, %1371 : vector<1x1xf32>
    %1373 = math.rsqrt %1372 : vector<1x1xf32>
    %1374 = vector.broadcast %1373 : vector<1x1xf32> to vector<8x127xf32>
    %1375 = arith.mulf %1361, %1374 : vector<8x127xf32>
    %c5_320 = arith.constant 5 : index
    %1376 = memref.load %arg9[%c5_320] : memref<8xf32, #tpu.memory_space<smem>>
    %1377 = vector.broadcast %1376 : f32 to vector<8x127xf32>
    %1378 = arith.mulf %1375, %1377 : vector<8x127xf32>
    %c5_321 = arith.constant 5 : index
    %1379 = memref.load %arg10[%c5_321] : memref<8xf32, #tpu.memory_space<smem>>
    %1380 = vector.broadcast %1379 : f32 to vector<8x127xf32>
    %1381 = arith.addf %1378, %1380 : vector<8x127xf32>
    %cst_322 = arith.constant 0.000000e+00 : f32
    %1382 = vector.broadcast %cst_322 : f32 to vector<8x127xf32>
    %1383 = arith.maximumf %1381, %1382 : vector<8x127xf32>
    %cst_323 = arith.constant dense<0.000000e+00> : vector<8xf32>
    %1384 = vector.multi_reduction <add>, %1190, %cst_323 [1] : vector<8x127xf32> to vector<8xf32>
    %1385 = vector.shape_cast %1384 : vector<8xf32> to vector<8x1xf32>
    %cst_324 = arith.constant 1.270000e+02 : f32
    %1386 = vector.broadcast %cst_324 : f32 to vector<8x1xf32>
    %1387 = arith.divf %1385, %1386 : vector<8x1xf32>
    %cst_325 = arith.constant dense<0.000000e+00> : vector<1xf32>
    %1388 = vector.multi_reduction <add>, %1387, %cst_325 [0] : vector<8x1xf32> to vector<1xf32>
    %1389 = vector.shape_cast %1388 : vector<1xf32> to vector<1x1xf32>
    %cst_326 = arith.constant 8.000000e+00 : f32
    %1390 = vector.broadcast %cst_326 : f32 to vector<1x1xf32>
    %1391 = arith.divf %1389, %1390 : vector<1x1xf32>
    %1392 = vector.broadcast %1391 : vector<1x1xf32> to vector<8x127xf32>
    %1393 = arith.subf %1190, %1392 : vector<8x127xf32>
    %1394 = arith.mulf %1393, %1393 : vector<8x127xf32>
    %cst_327 = arith.constant dense<0.000000e+00> : vector<8xf32>
    %1395 = vector.multi_reduction <add>, %1394, %cst_327 [1] : vector<8x127xf32> to vector<8xf32>
    %1396 = vector.shape_cast %1395 : vector<8xf32> to vector<8x1xf32>
    %cst_328 = arith.constant 1.270000e+02 : f32
    %1397 = vector.broadcast %cst_328 : f32 to vector<8x1xf32>
    %1398 = arith.divf %1396, %1397 : vector<8x1xf32>
    %cst_329 = arith.constant dense<0.000000e+00> : vector<1xf32>
    %1399 = vector.multi_reduction <add>, %1398, %cst_329 [0] : vector<8x1xf32> to vector<1xf32>
    %1400 = vector.shape_cast %1399 : vector<1xf32> to vector<1x1xf32>
    %cst_330 = arith.constant 8.000000e+00 : f32
    %1401 = vector.broadcast %cst_330 : f32 to vector<1x1xf32>
    %1402 = arith.divf %1400, %1401 : vector<1x1xf32>
    %cst_331 = arith.constant 9.99999974E-6 : f32
    %1403 = vector.broadcast %cst_331 : f32 to vector<1x1xf32>
    %1404 = arith.addf %1402, %1403 : vector<1x1xf32>
    %1405 = math.rsqrt %1404 : vector<1x1xf32>
    %1406 = vector.broadcast %1405 : vector<1x1xf32> to vector<8x127xf32>
    %1407 = arith.mulf %1393, %1406 : vector<8x127xf32>
    %c6_332 = arith.constant 6 : index
    %1408 = memref.load %arg9[%c6_332] : memref<8xf32, #tpu.memory_space<smem>>
    %1409 = vector.broadcast %1408 : f32 to vector<8x127xf32>
    %1410 = arith.mulf %1407, %1409 : vector<8x127xf32>
    %c6_333 = arith.constant 6 : index
    %1411 = memref.load %arg10[%c6_333] : memref<8xf32, #tpu.memory_space<smem>>
    %1412 = vector.broadcast %1411 : f32 to vector<8x127xf32>
    %1413 = arith.addf %1410, %1412 : vector<8x127xf32>
    %cst_334 = arith.constant 0.000000e+00 : f32
    %1414 = vector.broadcast %cst_334 : f32 to vector<8x127xf32>
    %1415 = arith.maximumf %1413, %1414 : vector<8x127xf32>
    %cst_335 = arith.constant dense<0.000000e+00> : vector<8xf32>
    %1416 = vector.multi_reduction <add>, %1191, %cst_335 [1] : vector<8x127xf32> to vector<8xf32>
    %1417 = vector.shape_cast %1416 : vector<8xf32> to vector<8x1xf32>
    %cst_336 = arith.constant 1.270000e+02 : f32
    %1418 = vector.broadcast %cst_336 : f32 to vector<8x1xf32>
    %1419 = arith.divf %1417, %1418 : vector<8x1xf32>
    %cst_337 = arith.constant dense<0.000000e+00> : vector<1xf32>
    %1420 = vector.multi_reduction <add>, %1419, %cst_337 [0] : vector<8x1xf32> to vector<1xf32>
    %1421 = vector.shape_cast %1420 : vector<1xf32> to vector<1x1xf32>
    %cst_338 = arith.constant 8.000000e+00 : f32
    %1422 = vector.broadcast %cst_338 : f32 to vector<1x1xf32>
    %1423 = arith.divf %1421, %1422 : vector<1x1xf32>
    %1424 = vector.broadcast %1423 : vector<1x1xf32> to vector<8x127xf32>
    %1425 = arith.subf %1191, %1424 : vector<8x127xf32>
    %1426 = arith.mulf %1425, %1425 : vector<8x127xf32>
    %cst_339 = arith.constant dense<0.000000e+00> : vector<8xf32>
    %1427 = vector.multi_reduction <add>, %1426, %cst_339 [1] : vector<8x127xf32> to vector<8xf32>
    %1428 = vector.shape_cast %1427 : vector<8xf32> to vector<8x1xf32>
    %cst_340 = arith.constant 1.270000e+02 : f32
    %1429 = vector.broadcast %cst_340 : f32 to vector<8x1xf32>
    %1430 = arith.divf %1428, %1429 : vector<8x1xf32>
    %cst_341 = arith.constant dense<0.000000e+00> : vector<1xf32>
    %1431 = vector.multi_reduction <add>, %1430, %cst_341 [0] : vector<8x1xf32> to vector<1xf32>
    %1432 = vector.shape_cast %1431 : vector<1xf32> to vector<1x1xf32>
    %cst_342 = arith.constant 8.000000e+00 : f32
    %1433 = vector.broadcast %cst_342 : f32 to vector<1x1xf32>
    %1434 = arith.divf %1432, %1433 : vector<1x1xf32>
    %cst_343 = arith.constant 9.99999974E-6 : f32
    %1435 = vector.broadcast %cst_343 : f32 to vector<1x1xf32>
    %1436 = arith.addf %1434, %1435 : vector<1x1xf32>
    %1437 = math.rsqrt %1436 : vector<1x1xf32>
    %1438 = vector.broadcast %1437 : vector<1x1xf32> to vector<8x127xf32>
    %1439 = arith.mulf %1425, %1438 : vector<8x127xf32>
    %c7_344 = arith.constant 7 : index
    %1440 = memref.load %arg9[%c7_344] : memref<8xf32, #tpu.memory_space<smem>>
    %1441 = vector.broadcast %1440 : f32 to vector<8x127xf32>
    %1442 = arith.mulf %1439, %1441 : vector<8x127xf32>
    %c7_345 = arith.constant 7 : index
    %1443 = memref.load %arg10[%c7_345] : memref<8xf32, #tpu.memory_space<smem>>
    %1444 = vector.broadcast %1443 : f32 to vector<8x127xf32>
    %1445 = arith.addf %1442, %1444 : vector<8x127xf32>
    %cst_346 = arith.constant 0.000000e+00 : f32
    %1446 = vector.broadcast %cst_346 : f32 to vector<8x127xf32>
    %1447 = arith.maximumf %1445, %1446 : vector<8x127xf32>
    %cst_347 = arith.constant 0.000000e+00 : f32
    %1448 = vector.broadcast %cst_347 : f32 to vector<8x2xf32>
    %1449 = tpu.concatenate %1448, %1223, %1448 in 1 : vector<8x2xf32>, vector<8x127xf32>, vector<8x2xf32> -> vector<8x131xf32>
    %cst_348 = arith.constant 0.000000e+00 : f32
    %1450 = vector.broadcast %cst_348 : f32 to vector<8x2xf32>
    %1451 = tpu.concatenate %1450, %1255, %1450 in 1 : vector<8x2xf32>, vector<8x127xf32>, vector<8x2xf32> -> vector<8x131xf32>
    %cst_349 = arith.constant 0.000000e+00 : f32
    %1452 = vector.broadcast %cst_349 : f32 to vector<8x2xf32>
    %1453 = tpu.concatenate %1452, %1287, %1452 in 1 : vector<8x2xf32>, vector<8x127xf32>, vector<8x2xf32> -> vector<8x131xf32>
    %cst_350 = arith.constant 0.000000e+00 : f32
    %1454 = vector.broadcast %cst_350 : f32 to vector<8x2xf32>
    %1455 = tpu.concatenate %1454, %1319, %1454 in 1 : vector<8x2xf32>, vector<8x127xf32>, vector<8x2xf32> -> vector<8x131xf32>
    %cst_351 = arith.constant 0.000000e+00 : f32
    %1456 = vector.broadcast %cst_351 : f32 to vector<8x2xf32>
    %1457 = tpu.concatenate %1456, %1351, %1456 in 1 : vector<8x2xf32>, vector<8x127xf32>, vector<8x2xf32> -> vector<8x131xf32>
    %cst_352 = arith.constant 0.000000e+00 : f32
    %1458 = vector.broadcast %cst_352 : f32 to vector<8x2xf32>
    %1459 = tpu.concatenate %1458, %1383, %1458 in 1 : vector<8x2xf32>, vector<8x127xf32>, vector<8x2xf32> -> vector<8x131xf32>
    %cst_353 = arith.constant 0.000000e+00 : f32
    %1460 = vector.broadcast %cst_353 : f32 to vector<8x2xf32>
    %1461 = tpu.concatenate %1460, %1415, %1460 in 1 : vector<8x2xf32>, vector<8x127xf32>, vector<8x2xf32> -> vector<8x131xf32>
    %cst_354 = arith.constant 0.000000e+00 : f32
    %1462 = vector.broadcast %cst_354 : f32 to vector<8x2xf32>
    %1463 = tpu.concatenate %1462, %1447, %1462 in 1 : vector<8x2xf32>, vector<8x127xf32>, vector<8x2xf32> -> vector<8x131xf32>
    %1464 = vector.extract_strided_slice %1449 {offsets = [0, 0], sizes = [8, 129], strides = [1, 1]} : vector<8x131xf32> to vector<8x129xf32>
    %1465 = vector.extract_strided_slice %1449 {offsets = [0, 1], sizes = [8, 129], strides = [1, 1]} : vector<8x131xf32> to vector<8x129xf32>
    %1466 = vector.extract_strided_slice %1449 {offsets = [0, 2], sizes = [8, 129], strides = [1, 1]} : vector<8x131xf32> to vector<8x129xf32>
    %1467 = vector.extract_strided_slice %1451 {offsets = [0, 0], sizes = [8, 129], strides = [1, 1]} : vector<8x131xf32> to vector<8x129xf32>
    %1468 = vector.extract_strided_slice %1451 {offsets = [0, 1], sizes = [8, 129], strides = [1, 1]} : vector<8x131xf32> to vector<8x129xf32>
    %1469 = vector.extract_strided_slice %1451 {offsets = [0, 2], sizes = [8, 129], strides = [1, 1]} : vector<8x131xf32> to vector<8x129xf32>
    %1470 = vector.extract_strided_slice %1453 {offsets = [0, 0], sizes = [8, 129], strides = [1, 1]} : vector<8x131xf32> to vector<8x129xf32>
    %1471 = vector.extract_strided_slice %1453 {offsets = [0, 1], sizes = [8, 129], strides = [1, 1]} : vector<8x131xf32> to vector<8x129xf32>
    %1472 = vector.extract_strided_slice %1453 {offsets = [0, 2], sizes = [8, 129], strides = [1, 1]} : vector<8x131xf32> to vector<8x129xf32>
    %1473 = vector.extract_strided_slice %1455 {offsets = [0, 0], sizes = [8, 129], strides = [1, 1]} : vector<8x131xf32> to vector<8x129xf32>
    %1474 = vector.extract_strided_slice %1455 {offsets = [0, 1], sizes = [8, 129], strides = [1, 1]} : vector<8x131xf32> to vector<8x129xf32>
    %1475 = vector.extract_strided_slice %1455 {offsets = [0, 2], sizes = [8, 129], strides = [1, 1]} : vector<8x131xf32> to vector<8x129xf32>
    %1476 = vector.extract_strided_slice %1457 {offsets = [0, 0], sizes = [8, 129], strides = [1, 1]} : vector<8x131xf32> to vector<8x129xf32>
    %1477 = vector.extract_strided_slice %1457 {offsets = [0, 1], sizes = [8, 129], strides = [1, 1]} : vector<8x131xf32> to vector<8x129xf32>
    %1478 = vector.extract_strided_slice %1457 {offsets = [0, 2], sizes = [8, 129], strides = [1, 1]} : vector<8x131xf32> to vector<8x129xf32>
    %1479 = vector.extract_strided_slice %1459 {offsets = [0, 0], sizes = [8, 129], strides = [1, 1]} : vector<8x131xf32> to vector<8x129xf32>
    %1480 = vector.extract_strided_slice %1459 {offsets = [0, 1], sizes = [8, 129], strides = [1, 1]} : vector<8x131xf32> to vector<8x129xf32>
    %1481 = vector.extract_strided_slice %1459 {offsets = [0, 2], sizes = [8, 129], strides = [1, 1]} : vector<8x131xf32> to vector<8x129xf32>
    %1482 = vector.extract_strided_slice %1461 {offsets = [0, 0], sizes = [8, 129], strides = [1, 1]} : vector<8x131xf32> to vector<8x129xf32>
    %1483 = vector.extract_strided_slice %1461 {offsets = [0, 1], sizes = [8, 129], strides = [1, 1]} : vector<8x131xf32> to vector<8x129xf32>
    %1484 = vector.extract_strided_slice %1461 {offsets = [0, 2], sizes = [8, 129], strides = [1, 1]} : vector<8x131xf32> to vector<8x129xf32>
    %1485 = vector.extract_strided_slice %1463 {offsets = [0, 0], sizes = [8, 129], strides = [1, 1]} : vector<8x131xf32> to vector<8x129xf32>
    %1486 = vector.extract_strided_slice %1463 {offsets = [0, 1], sizes = [8, 129], strides = [1, 1]} : vector<8x131xf32> to vector<8x129xf32>
    %1487 = vector.extract_strided_slice %1463 {offsets = [0, 2], sizes = [8, 129], strides = [1, 1]} : vector<8x131xf32> to vector<8x129xf32>
    %cst_355 = arith.constant 0.000000e+00 : f32
    %1488 = vector.broadcast %cst_355 : f32 to vector<8x129xf32>
    %c0_356 = arith.constant 0 : index
    %1489 = memref.load %arg11[%c0_356] : memref<96xf32, #tpu.memory_space<smem>>
    %1490 = vector.broadcast %1489 : f32 to vector<8x129xf32>
    %1491 = arith.mulf %1490, %1464 : vector<8x129xf32>
    %1492 = arith.addf %1488, %1491 : vector<8x129xf32>
    %c1_357 = arith.constant 1 : index
    %1493 = memref.load %arg11[%c1_357] : memref<96xf32, #tpu.memory_space<smem>>
    %1494 = vector.broadcast %1493 : f32 to vector<8x129xf32>
    %1495 = arith.mulf %1494, %1465 : vector<8x129xf32>
    %1496 = arith.addf %1492, %1495 : vector<8x129xf32>
    %c2_358 = arith.constant 2 : index
    %1497 = memref.load %arg11[%c2_358] : memref<96xf32, #tpu.memory_space<smem>>
    %1498 = vector.broadcast %1497 : f32 to vector<8x129xf32>
    %1499 = arith.mulf %1498, %1466 : vector<8x129xf32>
    %1500 = arith.addf %1496, %1499 : vector<8x129xf32>
    %c3_359 = arith.constant 3 : index
    %1501 = memref.load %arg11[%c3_359] : memref<96xf32, #tpu.memory_space<smem>>
    %1502 = vector.broadcast %1501 : f32 to vector<8x129xf32>
    %1503 = arith.mulf %1502, %1467 : vector<8x129xf32>
    %1504 = arith.addf %1500, %1503 : vector<8x129xf32>
    %c4_360 = arith.constant 4 : index
    %1505 = memref.load %arg11[%c4_360] : memref<96xf32, #tpu.memory_space<smem>>
    %1506 = vector.broadcast %1505 : f32 to vector<8x129xf32>
    %1507 = arith.mulf %1506, %1468 : vector<8x129xf32>
    %1508 = arith.addf %1504, %1507 : vector<8x129xf32>
    %c5_361 = arith.constant 5 : index
    %1509 = memref.load %arg11[%c5_361] : memref<96xf32, #tpu.memory_space<smem>>
    %1510 = vector.broadcast %1509 : f32 to vector<8x129xf32>
    %1511 = arith.mulf %1510, %1469 : vector<8x129xf32>
    %1512 = arith.addf %1508, %1511 : vector<8x129xf32>
    %c6_362 = arith.constant 6 : index
    %1513 = memref.load %arg11[%c6_362] : memref<96xf32, #tpu.memory_space<smem>>
    %1514 = vector.broadcast %1513 : f32 to vector<8x129xf32>
    %1515 = arith.mulf %1514, %1470 : vector<8x129xf32>
    %1516 = arith.addf %1512, %1515 : vector<8x129xf32>
    %c7_363 = arith.constant 7 : index
    %1517 = memref.load %arg11[%c7_363] : memref<96xf32, #tpu.memory_space<smem>>
    %1518 = vector.broadcast %1517 : f32 to vector<8x129xf32>
    %1519 = arith.mulf %1518, %1471 : vector<8x129xf32>
    %1520 = arith.addf %1516, %1519 : vector<8x129xf32>
    %c8_364 = arith.constant 8 : index
    %1521 = memref.load %arg11[%c8_364] : memref<96xf32, #tpu.memory_space<smem>>
    %1522 = vector.broadcast %1521 : f32 to vector<8x129xf32>
    %1523 = arith.mulf %1522, %1472 : vector<8x129xf32>
    %1524 = arith.addf %1520, %1523 : vector<8x129xf32>
    %c9_365 = arith.constant 9 : index
    %1525 = memref.load %arg11[%c9_365] : memref<96xf32, #tpu.memory_space<smem>>
    %1526 = vector.broadcast %1525 : f32 to vector<8x129xf32>
    %1527 = arith.mulf %1526, %1473 : vector<8x129xf32>
    %1528 = arith.addf %1524, %1527 : vector<8x129xf32>
    %c10_366 = arith.constant 10 : index
    %1529 = memref.load %arg11[%c10_366] : memref<96xf32, #tpu.memory_space<smem>>
    %1530 = vector.broadcast %1529 : f32 to vector<8x129xf32>
    %1531 = arith.mulf %1530, %1474 : vector<8x129xf32>
    %1532 = arith.addf %1528, %1531 : vector<8x129xf32>
    %c11_367 = arith.constant 11 : index
    %1533 = memref.load %arg11[%c11_367] : memref<96xf32, #tpu.memory_space<smem>>
    %1534 = vector.broadcast %1533 : f32 to vector<8x129xf32>
    %1535 = arith.mulf %1534, %1475 : vector<8x129xf32>
    %1536 = arith.addf %1532, %1535 : vector<8x129xf32>
    %c12_368 = arith.constant 12 : index
    %1537 = memref.load %arg11[%c12_368] : memref<96xf32, #tpu.memory_space<smem>>
    %1538 = vector.broadcast %1537 : f32 to vector<8x129xf32>
    %1539 = arith.mulf %1538, %1476 : vector<8x129xf32>
    %1540 = arith.addf %1536, %1539 : vector<8x129xf32>
    %c13_369 = arith.constant 13 : index
    %1541 = memref.load %arg11[%c13_369] : memref<96xf32, #tpu.memory_space<smem>>
    %1542 = vector.broadcast %1541 : f32 to vector<8x129xf32>
    %1543 = arith.mulf %1542, %1477 : vector<8x129xf32>
    %1544 = arith.addf %1540, %1543 : vector<8x129xf32>
    %c14_370 = arith.constant 14 : index
    %1545 = memref.load %arg11[%c14_370] : memref<96xf32, #tpu.memory_space<smem>>
    %1546 = vector.broadcast %1545 : f32 to vector<8x129xf32>
    %1547 = arith.mulf %1546, %1478 : vector<8x129xf32>
    %1548 = arith.addf %1544, %1547 : vector<8x129xf32>
    %c15_371 = arith.constant 15 : index
    %1549 = memref.load %arg11[%c15_371] : memref<96xf32, #tpu.memory_space<smem>>
    %1550 = vector.broadcast %1549 : f32 to vector<8x129xf32>
    %1551 = arith.mulf %1550, %1479 : vector<8x129xf32>
    %1552 = arith.addf %1548, %1551 : vector<8x129xf32>
    %c16_372 = arith.constant 16 : index
    %1553 = memref.load %arg11[%c16_372] : memref<96xf32, #tpu.memory_space<smem>>
    %1554 = vector.broadcast %1553 : f32 to vector<8x129xf32>
    %1555 = arith.mulf %1554, %1480 : vector<8x129xf32>
    %1556 = arith.addf %1552, %1555 : vector<8x129xf32>
    %c17_373 = arith.constant 17 : index
    %1557 = memref.load %arg11[%c17_373] : memref<96xf32, #tpu.memory_space<smem>>
    %1558 = vector.broadcast %1557 : f32 to vector<8x129xf32>
    %1559 = arith.mulf %1558, %1481 : vector<8x129xf32>
    %1560 = arith.addf %1556, %1559 : vector<8x129xf32>
    %c18_374 = arith.constant 18 : index
    %1561 = memref.load %arg11[%c18_374] : memref<96xf32, #tpu.memory_space<smem>>
    %1562 = vector.broadcast %1561 : f32 to vector<8x129xf32>
    %1563 = arith.mulf %1562, %1482 : vector<8x129xf32>
    %1564 = arith.addf %1560, %1563 : vector<8x129xf32>
    %c19_375 = arith.constant 19 : index
    %1565 = memref.load %arg11[%c19_375] : memref<96xf32, #tpu.memory_space<smem>>
    %1566 = vector.broadcast %1565 : f32 to vector<8x129xf32>
    %1567 = arith.mulf %1566, %1483 : vector<8x129xf32>
    %1568 = arith.addf %1564, %1567 : vector<8x129xf32>
    %c20_376 = arith.constant 20 : index
    %1569 = memref.load %arg11[%c20_376] : memref<96xf32, #tpu.memory_space<smem>>
    %1570 = vector.broadcast %1569 : f32 to vector<8x129xf32>
    %1571 = arith.mulf %1570, %1484 : vector<8x129xf32>
    %1572 = arith.addf %1568, %1571 : vector<8x129xf32>
    %c21_377 = arith.constant 21 : index
    %1573 = memref.load %arg11[%c21_377] : memref<96xf32, #tpu.memory_space<smem>>
    %1574 = vector.broadcast %1573 : f32 to vector<8x129xf32>
    %1575 = arith.mulf %1574, %1485 : vector<8x129xf32>
    %1576 = arith.addf %1572, %1575 : vector<8x129xf32>
    %c22_378 = arith.constant 22 : index
    %1577 = memref.load %arg11[%c22_378] : memref<96xf32, #tpu.memory_space<smem>>
    %1578 = vector.broadcast %1577 : f32 to vector<8x129xf32>
    %1579 = arith.mulf %1578, %1486 : vector<8x129xf32>
    %1580 = arith.addf %1576, %1579 : vector<8x129xf32>
    %c23_379 = arith.constant 23 : index
    %1581 = memref.load %arg11[%c23_379] : memref<96xf32, #tpu.memory_space<smem>>
    %1582 = vector.broadcast %1581 : f32 to vector<8x129xf32>
    %1583 = arith.mulf %1582, %1487 : vector<8x129xf32>
    %1584 = arith.addf %1580, %1583 : vector<8x129xf32>
    %cst_380 = arith.constant 0.000000e+00 : f32
    %1585 = vector.broadcast %cst_380 : f32 to vector<8x129xf32>
    %c24_381 = arith.constant 24 : index
    %1586 = memref.load %arg11[%c24_381] : memref<96xf32, #tpu.memory_space<smem>>
    %1587 = vector.broadcast %1586 : f32 to vector<8x129xf32>
    %1588 = arith.mulf %1587, %1464 : vector<8x129xf32>
    %1589 = arith.addf %1585, %1588 : vector<8x129xf32>
    %c25_382 = arith.constant 25 : index
    %1590 = memref.load %arg11[%c25_382] : memref<96xf32, #tpu.memory_space<smem>>
    %1591 = vector.broadcast %1590 : f32 to vector<8x129xf32>
    %1592 = arith.mulf %1591, %1465 : vector<8x129xf32>
    %1593 = arith.addf %1589, %1592 : vector<8x129xf32>
    %c26_383 = arith.constant 26 : index
    %1594 = memref.load %arg11[%c26_383] : memref<96xf32, #tpu.memory_space<smem>>
    %1595 = vector.broadcast %1594 : f32 to vector<8x129xf32>
    %1596 = arith.mulf %1595, %1466 : vector<8x129xf32>
    %1597 = arith.addf %1593, %1596 : vector<8x129xf32>
    %c27_384 = arith.constant 27 : index
    %1598 = memref.load %arg11[%c27_384] : memref<96xf32, #tpu.memory_space<smem>>
    %1599 = vector.broadcast %1598 : f32 to vector<8x129xf32>
    %1600 = arith.mulf %1599, %1467 : vector<8x129xf32>
    %1601 = arith.addf %1597, %1600 : vector<8x129xf32>
    %c28_385 = arith.constant 28 : index
    %1602 = memref.load %arg11[%c28_385] : memref<96xf32, #tpu.memory_space<smem>>
    %1603 = vector.broadcast %1602 : f32 to vector<8x129xf32>
    %1604 = arith.mulf %1603, %1468 : vector<8x129xf32>
    %1605 = arith.addf %1601, %1604 : vector<8x129xf32>
    %c29_386 = arith.constant 29 : index
    %1606 = memref.load %arg11[%c29_386] : memref<96xf32, #tpu.memory_space<smem>>
    %1607 = vector.broadcast %1606 : f32 to vector<8x129xf32>
    %1608 = arith.mulf %1607, %1469 : vector<8x129xf32>
    %1609 = arith.addf %1605, %1608 : vector<8x129xf32>
    %c30_387 = arith.constant 30 : index
    %1610 = memref.load %arg11[%c30_387] : memref<96xf32, #tpu.memory_space<smem>>
    %1611 = vector.broadcast %1610 : f32 to vector<8x129xf32>
    %1612 = arith.mulf %1611, %1470 : vector<8x129xf32>
    %1613 = arith.addf %1609, %1612 : vector<8x129xf32>
    %c31_388 = arith.constant 31 : index
    %1614 = memref.load %arg11[%c31_388] : memref<96xf32, #tpu.memory_space<smem>>
    %1615 = vector.broadcast %1614 : f32 to vector<8x129xf32>
    %1616 = arith.mulf %1615, %1471 : vector<8x129xf32>
    %1617 = arith.addf %1613, %1616 : vector<8x129xf32>
    %c32_389 = arith.constant 32 : index
    %1618 = memref.load %arg11[%c32_389] : memref<96xf32, #tpu.memory_space<smem>>
    %1619 = vector.broadcast %1618 : f32 to vector<8x129xf32>
    %1620 = arith.mulf %1619, %1472 : vector<8x129xf32>
    %1621 = arith.addf %1617, %1620 : vector<8x129xf32>
    %c33_390 = arith.constant 33 : index
    %1622 = memref.load %arg11[%c33_390] : memref<96xf32, #tpu.memory_space<smem>>
    %1623 = vector.broadcast %1622 : f32 to vector<8x129xf32>
    %1624 = arith.mulf %1623, %1473 : vector<8x129xf32>
    %1625 = arith.addf %1621, %1624 : vector<8x129xf32>
    %c34_391 = arith.constant 34 : index
    %1626 = memref.load %arg11[%c34_391] : memref<96xf32, #tpu.memory_space<smem>>
    %1627 = vector.broadcast %1626 : f32 to vector<8x129xf32>
    %1628 = arith.mulf %1627, %1474 : vector<8x129xf32>
    %1629 = arith.addf %1625, %1628 : vector<8x129xf32>
    %c35_392 = arith.constant 35 : index
    %1630 = memref.load %arg11[%c35_392] : memref<96xf32, #tpu.memory_space<smem>>
    %1631 = vector.broadcast %1630 : f32 to vector<8x129xf32>
    %1632 = arith.mulf %1631, %1475 : vector<8x129xf32>
    %1633 = arith.addf %1629, %1632 : vector<8x129xf32>
    %c36_393 = arith.constant 36 : index
    %1634 = memref.load %arg11[%c36_393] : memref<96xf32, #tpu.memory_space<smem>>
    %1635 = vector.broadcast %1634 : f32 to vector<8x129xf32>
    %1636 = arith.mulf %1635, %1476 : vector<8x129xf32>
    %1637 = arith.addf %1633, %1636 : vector<8x129xf32>
    %c37_394 = arith.constant 37 : index
    %1638 = memref.load %arg11[%c37_394] : memref<96xf32, #tpu.memory_space<smem>>
    %1639 = vector.broadcast %1638 : f32 to vector<8x129xf32>
    %1640 = arith.mulf %1639, %1477 : vector<8x129xf32>
    %1641 = arith.addf %1637, %1640 : vector<8x129xf32>
    %c38_395 = arith.constant 38 : index
    %1642 = memref.load %arg11[%c38_395] : memref<96xf32, #tpu.memory_space<smem>>
    %1643 = vector.broadcast %1642 : f32 to vector<8x129xf32>
    %1644 = arith.mulf %1643, %1478 : vector<8x129xf32>
    %1645 = arith.addf %1641, %1644 : vector<8x129xf32>
    %c39_396 = arith.constant 39 : index
    %1646 = memref.load %arg11[%c39_396] : memref<96xf32, #tpu.memory_space<smem>>
    %1647 = vector.broadcast %1646 : f32 to vector<8x129xf32>
    %1648 = arith.mulf %1647, %1479 : vector<8x129xf32>
    %1649 = arith.addf %1645, %1648 : vector<8x129xf32>
    %c40_397 = arith.constant 40 : index
    %1650 = memref.load %arg11[%c40_397] : memref<96xf32, #tpu.memory_space<smem>>
    %1651 = vector.broadcast %1650 : f32 to vector<8x129xf32>
    %1652 = arith.mulf %1651, %1480 : vector<8x129xf32>
    %1653 = arith.addf %1649, %1652 : vector<8x129xf32>
    %c41_398 = arith.constant 41 : index
    %1654 = memref.load %arg11[%c41_398] : memref<96xf32, #tpu.memory_space<smem>>
    %1655 = vector.broadcast %1654 : f32 to vector<8x129xf32>
    %1656 = arith.mulf %1655, %1481 : vector<8x129xf32>
    %1657 = arith.addf %1653, %1656 : vector<8x129xf32>
    %c42_399 = arith.constant 42 : index
    %1658 = memref.load %arg11[%c42_399] : memref<96xf32, #tpu.memory_space<smem>>
    %1659 = vector.broadcast %1658 : f32 to vector<8x129xf32>
    %1660 = arith.mulf %1659, %1482 : vector<8x129xf32>
    %1661 = arith.addf %1657, %1660 : vector<8x129xf32>
    %c43_400 = arith.constant 43 : index
    %1662 = memref.load %arg11[%c43_400] : memref<96xf32, #tpu.memory_space<smem>>
    %1663 = vector.broadcast %1662 : f32 to vector<8x129xf32>
    %1664 = arith.mulf %1663, %1483 : vector<8x129xf32>
    %1665 = arith.addf %1661, %1664 : vector<8x129xf32>
    %c44_401 = arith.constant 44 : index
    %1666 = memref.load %arg11[%c44_401] : memref<96xf32, #tpu.memory_space<smem>>
    %1667 = vector.broadcast %1666 : f32 to vector<8x129xf32>
    %1668 = arith.mulf %1667, %1484 : vector<8x129xf32>
    %1669 = arith.addf %1665, %1668 : vector<8x129xf32>
    %c45_402 = arith.constant 45 : index
    %1670 = memref.load %arg11[%c45_402] : memref<96xf32, #tpu.memory_space<smem>>
    %1671 = vector.broadcast %1670 : f32 to vector<8x129xf32>
    %1672 = arith.mulf %1671, %1485 : vector<8x129xf32>
    %1673 = arith.addf %1669, %1672 : vector<8x129xf32>
    %c46_403 = arith.constant 46 : index
    %1674 = memref.load %arg11[%c46_403] : memref<96xf32, #tpu.memory_space<smem>>
    %1675 = vector.broadcast %1674 : f32 to vector<8x129xf32>
    %1676 = arith.mulf %1675, %1486 : vector<8x129xf32>
    %1677 = arith.addf %1673, %1676 : vector<8x129xf32>
    %c47_404 = arith.constant 47 : index
    %1678 = memref.load %arg11[%c47_404] : memref<96xf32, #tpu.memory_space<smem>>
    %1679 = vector.broadcast %1678 : f32 to vector<8x129xf32>
    %1680 = arith.mulf %1679, %1487 : vector<8x129xf32>
    %1681 = arith.addf %1677, %1680 : vector<8x129xf32>
    %cst_405 = arith.constant 0.000000e+00 : f32
    %1682 = vector.broadcast %cst_405 : f32 to vector<8x129xf32>
    %c48_406 = arith.constant 48 : index
    %1683 = memref.load %arg11[%c48_406] : memref<96xf32, #tpu.memory_space<smem>>
    %1684 = vector.broadcast %1683 : f32 to vector<8x129xf32>
    %1685 = arith.mulf %1684, %1464 : vector<8x129xf32>
    %1686 = arith.addf %1682, %1685 : vector<8x129xf32>
    %c49_407 = arith.constant 49 : index
    %1687 = memref.load %arg11[%c49_407] : memref<96xf32, #tpu.memory_space<smem>>
    %1688 = vector.broadcast %1687 : f32 to vector<8x129xf32>
    %1689 = arith.mulf %1688, %1465 : vector<8x129xf32>
    %1690 = arith.addf %1686, %1689 : vector<8x129xf32>
    %c50_408 = arith.constant 50 : index
    %1691 = memref.load %arg11[%c50_408] : memref<96xf32, #tpu.memory_space<smem>>
    %1692 = vector.broadcast %1691 : f32 to vector<8x129xf32>
    %1693 = arith.mulf %1692, %1466 : vector<8x129xf32>
    %1694 = arith.addf %1690, %1693 : vector<8x129xf32>
    %c51_409 = arith.constant 51 : index
    %1695 = memref.load %arg11[%c51_409] : memref<96xf32, #tpu.memory_space<smem>>
    %1696 = vector.broadcast %1695 : f32 to vector<8x129xf32>
    %1697 = arith.mulf %1696, %1467 : vector<8x129xf32>
    %1698 = arith.addf %1694, %1697 : vector<8x129xf32>
    %c52_410 = arith.constant 52 : index
    %1699 = memref.load %arg11[%c52_410] : memref<96xf32, #tpu.memory_space<smem>>
    %1700 = vector.broadcast %1699 : f32 to vector<8x129xf32>
    %1701 = arith.mulf %1700, %1468 : vector<8x129xf32>
    %1702 = arith.addf %1698, %1701 : vector<8x129xf32>
    %c53_411 = arith.constant 53 : index
    %1703 = memref.load %arg11[%c53_411] : memref<96xf32, #tpu.memory_space<smem>>
    %1704 = vector.broadcast %1703 : f32 to vector<8x129xf32>
    %1705 = arith.mulf %1704, %1469 : vector<8x129xf32>
    %1706 = arith.addf %1702, %1705 : vector<8x129xf32>
    %c54_412 = arith.constant 54 : index
    %1707 = memref.load %arg11[%c54_412] : memref<96xf32, #tpu.memory_space<smem>>
    %1708 = vector.broadcast %1707 : f32 to vector<8x129xf32>
    %1709 = arith.mulf %1708, %1470 : vector<8x129xf32>
    %1710 = arith.addf %1706, %1709 : vector<8x129xf32>
    %c55_413 = arith.constant 55 : index
    %1711 = memref.load %arg11[%c55_413] : memref<96xf32, #tpu.memory_space<smem>>
    %1712 = vector.broadcast %1711 : f32 to vector<8x129xf32>
    %1713 = arith.mulf %1712, %1471 : vector<8x129xf32>
    %1714 = arith.addf %1710, %1713 : vector<8x129xf32>
    %c56_414 = arith.constant 56 : index
    %1715 = memref.load %arg11[%c56_414] : memref<96xf32, #tpu.memory_space<smem>>
    %1716 = vector.broadcast %1715 : f32 to vector<8x129xf32>
    %1717 = arith.mulf %1716, %1472 : vector<8x129xf32>
    %1718 = arith.addf %1714, %1717 : vector<8x129xf32>
    %c57_415 = arith.constant 57 : index
    %1719 = memref.load %arg11[%c57_415] : memref<96xf32, #tpu.memory_space<smem>>
    %1720 = vector.broadcast %1719 : f32 to vector<8x129xf32>
    %1721 = arith.mulf %1720, %1473 : vector<8x129xf32>
    %1722 = arith.addf %1718, %1721 : vector<8x129xf32>
    %c58_416 = arith.constant 58 : index
    %1723 = memref.load %arg11[%c58_416] : memref<96xf32, #tpu.memory_space<smem>>
    %1724 = vector.broadcast %1723 : f32 to vector<8x129xf32>
    %1725 = arith.mulf %1724, %1474 : vector<8x129xf32>
    %1726 = arith.addf %1722, %1725 : vector<8x129xf32>
    %c59_417 = arith.constant 59 : index
    %1727 = memref.load %arg11[%c59_417] : memref<96xf32, #tpu.memory_space<smem>>
    %1728 = vector.broadcast %1727 : f32 to vector<8x129xf32>
    %1729 = arith.mulf %1728, %1475 : vector<8x129xf32>
    %1730 = arith.addf %1726, %1729 : vector<8x129xf32>
    %c60_418 = arith.constant 60 : index
    %1731 = memref.load %arg11[%c60_418] : memref<96xf32, #tpu.memory_space<smem>>
    %1732 = vector.broadcast %1731 : f32 to vector<8x129xf32>
    %1733 = arith.mulf %1732, %1476 : vector<8x129xf32>
    %1734 = arith.addf %1730, %1733 : vector<8x129xf32>
    %c61_419 = arith.constant 61 : index
    %1735 = memref.load %arg11[%c61_419] : memref<96xf32, #tpu.memory_space<smem>>
    %1736 = vector.broadcast %1735 : f32 to vector<8x129xf32>
    %1737 = arith.mulf %1736, %1477 : vector<8x129xf32>
    %1738 = arith.addf %1734, %1737 : vector<8x129xf32>
    %c62_420 = arith.constant 62 : index
    %1739 = memref.load %arg11[%c62_420] : memref<96xf32, #tpu.memory_space<smem>>
    %1740 = vector.broadcast %1739 : f32 to vector<8x129xf32>
    %1741 = arith.mulf %1740, %1478 : vector<8x129xf32>
    %1742 = arith.addf %1738, %1741 : vector<8x129xf32>
    %c63_421 = arith.constant 63 : index
    %1743 = memref.load %arg11[%c63_421] : memref<96xf32, #tpu.memory_space<smem>>
    %1744 = vector.broadcast %1743 : f32 to vector<8x129xf32>
    %1745 = arith.mulf %1744, %1479 : vector<8x129xf32>
    %1746 = arith.addf %1742, %1745 : vector<8x129xf32>
    %c64_422 = arith.constant 64 : index
    %1747 = memref.load %arg11[%c64_422] : memref<96xf32, #tpu.memory_space<smem>>
    %1748 = vector.broadcast %1747 : f32 to vector<8x129xf32>
    %1749 = arith.mulf %1748, %1480 : vector<8x129xf32>
    %1750 = arith.addf %1746, %1749 : vector<8x129xf32>
    %c65_423 = arith.constant 65 : index
    %1751 = memref.load %arg11[%c65_423] : memref<96xf32, #tpu.memory_space<smem>>
    %1752 = vector.broadcast %1751 : f32 to vector<8x129xf32>
    %1753 = arith.mulf %1752, %1481 : vector<8x129xf32>
    %1754 = arith.addf %1750, %1753 : vector<8x129xf32>
    %c66_424 = arith.constant 66 : index
    %1755 = memref.load %arg11[%c66_424] : memref<96xf32, #tpu.memory_space<smem>>
    %1756 = vector.broadcast %1755 : f32 to vector<8x129xf32>
    %1757 = arith.mulf %1756, %1482 : vector<8x129xf32>
    %1758 = arith.addf %1754, %1757 : vector<8x129xf32>
    %c67_425 = arith.constant 67 : index
    %1759 = memref.load %arg11[%c67_425] : memref<96xf32, #tpu.memory_space<smem>>
    %1760 = vector.broadcast %1759 : f32 to vector<8x129xf32>
    %1761 = arith.mulf %1760, %1483 : vector<8x129xf32>
    %1762 = arith.addf %1758, %1761 : vector<8x129xf32>
    %c68_426 = arith.constant 68 : index
    %1763 = memref.load %arg11[%c68_426] : memref<96xf32, #tpu.memory_space<smem>>
    %1764 = vector.broadcast %1763 : f32 to vector<8x129xf32>
    %1765 = arith.mulf %1764, %1484 : vector<8x129xf32>
    %1766 = arith.addf %1762, %1765 : vector<8x129xf32>
    %c69_427 = arith.constant 69 : index
    %1767 = memref.load %arg11[%c69_427] : memref<96xf32, #tpu.memory_space<smem>>
    %1768 = vector.broadcast %1767 : f32 to vector<8x129xf32>
    %1769 = arith.mulf %1768, %1485 : vector<8x129xf32>
    %1770 = arith.addf %1766, %1769 : vector<8x129xf32>
    %c70_428 = arith.constant 70 : index
    %1771 = memref.load %arg11[%c70_428] : memref<96xf32, #tpu.memory_space<smem>>
    %1772 = vector.broadcast %1771 : f32 to vector<8x129xf32>
    %1773 = arith.mulf %1772, %1486 : vector<8x129xf32>
    %1774 = arith.addf %1770, %1773 : vector<8x129xf32>
    %c71_429 = arith.constant 71 : index
    %1775 = memref.load %arg11[%c71_429] : memref<96xf32, #tpu.memory_space<smem>>
    %1776 = vector.broadcast %1775 : f32 to vector<8x129xf32>
    %1777 = arith.mulf %1776, %1487 : vector<8x129xf32>
    %1778 = arith.addf %1774, %1777 : vector<8x129xf32>
    %cst_430 = arith.constant 0.000000e+00 : f32
    %1779 = vector.broadcast %cst_430 : f32 to vector<8x129xf32>
    %c72_431 = arith.constant 72 : index
    %1780 = memref.load %arg11[%c72_431] : memref<96xf32, #tpu.memory_space<smem>>
    %1781 = vector.broadcast %1780 : f32 to vector<8x129xf32>
    %1782 = arith.mulf %1781, %1464 : vector<8x129xf32>
    %1783 = arith.addf %1779, %1782 : vector<8x129xf32>
    %c73_432 = arith.constant 73 : index
    %1784 = memref.load %arg11[%c73_432] : memref<96xf32, #tpu.memory_space<smem>>
    %1785 = vector.broadcast %1784 : f32 to vector<8x129xf32>
    %1786 = arith.mulf %1785, %1465 : vector<8x129xf32>
    %1787 = arith.addf %1783, %1786 : vector<8x129xf32>
    %c74_433 = arith.constant 74 : index
    %1788 = memref.load %arg11[%c74_433] : memref<96xf32, #tpu.memory_space<smem>>
    %1789 = vector.broadcast %1788 : f32 to vector<8x129xf32>
    %1790 = arith.mulf %1789, %1466 : vector<8x129xf32>
    %1791 = arith.addf %1787, %1790 : vector<8x129xf32>
    %c75_434 = arith.constant 75 : index
    %1792 = memref.load %arg11[%c75_434] : memref<96xf32, #tpu.memory_space<smem>>
    %1793 = vector.broadcast %1792 : f32 to vector<8x129xf32>
    %1794 = arith.mulf %1793, %1467 : vector<8x129xf32>
    %1795 = arith.addf %1791, %1794 : vector<8x129xf32>
    %c76_435 = arith.constant 76 : index
    %1796 = memref.load %arg11[%c76_435] : memref<96xf32, #tpu.memory_space<smem>>
    %1797 = vector.broadcast %1796 : f32 to vector<8x129xf32>
    %1798 = arith.mulf %1797, %1468 : vector<8x129xf32>
    %1799 = arith.addf %1795, %1798 : vector<8x129xf32>
    %c77_436 = arith.constant 77 : index
    %1800 = memref.load %arg11[%c77_436] : memref<96xf32, #tpu.memory_space<smem>>
    %1801 = vector.broadcast %1800 : f32 to vector<8x129xf32>
    %1802 = arith.mulf %1801, %1469 : vector<8x129xf32>
    %1803 = arith.addf %1799, %1802 : vector<8x129xf32>
    %c78_437 = arith.constant 78 : index
    %1804 = memref.load %arg11[%c78_437] : memref<96xf32, #tpu.memory_space<smem>>
    %1805 = vector.broadcast %1804 : f32 to vector<8x129xf32>
    %1806 = arith.mulf %1805, %1470 : vector<8x129xf32>
    %1807 = arith.addf %1803, %1806 : vector<8x129xf32>
    %c79_438 = arith.constant 79 : index
    %1808 = memref.load %arg11[%c79_438] : memref<96xf32, #tpu.memory_space<smem>>
    %1809 = vector.broadcast %1808 : f32 to vector<8x129xf32>
    %1810 = arith.mulf %1809, %1471 : vector<8x129xf32>
    %1811 = arith.addf %1807, %1810 : vector<8x129xf32>
    %c80_439 = arith.constant 80 : index
    %1812 = memref.load %arg11[%c80_439] : memref<96xf32, #tpu.memory_space<smem>>
    %1813 = vector.broadcast %1812 : f32 to vector<8x129xf32>
    %1814 = arith.mulf %1813, %1472 : vector<8x129xf32>
    %1815 = arith.addf %1811, %1814 : vector<8x129xf32>
    %c81_440 = arith.constant 81 : index
    %1816 = memref.load %arg11[%c81_440] : memref<96xf32, #tpu.memory_space<smem>>
    %1817 = vector.broadcast %1816 : f32 to vector<8x129xf32>
    %1818 = arith.mulf %1817, %1473 : vector<8x129xf32>
    %1819 = arith.addf %1815, %1818 : vector<8x129xf32>
    %c82_441 = arith.constant 82 : index
    %1820 = memref.load %arg11[%c82_441] : memref<96xf32, #tpu.memory_space<smem>>
    %1821 = vector.broadcast %1820 : f32 to vector<8x129xf32>
    %1822 = arith.mulf %1821, %1474 : vector<8x129xf32>
    %1823 = arith.addf %1819, %1822 : vector<8x129xf32>
    %c83_442 = arith.constant 83 : index
    %1824 = memref.load %arg11[%c83_442] : memref<96xf32, #tpu.memory_space<smem>>
    %1825 = vector.broadcast %1824 : f32 to vector<8x129xf32>
    %1826 = arith.mulf %1825, %1475 : vector<8x129xf32>
    %1827 = arith.addf %1823, %1826 : vector<8x129xf32>
    %c84_443 = arith.constant 84 : index
    %1828 = memref.load %arg11[%c84_443] : memref<96xf32, #tpu.memory_space<smem>>
    %1829 = vector.broadcast %1828 : f32 to vector<8x129xf32>
    %1830 = arith.mulf %1829, %1476 : vector<8x129xf32>
    %1831 = arith.addf %1827, %1830 : vector<8x129xf32>
    %c85_444 = arith.constant 85 : index
    %1832 = memref.load %arg11[%c85_444] : memref<96xf32, #tpu.memory_space<smem>>
    %1833 = vector.broadcast %1832 : f32 to vector<8x129xf32>
    %1834 = arith.mulf %1833, %1477 : vector<8x129xf32>
    %1835 = arith.addf %1831, %1834 : vector<8x129xf32>
    %c86_445 = arith.constant 86 : index
    %1836 = memref.load %arg11[%c86_445] : memref<96xf32, #tpu.memory_space<smem>>
    %1837 = vector.broadcast %1836 : f32 to vector<8x129xf32>
    %1838 = arith.mulf %1837, %1478 : vector<8x129xf32>
    %1839 = arith.addf %1835, %1838 : vector<8x129xf32>
    %c87_446 = arith.constant 87 : index
    %1840 = memref.load %arg11[%c87_446] : memref<96xf32, #tpu.memory_space<smem>>
    %1841 = vector.broadcast %1840 : f32 to vector<8x129xf32>
    %1842 = arith.mulf %1841, %1479 : vector<8x129xf32>
    %1843 = arith.addf %1839, %1842 : vector<8x129xf32>
    %c88_447 = arith.constant 88 : index
    %1844 = memref.load %arg11[%c88_447] : memref<96xf32, #tpu.memory_space<smem>>
    %1845 = vector.broadcast %1844 : f32 to vector<8x129xf32>
    %1846 = arith.mulf %1845, %1480 : vector<8x129xf32>
    %1847 = arith.addf %1843, %1846 : vector<8x129xf32>
    %c89_448 = arith.constant 89 : index
    %1848 = memref.load %arg11[%c89_448] : memref<96xf32, #tpu.memory_space<smem>>
    %1849 = vector.broadcast %1848 : f32 to vector<8x129xf32>
    %1850 = arith.mulf %1849, %1481 : vector<8x129xf32>
    %1851 = arith.addf %1847, %1850 : vector<8x129xf32>
    %c90_449 = arith.constant 90 : index
    %1852 = memref.load %arg11[%c90_449] : memref<96xf32, #tpu.memory_space<smem>>
    %1853 = vector.broadcast %1852 : f32 to vector<8x129xf32>
    %1854 = arith.mulf %1853, %1482 : vector<8x129xf32>
    %1855 = arith.addf %1851, %1854 : vector<8x129xf32>
    %c91_450 = arith.constant 91 : index
    %1856 = memref.load %arg11[%c91_450] : memref<96xf32, #tpu.memory_space<smem>>
    %1857 = vector.broadcast %1856 : f32 to vector<8x129xf32>
    %1858 = arith.mulf %1857, %1483 : vector<8x129xf32>
    %1859 = arith.addf %1855, %1858 : vector<8x129xf32>
    %c92_451 = arith.constant 92 : index
    %1860 = memref.load %arg11[%c92_451] : memref<96xf32, #tpu.memory_space<smem>>
    %1861 = vector.broadcast %1860 : f32 to vector<8x129xf32>
    %1862 = arith.mulf %1861, %1484 : vector<8x129xf32>
    %1863 = arith.addf %1859, %1862 : vector<8x129xf32>
    %c93_452 = arith.constant 93 : index
    %1864 = memref.load %arg11[%c93_452] : memref<96xf32, #tpu.memory_space<smem>>
    %1865 = vector.broadcast %1864 : f32 to vector<8x129xf32>
    %1866 = arith.mulf %1865, %1485 : vector<8x129xf32>
    %1867 = arith.addf %1863, %1866 : vector<8x129xf32>
    %c94_453 = arith.constant 94 : index
    %1868 = memref.load %arg11[%c94_453] : memref<96xf32, #tpu.memory_space<smem>>
    %1869 = vector.broadcast %1868 : f32 to vector<8x129xf32>
    %1870 = arith.mulf %1869, %1486 : vector<8x129xf32>
    %1871 = arith.addf %1867, %1870 : vector<8x129xf32>
    %c95_454 = arith.constant 95 : index
    %1872 = memref.load %arg11[%c95_454] : memref<96xf32, #tpu.memory_space<smem>>
    %1873 = vector.broadcast %1872 : f32 to vector<8x129xf32>
    %1874 = arith.mulf %1873, %1487 : vector<8x129xf32>
    %1875 = arith.addf %1871, %1874 : vector<8x129xf32>
    %1876 = tpu.iota {dimensions = array<i32: 0>} : vector<128x64xi32>
    %1877 = tpu.iota {dimensions = array<i32: 1>} : vector<128x64xi32>
    %c2_i32 = arith.constant 2 : i32
    %1878 = vector.broadcast %c2_i32 : i32 to vector<128x64xi32>
    %1879 = arith.muli %1878, %1877 : vector<128x64xi32>
    %1880 = arith.cmpi eq, %1876, %1879 : vector<128x64xi32>
    %1881 = arith.extui %1880 : vector<128x64xi1> to vector<128x64xi32>
    %1882 = arith.sitofp %1881 : vector<128x64xi32> to vector<128x64xf32>
    %c2_i32_455 = arith.constant 2 : i32
    %1883 = vector.broadcast %c2_i32_455 : i32 to vector<128x64xi32>
    %1884 = arith.muli %1883, %1877 : vector<128x64xi32>
    %c1_i32 = arith.constant 1 : i32
    %1885 = vector.broadcast %c1_i32 : i32 to vector<128x64xi32>
    %1886 = arith.addi %1884, %1885 : vector<128x64xi32>
    %1887 = arith.cmpi eq, %1876, %1886 : vector<128x64xi32>
    %1888 = arith.extui %1887 : vector<128x64xi1> to vector<128x64xi32>
    %1889 = arith.sitofp %1888 : vector<128x64xi32> to vector<128x64xf32>
    %1890 = tpu.iota {dimensions = array<i32: 1>} : vector<8x64xi32>
    %1891 = vector.extract_strided_slice %1584 {offsets = [0, 0], sizes = [8, 128], strides = [1, 1]} : vector<8x129xf32> to vector<8x128xf32>
    %cst_456 = arith.constant dense<0.000000e+00> : vector<8x64xf32>
    %1892 = tpu.matmul %1891, %1882, %cst_456 {dimension_numbers = #tpu.dot_dimension_numbers<[1], [0], [0], [1], [0, 0, 1, 1], [], []>} : vector<8x128xf32>, vector<128x64xf32>, vector<8x64xf32> -> vector<8x64xf32>
    %cst_457 = arith.constant dense<0.000000e+00> : vector<8x64xf32>
    %1893 = tpu.matmul %1891, %1889, %cst_457 {dimension_numbers = #tpu.dot_dimension_numbers<[1], [0], [0], [1], [0, 0, 1, 1], [], []>} : vector<8x128xf32>, vector<128x64xf32>, vector<8x64xf32> -> vector<8x64xf32>
    %1894 = arith.cmpf oge, %1892, %1893 : vector<8x64xf32>
    %1895 = arith.select %1894, %1892, %1893 : vector<8x64xi1>, vector<8x64xf32>
    %c2_i32_458 = arith.constant 2 : i32
    %1896 = vector.broadcast %c2_i32_458 : i32 to vector<8x64xi32>
    %1897 = arith.muli %1896, %1890 : vector<8x64xi32>
    %c2_i32_459 = arith.constant 2 : i32
    %1898 = vector.broadcast %c2_i32_459 : i32 to vector<8x64xi32>
    %1899 = arith.muli %1898, %1890 : vector<8x64xi32>
    %c1_i32_460 = arith.constant 1 : i32
    %1900 = vector.broadcast %c1_i32_460 : i32 to vector<8x64xi32>
    %1901 = arith.addi %1899, %1900 : vector<8x64xi32>
    %1902 = arith.select %1894, %1897, %1901 : vector<8x64xi1>, vector<8x64xi32>
    %c0_461 = arith.constant 0 : index
    %c0_462 = arith.constant 0 : index
    %c0_463 = arith.constant 0 : index
    %1903 = vector.load %arg21[%c0_461, %c0_462, %c0_463] : memref<8x4x64xi32, #tpu.memory_space<vmem>>, vector<8x1x64xi32>
    %1904 = vector.shape_cast %1903 : vector<8x1x64xi32> to vector<8x64xi32>
    %1905 = vector.shape_cast %1902 : vector<8x64xi32> to vector<8x1x64xi32>
    tpu.vector_store %arg21[%c0_461, %c0_462, %c0_463], %1905 {strides = array<i32>} : memref<8x4x64xi32, #tpu.memory_space<vmem>>, vector<8x1x64xi32>,
    %1906 = vector.extract_strided_slice %1681 {offsets = [0, 0], sizes = [8, 128], strides = [1, 1]} : vector<8x129xf32> to vector<8x128xf32>
    %cst_464 = arith.constant dense<0.000000e+00> : vector<8x64xf32>
    %1907 = tpu.matmul %1906, %1882, %cst_464 {dimension_numbers = #tpu.dot_dimension_numbers<[1], [0], [0], [1], [0, 0, 1, 1], [], []>} : vector<8x128xf32>, vector<128x64xf32>, vector<8x64xf32> -> vector<8x64xf32>
    %cst_465 = arith.constant dense<0.000000e+00> : vector<8x64xf32>
    %1908 = tpu.matmul %1906, %1889, %cst_465 {dimension_numbers = #tpu.dot_dimension_numbers<[1], [0], [0], [1], [0, 0, 1, 1], [], []>} : vector<8x128xf32>, vector<128x64xf32>, vector<8x64xf32> -> vector<8x64xf32>
    %1909 = arith.cmpf oge, %1907, %1908 : vector<8x64xf32>
    %1910 = arith.select %1909, %1907, %1908 : vector<8x64xi1>, vector<8x64xf32>
    %c2_i32_466 = arith.constant 2 : i32
    %1911 = vector.broadcast %c2_i32_466 : i32 to vector<8x64xi32>
    %1912 = arith.muli %1911, %1890 : vector<8x64xi32>
    %c2_i32_467 = arith.constant 2 : i32
    %1913 = vector.broadcast %c2_i32_467 : i32 to vector<8x64xi32>
    %1914 = arith.muli %1913, %1890 : vector<8x64xi32>
    %c1_i32_468 = arith.constant 1 : i32
    %1915 = vector.broadcast %c1_i32_468 : i32 to vector<8x64xi32>
    %1916 = arith.addi %1914, %1915 : vector<8x64xi32>
    %1917 = arith.select %1909, %1912, %1916 : vector<8x64xi1>, vector<8x64xi32>
    %c0_469 = arith.constant 0 : index
    %c1_470 = arith.constant 1 : index
    %c0_471 = arith.constant 0 : index
    %1918 = vector.load %arg21[%c0_469, %c1_470, %c0_471] : memref<8x4x64xi32, #tpu.memory_space<vmem>>, vector<8x1x64xi32>
    %1919 = vector.shape_cast %1918 : vector<8x1x64xi32> to vector<8x64xi32>
    %1920 = vector.shape_cast %1917 : vector<8x64xi32> to vector<8x1x64xi32>
    tpu.vector_store %arg21[%c0_469, %c1_470, %c0_471], %1920 {strides = array<i32>} : memref<8x4x64xi32, #tpu.memory_space<vmem>>, vector<8x1x64xi32>,
    %1921 = vector.extract_strided_slice %1778 {offsets = [0, 0], sizes = [8, 128], strides = [1, 1]} : vector<8x129xf32> to vector<8x128xf32>
    %cst_472 = arith.constant dense<0.000000e+00> : vector<8x64xf32>
    %1922 = tpu.matmul %1921, %1882, %cst_472 {dimension_numbers = #tpu.dot_dimension_numbers<[1], [0], [0], [1], [0, 0, 1, 1], [], []>} : vector<8x128xf32>, vector<128x64xf32>, vector<8x64xf32> -> vector<8x64xf32>
    %cst_473 = arith.constant dense<0.000000e+00> : vector<8x64xf32>
    %1923 = tpu.matmul %1921, %1889, %cst_473 {dimension_numbers = #tpu.dot_dimension_numbers<[1], [0], [0], [1], [0, 0, 1, 1], [], []>} : vector<8x128xf32>, vector<128x64xf32>, vector<8x64xf32> -> vector<8x64xf32>
    %1924 = arith.cmpf oge, %1922, %1923 : vector<8x64xf32>
    %1925 = arith.select %1924, %1922, %1923 : vector<8x64xi1>, vector<8x64xf32>
    %c2_i32_474 = arith.constant 2 : i32
    %1926 = vector.broadcast %c2_i32_474 : i32 to vector<8x64xi32>
    %1927 = arith.muli %1926, %1890 : vector<8x64xi32>
    %c2_i32_475 = arith.constant 2 : i32
    %1928 = vector.broadcast %c2_i32_475 : i32 to vector<8x64xi32>
    %1929 = arith.muli %1928, %1890 : vector<8x64xi32>
    %c1_i32_476 = arith.constant 1 : i32
    %1930 = vector.broadcast %c1_i32_476 : i32 to vector<8x64xi32>
    %1931 = arith.addi %1929, %1930 : vector<8x64xi32>
    %1932 = arith.select %1924, %1927, %1931 : vector<8x64xi1>, vector<8x64xi32>
    %c0_477 = arith.constant 0 : index
    %c2_478 = arith.constant 2 : index
    %c0_479 = arith.constant 0 : index
    %1933 = vector.load %arg21[%c0_477, %c2_478, %c0_479] : memref<8x4x64xi32, #tpu.memory_space<vmem>>, vector<8x1x64xi32>
    %1934 = vector.shape_cast %1933 : vector<8x1x64xi32> to vector<8x64xi32>
    %1935 = vector.shape_cast %1932 : vector<8x64xi32> to vector<8x1x64xi32>
    tpu.vector_store %arg21[%c0_477, %c2_478, %c0_479], %1935 {strides = array<i32>} : memref<8x4x64xi32, #tpu.memory_space<vmem>>, vector<8x1x64xi32>,
    %1936 = vector.extract_strided_slice %1875 {offsets = [0, 0], sizes = [8, 128], strides = [1, 1]} : vector<8x129xf32> to vector<8x128xf32>
    %cst_480 = arith.constant dense<0.000000e+00> : vector<8x64xf32>
    %1937 = tpu.matmul %1936, %1882, %cst_480 {dimension_numbers = #tpu.dot_dimension_numbers<[1], [0], [0], [1], [0, 0, 1, 1], [], []>} : vector<8x128xf32>, vector<128x64xf32>, vector<8x64xf32> -> vector<8x64xf32>
    %cst_481 = arith.constant dense<0.000000e+00> : vector<8x64xf32>
    %1938 = tpu.matmul %1936, %1889, %cst_481 {dimension_numbers = #tpu.dot_dimension_numbers<[1], [0], [0], [1], [0, 0, 1, 1], [], []>} : vector<8x128xf32>, vector<128x64xf32>, vector<8x64xf32> -> vector<8x64xf32>
    %1939 = arith.cmpf oge, %1937, %1938 : vector<8x64xf32>
    %1940 = arith.select %1939, %1937, %1938 : vector<8x64xi1>, vector<8x64xf32>
    %c2_i32_482 = arith.constant 2 : i32
    %1941 = vector.broadcast %c2_i32_482 : i32 to vector<8x64xi32>
    %1942 = arith.muli %1941, %1890 : vector<8x64xi32>
    %c2_i32_483 = arith.constant 2 : i32
    %1943 = vector.broadcast %c2_i32_483 : i32 to vector<8x64xi32>
    %1944 = arith.muli %1943, %1890 : vector<8x64xi32>
    %c1_i32_484 = arith.constant 1 : i32
    %1945 = vector.broadcast %c1_i32_484 : i32 to vector<8x64xi32>
    %1946 = arith.addi %1944, %1945 : vector<8x64xi32>
    %1947 = arith.select %1939, %1942, %1946 : vector<8x64xi1>, vector<8x64xi32>
    %c0_485 = arith.constant 0 : index
    %c3_486 = arith.constant 3 : index
    %c0_487 = arith.constant 0 : index
    %1948 = vector.load %arg21[%c0_485, %c3_486, %c0_487] : memref<8x4x64xi32, #tpu.memory_space<vmem>>, vector<8x1x64xi32>
    %1949 = vector.shape_cast %1948 : vector<8x1x64xi32> to vector<8x64xi32>
    %1950 = vector.shape_cast %1947 : vector<8x64xi32> to vector<8x1x64xi32>
    tpu.vector_store %arg21[%c0_485, %c3_486, %c0_487], %1950 {strides = array<i32>} : memref<8x4x64xi32, #tpu.memory_space<vmem>>, vector<8x1x64xi32>,
    %cst_488 = arith.constant dense<0.000000e+00> : vector<8xf32>
    %1951 = vector.multi_reduction <add>, %1895, %cst_488 [1] : vector<8x64xf32> to vector<8xf32>
    %1952 = vector.shape_cast %1951 : vector<8xf32> to vector<8x1xf32>
    %cst_489 = arith.constant 6.400000e+01 : f32
    %1953 = vector.broadcast %cst_489 : f32 to vector<8x1xf32>
    %1954 = arith.divf %1952, %1953 : vector<8x1xf32>
    %cst_490 = arith.constant dense<0.000000e+00> : vector<1xf32>
    %1955 = vector.multi_reduction <add>, %1954, %cst_490 [0] : vector<8x1xf32> to vector<1xf32>
    %1956 = vector.shape_cast %1955 : vector<1xf32> to vector<1x1xf32>
    %cst_491 = arith.constant 8.000000e+00 : f32
    %1957 = vector.broadcast %cst_491 : f32 to vector<1x1xf32>
    %1958 = arith.divf %1956, %1957 : vector<1x1xf32>
    %1959 = vector.broadcast %1958 : vector<1x1xf32> to vector<8x64xf32>
    %1960 = arith.subf %1895, %1959 : vector<8x64xf32>
    %1961 = arith.mulf %1960, %1960 : vector<8x64xf32>
    %cst_492 = arith.constant dense<0.000000e+00> : vector<8xf32>
    %1962 = vector.multi_reduction <add>, %1961, %cst_492 [1] : vector<8x64xf32> to vector<8xf32>
    %1963 = vector.shape_cast %1962 : vector<8xf32> to vector<8x1xf32>
    %cst_493 = arith.constant 6.400000e+01 : f32
    %1964 = vector.broadcast %cst_493 : f32 to vector<8x1xf32>
    %1965 = arith.divf %1963, %1964 : vector<8x1xf32>
    %cst_494 = arith.constant dense<0.000000e+00> : vector<1xf32>
    %1966 = vector.multi_reduction <add>, %1965, %cst_494 [0] : vector<8x1xf32> to vector<1xf32>
    %1967 = vector.shape_cast %1966 : vector<1xf32> to vector<1x1xf32>
    %cst_495 = arith.constant 8.000000e+00 : f32
    %1968 = vector.broadcast %cst_495 : f32 to vector<1x1xf32>
    %1969 = arith.divf %1967, %1968 : vector<1x1xf32>
    %cst_496 = arith.constant 9.99999974E-6 : f32
    %1970 = vector.broadcast %cst_496 : f32 to vector<1x1xf32>
    %1971 = arith.addf %1969, %1970 : vector<1x1xf32>
    %1972 = math.rsqrt %1971 : vector<1x1xf32>
    %1973 = vector.broadcast %1972 : vector<1x1xf32> to vector<8x64xf32>
    %1974 = arith.mulf %1960, %1973 : vector<8x64xf32>
    %c0_497 = arith.constant 0 : index
    %1975 = memref.load %arg12[%c0_497] : memref<4xf32, #tpu.memory_space<smem>>
    %1976 = vector.broadcast %1975 : f32 to vector<8x64xf32>
    %1977 = arith.mulf %1974, %1976 : vector<8x64xf32>
    %c0_498 = arith.constant 0 : index
    %1978 = memref.load %arg13[%c0_498] : memref<4xf32, #tpu.memory_space<smem>>
    %1979 = vector.broadcast %1978 : f32 to vector<8x64xf32>
    %1980 = arith.addf %1977, %1979 : vector<8x64xf32>
    %1981 = math.tanh %1980 : vector<8x64xf32>
    %cst_499 = arith.constant dense<0.000000e+00> : vector<8xf32>
    %1982 = vector.multi_reduction <add>, %1910, %cst_499 [1] : vector<8x64xf32> to vector<8xf32>
    %1983 = vector.shape_cast %1982 : vector<8xf32> to vector<8x1xf32>
    %cst_500 = arith.constant 6.400000e+01 : f32
    %1984 = vector.broadcast %cst_500 : f32 to vector<8x1xf32>
    %1985 = arith.divf %1983, %1984 : vector<8x1xf32>
    %cst_501 = arith.constant dense<0.000000e+00> : vector<1xf32>
    %1986 = vector.multi_reduction <add>, %1985, %cst_501 [0] : vector<8x1xf32> to vector<1xf32>
    %1987 = vector.shape_cast %1986 : vector<1xf32> to vector<1x1xf32>
    %cst_502 = arith.constant 8.000000e+00 : f32
    %1988 = vector.broadcast %cst_502 : f32 to vector<1x1xf32>
    %1989 = arith.divf %1987, %1988 : vector<1x1xf32>
    %1990 = vector.broadcast %1989 : vector<1x1xf32> to vector<8x64xf32>
    %1991 = arith.subf %1910, %1990 : vector<8x64xf32>
    %1992 = arith.mulf %1991, %1991 : vector<8x64xf32>
    %cst_503 = arith.constant dense<0.000000e+00> : vector<8xf32>
    %1993 = vector.multi_reduction <add>, %1992, %cst_503 [1] : vector<8x64xf32> to vector<8xf32>
    %1994 = vector.shape_cast %1993 : vector<8xf32> to vector<8x1xf32>
    %cst_504 = arith.constant 6.400000e+01 : f32
    %1995 = vector.broadcast %cst_504 : f32 to vector<8x1xf32>
    %1996 = arith.divf %1994, %1995 : vector<8x1xf32>
    %cst_505 = arith.constant dense<0.000000e+00> : vector<1xf32>
    %1997 = vector.multi_reduction <add>, %1996, %cst_505 [0] : vector<8x1xf32> to vector<1xf32>
    %1998 = vector.shape_cast %1997 : vector<1xf32> to vector<1x1xf32>
    %cst_506 = arith.constant 8.000000e+00 : f32
    %1999 = vector.broadcast %cst_506 : f32 to vector<1x1xf32>
    %2000 = arith.divf %1998, %1999 : vector<1x1xf32>
    %cst_507 = arith.constant 9.99999974E-6 : f32
    %2001 = vector.broadcast %cst_507 : f32 to vector<1x1xf32>
    %2002 = arith.addf %2000, %2001 : vector<1x1xf32>
    %2003 = math.rsqrt %2002 : vector<1x1xf32>
    %2004 = vector.broadcast %2003 : vector<1x1xf32> to vector<8x64xf32>
    %2005 = arith.mulf %1991, %2004 : vector<8x64xf32>
    %c1_508 = arith.constant 1 : index
    %2006 = memref.load %arg12[%c1_508] : memref<4xf32, #tpu.memory_space<smem>>
    %2007 = vector.broadcast %2006 : f32 to vector<8x64xf32>
    %2008 = arith.mulf %2005, %2007 : vector<8x64xf32>
    %c1_509 = arith.constant 1 : index
    %2009 = memref.load %arg13[%c1_509] : memref<4xf32, #tpu.memory_space<smem>>
    %2010 = vector.broadcast %2009 : f32 to vector<8x64xf32>
    %2011 = arith.addf %2008, %2010 : vector<8x64xf32>
    %2012 = math.tanh %2011 : vector<8x64xf32>
    %cst_510 = arith.constant dense<0.000000e+00> : vector<8xf32>
    %2013 = vector.multi_reduction <add>, %1925, %cst_510 [1] : vector<8x64xf32> to vector<8xf32>
    %2014 = vector.shape_cast %2013 : vector<8xf32> to vector<8x1xf32>
    %cst_511 = arith.constant 6.400000e+01 : f32
    %2015 = vector.broadcast %cst_511 : f32 to vector<8x1xf32>
    %2016 = arith.divf %2014, %2015 : vector<8x1xf32>
    %cst_512 = arith.constant dense<0.000000e+00> : vector<1xf32>
    %2017 = vector.multi_reduction <add>, %2016, %cst_512 [0] : vector<8x1xf32> to vector<1xf32>
    %2018 = vector.shape_cast %2017 : vector<1xf32> to vector<1x1xf32>
    %cst_513 = arith.constant 8.000000e+00 : f32
    %2019 = vector.broadcast %cst_513 : f32 to vector<1x1xf32>
    %2020 = arith.divf %2018, %2019 : vector<1x1xf32>
    %2021 = vector.broadcast %2020 : vector<1x1xf32> to vector<8x64xf32>
    %2022 = arith.subf %1925, %2021 : vector<8x64xf32>
    %2023 = arith.mulf %2022, %2022 : vector<8x64xf32>
    %cst_514 = arith.constant dense<0.000000e+00> : vector<8xf32>
    %2024 = vector.multi_reduction <add>, %2023, %cst_514 [1] : vector<8x64xf32> to vector<8xf32>
    %2025 = vector.shape_cast %2024 : vector<8xf32> to vector<8x1xf32>
    %cst_515 = arith.constant 6.400000e+01 : f32
    %2026 = vector.broadcast %cst_515 : f32 to vector<8x1xf32>
    %2027 = arith.divf %2025, %2026 : vector<8x1xf32>
    %cst_516 = arith.constant dense<0.000000e+00> : vector<1xf32>
    %2028 = vector.multi_reduction <add>, %2027, %cst_516 [0] : vector<8x1xf32> to vector<1xf32>
    %2029 = vector.shape_cast %2028 : vector<1xf32> to vector<1x1xf32>
    %cst_517 = arith.constant 8.000000e+00 : f32
    %2030 = vector.broadcast %cst_517 : f32 to vector<1x1xf32>
    %2031 = arith.divf %2029, %2030 : vector<1x1xf32>
    %cst_518 = arith.constant 9.99999974E-6 : f32
    %2032 = vector.broadcast %cst_518 : f32 to vector<1x1xf32>
    %2033 = arith.addf %2031, %2032 : vector<1x1xf32>
    %2034 = math.rsqrt %2033 : vector<1x1xf32>
    %2035 = vector.broadcast %2034 : vector<1x1xf32> to vector<8x64xf32>
    %2036 = arith.mulf %2022, %2035 : vector<8x64xf32>
    %c2_519 = arith.constant 2 : index
    %2037 = memref.load %arg12[%c2_519] : memref<4xf32, #tpu.memory_space<smem>>
    %2038 = vector.broadcast %2037 : f32 to vector<8x64xf32>
    %2039 = arith.mulf %2036, %2038 : vector<8x64xf32>
    %c2_520 = arith.constant 2 : index
    %2040 = memref.load %arg13[%c2_520] : memref<4xf32, #tpu.memory_space<smem>>
    %2041 = vector.broadcast %2040 : f32 to vector<8x64xf32>
    %2042 = arith.addf %2039, %2041 : vector<8x64xf32>
    %2043 = math.tanh %2042 : vector<8x64xf32>
    %cst_521 = arith.constant dense<0.000000e+00> : vector<8xf32>
    %2044 = vector.multi_reduction <add>, %1940, %cst_521 [1] : vector<8x64xf32> to vector<8xf32>
    %2045 = vector.shape_cast %2044 : vector<8xf32> to vector<8x1xf32>
    %cst_522 = arith.constant 6.400000e+01 : f32
    %2046 = vector.broadcast %cst_522 : f32 to vector<8x1xf32>
    %2047 = arith.divf %2045, %2046 : vector<8x1xf32>
    %cst_523 = arith.constant dense<0.000000e+00> : vector<1xf32>
    %2048 = vector.multi_reduction <add>, %2047, %cst_523 [0] : vector<8x1xf32> to vector<1xf32>
    %2049 = vector.shape_cast %2048 : vector<1xf32> to vector<1x1xf32>
    %cst_524 = arith.constant 8.000000e+00 : f32
    %2050 = vector.broadcast %cst_524 : f32 to vector<1x1xf32>
    %2051 = arith.divf %2049, %2050 : vector<1x1xf32>
    %2052 = vector.broadcast %2051 : vector<1x1xf32> to vector<8x64xf32>
    %2053 = arith.subf %1940, %2052 : vector<8x64xf32>
    %2054 = arith.mulf %2053, %2053 : vector<8x64xf32>
    %cst_525 = arith.constant dense<0.000000e+00> : vector<8xf32>
    %2055 = vector.multi_reduction <add>, %2054, %cst_525 [1] : vector<8x64xf32> to vector<8xf32>
    %2056 = vector.shape_cast %2055 : vector<8xf32> to vector<8x1xf32>
    %cst_526 = arith.constant 6.400000e+01 : f32
    %2057 = vector.broadcast %cst_526 : f32 to vector<8x1xf32>
    %2058 = arith.divf %2056, %2057 : vector<8x1xf32>
    %cst_527 = arith.constant dense<0.000000e+00> : vector<1xf32>
    %2059 = vector.multi_reduction <add>, %2058, %cst_527 [0] : vector<8x1xf32> to vector<1xf32>
    %2060 = vector.shape_cast %2059 : vector<1xf32> to vector<1x1xf32>
    %cst_528 = arith.constant 8.000000e+00 : f32
    %2061 = vector.broadcast %cst_528 : f32 to vector<1x1xf32>
    %2062 = arith.divf %2060, %2061 : vector<1x1xf32>
    %cst_529 = arith.constant 9.99999974E-6 : f32
    %2063 = vector.broadcast %cst_529 : f32 to vector<1x1xf32>
    %2064 = arith.addf %2062, %2063 : vector<1x1xf32>
    %2065 = math.rsqrt %2064 : vector<1x1xf32>
    %2066 = vector.broadcast %2065 : vector<1x1xf32> to vector<8x64xf32>
    %2067 = arith.mulf %2053, %2066 : vector<8x64xf32>
    %c3_530 = arith.constant 3 : index
    %2068 = memref.load %arg12[%c3_530] : memref<4xf32, #tpu.memory_space<smem>>
    %2069 = vector.broadcast %2068 : f32 to vector<8x64xf32>
    %2070 = arith.mulf %2067, %2069 : vector<8x64xf32>
    %c3_531 = arith.constant 3 : index
    %2071 = memref.load %arg13[%c3_531] : memref<4xf32, #tpu.memory_space<smem>>
    %2072 = vector.broadcast %2071 : f32 to vector<8x64xf32>
    %2073 = arith.addf %2070, %2072 : vector<8x64xf32>
    %2074 = math.tanh %2073 : vector<8x64xf32>
    %c0_532 = arith.constant 0 : index
    %c0_533 = arith.constant 0 : index
    %c0_534 = arith.constant 0 : index
    %2075 = vector.load %arg14[%c0_532, %c0_533, %c0_534] : memref<4x64x32xf32, #tpu.memory_space<vmem>>, vector<1x64x32xf32>
    %2076 = vector.shape_cast %2075 : vector<1x64x32xf32> to vector<64x32xf32>
    %cst_535 = arith.constant dense<0.000000e+00> : vector<8x32xf32>
    %2077 = tpu.matmul %1981, %2076, %cst_535 {dimension_numbers = #tpu.dot_dimension_numbers<[1], [0], [0], [1], [0, 0, 1, 1], [], []>} : vector<8x64xf32>, vector<64x32xf32>, vector<8x32xf32> -> vector<8x32xf32>
    %c1_536 = arith.constant 1 : index
    %c0_537 = arith.constant 0 : index
    %c0_538 = arith.constant 0 : index
    %2078 = vector.load %arg14[%c1_536, %c0_537, %c0_538] : memref<4x64x32xf32, #tpu.memory_space<vmem>>, vector<1x64x32xf32>
    %2079 = vector.shape_cast %2078 : vector<1x64x32xf32> to vector<64x32xf32>
    %cst_539 = arith.constant dense<0.000000e+00> : vector<8x32xf32>
    %2080 = tpu.matmul %2012, %2079, %cst_539 {dimension_numbers = #tpu.dot_dimension_numbers<[1], [0], [0], [1], [0, 0, 1, 1], [], []>} : vector<8x64xf32>, vector<64x32xf32>, vector<8x32xf32> -> vector<8x32xf32>
    %2081 = arith.addf %2077, %2080 : vector<8x32xf32>
    %c2_540 = arith.constant 2 : index
    %c0_541 = arith.constant 0 : index
    %c0_542 = arith.constant 0 : index
    %2082 = vector.load %arg14[%c2_540, %c0_541, %c0_542] : memref<4x64x32xf32, #tpu.memory_space<vmem>>, vector<1x64x32xf32>
    %2083 = vector.shape_cast %2082 : vector<1x64x32xf32> to vector<64x32xf32>
    %cst_543 = arith.constant dense<0.000000e+00> : vector<8x32xf32>
    %2084 = tpu.matmul %2043, %2083, %cst_543 {dimension_numbers = #tpu.dot_dimension_numbers<[1], [0], [0], [1], [0, 0, 1, 1], [], []>} : vector<8x64xf32>, vector<64x32xf32>, vector<8x32xf32> -> vector<8x32xf32>
    %2085 = arith.addf %2081, %2084 : vector<8x32xf32>
    %c3_544 = arith.constant 3 : index
    %c0_545 = arith.constant 0 : index
    %c0_546 = arith.constant 0 : index
    %2086 = vector.load %arg14[%c3_544, %c0_545, %c0_546] : memref<4x64x32xf32, #tpu.memory_space<vmem>>, vector<1x64x32xf32>
    %2087 = vector.shape_cast %2086 : vector<1x64x32xf32> to vector<64x32xf32>
    %cst_547 = arith.constant dense<0.000000e+00> : vector<8x32xf32>
    %2088 = tpu.matmul %2074, %2087, %cst_547 {dimension_numbers = #tpu.dot_dimension_numbers<[1], [0], [0], [1], [0, 0, 1, 1], [], []>} : vector<8x64xf32>, vector<64x32xf32>, vector<8x32xf32> -> vector<8x32xf32>
    %2089 = arith.addf %2085, %2088 : vector<8x32xf32>
    %c0_548 = arith.constant 0 : index
    %c0_549 = arith.constant 0 : index
    %2090 = vector.load %arg15[%c0_548, %c0_549] : memref<1x32xf32, #tpu.memory_space<vmem>>, vector<1x32xf32>
    %2091 = vector.broadcast %2090 : vector<1x32xf32> to vector<8x32xf32>
    %2092 = arith.addf %2089, %2091 : vector<8x32xf32>
    %cst_550 = arith.constant 0.000000e+00 : f32
    %2093 = vector.broadcast %cst_550 : f32 to vector<8x32xf32>
    %2094 = arith.maximumf %2092, %2093 : vector<8x32xf32>
    %c0_551 = arith.constant 0 : index
    %c0_552 = arith.constant 0 : index
    %2095 = vector.load %arg16[%c0_551, %c0_552] : memref<32x24xf32, #tpu.memory_space<vmem>>, vector<32x24xf32>
    %cst_553 = arith.constant dense<0.000000e+00> : vector<8x24xf32>
    %2096 = tpu.matmul %2094, %2095, %cst_553 {dimension_numbers = #tpu.dot_dimension_numbers<[1], [0], [0], [1], [0, 0, 1, 1], [], []>} : vector<8x32xf32>, vector<32x24xf32>, vector<8x24xf32> -> vector<8x24xf32>
    %c0_554 = arith.constant 0 : index
    %c0_555 = arith.constant 0 : index
    %2097 = vector.load %arg17[%c0_554, %c0_555] : memref<1x24xf32, #tpu.memory_space<vmem>>, vector<1x24xf32>
    %2098 = vector.broadcast %2097 : vector<1x24xf32> to vector<8x24xf32>
    %2099 = arith.addf %2096, %2098 : vector<8x24xf32>
    %cst_556 = arith.constant 0.000000e+00 : f32
    %2100 = vector.broadcast %cst_556 : f32 to vector<8x24xf32>
    %2101 = arith.maximumf %2099, %2100 : vector<8x24xf32>
    %c0_557 = arith.constant 0 : index
    %c0_558 = arith.constant 0 : index
    %2102 = vector.load %arg18[%c0_557, %c0_558] : memref<24x16xf32, #tpu.memory_space<vmem>>, vector<24x16xf32>
    %cst_559 = arith.constant dense<0.000000e+00> : vector<8x16xf32>
    %2103 = tpu.matmul %2101, %2102, %cst_559 {dimension_numbers = #tpu.dot_dimension_numbers<[1], [0], [0], [1], [0, 0, 1, 1], [], []>} : vector<8x24xf32>, vector<24x16xf32>, vector<8x16xf32> -> vector<8x16xf32>
    %c0_560 = arith.constant 0 : index
    %c0_561 = arith.constant 0 : index
    %2104 = vector.load %arg19[%c0_560, %c0_561] : memref<1x16xf32, #tpu.memory_space<vmem>>, vector<1x16xf32>
    %2105 = vector.broadcast %2104 : vector<1x16xf32> to vector<8x16xf32>
    %2106 = arith.addf %2103, %2105 : vector<8x16xf32>
    %c0_562 = arith.constant 0 : index
    %c0_563 = arith.constant 0 : index
    %2107 = vector.load %arg20[%c0_562, %c0_563] : memref<8x16xf32, #tpu.memory_space<vmem>>, vector<8x16xf32>
    tpu.vector_store %arg20[%c0_562, %c0_563], %2106 {strides = array<i32>} : memref<8x16xf32, #tpu.memory_space<vmem>>, vector<8x16xf32>,
    return
  }
}

</mosaic_0001>

<llo_original>
// kernel: tpu_custom_call.1
$region0: #{tpu_custom_call.1}
  #allocation0 [shape = 'u32[]', space=smem, size = 0x4, offset = 0x4, fixed_abs, tag = 'smem constant byte address 0x4 - core index']
  #allocation1 [shape = 'u32[144,128]{1,0:T(1,128)}', space=vmem, size = 0x12000, scoped, tag = 'internal scratch']
  %s0 = inlined_call_operand.vmem [shape: f32[8,1,128], index: 0, kind: input, shape index: {}]
  %s1 = inlined_call_operand.vmem [shape: f32[48], index: 1, kind: input, shape index: {}]
  %s2 = inlined_call_operand.vmem [shape: f32[4], index: 2, kind: input, shape index: {}]
  %s3 = inlined_call_operand.vmem [shape: f32[4], index: 3, kind: input, shape index: {}]
  %s4 = inlined_call_operand.vmem [shape: f32[4], index: 4, kind: input, shape index: {}]
  %s5 = inlined_call_operand.vmem [shape: f32[48], index: 5, kind: input, shape index: {}]
  %s6 = inlined_call_operand.vmem [shape: f32[6], index: 6, kind: input, shape index: {}]
  %s7 = inlined_call_operand.vmem [shape: f32[6], index: 7, kind: input, shape index: {}]
  %s8 = inlined_call_operand.vmem [shape: f32[96], index: 8, kind: input, shape index: {}]
  %s9 = inlined_call_operand.vmem [shape: f32[8], index: 9, kind: input, shape index: {}]
  %s10 = inlined_call_operand.vmem [shape: f32[8], index: 10, kind: input, shape index: {}]
  %s11 = inlined_call_operand.vmem [shape: f32[96], index: 11, kind: input, shape index: {}]
  %s12 = inlined_call_operand.vmem [shape: f32[4], index: 12, kind: input, shape index: {}]
  %s13 = inlined_call_operand.vmem [shape: f32[4], index: 13, kind: input, shape index: {}]
  %s14 = inlined_call_operand.vmem [shape: f32[4,64,32], index: 14, kind: input, shape index: {}]
  %s15 = inlined_call_operand.vmem [shape: f32[1,32], index: 15, kind: input, shape index: {}]
  %s16 = inlined_call_operand.vmem [shape: f32[32,24], index: 16, kind: input, shape index: {}]
  %s17 = inlined_call_operand.vmem [shape: f32[1,24], index: 17, kind: input, shape index: {}]
  %s18 = inlined_call_operand.vmem [shape: f32[24,16], index: 18, kind: input, shape index: {}]
  %s19 = inlined_call_operand.vmem [shape: f32[1,16], index: 19, kind: input, shape index: {}]
  %s20 = inlined_call_operand.hbm [shape: f32[8,16], index: 20, kind: output, shape index: {0}]
  %s21 = inlined_call_operand.hbm [shape: s32[8,4,64], index: 21, kind: output, shape index: {1}]
  %22 = xla_tuple %s20, %s21
  %s23 = sld [smem:[#allocation0]]
  $region150: #{tpu_custom_call.1} parent=0
    _
  %s25 = ssub.s32 1, %s23
  %s26 = scalar_select 0, %s25, %s23
  $region1: #{tpu_custom_call.1} parent=0
    #allocation2 [shape = 'u8[512]{0}', space=smem, size = 0x200, scoped, tag = 'input window, operand 1, single buffered']
    #allocation3 [shape = 's32[1]{0}', space=sflag, size = 0x4, scoped, tag = 'scoped memory for tpu_custom_call.1']
    #allocation4 [shape = 's32[1]{0}', space=sflag, size = 0x4, scoped, tag = 'scoped memory for tpu_custom_call.1']
    #allocation5 [shape = 'u8[512]{0}', space=smem, size = 0x200, scoped, tag = 'input window, operand 2, single buffered']
    #allocation6 [shape = 's32[1]{0}', space=sflag, size = 0x4, scoped, tag = 'scoped memory for tpu_custom_call.1']
    #allocation7 [shape = 'u8[512]{0}', space=smem, size = 0x200, scoped, tag = 'input window, operand 3, single buffered']
    #allocation8 [shape = 'u8[512]{0}', space=smem, size = 0x200, scoped, tag = 'input window, operand 4, single buffered']
    #allocation9 [shape = 's32[1]{0}', space=sflag, size = 0x4, scoped, tag = 'scoped memory for tpu_custom_call.1']
    #allocation10 [shape = 'u8[512]{0}', space=smem, size = 0x200, scoped, tag = 'input window, operand 5, single buffered']
    #allocation11 [shape = 'u8[512]{0}', space=smem, size = 0x200, scoped, tag = 'input window, operand 6, single buffered']
    #allocation12 [shape = 's32[1]{0}', space=sflag, size = 0x4, scoped, tag = 'scoped memory for tpu_custom_call.1']
    #allocation13 [shape = 'u8[512]{0}', space=smem, size = 0x200, scoped, tag = 'input window, operand 7, single buffered']
    #allocation14 [shape = 'u8[512]{0}', space=smem, size = 0x200, scoped, tag = 'input window, operand 8, single buffered']
    #allocation15 [shape = 's32[1]{0}', space=sflag, size = 0x4, scoped, tag = 'scoped memory for tpu_custom_call.1']
    #allocation16 [shape = 'u8[512]{0}', space=smem, size = 0x200, scoped, tag = 'input window, operand 9, single buffered']
    #allocation17 [shape = 'u8[512]{0}', space=smem, size = 0x200, scoped, tag = 'input window, operand 10, single buffered']
    #allocation18 [shape = 's32[1]{0}', space=sflag, size = 0x4, scoped, tag = 'scoped memory for tpu_custom_call.1']
    #allocation19 [shape = 'u8[512]{0}', space=smem, size = 0x200, scoped, tag = 'input window, operand 11, single buffered']
    #allocation20 [shape = 'u8[512]{0}', space=smem, size = 0x200, scoped, tag = 'input window, operand 12, single buffered']
    #allocation21 [shape = 's32[1]{0}', space=sflag, size = 0x4, scoped, tag = 'scoped memory for tpu_custom_call.1']
    #allocation22 [shape = 'u8[512]{0}', space=smem, size = 0x200, scoped, tag = 'input window, operand 13, single buffered']
    #allocation23 [shape = 'u8[4096]{0}', space=vmem, size = 0x1000, scoped, tag = 'output window, operand 0, single buffered']
    #allocation24 [shape = 'u8[16384]{0}', space=vmem, size = 0x4000, scoped, tag = 'output window, operand 1, single buffered']
    #allocation25 [shape = 's32[1]{0}', space=sflag, size = 0x4, scoped, tag = 'scoped memory for tpu_custom_call.1']
    %27 = vsyncpa [#allocation4], 0
    %28 = vsyncpa [#allocation6], 0
    %29 = vsyncpa [#allocation9], 0
    %30 = vsyncpa [#allocation12], 0
    %31 = vsyncpa [#allocation15], 0
    %32 = vsyncpa [#allocation18], 0
    %33 = vsyncpa [#allocation21], 0
    %34 = vsyncpa [#allocation3], 0
    %35 = vsyncpa [#allocation25], 0
    // Predicated region
    $region2: #{tpu_custom_call.1} parent=1 // pred_check
      _
    $region3: #{tpu_custom_call.1} parent=1 // pred_check_branch
      %37 = sbr.rel (0) target = $region5
    $region4: #{tpu_custom_call.1} parent=1 // pred_region
      _
    $region5: #{tpu_custom_call.1} parent=1 // pred_fallthru
      _
    // Predicated region
    $region6: #{tpu_custom_call.1} parent=1 // pred_check
      _
    $region7: #{tpu_custom_call.1} parent=1 // pred_check_branch
      %39 = sbr.rel (0) target = $region9
    $region8: #{tpu_custom_call.1} parent=1 // pred_region
      %s41 = ssub.s32 16, 16
      %42 = vsyncadd [#allocation4], %s41
      %s44 = sshll.u32 %s1, 4
      %s45 = int_to_ptr.vmem [resolvable:$true] %s44
      %47 = dma.vmem_to_smem %s45, 16, [#allocation2], [#allocation4]
    $region9: #{tpu_custom_call.1} parent=1 // pred_fallthru
      _
    // Predicated region
    $region10: #{tpu_custom_call.1} parent=1 // pred_check
      _
    $region11: #{tpu_custom_call.1} parent=1 // pred_check_branch
      %49 = sbr.rel (0) target = $region13
    $region12: #{tpu_custom_call.1} parent=1 // pred_region
      %s51 = ssub.s32 16, 16
      %52 = vsyncadd [#allocation6], %s51
      %s54 = sshll.u32 %s2, 4
      %s55 = int_to_ptr.vmem [resolvable:$true] %s54
      %57 = dma.vmem_to_smem %s55, 16, [#allocation5], [#allocation6]
    $region13: #{tpu_custom_call.1} parent=1 // pred_fallthru
      _
    // Predicated region
    $region14: #{tpu_custom_call.1} parent=1 // pred_check
      _
    $region15: #{tpu_custom_call.1} parent=1 // pred_check_branch
      %59 = sbr.rel (0) target = $region17
    $region16: #{tpu_custom_call.1} parent=1 // pred_region
      %s61 = ssub.s32 16, 16
      %62 = vsyncadd [#allocation6], %s61
      %s64 = sshll.u32 %s3, 4
      %s65 = int_to_ptr.vmem [resolvable:$true] %s64
      %67 = dma.vmem_to_smem %s65, 16, [#allocation7], [#allocation6]
    $region17: #{tpu_custom_call.1} parent=1 // pred_fallthru
      _
    // Predicated region
    $region18: #{tpu_custom_call.1} parent=1 // pred_check
      _
    $region19: #{tpu_custom_call.1} parent=1 // pred_check_branch
      %69 = sbr.rel (0) target = $region21
    $region20: #{tpu_custom_call.1} parent=1 // pred_region
      %s71 = ssub.s32 16, 16
      %72 = vsyncadd [#allocation9], %s71
      %s74 = sshll.u32 %s4, 4
      %s75 = int_to_ptr.vmem [resolvable:$true] %s74
      %77 = dma.vmem_to_smem %s75, 16, [#allocation8], [#allocation9]
    $region21: #{tpu_custom_call.1} parent=1 // pred_fallthru
      _
    // Predicated region
    $region22: #{tpu_custom_call.1} parent=1 // pred_check
      _
    $region23: #{tpu_custom_call.1} parent=1 // pred_check_branch
      %79 = sbr.rel (0) target = $region25
    $region24: #{tpu_custom_call.1} parent=1 // pred_region
      %s81 = ssub.s32 16, 16
      %82 = vsyncadd [#allocation9], %s81
      %s84 = sshll.u32 %s5, 4
      %s85 = int_to_ptr.vmem [resolvable:$true] %s84
      %87 = dma.vmem_to_smem %s85, 16, [#allocation10], [#allocation9]
    $region25: #{tpu_custom_call.1} parent=1 // pred_fallthru
      _
    // Predicated region
    $region26: #{tpu_custom_call.1} parent=1 // pred_check
      _
    $region27: #{tpu_custom_call.1} parent=1 // pred_check_branch
      %89 = sbr.rel (0) target = $region29
    $region28: #{tpu_custom_call.1} parent=1 // pred_region
      %s91 = ssub.s32 16, 16
      %92 = vsyncadd [#allocation12], %s91
      %s94 = sshll.u32 %s6, 4
      %s95 = int_to_ptr.vmem [resolvable:$true] %s94
      %97 = dma.vmem_to_smem %s95, 16, [#allocation11], [#allocation12]
    $region29: #{tpu_custom_call.1} parent=1 // pred_fallthru
      _
    // Predicated region
    $region30: #{tpu_custom_call.1} parent=1 // pred_check
      _
    $region31: #{tpu_custom_call.1} parent=1 // pred_check_branch
      %99 = sbr.rel (0) target = $region33
    $region32: #{tpu_custom_call.1} parent=1 // pred_region
      %s101 = ssub.s32 16, 16
      %102 = vsyncadd [#allocation12], %s101
      %s104 = sshll.u32 %s7, 4
      %s105 = int_to_ptr.vmem [resolvable:$true] %s104
      %107 = dma.vmem_to_smem %s105, 16, [#allocation13], [#allocation12]
    $region33: #{tpu_custom_call.1} parent=1 // pred_fallthru
      _
    // Predicated region
    $region34: #{tpu_custom_call.1} parent=1 // pred_check
      _
    $region35: #{tpu_custom_call.1} parent=1 // pred_check_branch
      %109 = sbr.rel (0) target = $region37
    $region36: #{tpu_custom_call.1} parent=1 // pred_region
      %s111 = ssub.s32 16, 16
      %112 = vsyncadd [#allocation15], %s111
      %s114 = sshll.u32 %s8, 4
      %s115 = int_to_ptr.vmem [resolvable:$true] %s114
      %117 = dma.vmem_to_smem %s115, 16, [#allocation14], [#allocation15]
    $region37: #{tpu_custom_call.1} parent=1 // pred_fallthru
      _
    // Predicated region
    $region38: #{tpu_custom_call.1} parent=1 // pred_check
      _
    $region39: #{tpu_custom_call.1} parent=1 // pred_check_branch
      %119 = sbr.rel (0) target = $region41
    $region40: #{tpu_custom_call.1} parent=1 // pred_region
      %s121 = ssub.s32 16, 16
      %122 = vsyncadd [#allocation15], %s121
      %s124 = sshll.u32 %s9, 4
      %s125 = int_to_ptr.vmem [resolvable:$true] %s124
      %127 = dma.vmem_to_smem %s125, 16, [#allocation16], [#allocation15]
    $region41: #{tpu_custom_call.1} parent=1 // pred_fallthru
      _
    // Predicated region
    $region42: #{tpu_custom_call.1} parent=1 // pred_check
      _
    $region43: #{tpu_custom_call.1} parent=1 // pred_check_branch
      %129 = sbr.rel (0) target = $region45
    $region44: #{tpu_custom_call.1} parent=1 // pred_region
      %s131 = ssub.s32 16, 16
      %132 = vsyncadd [#allocation18], %s131
      %s134 = sshll.u32 %s10, 4
      %s135 = int_to_ptr.vmem [resolvable:$true] %s134
      %137 = dma.vmem_to_smem %s135, 16, [#allocation17], [#allocation18]
    $region45: #{tpu_custom_call.1} parent=1 // pred_fallthru
      _
    // Predicated region
    $region46: #{tpu_custom_call.1} parent=1 // pred_check
      _
    $region47: #{tpu_custom_call.1} parent=1 // pred_check_branch
      %139 = sbr.rel (0) target = $region49
    $region48: #{tpu_custom_call.1} parent=1 // pred_region
      %s141 = ssub.s32 16, 16
      %142 = vsyncadd [#allocation18], %s141
      %s144 = sshll.u32 %s11, 4
      %s145 = int_to_ptr.vmem [resolvable:$true] %s144
      %147 = dma.vmem_to_smem %s145, 16, [#allocation19], [#allocation18]
    $region49: #{tpu_custom_call.1} parent=1 // pred_fallthru
      _
    // Predicated region
    $region50: #{tpu_custom_call.1} parent=1 // pred_check
      _
    $region51: #{tpu_custom_call.1} parent=1 // pred_check_branch
      %149 = sbr.rel (0) target = $region53
    $region52: #{tpu_custom_call.1} parent=1 // pred_region
      %s151 = ssub.s32 16, 16
      %152 = vsyncadd [#allocation21], %s151
      %s154 = sshll.u32 %s12, 4
      %s155 = int_to_ptr.vmem [resolvable:$true] %s154
      %157 = dma.vmem_to_smem %s155, 16, [#allocation20], [#allocation21]
    $region53: #{tpu_custom_call.1} parent=1 // pred_fallthru
      _
    // Predicated region
    $region54: #{tpu_custom_call.1} parent=1 // pred_check
      _
    $region55: #{tpu_custom_call.1} parent=1 // pred_check_branch
      %159 = sbr.rel (0) target = $region57
    $region56: #{tpu_custom_call.1} parent=1 // pred_region
      %s161 = ssub.s32 16, 16
      %162 = vsyncadd [#allocation21], %s161
      %s164 = sshll.u32 %s13, 4
      %s165 = int_to_ptr.vmem [resolvable:$true] %s164
      %167 = dma.vmem_to_smem %s165, 16, [#allocation22], [#allocation21]
    $region57: #{tpu_custom_call.1} parent=1 // pred_fallthru
      _
    // Predicated region
    $region58: #{tpu_custom_call.1} parent=1 // pred_check
      _
    $region59: #{tpu_custom_call.1} parent=1 // pred_check_branch
      %169 = sbr.rel (0) target = $region61
    $region60: #{tpu_custom_call.1} parent=1 // pred_region
      _
    $region61: #{tpu_custom_call.1} parent=1 // pred_fallthru
      _
    // Predicated region
    $region62: #{tpu_custom_call.1} parent=1 // pred_check
      _
    $region63: #{tpu_custom_call.1} parent=1 // pred_check_branch
      %171 = sbr.rel (0) target = $region65
    $region64: #{tpu_custom_call.1} parent=1 // pred_region
      _
    $region65: #{tpu_custom_call.1} parent=1 // pred_fallthru
      _
    // Predicated region
    $region66: #{tpu_custom_call.1} parent=1 // pred_check
      _
    $region67: #{tpu_custom_call.1} parent=1 // pred_check_branch
      %173 = sbr.rel (0) target = $region69
    $region68: #{tpu_custom_call.1} parent=1 // pred_region
      _
    $region69: #{tpu_custom_call.1} parent=1 // pred_fallthru
      _
    // Predicated region
    $region70: #{tpu_custom_call.1} parent=1 // pred_check
      _
    $region71: #{tpu_custom_call.1} parent=1 // pred_check_branch
      %175 = sbr.rel (0) target = $region73
    $region72: #{tpu_custom_call.1} parent=1 // pred_region
      _
    $region73: #{tpu_custom_call.1} parent=1 // pred_fallthru
      _
    // Predicated region
    $region74: #{tpu_custom_call.1} parent=1 // pred_check
      _
    $region75: #{tpu_custom_call.1} parent=1 // pred_check_branch
      %177 = sbr.rel (0) target = $region77
    $region76: #{tpu_custom_call.1} parent=1 // pred_region
      _
    $region77: #{tpu_custom_call.1} parent=1 // pred_fallthru
      _
    // Predicated region
    $region78: #{tpu_custom_call.1} parent=1 // pred_check
      _
    $region79: #{tpu_custom_call.1} parent=1 // pred_check_branch
      %179 = sbr.rel (0) target = $region81
    $region80: #{tpu_custom_call.1} parent=1 // pred_region
      _
    $region81: #{tpu_custom_call.1} parent=1 // pred_fallthru
      _
    // Predicated region
    $region82: #{tpu_custom_call.1} parent=1 // pred_check
      _
    $region83: #{tpu_custom_call.1} parent=1 // pred_check_branch
      %181 = sbr.rel (0) target = $region85
    $region84: #{tpu_custom_call.1} parent=1 // pred_region
      %182 = dma.done [#allocation4], 16
    $region85: #{tpu_custom_call.1} parent=1 // pred_fallthru
      _
    // Predicated region
    $region86: #{tpu_custom_call.1} parent=1 // pred_check
      _
    $region87: #{tpu_custom_call.1} parent=1 // pred_check_branch
      %184 = sbr.rel (0) target = $region89
    $region88: #{tpu_custom_call.1} parent=1 // pred_region
      %185 = dma.done [#allocation6], 16
    $region89: #{tpu_custom_call.1} parent=1 // pred_fallthru
      _
    // Predicated region
    $region90: #{tpu_custom_call.1} parent=1 // pred_check
      _
    $region91: #{tpu_custom_call.1} parent=1 // pred_check_branch
      %187 = sbr.rel (0) target = $region93
    $region92: #{tpu_custom_call.1} parent=1 // pred_region
      %188 = dma.done [#allocation6], 16
    $region93: #{tpu_custom_call.1} parent=1 // pred_fallthru
      _
    // Predicated region
    $region94: #{tpu_custom_call.1} parent=1 // pred_check
      _
    $region95: #{tpu_custom_call.1} parent=1 // pred_check_branch
      %190 = sbr.rel (0) target = $region97
    $region96: #{tpu_custom_call.1} parent=1 // pred_region
      %191 = dma.done [#allocation9], 16
    $region97: #{tpu_custom_call.1} parent=1 // pred_fallthru
      _
    // Predicated region
    $region98: #{tpu_custom_call.1} parent=1 // pred_check
      _
    $region99: #{tpu_custom_call.1} parent=1 // pred_check_branch
      %193 = sbr.rel (0) target = $region101
    $region100: #{tpu_custom_call.1} parent=1 // pred_region
      %194 = dma.done [#allocation9], 16
    $region101: #{tpu_custom_call.1} parent=1 // pred_fallthru
      _
    // Predicated region
    $region102: #{tpu_custom_call.1} parent=1 // pred_check
      _
    $region103: #{tpu_custom_call.1} parent=1 // pred_check_branch
      %196 = sbr.rel (0) target = $region105
    $region104: #{tpu_custom_call.1} parent=1 // pred_region
      %197 = dma.done [#allocation12], 16
    $region105: #{tpu_custom_call.1} parent=1 // pred_fallthru
      _
    // Predicated region
    $region106: #{tpu_custom_call.1} parent=1 // pred_check
      _
    $region107: #{tpu_custom_call.1} parent=1 // pred_check_branch
      %199 = sbr.rel (0) target = $region109
    $region108: #{tpu_custom_call.1} parent=1 // pred_region
      %200 = dma.done [#allocation12], 16
    $region109: #{tpu_custom_call.1} parent=1 // pred_fallthru
      _
    // Predicated region
    $region110: #{tpu_custom_call.1} parent=1 // pred_check
      _
    $region111: #{tpu_custom_call.1} parent=1 // pred_check_branch
      %202 = sbr.rel (0) target = $region113
    $region112: #{tpu_custom_call.1} parent=1 // pred_region
      %203 = dma.done [#allocation15], 16
    $region113: #{tpu_custom_call.1} parent=1 // pred_fallthru
      _
    // Predicated region
    $region114: #{tpu_custom_call.1} parent=1 // pred_check
      _
    $region115: #{tpu_custom_call.1} parent=1 // pred_check_branch
      %205 = sbr.rel (0) target = $region117
    $region116: #{tpu_custom_call.1} parent=1 // pred_region
      %206 = dma.done [#allocation15], 16
    $region117: #{tpu_custom_call.1} parent=1 // pred_fallthru
      _
    // Predicated region
    $region118: #{tpu_custom_call.1} parent=1 // pred_check
      _
    $region119: #{tpu_custom_call.1} parent=1 // pred_check_branch
      %208 = sbr.rel (0) target = $region121
    $region120: #{tpu_custom_call.1} parent=1 // pred_region
      %209 = dma.done [#allocation18], 16
    $region121: #{tpu_custom_call.1} parent=1 // pred_fallthru
      _
    // Predicated region
    $region122: #{tpu_custom_call.1} parent=1 // pred_check
      _
    $region123: #{tpu_custom_call.1} parent=1 // pred_check_branch
      %211 = sbr.rel (0) target = $region125
    $region124: #{tpu_custom_call.1} parent=1 // pred_region
      %212 = dma.done [#allocation18], 16
    $region125: #{tpu_custom_call.1} parent=1 // pred_fallthru
      _
    // Predicated region
    $region126: #{tpu_custom_call.1} parent=1 // pred_check
      _
    $region127: #{tpu_custom_call.1} parent=1 // pred_check_branch
      %214 = sbr.rel (0) target = $region129
    $region128: #{tpu_custom_call.1} parent=1 // pred_region
      %215 = dma.done [#allocation21], 16
    $region129: #{tpu_custom_call.1} parent=1 // pred_fallthru
      _
    // Predicated region
    $region130: #{tpu_custom_call.1} parent=1 // pred_check
      _
    $region131: #{tpu_custom_call.1} parent=1 // pred_check_branch
      %217 = sbr.rel (0) target = $region133
    $region132: #{tpu_custom_call.1} parent=1 // pred_region
      %218 = dma.done [#allocation21], 16
    $region133: #{tpu_custom_call.1} parent=1 // pred_fallthru
      _
    %219 = sfence
    %v220 = vld [vmem:[%s0] sm:$0x1]
    %v221 = vld [vmem:[%s0 + $0x1] sm:$0x1]
    %v222 = vld [vmem:[%s0 + $0x2] sm:$0x1]
    %v223 = vld [vmem:[%s0 + $0x3] sm:$0x1]
    %v224 = vld [vmem:[%s0 + $0x4] sm:$0x1]
    %v225 = vld [vmem:[%s0 + $0x5] sm:$0x1]
    %v226 = vld [vmem:[%s0 + $0x6] sm:$0x1]
    %v227 = vld [vmem:[%s0 + $0x7] sm:$0x1]
    %v236 = vcombine.low %v220, %v221
    %v237 = vcombine.low %v222, %v223
    %v238 = vcombine.low %v224, %v225
    %v239 = vcombine.low %v226, %v227
    %v241 = vunpack.c.l.s4 1966171168
    %v242 = vunpack.c.0.s8 %v241
    %v243 = vlaneseq
    %v244 = vshrl.u32 %v243, 7
    %v245 = vsub.s32 %v242, %v244
    %v246 = vrot.slane %v236, %v245
    %v248 = vunpack.c.l.s4 1966171168
    %v249 = vunpack.c.0.s8 %v248
    %v250 = vlaneseq
    %v251 = vshrl.u32 %v250, 7
    %v252 = vsub.s32 %v249, %v251
    %v253 = vrot.slane %v237, %v252
    %v255 = vunpack.c.l.s4 1966171168
    %v256 = vunpack.c.0.s8 %v255
    %v257 = vlaneseq
    %v258 = vshrl.u32 %v257, 7
    %v259 = vsub.s32 %v256, %v258
    %v260 = vrot.slane %v238, %v259
    %v262 = vunpack.c.l.s4 1966171168
    %v263 = vunpack.c.0.s8 %v262
    %v264 = vlaneseq
    %v265 = vshrl.u32 %v264, 7
    %v266 = vsub.s32 %v263, %v265
    %v267 = vrot.slane %v239, %v266
    %v268 = vcombine.low %v246, %v253
    %v269 = vcombine.low %v260, %v267
    %v271 = vunpack.c.l.s4 1966171168
    %v272 = vunpack.c.0.s8 %v271
    %v273 = vlaneseq
    %v274 = vshrl.u32 %v273, 7
    %v275 = vsub.s32 %v272, %v274
    %v276 = vrot.slane %v268, %v275
    %v278 = vunpack.c.l.s4 1966171168
    %v279 = vunpack.c.0.s8 %v278
    %v280 = vlaneseq
    %v281 = vshrl.u32 %v280, 7
    %v282 = vsub.s32 %v279, %v281
    %v283 = vrot.slane %v269, %v282
    %v284 = vcombine.low %v276, %v283
    %285 = vrot.lane.b32.xlu0 %v284, 6
    %v286 = vpop.permute.xlu0 %285
    %vm288 = vcmask 48128
    %v289 = vsel %vm288, 0.0, %v286
    %v290 = vsel %vm288, %v286, 0.0
    %s291 = sld [smem:[#allocation2]]
    %v292 = vstv %s291
    %v293 = vmul.f32 %v292, %v289
    %v294 = vadd.f32 %v293, 0.0
    %s295 = sld [smem:[#allocation2 + $0x1]]
    %v296 = vstv %s295
    %v297 = vmul.f32 %v296, %v289
    %v298 = vmul.f32 %v296, %v290
    %301 = vrot.lane.b32.xlu0 %v297, 127
    %v302 = vpop.permute.xlu0 %301
    %303 = vrot.lane.b32.xlu0 %v298, 127
    %v304 = vpop.permute.xlu0 %303
    %vm305 = vcmask 1039360
    %v306 = vsel %vm305, %v302, %v304
    %v308 = vadd.f32 %v294, %v306
    %s309 = sld [smem:[#allocation2 + $0x2]]
    %v310 = vstv %s309
    %v311 = vmul.f32 %v310, %v289
    %v312 = vmul.f32 %v310, %v290
    %315 = vrot.lane.b32.xlu0 %v311, 126
    %v316 = vpop.permute.xlu0 %315
    %317 = vrot.lane.b32.xlu0 %v312, 126
    %v318 = vpop.permute.xlu0 %317
    %vm319 = vcmask 1031168
    %v320 = vsel %vm319, %v316, %v318
    %v322 = vadd.f32 %v308, %v320
    %s323 = sld [smem:[#allocation2 + $0x3]]
    %v324 = vstv %s323
    %v325 = vmul.f32 %v324, %v289
    %v326 = vmul.f32 %v324, %v290
    %329 = vrot.lane.b32.xlu0 %v325, 125
    %v330 = vpop.permute.xlu0 %329
    %331 = vrot.lane.b32.xlu0 %v326, 125
    %v332 = vpop.permute.xlu0 %331
    %vm333 = vcmask 1022976
    %v334 = vsel %vm333, %v330, %v332
    %v336 = vadd.f32 %v322, %v334
    %s337 = sld [smem:[#allocation2 + $0x4]]
    %v338 = vstv %s337
    %v339 = vmul.f32 %v338, %v289
    %v340 = vmul.f32 %v338, %v290
    %343 = vrot.lane.b32.xlu0 %v339, 124
    %v344 = vpop.permute.xlu0 %343
    %345 = vrot.lane.b32.xlu0 %v340, 124
    %v346 = vpop.permute.xlu0 %345
    %vm347 = vcmask 1014784
    %v348 = vsel %vm347, %v344, %v346
    %v350 = vadd.f32 %v336, %v348
    %s351 = sld [smem:[#allocation2 + $0x5]]
    %v352 = vstv %s351
    %v353 = vmul.f32 %v352, %v289
    %v354 = vmul.f32 %v352, %v290
    %357 = vrot.lane.b32.xlu0 %v353, 123
    %v358 = vpop.permute.xlu0 %357
    %359 = vrot.lane.b32.xlu0 %v354, 123
    %v360 = vpop.permute.xlu0 %359
    %vm361 = vcmask 1006592
    %v362 = vsel %vm361, %v358, %v360
    %v364 = vadd.f32 %v350, %v362
    %s365 = sld [smem:[#allocation2 + $0x6]]
    %v366 = vstv %s365
    %v367 = vmul.f32 %v366, %v289
    %v368 = vmul.f32 %v366, %v290
    %371 = vrot.lane.b32.xlu0 %v367, 122
    %v372 = vpop.permute.xlu0 %371
    %373 = vrot.lane.b32.xlu0 %v368, 122
    %v374 = vpop.permute.xlu0 %373
    %vm375 = vcmask 998400
    %v376 = vsel %vm375, %v372, %v374
    %v378 = vadd.f32 %v364, %v376
    %s379 = sld [smem:[#allocation2 + $0x7]]
    %v380 = vstv %s379
    %v381 = vmul.f32 %v380, %v289
    %v382 = vmul.f32 %v380, %v290
    %385 = vrot.lane.b32.xlu0 %v381, 121
    %v386 = vpop.permute.xlu0 %385
    %387 = vrot.lane.b32.xlu0 %v382, 121
    %v388 = vpop.permute.xlu0 %387
    %vm389 = vcmask 990208
    %v390 = vsel %vm389, %v386, %v388
    %v392 = vadd.f32 %v378, %v390
    %s393 = sld [smem:[#allocation2 + $0x8]]
    %v394 = vstv %s393
    %v395 = vmul.f32 %v394, %v289
    %v396 = vmul.f32 %v394, %v290
    %399 = vrot.lane.b32.xlu0 %v395, 120
    %v400 = vpop.permute.xlu0 %399
    %401 = vrot.lane.b32.xlu0 %v396, 120
    %v402 = vpop.permute.xlu0 %401
    %vm403 = vcmask 982016
    %v404 = vsel %vm403, %v400, %v402
    %v406 = vadd.f32 %v392, %v404
    %s407 = sld [smem:[#allocation2 + $0x9]]
    %v408 = vstv %s407
    %v409 = vmul.f32 %v408, %v289
    %v410 = vmul.f32 %v408, %v290
    %413 = vrot.lane.b32.xlu0 %v409, 119
    %v414 = vpop.permute.xlu0 %413
    %415 = vrot.lane.b32.xlu0 %v410, 119
    %v416 = vpop.permute.xlu0 %415
    %vm417 = vcmask 973824
    %v418 = vsel %vm417, %v414, %v416
    %v420 = vadd.f32 %v406, %v418
    %s421 = sld [smem:[#allocation2 + $0xa]]
    %v422 = vstv %s421
    %v423 = vmul.f32 %v422, %v289
    %v424 = vmul.f32 %v422, %v290
    %427 = vrot.lane.b32.xlu0 %v423, 118
    %v428 = vpop.permute.xlu0 %427
    %429 = vrot.lane.b32.xlu0 %v424, 118
    %v430 = vpop.permute.xlu0 %429
    %vm431 = vcmask 965632
    %v432 = vsel %vm431, %v428, %v430
    %v434 = vadd.f32 %v420, %v432
    %s435 = sld [smem:[#allocation2 + $0xb]]
    %v436 = vstv %s435
    %v437 = vmul.f32 %v436, %v289
    %v438 = vmul.f32 %v436, %v290
    %441 = vrot.lane.b32.xlu0 %v437, 117
    %v442 = vpop.permute.xlu0 %441
    %443 = vrot.lane.b32.xlu0 %v438, 117
    %v444 = vpop.permute.xlu0 %443
    %vm445 = vcmask 957440
    %v446 = vsel %vm445, %v442, %v444
    %v448 = vadd.f32 %v434, %v446
    %s449 = sld [smem:[#allocation5]]
    %v450 = vstv %s449
    %v451 = vadd.f32 %v448, %v450
    %s452 = sld [smem:[#allocation2 + $0xc]]
    %v453 = vstv %s452
    %v454 = vmul.f32 %v453, %v289
    %v455 = vadd.f32 %v454, 0.0
    %s456 = sld [smem:[#allocation2 + $0xd]]
    %v457 = vstv %s456
    %v458 = vmul.f32 %v457, %v289
    %v459 = vmul.f32 %v457, %v290
    %462 = vrot.lane.b32.xlu0 %v458, 127
    %v463 = vpop.permute.xlu0 %462
    %464 = vrot.lane.b32.xlu0 %v459, 127
    %v465 = vpop.permute.xlu0 %464
    %v466 = vsel %vm305, %v463, %v465
    %v468 = vadd.f32 %v455, %v466
    %s469 = sld [smem:[#allocation2 + $0xe]]
    %v470 = vstv %s469
    %v471 = vmul.f32 %v470, %v289
    %v472 = vmul.f32 %v470, %v290
    %475 = vrot.lane.b32.xlu0 %v471, 126
    %v476 = vpop.permute.xlu0 %475
    %477 = vrot.lane.b32.xlu0 %v472, 126
    %v478 = vpop.permute.xlu0 %477
    %v479 = vsel %vm319, %v476, %v478
    %v481 = vadd.f32 %v468, %v479
    %s482 = sld [smem:[#allocation2 + $0xf]]
    %v483 = vstv %s482
    %v484 = vmul.f32 %v483, %v289
    %v485 = vmul.f32 %v483, %v290
    %488 = vrot.lane.b32.xlu0 %v484, 125
    %v489 = vpop.permute.xlu0 %488
    %490 = vrot.lane.b32.xlu0 %v485, 125
    %v491 = vpop.permute.xlu0 %490
    %v492 = vsel %vm333, %v489, %v491
    %v494 = vadd.f32 %v481, %v492
    %s495 = sld [smem:[#allocation2 + $0x10]]
    %v496 = vstv %s495
    %v497 = vmul.f32 %v496, %v289
    %v498 = vmul.f32 %v496, %v290
    %501 = vrot.lane.b32.xlu0 %v497, 124
    %v502 = vpop.permute.xlu0 %501
    %503 = vrot.lane.b32.xlu0 %v498, 124
    %v504 = vpop.permute.xlu0 %503
    %v505 = vsel %vm347, %v502, %v504
    %v507 = vadd.f32 %v494, %v505
    %s508 = sld [smem:[#allocation2 + $0x11]]
    %v509 = vstv %s508
    %v510 = vmul.f32 %v509, %v289
    %v511 = vmul.f32 %v509, %v290
    %514 = vrot.lane.b32.xlu0 %v510, 123
    %v515 = vpop.permute.xlu0 %514
    %516 = vrot.lane.b32.xlu0 %v511, 123
    %v517 = vpop.permute.xlu0 %516
    %v518 = vsel %vm361, %v515, %v517
    %v520 = vadd.f32 %v507, %v518
    %s521 = sld [smem:[#allocation2 + $0x12]]
    %v522 = vstv %s521
    %v523 = vmul.f32 %v522, %v289
    %v524 = vmul.f32 %v522, %v290
    %527 = vrot.lane.b32.xlu0 %v523, 122
    %v528 = vpop.permute.xlu0 %527
    %529 = vrot.lane.b32.xlu0 %v524, 122
    %v530 = vpop.permute.xlu0 %529
    %v531 = vsel %vm375, %v528, %v530
    %v533 = vadd.f32 %v520, %v531
    %s534 = sld [smem:[#allocation2 + $0x13]]
    %v535 = vstv %s534
    %v536 = vmul.f32 %v535, %v289
    %v537 = vmul.f32 %v535, %v290
    %540 = vrot.lane.b32.xlu0 %v536, 121
    %v541 = vpop.permute.xlu0 %540
    %542 = vrot.lane.b32.xlu0 %v537, 121
    %v543 = vpop.permute.xlu0 %542
    %v544 = vsel %vm389, %v541, %v543
    %v546 = vadd.f32 %v533, %v544
    %s547 = sld [smem:[#allocation2 + $0x14]]
    %v548 = vstv %s547
    %v549 = vmul.f32 %v548, %v289
    %v550 = vmul.f32 %v548, %v290
    %553 = vrot.lane.b32.xlu0 %v549, 120
    %v554 = vpop.permute.xlu0 %553
    %555 = vrot.lane.b32.xlu0 %v550, 120
    %v556 = vpop.permute.xlu0 %555
    %v557 = vsel %vm403, %v554, %v556
    %v559 = vadd.f32 %v546, %v557
    %s560 = sld [smem:[#allocation2 + $0x15]]
    %v561 = vstv %s560
    %v562 = vmul.f32 %v561, %v289
    %v563 = vmul.f32 %v561, %v290
    %566 = vrot.lane.b32.xlu0 %v562, 119
    %v567 = vpop.permute.xlu0 %566
    %568 = vrot.lane.b32.xlu0 %v563, 119
    %v569 = vpop.permute.xlu0 %568
    %v570 = vsel %vm417, %v567, %v569
    %v572 = vadd.f32 %v559, %v570
    %s573 = sld [smem:[#allocation2 + $0x16]]
    %v574 = vstv %s573
    %v575 = vmul.f32 %v574, %v289
    %v576 = vmul.f32 %v574, %v290
    %579 = vrot.lane.b32.xlu0 %v575, 118
    %v580 = vpop.permute.xlu0 %579
    %581 = vrot.lane.b32.xlu0 %v576, 118
    %v582 = vpop.permute.xlu0 %581
    %v583 = vsel %vm431, %v580, %v582
    %v585 = vadd.f32 %v572, %v583
    %s586 = sld [smem:[#allocation2 + $0x17]]
    %v587 = vstv %s586
    %v588 = vmul.f32 %v587, %v289
    %v589 = vmul.f32 %v587, %v290
    %592 = vrot.lane.b32.xlu0 %v588, 117
    %v593 = vpop.permute.xlu0 %592
    %594 = vrot.lane.b32.xlu0 %v589, 117
    %v595 = vpop.permute.xlu0 %594
    %v596 = vsel %vm445, %v593, %v595
    %v598 = vadd.f32 %v585, %v596
    %s599 = sld [smem:[#allocation5 + $0x1]]
    %v600 = vstv %s599
    %v601 = vadd.f32 %v598, %v600
    %s602 = sld [smem:[#allocation2 + $0x18]]
    %v603 = vstv %s602
    %v604 = vmul.f32 %v603, %v289
    %v605 = vadd.f32 %v604, 0.0
    %s606 = sld [smem:[#allocation2 + $0x19]]
    %v607 = vstv %s606
    %v608 = vmul.f32 %v607, %v289
    %v609 = vmul.f32 %v607, %v290
    %612 = vrot.lane.b32.xlu0 %v608, 127
    %v613 = vpop.permute.xlu0 %612
    %614 = vrot.lane.b32.xlu0 %v609, 127
    %v615 = vpop.permute.xlu0 %614
    %v616 = vsel %vm305, %v613, %v615
    %v618 = vadd.f32 %v605, %v616
    %s619 = sld [smem:[#allocation2 + $0x1a]]
    %v620 = vstv %s619
    %v621 = vmul.f32 %v620, %v289
    %v622 = vmul.f32 %v620, %v290
    %625 = vrot.lane.b32.xlu0 %v621, 126
    %v626 = vpop.permute.xlu0 %625
    %627 = vrot.lane.b32.xlu0 %v622, 126
    %v628 = vpop.permute.xlu0 %627
    %v629 = vsel %vm319, %v626, %v628
    %v631 = vadd.f32 %v618, %v629
    %s632 = sld [smem:[#allocation2 + $0x1b]]
    %v633 = vstv %s632
    %v634 = vmul.f32 %v633, %v289
    %v635 = vmul.f32 %v633, %v290
    %638 = vrot.lane.b32.xlu0 %v634, 125
    %v639 = vpop.permute.xlu0 %638
    %640 = vrot.lane.b32.xlu0 %v635, 125
    %v641 = vpop.permute.xlu0 %640
    %v642 = vsel %vm333, %v639, %v641
    %v644 = vadd.f32 %v631, %v642
    %s645 = sld [smem:[#allocation2 + $0x1c]]
    %v646 = vstv %s645
    %v647 = vmul.f32 %v646, %v289
    %v648 = vmul.f32 %v646, %v290
    %651 = vrot.lane.b32.xlu0 %v647, 124
    %v652 = vpop.permute.xlu0 %651
    %653 = vrot.lane.b32.xlu0 %v648, 124
    %v654 = vpop.permute.xlu0 %653
    %v655 = vsel %vm347, %v652, %v654
    %v657 = vadd.f32 %v644, %v655
    %s658 = sld [smem:[#allocation2 + $0x1d]]
    %v659 = vstv %s658
    %v660 = vmul.f32 %v659, %v289
    %v661 = vmul.f32 %v659, %v290
    %664 = vrot.lane.b32.xlu0 %v660, 123
    %v665 = vpop.permute.xlu0 %664
    %666 = vrot.lane.b32.xlu0 %v661, 123
    %v667 = vpop.permute.xlu0 %666
    %v668 = vsel %vm361, %v665, %v667
    %v670 = vadd.f32 %v657, %v668
    %s671 = sld [smem:[#allocation2 + $0x1e]]
    %v672 = vstv %s671
    %v673 = vmul.f32 %v672, %v289
    %v674 = vmul.f32 %v672, %v290
    %677 = vrot.lane.b32.xlu0 %v673, 122
    %v678 = vpop.permute.xlu0 %677
    %679 = vrot.lane.b32.xlu0 %v674, 122
    %v680 = vpop.permute.xlu0 %679
    %v681 = vsel %vm375, %v678, %v680
    %v683 = vadd.f32 %v670, %v681
    %s684 = sld [smem:[#allocation2 + $0x1f]]
    %v685 = vstv %s684
    %v686 = vmul.f32 %v685, %v289
    %v687 = vmul.f32 %v685, %v290
    %690 = vrot.lane.b32.xlu0 %v686, 121
    %v691 = vpop.permute.xlu0 %690
    %692 = vrot.lane.b32.xlu0 %v687, 121
    %v693 = vpop.permute.xlu0 %692
    %v694 = vsel %vm389, %v691, %v693
    %v696 = vadd.f32 %v683, %v694
    %s697 = sld [smem:[#allocation2 + $0x20]]
    %v698 = vstv %s697
    %v699 = vmul.f32 %v698, %v289
    %v700 = vmul.f32 %v698, %v290
    %703 = vrot.lane.b32.xlu0 %v699, 120
    %v704 = vpop.permute.xlu0 %703
    %705 = vrot.lane.b32.xlu0 %v700, 120
    %v706 = vpop.permute.xlu0 %705
    %v707 = vsel %vm403, %v704, %v706
    %v709 = vadd.f32 %v696, %v707
    %s710 = sld [smem:[#allocation2 + $0x21]]
    %v711 = vstv %s710
    %v712 = vmul.f32 %v711, %v289
    %v713 = vmul.f32 %v711, %v290
    %716 = vrot.lane.b32.xlu0 %v712, 119
    %v717 = vpop.permute.xlu0 %716
    %718 = vrot.lane.b32.xlu0 %v713, 119
    %v719 = vpop.permute.xlu0 %718
    %v720 = vsel %vm417, %v717, %v719
    %v722 = vadd.f32 %v709, %v720
    %s723 = sld [smem:[#allocation2 + $0x22]]
    %v724 = vstv %s723
    %v725 = vmul.f32 %v724, %v289
    %v726 = vmul.f32 %v724, %v290
    %729 = vrot.lane.b32.xlu0 %v725, 118
    %v730 = vpop.permute.xlu0 %729
    %731 = vrot.lane.b32.xlu0 %v726, 118
    %v732 = vpop.permute.xlu0 %731
    %v733 = vsel %vm431, %v730, %v732
    %v735 = vadd.f32 %v722, %v733
    %s736 = sld [smem:[#allocation2 + $0x23]]
    %v737 = vstv %s736
    %v738 = vmul.f32 %v737, %v289
    %v739 = vmul.f32 %v737, %v290
    %742 = vrot.lane.b32.xlu0 %v738, 117
    %v743 = vpop.permute.xlu0 %742
    %744 = vrot.lane.b32.xlu0 %v739, 117
    %v745 = vpop.permute.xlu0 %744
    %v746 = vsel %vm445, %v743, %v745
    %v748 = vadd.f32 %v735, %v746
    %s749 = sld [smem:[#allocation5 + $0x2]]
    %v750 = vstv %s749
    %v751 = vadd.f32 %v748, %v750
    %s752 = sld [smem:[#allocation2 + $0x24]]
    %v753 = vstv %s752
    %v754 = vmul.f32 %v753, %v289
    %v755 = vadd.f32 %v754, 0.0
    %s756 = sld [smem:[#allocation2 + $0x25]]
    %v757 = vstv %s756
    %v758 = vmul.f32 %v757, %v289
    %v759 = vmul.f32 %v757, %v290
    %762 = vrot.lane.b32.xlu0 %v758, 127
    %v763 = vpop.permute.xlu0 %762
    %764 = vrot.lane.b32.xlu0 %v759, 127
    %v765 = vpop.permute.xlu0 %764
    %v766 = vsel %vm305, %v763, %v765
    %v768 = vadd.f32 %v755, %v766
    %s769 = sld [smem:[#allocation2 + $0x26]]
    %v770 = vstv %s769
    %v771 = vmul.f32 %v770, %v289
    %v772 = vmul.f32 %v770, %v290
    %775 = vrot.lane.b32.xlu0 %v771, 126
    %v776 = vpop.permute.xlu0 %775
    %777 = vrot.lane.b32.xlu0 %v772, 126
    %v778 = vpop.permute.xlu0 %777
    %v779 = vsel %vm319, %v776, %v778
    %v781 = vadd.f32 %v768, %v779
    %s782 = sld [smem:[#allocation2 + $0x27]]
    %v783 = vstv %s782
    %v784 = vmul.f32 %v783, %v289
    %v785 = vmul.f32 %v783, %v290
    %788 = vrot.lane.b32.xlu0 %v784, 125
    %v789 = vpop.permute.xlu0 %788
    %790 = vrot.lane.b32.xlu0 %v785, 125
    %v791 = vpop.permute.xlu0 %790
    %v792 = vsel %vm333, %v789, %v791
    %v794 = vadd.f32 %v781, %v792
    %s795 = sld [smem:[#allocation2 + $0x28]]
    %v796 = vstv %s795
    %v797 = vmul.f32 %v796, %v289
    %v798 = vmul.f32 %v796, %v290
    %801 = vrot.lane.b32.xlu0 %v797, 124
    %v802 = vpop.permute.xlu0 %801
    %803 = vrot.lane.b32.xlu0 %v798, 124
    %v804 = vpop.permute.xlu0 %803
    %v805 = vsel %vm347, %v802, %v804
    %v807 = vadd.f32 %v794, %v805
    %s808 = sld [smem:[#allocation2 + $0x29]]
    %v809 = vstv %s808
    %v810 = vmul.f32 %v809, %v289
    %v811 = vmul.f32 %v809, %v290
    %814 = vrot.lane.b32.xlu0 %v810, 123
    %v815 = vpop.permute.xlu0 %814
    %816 = vrot.lane.b32.xlu0 %v811, 123
    %v817 = vpop.permute.xlu0 %816
    %v818 = vsel %vm361, %v815, %v817
    %v820 = vadd.f32 %v807, %v818
    %s821 = sld [smem:[#allocation2 + $0x2a]]
    %v822 = vstv %s821
    %v823 = vmul.f32 %v822, %v289
    %v824 = vmul.f32 %v822, %v290
    %827 = vrot.lane.b32.xlu0 %v823, 122
    %v828 = vpop.permute.xlu0 %827
    %829 = vrot.lane.b32.xlu0 %v824, 122
    %v830 = vpop.permute.xlu0 %829
    %v831 = vsel %vm375, %v828, %v830
    %v833 = vadd.f32 %v820, %v831
    %s834 = sld [smem:[#allocation2 + $0x2b]]
    %v835 = vstv %s834
    %v836 = vmul.f32 %v835, %v289
    %v837 = vmul.f32 %v835, %v290
    %840 = vrot.lane.b32.xlu0 %v836, 121
    %v841 = vpop.permute.xlu0 %840
    %842 = vrot.lane.b32.xlu0 %v837, 121
    %v843 = vpop.permute.xlu0 %842
    %v844 = vsel %vm389, %v841, %v843
    %v846 = vadd.f32 %v833, %v844
    %s847 = sld [smem:[#allocation2 + $0x2c]]
    %v848 = vstv %s847
    %v849 = vmul.f32 %v848, %v289
    %v850 = vmul.f32 %v848, %v290
    %853 = vrot.lane.b32.xlu0 %v849, 120
    %v854 = vpop.permute.xlu0 %853
    %855 = vrot.lane.b32.xlu0 %v850, 120
    %v856 = vpop.permute.xlu0 %855
    %v857 = vsel %vm403, %v854, %v856
    %v859 = vadd.f32 %v846, %v857
    %s860 = sld [smem:[#allocation2 + $0x2d]]
    %v861 = vstv %s860
    %v862 = vmul.f32 %v861, %v289
    %v863 = vmul.f32 %v861, %v290
    %866 = vrot.lane.b32.xlu0 %v862, 119
    %v867 = vpop.permute.xlu0 %866
    %868 = vrot.lane.b32.xlu0 %v863, 119
    %v869 = vpop.permute.xlu0 %868
    %v870 = vsel %vm417, %v867, %v869
    %v872 = vadd.f32 %v859, %v870
    %s873 = sld [smem:[#allocation2 + $0x2e]]
    %v874 = vstv %s873
    %v875 = vmul.f32 %v874, %v289
    %v876 = vmul.f32 %v874, %v290
    %879 = vrot.lane.b32.xlu0 %v875, 118
    %v880 = vpop.permute.xlu0 %879
    %881 = vrot.lane.b32.xlu0 %v876, 118
    %v882 = vpop.permute.xlu0 %881
    %v883 = vsel %vm431, %v880, %v882
    %v885 = vadd.f32 %v872, %v883
    %s886 = sld [smem:[#allocation2 + $0x2f]]
    %v887 = vstv %s886
    %v888 = vmul.f32 %v887, %v289
    %v889 = vmul.f32 %v887, %v290
    %892 = vrot.lane.b32.xlu0 %v888, 117
    %v893 = vpop.permute.xlu0 %892
    %894 = vrot.lane.b32.xlu0 %v889, 117
    %v895 = vpop.permute.xlu0 %894
    %v896 = vsel %vm445, %v893, %v895
    %v898 = vadd.f32 %v885, %v896
    %s899 = sld [smem:[#allocation5 + $0x3]]
    %v900 = vstv %s899
    %v901 = vadd.f32 %v898, %v900
    %902 = vadd.xlane.f32.xlu0 %v451
    %v903 = vpop.xlane.xlu0 %902
    %v904 = vrcp.pop 128.0
    %v905 = vmul.f32 %v903, %v904
    %v906 = vrot.slane %v905, 4
    %v907 = vadd.f32 %v905, %v906
    %v908 = vrot.slane %v907, 2
    %v909 = vadd.f32 %v907, %v908
    %v910 = vrot.slane %v909, 1
    %v911 = vadd.f32 %v909, %v910
    %v912 = vrcp.pop 8.0
    %v913 = vmul.f32 %v911, %v912
    %v914 = vsub.f32 %v451, %v913
    %v915 = vmul.f32 %v914, %v914
    %916 = vadd.xlane.f32.xlu0 %v915
    %v917 = vpop.xlane.xlu0 %916
    %v918 = vmul.f32 %v917, %v904
    %v919 = vrot.slane %v918, 4
    %v920 = vadd.f32 %v918, %v919
    %v921 = vrot.slane %v920, 2
    %v922 = vadd.f32 %v920, %v921
    %v923 = vrot.slane %v922, 1
    %v924 = vadd.f32 %v922, %v923
    %v925 = vmul.f32 %v924, %v912
    %v926 = vadd.f32 %v925, 1e-05
    %v927 = vrsqrt.pop %v926
    %v928 = vmul.f32 %v914, %v927
    %s929 = sld [smem:[#allocation7]]
    %v930 = vstv %s929
    %v931 = vmul.f32 %v928, %v930
    %s932 = sld [smem:[#allocation8]]
    %v933 = vstv %s932
    %v934 = vadd.f32 %v931, %v933
    %v935 = vmax.f32 %v934, 0.0
    %936 = vadd.xlane.f32.xlu0 %v601
    %v937 = vpop.xlane.xlu0 %936
    %v938 = vmul.f32 %v937, %v904
    %v939 = vrot.slane %v938, 4
    %v940 = vadd.f32 %v938, %v939
    %v941 = vrot.slane %v940, 2
    %v942 = vadd.f32 %v940, %v941
    %v943 = vrot.slane %v942, 1
    %v944 = vadd.f32 %v942, %v943
    %v945 = vmul.f32 %v944, %v912
    %v946 = vsub.f32 %v601, %v945
    %v947 = vmul.f32 %v946, %v946
    %948 = vadd.xlane.f32.xlu0 %v947
    %v949 = vpop.xlane.xlu0 %948
    %v950 = vmul.f32 %v949, %v904
    %v951 = vrot.slane %v950, 4
    %v952 = vadd.f32 %v950, %v951
    %v953 = vrot.slane %v952, 2
    %v954 = vadd.f32 %v952, %v953
    %v955 = vrot.slane %v954, 1
    %v956 = vadd.f32 %v954, %v955
    %v957 = vmul.f32 %v956, %v912
    %v958 = vadd.f32 %v957, 1e-05
    %v959 = vrsqrt.pop %v958
    %v960 = vmul.f32 %v946, %v959
    %s961 = sld [smem:[#allocation7 + $0x1]]
    %v962 = vstv %s961
    %v963 = vmul.f32 %v960, %v962
    %s964 = sld [smem:[#allocation8 + $0x1]]
    %v965 = vstv %s964
    %v966 = vadd.f32 %v963, %v965
    %v967 = vmax.f32 %v966, 0.0
    %968 = vadd.xlane.f32.xlu0 %v751
    %v969 = vpop.xlane.xlu0 %968
    %v970 = vmul.f32 %v969, %v904
    %v971 = vrot.slane %v970, 4
    %v972 = vadd.f32 %v970, %v971
    %v973 = vrot.slane %v972, 2
    %v974 = vadd.f32 %v972, %v973
    %v975 = vrot.slane %v974, 1
    %v976 = vadd.f32 %v974, %v975
    %v977 = vmul.f32 %v976, %v912
    %v978 = vsub.f32 %v751, %v977
    %v979 = vmul.f32 %v978, %v978
    %980 = vadd.xlane.f32.xlu0 %v979
    %v981 = vpop.xlane.xlu0 %980
    %v982 = vmul.f32 %v981, %v904
    %v983 = vrot.slane %v982, 4
    %v984 = vadd.f32 %v982, %v983
    %v985 = vrot.slane %v984, 2
    %v986 = vadd.f32 %v984, %v985
    %v987 = vrot.slane %v986, 1
    %v988 = vadd.f32 %v986, %v987
    %v989 = vmul.f32 %v988, %v912
    %v990 = vadd.f32 %v989, 1e-05
    %v991 = vrsqrt.pop %v990
    %v992 = vmul.f32 %v978, %v991
    %s993 = sld [smem:[#allocation7 + $0x2]]
    %v994 = vstv %s993
    %v995 = vmul.f32 %v992, %v994
    %s996 = sld [smem:[#allocation8 + $0x2]]
    %v997 = vstv %s996
    %v998 = vadd.f32 %v995, %v997
    %v999 = vmax.f32 %v998, 0.0
    %1000 = vadd.xlane.f32.xlu0 %v901
    %v1001 = vpop.xlane.xlu0 %1000
    %v1002 = vmul.f32 %v1001, %v904
    %v1003 = vrot.slane %v1002, 4
    %v1004 = vadd.f32 %v1002, %v1003
    %v1005 = vrot.slane %v1004, 2
    %v1006 = vadd.f32 %v1004, %v1005
    %v1007 = vrot.slane %v1006, 1
    %v1008 = vadd.f32 %v1006, %v1007
    %v1009 = vmul.f32 %v1008, %v912
    %v1010 = vsub.f32 %v901, %v1009
    %v1011 = vmul.f32 %v1010, %v1010
    %1012 = vadd.xlane.f32.xlu0 %v1011
    %v1013 = vpop.xlane.xlu0 %1012
    %v1014 = vmul.f32 %v1013, %v904
    %v1015 = vrot.slane %v1014, 4
    %v1016 = vadd.f32 %v1014, %v1015
    %v1017 = vrot.slane %v1016, 2
    %v1018 = vadd.f32 %v1016, %v1017
    %v1019 = vrot.slane %v1018, 1
    %v1020 = vadd.f32 %v1018, %v1019
    %v1021 = vmul.f32 %v1020, %v912
    %v1022 = vadd.f32 %v1021, 1e-05
    %v1023 = vrsqrt.pop %v1022
    %v1024 = vmul.f32 %v1010, %v1023
    %s1025 = sld [smem:[#allocation7 + $0x3]]
    %v1026 = vstv %s1025
    %v1027 = vmul.f32 %v1024, %v1026
    %s1028 = sld [smem:[#allocation8 + $0x3]]
    %v1029 = vstv %s1028
    %v1030 = vadd.f32 %v1027, %v1029
    %v1031 = vmax.f32 %v1030, 0.0
    %1033 = vrot.lane.b32.xlu0 %v935, 1
    %v1034 = vpop.permute.xlu0 %1033
    %vm1036 = vcmask 7168
    %v1037 = vsel %vm1036, 0.0, %v1034
    %v1038 = vsel %vm1036, %v1034, 0.0
    %1040 = vrot.lane.b32.xlu0 %v967, 1
    %v1041 = vpop.permute.xlu0 %1040
    %v1043 = vsel %vm1036, 0.0, %v1041
    %v1044 = vsel %vm1036, %v1041, 0.0
    %1046 = vrot.lane.b32.xlu0 %v999, 1
    %v1047 = vpop.permute.xlu0 %1046
    %v1049 = vsel %vm1036, 0.0, %v1047
    %v1050 = vsel %vm1036, %v1047, 0.0
    %1052 = vrot.lane.b32.xlu0 %v1031, 1
    %v1053 = vpop.permute.xlu0 %1052
    %v1055 = vsel %vm1036, 0.0, %v1053
    %v1056 = vsel %vm1036, %v1053, 0.0
    %s1057 = sld [smem:[#allocation10]]
    %v1058 = vstv %s1057
    %v1059 = vmul.f32 %v1058, %v1037
    %v1060 = vadd.f32 %v1059, 0.0
    %s1061 = sld [smem:[#allocation10 + $0x1]]
    %v1062 = vstv %s1061
    %v1063 = vmul.f32 %v1062, %v1037
    %v1064 = vmul.f32 %v1062, %v1038
    %1067 = vrot.lane.b32.xlu0 %v1063, 127
    %v1068 = vpop.permute.xlu0 %1067
    %1069 = vrot.lane.b32.xlu0 %v1064, 127
    %v1070 = vpop.permute.xlu0 %1069
    %v1071 = vsel %vm305, %v1068, %v1070
    %v1073 = vadd.f32 %v1060, %v1071
    %s1074 = sld [smem:[#allocation10 + $0x2]]
    %v1075 = vstv %s1074
    %v1076 = vmul.f32 %v1075, %v1043
    %v1077 = vadd.f32 %v1073, %v1076
    %s1078 = sld [smem:[#allocation10 + $0x3]]
    %v1079 = vstv %s1078
    %v1080 = vmul.f32 %v1079, %v1043
    %v1081 = vmul.f32 %v1079, %v1044
    %1084 = vrot.lane.b32.xlu0 %v1080, 127
    %v1085 = vpop.permute.xlu0 %1084
    %1086 = vrot.lane.b32.xlu0 %v1081, 127
    %v1087 = vpop.permute.xlu0 %1086
    %v1088 = vsel %vm305, %v1085, %v1087
    %v1090 = vadd.f32 %v1077, %v1088
    %s1091 = sld [smem:[#allocation10 + $0x4]]
    %v1092 = vstv %s1091
    %v1093 = vmul.f32 %v1092, %v1049
    %v1094 = vadd.f32 %v1090, %v1093
    %s1095 = sld [smem:[#allocation10 + $0x5]]
    %v1096 = vstv %s1095
    %v1097 = vmul.f32 %v1096, %v1049
    %v1098 = vmul.f32 %v1096, %v1050
    %1101 = vrot.lane.b32.xlu0 %v1097, 127
    %v1102 = vpop.permute.xlu0 %1101
    %1103 = vrot.lane.b32.xlu0 %v1098, 127
    %v1104 = vpop.permute.xlu0 %1103
    %v1105 = vsel %vm305, %v1102, %v1104
    %v1107 = vadd.f32 %v1094, %v1105
    %s1108 = sld [smem:[#allocation10 + $0x6]]
    %v1109 = vstv %s1108
    %v1110 = vmul.f32 %v1109, %v1055
    %v1111 = vadd.f32 %v1107, %v1110
    %s1112 = sld [smem:[#allocation10 + $0x7]]
    %v1113 = vstv %s1112
    %v1114 = vmul.f32 %v1113, %v1055
    %v1115 = vmul.f32 %v1113, %v1056
    %1118 = vrot.lane.b32.xlu0 %v1114, 127
    %v1119 = vpop.permute.xlu0 %1118
    %1120 = vrot.lane.b32.xlu0 %v1115, 127
    %v1121 = vpop.permute.xlu0 %1120
    %v1122 = vsel %vm305, %v1119, %v1121
    %v1124 = vadd.f32 %v1111, %v1122
    %s1125 = sld [smem:[#allocation10 + $0x8]]
    %v1126 = vstv %s1125
    %v1127 = vmul.f32 %v1126, %v1037
    %v1128 = vadd.f32 %v1127, 0.0
    %s1129 = sld [smem:[#allocation10 + $0x9]]
    %v1130 = vstv %s1129
    %v1131 = vmul.f32 %v1130, %v1037
    %v1132 = vmul.f32 %v1130, %v1038
    %1135 = vrot.lane.b32.xlu0 %v1131, 127
    %v1136 = vpop.permute.xlu0 %1135
    %1137 = vrot.lane.b32.xlu0 %v1132, 127
    %v1138 = vpop.permute.xlu0 %1137
    %v1139 = vsel %vm305, %v1136, %v1138
    %v1141 = vadd.f32 %v1128, %v1139
    %s1142 = sld [smem:[#allocation10 + $0xa]]
    %v1143 = vstv %s1142
    %v1144 = vmul.f32 %v1143, %v1043
    %v1145 = vadd.f32 %v1141, %v1144
    %s1146 = sld [smem:[#allocation10 + $0xb]]
    %v1147 = vstv %s1146
    %v1148 = vmul.f32 %v1147, %v1043
    %v1149 = vmul.f32 %v1147, %v1044
    %1152 = vrot.lane.b32.xlu0 %v1148, 127
    %v1153 = vpop.permute.xlu0 %1152
    %1154 = vrot.lane.b32.xlu0 %v1149, 127
    %v1155 = vpop.permute.xlu0 %1154
    %v1156 = vsel %vm305, %v1153, %v1155
    %v1158 = vadd.f32 %v1145, %v1156
    %s1159 = sld [smem:[#allocation10 + $0xc]]
    %v1160 = vstv %s1159
    %v1161 = vmul.f32 %v1160, %v1049
    %v1162 = vadd.f32 %v1158, %v1161
    %s1163 = sld [smem:[#allocation10 + $0xd]]
    %v1164 = vstv %s1163
    %v1165 = vmul.f32 %v1164, %v1049
    %v1166 = vmul.f32 %v1164, %v1050
    %1169 = vrot.lane.b32.xlu0 %v1165, 127
    %v1170 = vpop.permute.xlu0 %1169
    %1171 = vrot.lane.b32.xlu0 %v1166, 127
    %v1172 = vpop.permute.xlu0 %1171
    %v1173 = vsel %vm305, %v1170, %v1172
    %v1175 = vadd.f32 %v1162, %v1173
    %s1176 = sld [smem:[#allocation10 + $0xe]]
    %v1177 = vstv %s1176
    %v1178 = vmul.f32 %v1177, %v1055
    %v1179 = vadd.f32 %v1175, %v1178
    %s1180 = sld [smem:[#allocation10 + $0xf]]
    %v1181 = vstv %s1180
    %v1182 = vmul.f32 %v1181, %v1055
    %v1183 = vmul.f32 %v1181, %v1056
    %1186 = vrot.lane.b32.xlu0 %v1182, 127
    %v1187 = vpop.permute.xlu0 %1186
    %1188 = vrot.lane.b32.xlu0 %v1183, 127
    %v1189 = vpop.permute.xlu0 %1188
    %v1190 = vsel %vm305, %v1187, %v1189
    %v1192 = vadd.f32 %v1179, %v1190
    %s1193 = sld [smem:[#allocation10 + $0x10]]
    %v1194 = vstv %s1193
    %v1195 = vmul.f32 %v1194, %v1037
    %v1196 = vadd.f32 %v1195, 0.0
    %s1197 = sld [smem:[#allocation10 + $0x11]]
    %v1198 = vstv %s1197
    %v1199 = vmul.f32 %v1198, %v1037
    %v1200 = vmul.f32 %v1198, %v1038
    %1203 = vrot.lane.b32.xlu0 %v1199, 127
    %v1204 = vpop.permute.xlu0 %1203
    %1205 = vrot.lane.b32.xlu0 %v1200, 127
    %v1206 = vpop.permute.xlu0 %1205
    %v1207 = vsel %vm305, %v1204, %v1206
    %v1209 = vadd.f32 %v1196, %v1207
    %s1210 = sld [smem:[#allocation10 + $0x12]]
    %v1211 = vstv %s1210
    %v1212 = vmul.f32 %v1211, %v1043
    %v1213 = vadd.f32 %v1209, %v1212
    %s1214 = sld [smem:[#allocation10 + $0x13]]
    %v1215 = vstv %s1214
    %v1216 = vmul.f32 %v1215, %v1043
    %v1217 = vmul.f32 %v1215, %v1044
    %1220 = vrot.lane.b32.xlu0 %v1216, 127
    %v1221 = vpop.permute.xlu0 %1220
    %1222 = vrot.lane.b32.xlu0 %v1217, 127
    %v1223 = vpop.permute.xlu0 %1222
    %v1224 = vsel %vm305, %v1221, %v1223
    %v1226 = vadd.f32 %v1213, %v1224
    %s1227 = sld [smem:[#allocation10 + $0x14]]
    %v1228 = vstv %s1227
    %v1229 = vmul.f32 %v1228, %v1049
    %v1230 = vadd.f32 %v1226, %v1229
    %s1231 = sld [smem:[#allocation10 + $0x15]]
    %v1232 = vstv %s1231
    %v1233 = vmul.f32 %v1232, %v1049
    %v1234 = vmul.f32 %v1232, %v1050
    %1237 = vrot.lane.b32.xlu0 %v1233, 127
    %v1238 = vpop.permute.xlu0 %1237
    %1239 = vrot.lane.b32.xlu0 %v1234, 127
    %v1240 = vpop.permute.xlu0 %1239
    %v1241 = vsel %vm305, %v1238, %v1240
    %v1243 = vadd.f32 %v1230, %v1241
    %s1244 = sld [smem:[#allocation10 + $0x16]]
    %v1245 = vstv %s1244
    %v1246 = vmul.f32 %v1245, %v1055
    %v1247 = vadd.f32 %v1243, %v1246
    %s1248 = sld [smem:[#allocation10 + $0x17]]
    %v1249 = vstv %s1248
    %v1250 = vmul.f32 %v1249, %v1055
    %v1251 = vmul.f32 %v1249, %v1056
    %1254 = vrot.lane.b32.xlu0 %v1250, 127
    %v1255 = vpop.permute.xlu0 %1254
    %1256 = vrot.lane.b32.xlu0 %v1251, 127
    %v1257 = vpop.permute.xlu0 %1256
    %v1258 = vsel %vm305, %v1255, %v1257
    %v1260 = vadd.f32 %v1247, %v1258
    %s1261 = sld [smem:[#allocation10 + $0x18]]
    %v1262 = vstv %s1261
    %v1263 = vmul.f32 %v1262, %v1037
    %v1264 = vadd.f32 %v1263, 0.0
    %s1265 = sld [smem:[#allocation10 + $0x19]]
    %v1266 = vstv %s1265
    %v1267 = vmul.f32 %v1266, %v1037
    %v1268 = vmul.f32 %v1266, %v1038
    %1271 = vrot.lane.b32.xlu0 %v1267, 127
    %v1272 = vpop.permute.xlu0 %1271
    %1273 = vrot.lane.b32.xlu0 %v1268, 127
    %v1274 = vpop.permute.xlu0 %1273
    %v1275 = vsel %vm305, %v1272, %v1274
    %v1277 = vadd.f32 %v1264, %v1275
    %s1278 = sld [smem:[#allocation10 + $0x1a]]
    %v1279 = vstv %s1278
    %v1280 = vmul.f32 %v1279, %v1043
    %v1281 = vadd.f32 %v1277, %v1280
    %s1282 = sld [smem:[#allocation10 + $0x1b]]
    %v1283 = vstv %s1282
    %v1284 = vmul.f32 %v1283, %v1043
    %v1285 = vmul.f32 %v1283, %v1044
    %1288 = vrot.lane.b32.xlu0 %v1284, 127
    %v1289 = vpop.permute.xlu0 %1288
    %1290 = vrot.lane.b32.xlu0 %v1285, 127
    %v1291 = vpop.permute.xlu0 %1290
    %v1292 = vsel %vm305, %v1289, %v1291
    %v1294 = vadd.f32 %v1281, %v1292
    %s1295 = sld [smem:[#allocation10 + $0x1c]]
    %v1296 = vstv %s1295
    %v1297 = vmul.f32 %v1296, %v1049
    %v1298 = vadd.f32 %v1294, %v1297
    %s1299 = sld [smem:[#allocation10 + $0x1d]]
    %v1300 = vstv %s1299
    %v1301 = vmul.f32 %v1300, %v1049
    %v1302 = vmul.f32 %v1300, %v1050
    %1305 = vrot.lane.b32.xlu0 %v1301, 127
    %v1306 = vpop.permute.xlu0 %1305
    %1307 = vrot.lane.b32.xlu0 %v1302, 127
    %v1308 = vpop.permute.xlu0 %1307
    %v1309 = vsel %vm305, %v1306, %v1308
    %v1311 = vadd.f32 %v1298, %v1309
    %s1312 = sld [smem:[#allocation10 + $0x1e]]
    %v1313 = vstv %s1312
    %v1314 = vmul.f32 %v1313, %v1055
    %v1315 = vadd.f32 %v1311, %v1314
    %s1316 = sld [smem:[#allocation10 + $0x1f]]
    %v1317 = vstv %s1316
    %v1318 = vmul.f32 %v1317, %v1055
    %v1319 = vmul.f32 %v1317, %v1056
    %1322 = vrot.lane.b32.xlu0 %v1318, 127
    %v1323 = vpop.permute.xlu0 %1322
    %1324 = vrot.lane.b32.xlu0 %v1319, 127
    %v1325 = vpop.permute.xlu0 %1324
    %v1326 = vsel %vm305, %v1323, %v1325
    %v1328 = vadd.f32 %v1315, %v1326
    %s1329 = sld [smem:[#allocation10 + $0x20]]
    %v1330 = vstv %s1329
    %v1331 = vmul.f32 %v1330, %v1037
    %v1332 = vadd.f32 %v1331, 0.0
    %s1333 = sld [smem:[#allocation10 + $0x21]]
    %v1334 = vstv %s1333
    %v1335 = vmul.f32 %v1334, %v1037
    %v1336 = vmul.f32 %v1334, %v1038
    %1339 = vrot.lane.b32.xlu0 %v1335, 127
    %v1340 = vpop.permute.xlu0 %1339
    %1341 = vrot.lane.b32.xlu0 %v1336, 127
    %v1342 = vpop.permute.xlu0 %1341
    %v1343 = vsel %vm305, %v1340, %v1342
    %v1345 = vadd.f32 %v1332, %v1343
    %s1346 = sld [smem:[#allocation10 + $0x22]]
    %v1347 = vstv %s1346
    %v1348 = vmul.f32 %v1347, %v1043
    %v1349 = vadd.f32 %v1345, %v1348
    %s1350 = sld [smem:[#allocation10 + $0x23]]
    %v1351 = vstv %s1350
    %v1352 = vmul.f32 %v1351, %v1043
    %v1353 = vmul.f32 %v1351, %v1044
    %1356 = vrot.lane.b32.xlu0 %v1352, 127
    %v1357 = vpop.permute.xlu0 %1356
    %1358 = vrot.lane.b32.xlu0 %v1353, 127
    %v1359 = vpop.permute.xlu0 %1358
    %v1360 = vsel %vm305, %v1357, %v1359
    %v1362 = vadd.f32 %v1349, %v1360
    %s1363 = sld [smem:[#allocation10 + $0x24]]
    %v1364 = vstv %s1363
    %v1365 = vmul.f32 %v1364, %v1049
    %v1366 = vadd.f32 %v1362, %v1365
    %s1367 = sld [smem:[#allocation10 + $0x25]]
    %v1368 = vstv %s1367
    %v1369 = vmul.f32 %v1368, %v1049
    %v1370 = vmul.f32 %v1368, %v1050
    %1373 = vrot.lane.b32.xlu0 %v1369, 127
    %v1374 = vpop.permute.xlu0 %1373
    %1375 = vrot.lane.b32.xlu0 %v1370, 127
    %v1376 = vpop.permute.xlu0 %1375
    %v1377 = vsel %vm305, %v1374, %v1376
    %v1379 = vadd.f32 %v1366, %v1377
    %s1380 = sld [smem:[#allocation10 + $0x26]]
    %v1381 = vstv %s1380
    %v1382 = vmul.f32 %v1381, %v1055
    %v1383 = vadd.f32 %v1379, %v1382
    %s1384 = sld [smem:[#allocation10 + $0x27]]
    %v1385 = vstv %s1384
    %v1386 = vmul.f32 %v1385, %v1055
    %v1387 = vmul.f32 %v1385, %v1056
    %1390 = vrot.lane.b32.xlu0 %v1386, 127
    %v1391 = vpop.permute.xlu0 %1390
    %1392 = vrot.lane.b32.xlu0 %v1387, 127
    %v1393 = vpop.permute.xlu0 %1392
    %v1394 = vsel %vm305, %v1391, %v1393
    %v1396 = vadd.f32 %v1383, %v1394
    %s1397 = sld [smem:[#allocation10 + $0x28]]
    %v1398 = vstv %s1397
    %v1399 = vmul.f32 %v1398, %v1037
    %v1400 = vadd.f32 %v1399, 0.0
    %s1401 = sld [smem:[#allocation10 + $0x29]]
    %v1402 = vstv %s1401
    %v1403 = vmul.f32 %v1402, %v1037
    %v1404 = vmul.f32 %v1402, %v1038
    %1407 = vrot.lane.b32.xlu0 %v1403, 127
    %v1408 = vpop.permute.xlu0 %1407
    %1409 = vrot.lane.b32.xlu0 %v1404, 127
    %v1410 = vpop.permute.xlu0 %1409
    %v1411 = vsel %vm305, %v1408, %v1410
    %v1413 = vadd.f32 %v1400, %v1411
    %s1414 = sld [smem:[#allocation10 + $0x2a]]
    %v1415 = vstv %s1414
    %v1416 = vmul.f32 %v1415, %v1043
    %v1417 = vadd.f32 %v1413, %v1416
    %s1418 = sld [smem:[#allocation10 + $0x2b]]
    %v1419 = vstv %s1418
    %v1420 = vmul.f32 %v1419, %v1043
    %v1421 = vmul.f32 %v1419, %v1044
    %1424 = vrot.lane.b32.xlu0 %v1420, 127
    %v1425 = vpop.permute.xlu0 %1424
    %1426 = vrot.lane.b32.xlu0 %v1421, 127
    %v1427 = vpop.permute.xlu0 %1426
    %v1428 = vsel %vm305, %v1425, %v1427
    %v1430 = vadd.f32 %v1417, %v1428
    %s1431 = sld [smem:[#allocation10 + $0x2c]]
    %v1432 = vstv %s1431
    %v1433 = vmul.f32 %v1432, %v1049
    %v1434 = vadd.f32 %v1430, %v1433
    %s1435 = sld [smem:[#allocation10 + $0x2d]]
    %v1436 = vstv %s1435
    %v1437 = vmul.f32 %v1436, %v1049
    %v1438 = vmul.f32 %v1436, %v1050
    %1441 = vrot.lane.b32.xlu0 %v1437, 127
    %v1442 = vpop.permute.xlu0 %1441
    %1443 = vrot.lane.b32.xlu0 %v1438, 127
    %v1444 = vpop.permute.xlu0 %1443
    %v1445 = vsel %vm305, %v1442, %v1444
    %v1447 = vadd.f32 %v1434, %v1445
    %s1448 = sld [smem:[#allocation10 + $0x2e]]
    %v1449 = vstv %s1448
    %v1450 = vmul.f32 %v1449, %v1055
    %v1451 = vadd.f32 %v1447, %v1450
    %s1452 = sld [smem:[#allocation10 + $0x2f]]
    %v1453 = vstv %s1452
    %v1454 = vmul.f32 %v1453, %v1055
    %v1455 = vmul.f32 %v1453, %v1056
    %1458 = vrot.lane.b32.xlu0 %v1454, 127
    %v1459 = vpop.permute.xlu0 %1458
    %1460 = vrot.lane.b32.xlu0 %v1455, 127
    %v1461 = vpop.permute.xlu0 %1460
    %v1462 = vsel %vm305, %v1459, %v1461
    %v1464 = vadd.f32 %v1451, %v1462
    %1465 = vadd.xlane.f32.xlu0 %v1124
    %v1466 = vpop.xlane.xlu0 %1465
    %v1467 = vmul.f32 %v1466, %v904
    %v1468 = vrot.slane %v1467, 4
    %v1469 = vadd.f32 %v1467, %v1468
    %v1470 = vrot.slane %v1469, 2
    %v1471 = vadd.f32 %v1469, %v1470
    %v1472 = vrot.slane %v1471, 1
    %v1473 = vadd.f32 %v1471, %v1472
    %v1474 = vmul.f32 %v1473, %v912
    %v1475 = vsub.f32 %v1124, %v1474
    %v1476 = vmul.f32 %v1475, %v1475
    %1477 = vadd.xlane.f32.xlu0 %v1476
    %v1478 = vpop.xlane.xlu0 %1477
    %v1479 = vmul.f32 %v1478, %v904
    %v1480 = vrot.slane %v1479, 4
    %v1481 = vadd.f32 %v1479, %v1480
    %v1482 = vrot.slane %v1481, 2
    %v1483 = vadd.f32 %v1481, %v1482
    %v1484 = vrot.slane %v1483, 1
    %v1485 = vadd.f32 %v1483, %v1484
    %v1486 = vmul.f32 %v1485, %v912
    %v1487 = vadd.f32 %v1486, 1e-05
    %v1488 = vrsqrt.pop %v1487
    %v1489 = vmul.f32 %v1475, %v1488
    %s1490 = sld [smem:[#allocation11]]
    %v1491 = vstv %s1490
    %v1492 = vmul.f32 %v1489, %v1491
    %s1493 = sld [smem:[#allocation13]]
    %v1494 = vstv %s1493
    %v1495 = vadd.f32 %v1492, %v1494
    %v1496 = vmax.f32 %v1495, 0.0
    %1497 = vadd.xlane.f32.xlu0 %v1192
    %v1498 = vpop.xlane.xlu0 %1497
    %v1499 = vmul.f32 %v1498, %v904
    %v1500 = vrot.slane %v1499, 4
    %v1501 = vadd.f32 %v1499, %v1500
    %v1502 = vrot.slane %v1501, 2
    %v1503 = vadd.f32 %v1501, %v1502
    %v1504 = vrot.slane %v1503, 1
    %v1505 = vadd.f32 %v1503, %v1504
    %v1506 = vmul.f32 %v1505, %v912
    %v1507 = vsub.f32 %v1192, %v1506
    %v1508 = vmul.f32 %v1507, %v1507
    %1509 = vadd.xlane.f32.xlu0 %v1508
    %v1510 = vpop.xlane.xlu0 %1509
    %v1511 = vmul.f32 %v1510, %v904
    %v1512 = vrot.slane %v1511, 4
    %v1513 = vadd.f32 %v1511, %v1512
    %v1514 = vrot.slane %v1513, 2
    %v1515 = vadd.f32 %v1513, %v1514
    %v1516 = vrot.slane %v1515, 1
    %v1517 = vadd.f32 %v1515, %v1516
    %v1518 = vmul.f32 %v1517, %v912
    %v1519 = vadd.f32 %v1518, 1e-05
    %v1520 = vrsqrt.pop %v1519
    %v1521 = vmul.f32 %v1507, %v1520
    %s1522 = sld [smem:[#allocation11 + $0x1]]
    %v1523 = vstv %s1522
    %v1524 = vmul.f32 %v1521, %v1523
    %s1525 = sld [smem:[#allocation13 + $0x1]]
    %v1526 = vstv %s1525
    %v1527 = vadd.f32 %v1524, %v1526
    %v1528 = vmax.f32 %v1527, 0.0
    %1529 = vadd.xlane.f32.xlu0 %v1260
    %v1530 = vpop.xlane.xlu0 %1529
    %v1531 = vmul.f32 %v1530, %v904
    %v1532 = vrot.slane %v1531, 4
    %v1533 = vadd.f32 %v1531, %v1532
    %v1534 = vrot.slane %v1533, 2
    %v1535 = vadd.f32 %v1533, %v1534
    %v1536 = vrot.slane %v1535, 1
    %v1537 = vadd.f32 %v1535, %v1536
    %v1538 = vmul.f32 %v1537, %v912
    %v1539 = vsub.f32 %v1260, %v1538
    %v1540 = vmul.f32 %v1539, %v1539
    %1541 = vadd.xlane.f32.xlu0 %v1540
    %v1542 = vpop.xlane.xlu0 %1541
    %v1543 = vmul.f32 %v1542, %v904
    %v1544 = vrot.slane %v1543, 4
    %v1545 = vadd.f32 %v1543, %v1544
    %v1546 = vrot.slane %v1545, 2
    %v1547 = vadd.f32 %v1545, %v1546
    %v1548 = vrot.slane %v1547, 1
    %v1549 = vadd.f32 %v1547, %v1548
    %v1550 = vmul.f32 %v1549, %v912
    %v1551 = vadd.f32 %v1550, 1e-05
    %v1552 = vrsqrt.pop %v1551
    %v1553 = vmul.f32 %v1539, %v1552
    %s1554 = sld [smem:[#allocation11 + $0x2]]
    %v1555 = vstv %s1554
    %v1556 = vmul.f32 %v1553, %v1555
    %s1557 = sld [smem:[#allocation13 + $0x2]]
    %v1558 = vstv %s1557
    %v1559 = vadd.f32 %v1556, %v1558
    %v1560 = vmax.f32 %v1559, 0.0
    %1561 = vadd.xlane.f32.xlu0 %v1328
    %v1562 = vpop.xlane.xlu0 %1561
    %v1563 = vmul.f32 %v1562, %v904
    %v1564 = vrot.slane %v1563, 4
    %v1565 = vadd.f32 %v1563, %v1564
    %v1566 = vrot.slane %v1565, 2
    %v1567 = vadd.f32 %v1565, %v1566
    %v1568 = vrot.slane %v1567, 1
    %v1569 = vadd.f32 %v1567, %v1568
    %v1570 = vmul.f32 %v1569, %v912
    %v1571 = vsub.f32 %v1328, %v1570
    %v1572 = vmul.f32 %v1571, %v1571
    %1573 = vadd.xlane.f32.xlu0 %v1572
    %v1574 = vpop.xlane.xlu0 %1573
    %v1575 = vmul.f32 %v1574, %v904
    %v1576 = vrot.slane %v1575, 4
    %v1577 = vadd.f32 %v1575, %v1576
    %v1578 = vrot.slane %v1577, 2
    %v1579 = vadd.f32 %v1577, %v1578
    %v1580 = vrot.slane %v1579, 1
    %v1581 = vadd.f32 %v1579, %v1580
    %v1582 = vmul.f32 %v1581, %v912
    %v1583 = vadd.f32 %v1582, 1e-05
    %v1584 = vrsqrt.pop %v1583
    %v1585 = vmul.f32 %v1571, %v1584
    %s1586 = sld [smem:[#allocation11 + $0x3]]
    %v1587 = vstv %s1586
    %v1588 = vmul.f32 %v1585, %v1587
    %s1589 = sld [smem:[#allocation13 + $0x3]]
    %v1590 = vstv %s1589
    %v1591 = vadd.f32 %v1588, %v1590
    %v1592 = vmax.f32 %v1591, 0.0
    %1593 = vadd.xlane.f32.xlu0 %v1396
    %v1594 = vpop.xlane.xlu0 %1593
    %v1595 = vmul.f32 %v1594, %v904
    %v1596 = vrot.slane %v1595, 4
    %v1597 = vadd.f32 %v1595, %v1596
    %v1598 = vrot.slane %v1597, 2
    %v1599 = vadd.f32 %v1597, %v1598
    %v1600 = vrot.slane %v1599, 1
    %v1601 = vadd.f32 %v1599, %v1600
    %v1602 = vmul.f32 %v1601, %v912
    %v1603 = vsub.f32 %v1396, %v1602
    %v1604 = vmul.f32 %v1603, %v1603
    %1605 = vadd.xlane.f32.xlu0 %v1604
    %v1606 = vpop.xlane.xlu0 %1605
    %v1607 = vmul.f32 %v1606, %v904
    %v1608 = vrot.slane %v1607, 4
    %v1609 = vadd.f32 %v1607, %v1608
    %v1610 = vrot.slane %v1609, 2
    %v1611 = vadd.f32 %v1609, %v1610
    %v1612 = vrot.slane %v1611, 1
    %v1613 = vadd.f32 %v1611, %v1612
    %v1614 = vmul.f32 %v1613, %v912
    %v1615 = vadd.f32 %v1614, 1e-05
    %v1616 = vrsqrt.pop %v1615
    %v1617 = vmul.f32 %v1603, %v1616
    %s1618 = sld [smem:[#allocation11 + $0x4]]
    %v1619 = vstv %s1618
    %v1620 = vmul.f32 %v1617, %v1619
    %s1621 = sld [smem:[#allocation13 + $0x4]]
    %v1622 = vstv %s1621
    %v1623 = vadd.f32 %v1620, %v1622
    %v1624 = vmax.f32 %v1623, 0.0
    %1625 = vadd.xlane.f32.xlu0 %v1464
    %v1626 = vpop.xlane.xlu0 %1625
    %v1627 = vmul.f32 %v1626, %v904
    %v1628 = vrot.slane %v1627, 4
    %v1629 = vadd.f32 %v1627, %v1628
    %v1630 = vrot.slane %v1629, 2
    %v1631 = vadd.f32 %v1629, %v1630
    %v1632 = vrot.slane %v1631, 1
    %v1633 = vadd.f32 %v1631, %v1632
    %v1634 = vmul.f32 %v1633, %v912
    %v1635 = vsub.f32 %v1464, %v1634
    %v1636 = vmul.f32 %v1635, %v1635
    %1637 = vadd.xlane.f32.xlu0 %v1636
    %v1638 = vpop.xlane.xlu0 %1637
    %v1639 = vmul.f32 %v1638, %v904
    %v1640 = vrot.slane %v1639, 4
    %v1641 = vadd.f32 %v1639, %v1640
    %v1642 = vrot.slane %v1641, 2
    %v1643 = vadd.f32 %v1641, %v1642
    %v1644 = vrot.slane %v1643, 1
    %v1645 = vadd.f32 %v1643, %v1644
    %v1646 = vmul.f32 %v1645, %v912
    %v1647 = vadd.f32 %v1646, 1e-05
    %v1648 = vrsqrt.pop %v1647
    %v1649 = vmul.f32 %v1635, %v1648
    %s1650 = sld [smem:[#allocation11 + $0x5]]
    %v1651 = vstv %s1650
    %v1652 = vmul.f32 %v1649, %v1651
    %s1653 = sld [smem:[#allocation13 + $0x5]]
    %v1654 = vstv %s1653
    %v1655 = vadd.f32 %v1652, %v1654
    %v1656 = vmax.f32 %v1655, 0.0
    %1658 = vrot.lane.b32.xlu0 %v1496, 1
    %v1659 = vpop.permute.xlu0 %1658
    %v1661 = vsel %vm1036, 0.0, %v1659
    %v1662 = vsel %vm1036, %v1659, 0.0
    %1664 = vrot.lane.b32.xlu0 %v1528, 1
    %v1665 = vpop.permute.xlu0 %1664
    %v1667 = vsel %vm1036, 0.0, %v1665
    %v1668 = vsel %vm1036, %v1665, 0.0
    %1670 = vrot.lane.b32.xlu0 %v1560, 1
    %v1671 = vpop.permute.xlu0 %1670
    %v1673 = vsel %vm1036, 0.0, %v1671
    %v1674 = vsel %vm1036, %v1671, 0.0
    %1676 = vrot.lane.b32.xlu0 %v1592, 1
    %v1677 = vpop.permute.xlu0 %1676
    %v1679 = vsel %vm1036, 0.0, %v1677
    %v1680 = vsel %vm1036, %v1677, 0.0
    %1682 = vrot.lane.b32.xlu0 %v1624, 1
    %v1683 = vpop.permute.xlu0 %1682
    %v1685 = vsel %vm1036, 0.0, %v1683
    %v1686 = vsel %vm1036, %v1683, 0.0
    %1688 = vrot.lane.b32.xlu0 %v1656, 1
    %v1689 = vpop.permute.xlu0 %1688
    %v1691 = vsel %vm1036, 0.0, %v1689
    %v1692 = vsel %vm1036, %v1689, 0.0
    %s1693 = sld [smem:[#allocation14]]
    %v1694 = vstv %s1693
    %v1695 = vmul.f32 %v1694, %v1661
    %v1696 = vadd.f32 %v1695, 0.0
    %s1697 = sld [smem:[#allocation14 + $0x1]]
    %v1698 = vstv %s1697
    %v1699 = vmul.f32 %v1698, %v1661
    %v1700 = vmul.f32 %v1698, %v1662
    %1703 = vrot.lane.b32.xlu0 %v1699, 127
    %v1704 = vpop.permute.xlu0 %1703
    %1705 = vrot.lane.b32.xlu0 %v1700, 127
    %v1706 = vpop.permute.xlu0 %1705
    %v1707 = vsel %vm305, %v1704, %v1706
    %v1709 = vadd.f32 %v1696, %v1707
    %s1710 = sld [smem:[#allocation14 + $0x2]]
    %v1711 = vstv %s1710
    %v1712 = vmul.f32 %v1711, %v1667
    %v1713 = vadd.f32 %v1709, %v1712
    %s1714 = sld [smem:[#allocation14 + $0x3]]
    %v1715 = vstv %s1714
    %v1716 = vmul.f32 %v1715, %v1667
    %v1717 = vmul.f32 %v1715, %v1668
    %1720 = vrot.lane.b32.xlu0 %v1716, 127
    %v1721 = vpop.permute.xlu0 %1720
    %1722 = vrot.lane.b32.xlu0 %v1717, 127
    %v1723 = vpop.permute.xlu0 %1722
    %v1724 = vsel %vm305, %v1721, %v1723
    %v1726 = vadd.f32 %v1713, %v1724
    %s1727 = sld [smem:[#allocation14 + $0x4]]
    %v1728 = vstv %s1727
    %v1729 = vmul.f32 %v1728, %v1673
    %v1730 = vadd.f32 %v1726, %v1729
    %s1731 = sld [smem:[#allocation14 + $0x5]]
    %v1732 = vstv %s1731
    %v1733 = vmul.f32 %v1732, %v1673
    %v1734 = vmul.f32 %v1732, %v1674
    %1737 = vrot.lane.b32.xlu0 %v1733, 127
    %v1738 = vpop.permute.xlu0 %1737
    %1739 = vrot.lane.b32.xlu0 %v1734, 127
    %v1740 = vpop.permute.xlu0 %1739
    %v1741 = vsel %vm305, %v1738, %v1740
    %v1743 = vadd.f32 %v1730, %v1741
    %s1744 = sld [smem:[#allocation14 + $0x6]]
    %v1745 = vstv %s1744
    %v1746 = vmul.f32 %v1745, %v1679
    %v1747 = vadd.f32 %v1743, %v1746
    %s1748 = sld [smem:[#allocation14 + $0x7]]
    %v1749 = vstv %s1748
    %v1750 = vmul.f32 %v1749, %v1679
    %v1751 = vmul.f32 %v1749, %v1680
    %1754 = vrot.lane.b32.xlu0 %v1750, 127
    %v1755 = vpop.permute.xlu0 %1754
    %1756 = vrot.lane.b32.xlu0 %v1751, 127
    %v1757 = vpop.permute.xlu0 %1756
    %v1758 = vsel %vm305, %v1755, %v1757
    %v1760 = vadd.f32 %v1747, %v1758
    %s1761 = sld [smem:[#allocation14 + $0x8]]
    %v1762 = vstv %s1761
    %v1763 = vmul.f32 %v1762, %v1685
    %v1764 = vadd.f32 %v1760, %v1763
    %s1765 = sld [smem:[#allocation14 + $0x9]]
    %v1766 = vstv %s1765
    %v1767 = vmul.f32 %v1766, %v1685
    %v1768 = vmul.f32 %v1766, %v1686
    %1771 = vrot.lane.b32.xlu0 %v1767, 127
    %v1772 = vpop.permute.xlu0 %1771
    %1773 = vrot.lane.b32.xlu0 %v1768, 127
    %v1774 = vpop.permute.xlu0 %1773
    %v1775 = vsel %vm305, %v1772, %v1774
    %v1777 = vadd.f32 %v1764, %v1775
    %s1778 = sld [smem:[#allocation14 + $0xa]]
    %v1779 = vstv %s1778
    %v1780 = vmul.f32 %v1779, %v1691
    %v1781 = vadd.f32 %v1777, %v1780
    %s1782 = sld [smem:[#allocation14 + $0xb]]
    %v1783 = vstv %s1782
    %v1784 = vmul.f32 %v1783, %v1691
    %v1785 = vmul.f32 %v1783, %v1692
    %1788 = vrot.lane.b32.xlu0 %v1784, 127
    %v1789 = vpop.permute.xlu0 %1788
    %1790 = vrot.lane.b32.xlu0 %v1785, 127
    %v1791 = vpop.permute.xlu0 %1790
    %v1792 = vsel %vm305, %v1789, %v1791
    %v1794 = vadd.f32 %v1781, %v1792
    %s1795 = sld [smem:[#allocation14 + $0xc]]
    %v1796 = vstv %s1795
    %v1797 = vmul.f32 %v1796, %v1661
    %v1798 = vadd.f32 %v1797, 0.0
    %s1799 = sld [smem:[#allocation14 + $0xd]]
    %v1800 = vstv %s1799
    %v1801 = vmul.f32 %v1800, %v1661
    %v1802 = vmul.f32 %v1800, %v1662
    %1805 = vrot.lane.b32.xlu0 %v1801, 127
    %v1806 = vpop.permute.xlu0 %1805
    %1807 = vrot.lane.b32.xlu0 %v1802, 127
    %v1808 = vpop.permute.xlu0 %1807
    %v1809 = vsel %vm305, %v1806, %v1808
    %v1811 = vadd.f32 %v1798, %v1809
    %s1812 = sld [smem:[#allocation14 + $0xe]]
    %v1813 = vstv %s1812
    %v1814 = vmul.f32 %v1813, %v1667
    %v1815 = vadd.f32 %v1811, %v1814
    %s1816 = sld [smem:[#allocation14 + $0xf]]
    %v1817 = vstv %s1816
    %v1818 = vmul.f32 %v1817, %v1667
    %v1819 = vmul.f32 %v1817, %v1668
    %1822 = vrot.lane.b32.xlu0 %v1818, 127
    %v1823 = vpop.permute.xlu0 %1822
    %1824 = vrot.lane.b32.xlu0 %v1819, 127
    %v1825 = vpop.permute.xlu0 %1824
    %v1826 = vsel %vm305, %v1823, %v1825
    %v1828 = vadd.f32 %v1815, %v1826
    %s1829 = sld [smem:[#allocation14 + $0x10]]
    %v1830 = vstv %s1829
    %v1831 = vmul.f32 %v1830, %v1673
    %v1832 = vadd.f32 %v1828, %v1831
    %s1833 = sld [smem:[#allocation14 + $0x11]]
    %v1834 = vstv %s1833
    %v1835 = vmul.f32 %v1834, %v1673
    %v1836 = vmul.f32 %v1834, %v1674
    %1839 = vrot.lane.b32.xlu0 %v1835, 127
    %v1840 = vpop.permute.xlu0 %1839
    %1841 = vrot.lane.b32.xlu0 %v1836, 127
    %v1842 = vpop.permute.xlu0 %1841
    %v1843 = vsel %vm305, %v1840, %v1842
    %v1845 = vadd.f32 %v1832, %v1843
    %s1846 = sld [smem:[#allocation14 + $0x12]]
    %v1847 = vstv %s1846
    %v1848 = vmul.f32 %v1847, %v1679
    %v1849 = vadd.f32 %v1845, %v1848
    %s1850 = sld [smem:[#allocation14 + $0x13]]
    %v1851 = vstv %s1850
    %v1852 = vmul.f32 %v1851, %v1679
    %v1853 = vmul.f32 %v1851, %v1680
    %1856 = vrot.lane.b32.xlu0 %v1852, 127
    %v1857 = vpop.permute.xlu0 %1856
    %1858 = vrot.lane.b32.xlu0 %v1853, 127
    %v1859 = vpop.permute.xlu0 %1858
    %v1860 = vsel %vm305, %v1857, %v1859
    %v1862 = vadd.f32 %v1849, %v1860
    %s1863 = sld [smem:[#allocation14 + $0x14]]
    %v1864 = vstv %s1863
    %v1865 = vmul.f32 %v1864, %v1685
    %v1866 = vadd.f32 %v1862, %v1865
    %s1867 = sld [smem:[#allocation14 + $0x15]]
    %v1868 = vstv %s1867
    %v1869 = vmul.f32 %v1868, %v1685
    %v1870 = vmul.f32 %v1868, %v1686
    %1873 = vrot.lane.b32.xlu0 %v1869, 127
    %v1874 = vpop.permute.xlu0 %1873
    %1875 = vrot.lane.b32.xlu0 %v1870, 127
    %v1876 = vpop.permute.xlu0 %1875
    %v1877 = vsel %vm305, %v1874, %v1876
    %v1879 = vadd.f32 %v1866, %v1877
    %s1880 = sld [smem:[#allocation14 + $0x16]]
    %v1881 = vstv %s1880
    %v1882 = vmul.f32 %v1881, %v1691
    %v1883 = vadd.f32 %v1879, %v1882
    %s1884 = sld [smem:[#allocation14 + $0x17]]
    %v1885 = vstv %s1884
    %v1886 = vmul.f32 %v1885, %v1691
    %v1887 = vmul.f32 %v1885, %v1692
    %1890 = vrot.lane.b32.xlu0 %v1886, 127
    %v1891 = vpop.permute.xlu0 %1890
    %1892 = vrot.lane.b32.xlu0 %v1887, 127
    %v1893 = vpop.permute.xlu0 %1892
    %v1894 = vsel %vm305, %v1891, %v1893
    %v1896 = vadd.f32 %v1883, %v1894
    %s1897 = sld [smem:[#allocation14 + $0x18]]
    %v1898 = vstv %s1897
    %v1899 = vmul.f32 %v1898, %v1661
    %v1900 = vadd.f32 %v1899, 0.0
    %s1901 = sld [smem:[#allocation14 + $0x19]]
    %v1902 = vstv %s1901
    %v1903 = vmul.f32 %v1902, %v1661
    %v1904 = vmul.f32 %v1902, %v1662
    %1907 = vrot.lane.b32.xlu0 %v1903, 127
    %v1908 = vpop.permute.xlu0 %1907
    %1909 = vrot.lane.b32.xlu0 %v1904, 127
    %v1910 = vpop.permute.xlu0 %1909
    %v1911 = vsel %vm305, %v1908, %v1910
    %v1913 = vadd.f32 %v1900, %v1911
    %s1914 = sld [smem:[#allocation14 + $0x1a]]
    %v1915 = vstv %s1914
    %v1916 = vmul.f32 %v1915, %v1667
    %v1917 = vadd.f32 %v1913, %v1916
    %s1918 = sld [smem:[#allocation14 + $0x1b]]
    %v1919 = vstv %s1918
    %v1920 = vmul.f32 %v1919, %v1667
    %v1921 = vmul.f32 %v1919, %v1668
    %1924 = vrot.lane.b32.xlu0 %v1920, 127
    %v1925 = vpop.permute.xlu0 %1924
    %1926 = vrot.lane.b32.xlu0 %v1921, 127
    %v1927 = vpop.permute.xlu0 %1926
    %v1928 = vsel %vm305, %v1925, %v1927
    %v1930 = vadd.f32 %v1917, %v1928
    %s1931 = sld [smem:[#allocation14 + $0x1c]]
    %v1932 = vstv %s1931
    %v1933 = vmul.f32 %v1932, %v1673
    %v1934 = vadd.f32 %v1930, %v1933
    %s1935 = sld [smem:[#allocation14 + $0x1d]]
    %v1936 = vstv %s1935
    %v1937 = vmul.f32 %v1936, %v1673
    %v1938 = vmul.f32 %v1936, %v1674
    %1941 = vrot.lane.b32.xlu0 %v1937, 127
    %v1942 = vpop.permute.xlu0 %1941
    %1943 = vrot.lane.b32.xlu0 %v1938, 127
    %v1944 = vpop.permute.xlu0 %1943
    %v1945 = vsel %vm305, %v1942, %v1944
    %v1947 = vadd.f32 %v1934, %v1945
    %s1948 = sld [smem:[#allocation14 + $0x1e]]
    %v1949 = vstv %s1948
    %v1950 = vmul.f32 %v1949, %v1679
    %v1951 = vadd.f32 %v1947, %v1950
    %s1952 = sld [smem:[#allocation14 + $0x1f]]
    %v1953 = vstv %s1952
    %v1954 = vmul.f32 %v1953, %v1679
    %v1955 = vmul.f32 %v1953, %v1680
    %1958 = vrot.lane.b32.xlu0 %v1954, 127
    %v1959 = vpop.permute.xlu0 %1958
    %1960 = vrot.lane.b32.xlu0 %v1955, 127
    %v1961 = vpop.permute.xlu0 %1960
    %v1962 = vsel %vm305, %v1959, %v1961
    %v1964 = vadd.f32 %v1951, %v1962
    %s1965 = sld [smem:[#allocation14 + $0x20]]
    %v1966 = vstv %s1965
    %v1967 = vmul.f32 %v1966, %v1685
    %v1968 = vadd.f32 %v1964, %v1967
    %s1969 = sld [smem:[#allocation14 + $0x21]]
    %v1970 = vstv %s1969
    %v1971 = vmul.f32 %v1970, %v1685
    %v1972 = vmul.f32 %v1970, %v1686
    %1975 = vrot.lane.b32.xlu0 %v1971, 127
    %v1976 = vpop.permute.xlu0 %1975
    %1977 = vrot.lane.b32.xlu0 %v1972, 127
    %v1978 = vpop.permute.xlu0 %1977
    %v1979 = vsel %vm305, %v1976, %v1978
    %v1981 = vadd.f32 %v1968, %v1979
    %s1982 = sld [smem:[#allocation14 + $0x22]]
    %v1983 = vstv %s1982
    %v1984 = vmul.f32 %v1983, %v1691
    %v1985 = vadd.f32 %v1981, %v1984
    %s1986 = sld [smem:[#allocation14 + $0x23]]
    %v1987 = vstv %s1986
    %v1988 = vmul.f32 %v1987, %v1691
    %v1989 = vmul.f32 %v1987, %v1692
    %1992 = vrot.lane.b32.xlu0 %v1988, 127
    %v1993 = vpop.permute.xlu0 %1992
    %1994 = vrot.lane.b32.xlu0 %v1989, 127
    %v1995 = vpop.permute.xlu0 %1994
    %v1996 = vsel %vm305, %v1993, %v1995
    %v1998 = vadd.f32 %v1985, %v1996
    %s1999 = sld [smem:[#allocation14 + $0x24]]
    %v2000 = vstv %s1999
    %v2001 = vmul.f32 %v2000, %v1661
    %v2002 = vadd.f32 %v2001, 0.0
    %s2003 = sld [smem:[#allocation14 + $0x25]]
    %v2004 = vstv %s2003
    %v2005 = vmul.f32 %v2004, %v1661
    %v2006 = vmul.f32 %v2004, %v1662
    %2009 = vrot.lane.b32.xlu0 %v2005, 127
    %v2010 = vpop.permute.xlu0 %2009
    %2011 = vrot.lane.b32.xlu0 %v2006, 127
    %v2012 = vpop.permute.xlu0 %2011
    %v2013 = vsel %vm305, %v2010, %v2012
    %v2015 = vadd.f32 %v2002, %v2013
    %s2016 = sld [smem:[#allocation14 + $0x26]]
    %v2017 = vstv %s2016
    %v2018 = vmul.f32 %v2017, %v1667
    %v2019 = vadd.f32 %v2015, %v2018
    %s2020 = sld [smem:[#allocation14 + $0x27]]
    %v2021 = vstv %s2020
    %v2022 = vmul.f32 %v2021, %v1667
    %v2023 = vmul.f32 %v2021, %v1668
    %2026 = vrot.lane.b32.xlu0 %v2022, 127
    %v2027 = vpop.permute.xlu0 %2026
    %2028 = vrot.lane.b32.xlu0 %v2023, 127
    %v2029 = vpop.permute.xlu0 %2028
    %v2030 = vsel %vm305, %v2027, %v2029
    %v2032 = vadd.f32 %v2019, %v2030
    %s2033 = sld [smem:[#allocation14 + $0x28]]
    %v2034 = vstv %s2033
    %v2035 = vmul.f32 %v2034, %v1673
    %v2036 = vadd.f32 %v2032, %v2035
    %s2037 = sld [smem:[#allocation14 + $0x29]]
    %v2038 = vstv %s2037
    %v2039 = vmul.f32 %v2038, %v1673
    %v2040 = vmul.f32 %v2038, %v1674
    %2043 = vrot.lane.b32.xlu0 %v2039, 127
    %v2044 = vpop.permute.xlu0 %2043
    %2045 = vrot.lane.b32.xlu0 %v2040, 127
    %v2046 = vpop.permute.xlu0 %2045
    %v2047 = vsel %vm305, %v2044, %v2046
    %v2049 = vadd.f32 %v2036, %v2047
    %s2050 = sld [smem:[#allocation14 + $0x2a]]
    %v2051 = vstv %s2050
    %v2052 = vmul.f32 %v2051, %v1679
    %v2053 = vadd.f32 %v2049, %v2052
    %s2054 = sld [smem:[#allocation14 + $0x2b]]
    %v2055 = vstv %s2054
    %v2056 = vmul.f32 %v2055, %v1679
    %v2057 = vmul.f32 %v2055, %v1680
    %2060 = vrot.lane.b32.xlu0 %v2056, 127
    %v2061 = vpop.permute.xlu0 %2060
    %2062 = vrot.lane.b32.xlu0 %v2057, 127
    %v2063 = vpop.permute.xlu0 %2062
    %v2064 = vsel %vm305, %v2061, %v2063
    %v2066 = vadd.f32 %v2053, %v2064
    %s2067 = sld [smem:[#allocation14 + $0x2c]]
    %v2068 = vstv %s2067
    %v2069 = vmul.f32 %v2068, %v1685
    %v2070 = vadd.f32 %v2066, %v2069
    %s2071 = sld [smem:[#allocation14 + $0x2d]]
    %v2072 = vstv %s2071
    %v2073 = vmul.f32 %v2072, %v1685
    %v2074 = vmul.f32 %v2072, %v1686
    %2077 = vrot.lane.b32.xlu0 %v2073, 127
    %v2078 = vpop.permute.xlu0 %2077
    %2079 = vrot.lane.b32.xlu0 %v2074, 127
    %v2080 = vpop.permute.xlu0 %2079
    %v2081 = vsel %vm305, %v2078, %v2080
    %v2083 = vadd.f32 %v2070, %v2081
    %s2084 = sld [smem:[#allocation14 + $0x2e]]
    %v2085 = vstv %s2084
    %v2086 = vmul.f32 %v2085, %v1691
    %v2087 = vadd.f32 %v2083, %v2086
    %s2088 = sld [smem:[#allocation14 + $0x2f]]
    %v2089 = vstv %s2088
    %v2090 = vmul.f32 %v2089, %v1691
    %v2091 = vmul.f32 %v2089, %v1692
    %2094 = vrot.lane.b32.xlu0 %v2090, 127
    %v2095 = vpop.permute.xlu0 %2094
    %2096 = vrot.lane.b32.xlu0 %v2091, 127
    %v2097 = vpop.permute.xlu0 %2096
    %v2098 = vsel %vm305, %v2095, %v2097
    %v2100 = vadd.f32 %v2087, %v2098
    %s2101 = sld [smem:[#allocation14 + $0x30]]
    %v2102 = vstv %s2101
    %v2103 = vmul.f32 %v2102, %v1661
    %v2104 = vadd.f32 %v2103, 0.0
    %s2105 = sld [smem:[#allocation14 + $0x31]]
    %v2106 = vstv %s2105
    %v2107 = vmul.f32 %v2106, %v1661
    %v2108 = vmul.f32 %v2106, %v1662
    %2111 = vrot.lane.b32.xlu0 %v2107, 127
    %v2112 = vpop.permute.xlu0 %2111
    %2113 = vrot.lane.b32.xlu0 %v2108, 127
    %v2114 = vpop.permute.xlu0 %2113
    %v2115 = vsel %vm305, %v2112, %v2114
    %v2117 = vadd.f32 %v2104, %v2115
    %s2118 = sld [smem:[#allocation14 + $0x32]]
    %v2119 = vstv %s2118
    %v2120 = vmul.f32 %v2119, %v1667
    %v2121 = vadd.f32 %v2117, %v2120
    %s2122 = sld [smem:[#allocation14 + $0x33]]
    %v2123 = vstv %s2122
    %v2124 = vmul.f32 %v2123, %v1667
    %v2125 = vmul.f32 %v2123, %v1668
    %2128 = vrot.lane.b32.xlu0 %v2124, 127
    %v2129 = vpop.permute.xlu0 %2128
    %2130 = vrot.lane.b32.xlu0 %v2125, 127
    %v2131 = vpop.permute.xlu0 %2130
    %v2132 = vsel %vm305, %v2129, %v2131
    %v2134 = vadd.f32 %v2121, %v2132
    %s2135 = sld [smem:[#allocation14 + $0x34]]
    %v2136 = vstv %s2135
    %v2137 = vmul.f32 %v2136, %v1673
    %v2138 = vadd.f32 %v2134, %v2137
    %s2139 = sld [smem:[#allocation14 + $0x35]]
    %v2140 = vstv %s2139
    %v2141 = vmul.f32 %v2140, %v1673
    %v2142 = vmul.f32 %v2140, %v1674
    %2145 = vrot.lane.b32.xlu0 %v2141, 127
    %v2146 = vpop.permute.xlu0 %2145
    %2147 = vrot.lane.b32.xlu0 %v2142, 127
    %v2148 = vpop.permute.xlu0 %2147
    %v2149 = vsel %vm305, %v2146, %v2148
    %v2151 = vadd.f32 %v2138, %v2149
    %s2152 = sld [smem:[#allocation14 + $0x36]]
    %v2153 = vstv %s2152
    %v2154 = vmul.f32 %v2153, %v1679
    %v2155 = vadd.f32 %v2151, %v2154
    %s2156 = sld [smem:[#allocation14 + $0x37]]
    %v2157 = vstv %s2156
    %v2158 = vmul.f32 %v2157, %v1679
    %v2159 = vmul.f32 %v2157, %v1680
    %2162 = vrot.lane.b32.xlu0 %v2158, 127
    %v2163 = vpop.permute.xlu0 %2162
    %2164 = vrot.lane.b32.xlu0 %v2159, 127
    %v2165 = vpop.permute.xlu0 %2164
    %v2166 = vsel %vm305, %v2163, %v2165
    %v2168 = vadd.f32 %v2155, %v2166
    %s2169 = sld [smem:[#allocation14 + $0x38]]
    %v2170 = vstv %s2169
    %v2171 = vmul.f32 %v2170, %v1685
    %v2172 = vadd.f32 %v2168, %v2171
    %s2173 = sld [smem:[#allocation14 + $0x39]]
    %v2174 = vstv %s2173
    %v2175 = vmul.f32 %v2174, %v1685
    %v2176 = vmul.f32 %v2174, %v1686
    %2179 = vrot.lane.b32.xlu0 %v2175, 127
    %v2180 = vpop.permute.xlu0 %2179
    %2181 = vrot.lane.b32.xlu0 %v2176, 127
    %v2182 = vpop.permute.xlu0 %2181
    %v2183 = vsel %vm305, %v2180, %v2182
    %v2185 = vadd.f32 %v2172, %v2183
    %s2186 = sld [smem:[#allocation14 + $0x3a]]
    %v2187 = vstv %s2186
    %v2188 = vmul.f32 %v2187, %v1691
    %v2189 = vadd.f32 %v2185, %v2188
    %s2190 = sld [smem:[#allocation14 + $0x3b]]
    %v2191 = vstv %s2190
    %v2192 = vmul.f32 %v2191, %v1691
    %v2193 = vmul.f32 %v2191, %v1692
    %2196 = vrot.lane.b32.xlu0 %v2192, 127
    %v2197 = vpop.permute.xlu0 %2196
    %2198 = vrot.lane.b32.xlu0 %v2193, 127
    %v2199 = vpop.permute.xlu0 %2198
    %v2200 = vsel %vm305, %v2197, %v2199
    %v2202 = vadd.f32 %v2189, %v2200
    %s2203 = sld [smem:[#allocation14 + $0x3c]]
    %v2204 = vstv %s2203
    %v2205 = vmul.f32 %v2204, %v1661
    %v2206 = vadd.f32 %v2205, 0.0
    %s2207 = sld [smem:[#allocation14 + $0x3d]]
    %v2208 = vstv %s2207
    %v2209 = vmul.f32 %v2208, %v1661
    %v2210 = vmul.f32 %v2208, %v1662
    %2213 = vrot.lane.b32.xlu0 %v2209, 127
    %v2214 = vpop.permute.xlu0 %2213
    %2215 = vrot.lane.b32.xlu0 %v2210, 127
    %v2216 = vpop.permute.xlu0 %2215
    %v2217 = vsel %vm305, %v2214, %v2216
    %v2219 = vadd.f32 %v2206, %v2217
    %s2220 = sld [smem:[#allocation14 + $0x3e]]
    %v2221 = vstv %s2220
    %v2222 = vmul.f32 %v2221, %v1667
    %v2223 = vadd.f32 %v2219, %v2222
    %s2224 = sld [smem:[#allocation14 + $0x3f]]
    %v2225 = vstv %s2224
    %v2226 = vmul.f32 %v2225, %v1667
    %v2227 = vmul.f32 %v2225, %v1668
    %2230 = vrot.lane.b32.xlu0 %v2226, 127
    %v2231 = vpop.permute.xlu0 %2230
    %2232 = vrot.lane.b32.xlu0 %v2227, 127
    %v2233 = vpop.permute.xlu0 %2232
    %v2234 = vsel %vm305, %v2231, %v2233
    %v2236 = vadd.f32 %v2223, %v2234
    %s2237 = sld [smem:[#allocation14 + $0x40]]
    %v2238 = vstv %s2237
    %v2239 = vmul.f32 %v2238, %v1673
    %v2240 = vadd.f32 %v2236, %v2239
    %s2241 = sld [smem:[#allocation14 + $0x41]]
    %v2242 = vstv %s2241
    %v2243 = vmul.f32 %v2242, %v1673
    %v2244 = vmul.f32 %v2242, %v1674
    %2247 = vrot.lane.b32.xlu0 %v2243, 127
    %v2248 = vpop.permute.xlu0 %2247
    %2249 = vrot.lane.b32.xlu0 %v2244, 127
    %v2250 = vpop.permute.xlu0 %2249
    %v2251 = vsel %vm305, %v2248, %v2250
    %v2253 = vadd.f32 %v2240, %v2251
    %s2254 = sld [smem:[#allocation14 + $0x42]]
    %v2255 = vstv %s2254
    %v2256 = vmul.f32 %v2255, %v1679
    %v2257 = vadd.f32 %v2253, %v2256
    %s2258 = sld [smem:[#allocation14 + $0x43]]
    %v2259 = vstv %s2258
    %v2260 = vmul.f32 %v2259, %v1679
    %v2261 = vmul.f32 %v2259, %v1680
    %2264 = vrot.lane.b32.xlu0 %v2260, 127
    %v2265 = vpop.permute.xlu0 %2264
    %2266 = vrot.lane.b32.xlu0 %v2261, 127
    %v2267 = vpop.permute.xlu0 %2266
    %v2268 = vsel %vm305, %v2265, %v2267
    %v2270 = vadd.f32 %v2257, %v2268
    %s2271 = sld [smem:[#allocation14 + $0x44]]
    %v2272 = vstv %s2271
    %v2273 = vmul.f32 %v2272, %v1685
    %v2274 = vadd.f32 %v2270, %v2273
    %s2275 = sld [smem:[#allocation14 + $0x45]]
    %v2276 = vstv %s2275
    %v2277 = vmul.f32 %v2276, %v1685
    %v2278 = vmul.f32 %v2276, %v1686
    %2281 = vrot.lane.b32.xlu0 %v2277, 127
    %v2282 = vpop.permute.xlu0 %2281
    %2283 = vrot.lane.b32.xlu0 %v2278, 127
    %v2284 = vpop.permute.xlu0 %2283
    %v2285 = vsel %vm305, %v2282, %v2284
    %v2287 = vadd.f32 %v2274, %v2285
    %s2288 = sld [smem:[#allocation14 + $0x46]]
    %v2289 = vstv %s2288
    %v2290 = vmul.f32 %v2289, %v1691
    %v2291 = vadd.f32 %v2287, %v2290
    %s2292 = sld [smem:[#allocation14 + $0x47]]
    %v2293 = vstv %s2292
    %v2294 = vmul.f32 %v2293, %v1691
    %v2295 = vmul.f32 %v2293, %v1692
    %2298 = vrot.lane.b32.xlu0 %v2294, 127
    %v2299 = vpop.permute.xlu0 %2298
    %2300 = vrot.lane.b32.xlu0 %v2295, 127
    %v2301 = vpop.permute.xlu0 %2300
    %v2302 = vsel %vm305, %v2299, %v2301
    %v2304 = vadd.f32 %v2291, %v2302
    %s2305 = sld [smem:[#allocation14 + $0x48]]
    %v2306 = vstv %s2305
    %v2307 = vmul.f32 %v2306, %v1661
    %v2308 = vadd.f32 %v2307, 0.0
    %s2309 = sld [smem:[#allocation14 + $0x49]]
    %v2310 = vstv %s2309
    %v2311 = vmul.f32 %v2310, %v1661
    %v2312 = vmul.f32 %v2310, %v1662
    %2315 = vrot.lane.b32.xlu0 %v2311, 127
    %v2316 = vpop.permute.xlu0 %2315
    %2317 = vrot.lane.b32.xlu0 %v2312, 127
    %v2318 = vpop.permute.xlu0 %2317
    %v2319 = vsel %vm305, %v2316, %v2318
    %v2321 = vadd.f32 %v2308, %v2319
    %s2322 = sld [smem:[#allocation14 + $0x4a]]
    %v2323 = vstv %s2322
    %v2324 = vmul.f32 %v2323, %v1667
    %v2325 = vadd.f32 %v2321, %v2324
    %s2326 = sld [smem:[#allocation14 + $0x4b]]
    %v2327 = vstv %s2326
    %v2328 = vmul.f32 %v2327, %v1667
    %v2329 = vmul.f32 %v2327, %v1668
    %2332 = vrot.lane.b32.xlu0 %v2328, 127
    %v2333 = vpop.permute.xlu0 %2332
    %2334 = vrot.lane.b32.xlu0 %v2329, 127
    %v2335 = vpop.permute.xlu0 %2334
    %v2336 = vsel %vm305, %v2333, %v2335
    %v2338 = vadd.f32 %v2325, %v2336
    %s2339 = sld [smem:[#allocation14 + $0x4c]]
    %v2340 = vstv %s2339
    %v2341 = vmul.f32 %v2340, %v1673
    %v2342 = vadd.f32 %v2338, %v2341
    %s2343 = sld [smem:[#allocation14 + $0x4d]]
    %v2344 = vstv %s2343
    %v2345 = vmul.f32 %v2344, %v1673
    %v2346 = vmul.f32 %v2344, %v1674
    %2349 = vrot.lane.b32.xlu0 %v2345, 127
    %v2350 = vpop.permute.xlu0 %2349
    %2351 = vrot.lane.b32.xlu0 %v2346, 127
    %v2352 = vpop.permute.xlu0 %2351
    %v2353 = vsel %vm305, %v2350, %v2352
    %v2355 = vadd.f32 %v2342, %v2353
    %s2356 = sld [smem:[#allocation14 + $0x4e]]
    %v2357 = vstv %s2356
    %v2358 = vmul.f32 %v2357, %v1679
    %v2359 = vadd.f32 %v2355, %v2358
    %s2360 = sld [smem:[#allocation14 + $0x4f]]
    %v2361 = vstv %s2360
    %v2362 = vmul.f32 %v2361, %v1679
    %v2363 = vmul.f32 %v2361, %v1680
    %2366 = vrot.lane.b32.xlu0 %v2362, 127
    %v2367 = vpop.permute.xlu0 %2366
    %2368 = vrot.lane.b32.xlu0 %v2363, 127
    %v2369 = vpop.permute.xlu0 %2368
    %v2370 = vsel %vm305, %v2367, %v2369
    %v2372 = vadd.f32 %v2359, %v2370
    %s2373 = sld [smem:[#allocation14 + $0x50]]
    %v2374 = vstv %s2373
    %v2375 = vmul.f32 %v2374, %v1685
    %v2376 = vadd.f32 %v2372, %v2375
    %s2377 = sld [smem:[#allocation14 + $0x51]]
    %v2378 = vstv %s2377
    %v2379 = vmul.f32 %v2378, %v1685
    %v2380 = vmul.f32 %v2378, %v1686
    %2383 = vrot.lane.b32.xlu0 %v2379, 127
    %v2384 = vpop.permute.xlu0 %2383
    %2385 = vrot.lane.b32.xlu0 %v2380, 127
    %v2386 = vpop.permute.xlu0 %2385
    %v2387 = vsel %vm305, %v2384, %v2386
    %v2389 = vadd.f32 %v2376, %v2387
    %s2390 = sld [smem:[#allocation14 + $0x52]]
    %v2391 = vstv %s2390
    %v2392 = vmul.f32 %v2391, %v1691
    %v2393 = vadd.f32 %v2389, %v2392
    %s2394 = sld [smem:[#allocation14 + $0x53]]
    %v2395 = vstv %s2394
    %v2396 = vmul.f32 %v2395, %v1691
    %v2397 = vmul.f32 %v2395, %v1692
    %2400 = vrot.lane.b32.xlu0 %v2396, 127
    %v2401 = vpop.permute.xlu0 %2400
    %2402 = vrot.lane.b32.xlu0 %v2397, 127
    %v2403 = vpop.permute.xlu0 %2402
    %v2404 = vsel %vm305, %v2401, %v2403
    %v2406 = vadd.f32 %v2393, %v2404
    %s2407 = sld [smem:[#allocation14 + $0x54]]
    %v2408 = vstv %s2407
    %v2409 = vmul.f32 %v2408, %v1661
    %v2410 = vadd.f32 %v2409, 0.0
    %s2411 = sld [smem:[#allocation14 + $0x55]]
    %v2412 = vstv %s2411
    %v2413 = vmul.f32 %v2412, %v1661
    %v2414 = vmul.f32 %v2412, %v1662
    %2417 = vrot.lane.b32.xlu0 %v2413, 127
    %v2418 = vpop.permute.xlu0 %2417
    %2419 = vrot.lane.b32.xlu0 %v2414, 127
    %v2420 = vpop.permute.xlu0 %2419
    %v2421 = vsel %vm305, %v2418, %v2420
    %v2423 = vadd.f32 %v2410, %v2421
    %s2424 = sld [smem:[#allocation14 + $0x56]]
    %v2425 = vstv %s2424
    %v2426 = vmul.f32 %v2425, %v1667
    %v2427 = vadd.f32 %v2423, %v2426
    %s2428 = sld [smem:[#allocation14 + $0x57]]
    %v2429 = vstv %s2428
    %v2430 = vmul.f32 %v2429, %v1667
    %v2431 = vmul.f32 %v2429, %v1668
    %2434 = vrot.lane.b32.xlu0 %v2430, 127
    %v2435 = vpop.permute.xlu0 %2434
    %2436 = vrot.lane.b32.xlu0 %v2431, 127
    %v2437 = vpop.permute.xlu0 %2436
    %v2438 = vsel %vm305, %v2435, %v2437
    %v2440 = vadd.f32 %v2427, %v2438
    %s2441 = sld [smem:[#allocation14 + $0x58]]
    %v2442 = vstv %s2441
    %v2443 = vmul.f32 %v2442, %v1673
    %v2444 = vadd.f32 %v2440, %v2443
    %s2445 = sld [smem:[#allocation14 + $0x59]]
    %v2446 = vstv %s2445
    %v2447 = vmul.f32 %v2446, %v1673
    %v2448 = vmul.f32 %v2446, %v1674
    %2451 = vrot.lane.b32.xlu0 %v2447, 127
    %v2452 = vpop.permute.xlu0 %2451
    %2453 = vrot.lane.b32.xlu0 %v2448, 127
    %v2454 = vpop.permute.xlu0 %2453
    %v2455 = vsel %vm305, %v2452, %v2454
    %v2457 = vadd.f32 %v2444, %v2455
    %s2458 = sld [smem:[#allocation14 + $0x5a]]
    %v2459 = vstv %s2458
    %v2460 = vmul.f32 %v2459, %v1679
    %v2461 = vadd.f32 %v2457, %v2460
    %s2462 = sld [smem:[#allocation14 + $0x5b]]
    %v2463 = vstv %s2462
    %v2464 = vmul.f32 %v2463, %v1679
    %v2465 = vmul.f32 %v2463, %v1680
    %2468 = vrot.lane.b32.xlu0 %v2464, 127
    %v2469 = vpop.permute.xlu0 %2468
    %2470 = vrot.lane.b32.xlu0 %v2465, 127
    %v2471 = vpop.permute.xlu0 %2470
    %v2472 = vsel %vm305, %v2469, %v2471
    %v2474 = vadd.f32 %v2461, %v2472
    %s2475 = sld [smem:[#allocation14 + $0x5c]]
    %v2476 = vstv %s2475
    %v2477 = vmul.f32 %v2476, %v1685
    %v2478 = vadd.f32 %v2474, %v2477
    %s2479 = sld [smem:[#allocation14 + $0x5d]]
    %v2480 = vstv %s2479
    %v2481 = vmul.f32 %v2480, %v1685
    %v2482 = vmul.f32 %v2480, %v1686
    %2485 = vrot.lane.b32.xlu0 %v2481, 127
    %v2486 = vpop.permute.xlu0 %2485
    %2487 = vrot.lane.b32.xlu0 %v2482, 127
    %v2488 = vpop.permute.xlu0 %2487
    %v2489 = vsel %vm305, %v2486, %v2488
    %v2491 = vadd.f32 %v2478, %v2489
    %s2492 = sld [smem:[#allocation14 + $0x5e]]
    %v2493 = vstv %s2492
    %v2494 = vmul.f32 %v2493, %v1691
    %v2495 = vadd.f32 %v2491, %v2494
    %s2496 = sld [smem:[#allocation14 + $0x5f]]
    %v2497 = vstv %s2496
    %v2498 = vmul.f32 %v2497, %v1691
    %v2499 = vmul.f32 %v2497, %v1692
    %2502 = vrot.lane.b32.xlu0 %v2498, 127
    %v2503 = vpop.permute.xlu0 %2502
    %2504 = vrot.lane.b32.xlu0 %v2499, 127
    %v2505 = vpop.permute.xlu0 %2504
    %v2506 = vsel %vm305, %v2503, %v2505
    %v2508 = vadd.f32 %v2495, %v2506
    %v2509 = vsel %vm305, %v1794, 0.0
    %2510 = vadd.xlane.f32.xlu0 %v2509
    %v2511 = vpop.xlane.xlu0 %2510
    %v2512 = vrcp.pop 127.0
    %v2513 = vmul.f32 %v2511, %v2512
    %v2514 = vrot.slane %v2513, 4
    %v2515 = vadd.f32 %v2513, %v2514
    %v2516 = vrot.slane %v2515, 2
    %v2517 = vadd.f32 %v2515, %v2516
    %v2518 = vrot.slane %v2517, 1
    %v2519 = vadd.f32 %v2517, %v2518
    %v2520 = vmul.f32 %v2519, %v912
    %v2521 = vsub.f32 %v1794, %v2520
    %v2522 = vmul.f32 %v2521, %v2521
    %v2523 = vsel %vm305, %v2522, 0.0
    %2524 = vadd.xlane.f32.xlu0 %v2523
    %v2525 = vpop.xlane.xlu0 %2524
    %v2526 = vmul.f32 %v2525, %v2512
    %v2527 = vrot.slane %v2526, 4
    %v2528 = vadd.f32 %v2526, %v2527
    %v2529 = vrot.slane %v2528, 2
    %v2530 = vadd.f32 %v2528, %v2529
    %v2531 = vrot.slane %v2530, 1
    %v2532 = vadd.f32 %v2530, %v2531
    %v2533 = vmul.f32 %v2532, %v912
    %v2534 = vadd.f32 %v2533, 1e-05
    %v2535 = vrsqrt.pop %v2534
    %v2536 = vmul.f32 %v2521, %v2535
    %s2537 = sld [smem:[#allocation16]]
    %v2538 = vstv %s2537
    %v2539 = vmul.f32 %v2536, %v2538
    %s2540 = sld [smem:[#allocation17]]
    %v2541 = vstv %s2540
    %v2542 = vadd.f32 %v2539, %v2541
    %v2543 = vmax.f32 %v2542, 0.0
    %v2544 = vsel %vm305, %v1896, 0.0
    %2545 = vadd.xlane.f32.xlu0 %v2544
    %v2546 = vpop.xlane.xlu0 %2545
    %v2547 = vmul.f32 %v2546, %v2512
    %v2548 = vrot.slane %v2547, 4
    %v2549 = vadd.f32 %v2547, %v2548
    %v2550 = vrot.slane %v2549, 2
    %v2551 = vadd.f32 %v2549, %v2550
    %v2552 = vrot.slane %v2551, 1
    %v2553 = vadd.f32 %v2551, %v2552
    %v2554 = vmul.f32 %v2553, %v912
    %v2555 = vsub.f32 %v1896, %v2554
    %v2556 = vmul.f32 %v2555, %v2555
    %v2557 = vsel %vm305, %v2556, 0.0
    %2558 = vadd.xlane.f32.xlu0 %v2557
    %v2559 = vpop.xlane.xlu0 %2558
    %v2560 = vmul.f32 %v2559, %v2512
    %v2561 = vrot.slane %v2560, 4
    %v2562 = vadd.f32 %v2560, %v2561
    %v2563 = vrot.slane %v2562, 2
    %v2564 = vadd.f32 %v2562, %v2563
    %v2565 = vrot.slane %v2564, 1
    %v2566 = vadd.f32 %v2564, %v2565
    %v2567 = vmul.f32 %v2566, %v912
    %v2568 = vadd.f32 %v2567, 1e-05
    %v2569 = vrsqrt.pop %v2568
    %v2570 = vmul.f32 %v2555, %v2569
    %s2571 = sld [smem:[#allocation16 + $0x1]]
    %v2572 = vstv %s2571
    %v2573 = vmul.f32 %v2570, %v2572
    %s2574 = sld [smem:[#allocation17 + $0x1]]
    %v2575 = vstv %s2574
    %v2576 = vadd.f32 %v2573, %v2575
    %v2577 = vmax.f32 %v2576, 0.0
    %v2578 = vsel %vm305, %v1998, 0.0
    %2579 = vadd.xlane.f32.xlu0 %v2578
    %v2580 = vpop.xlane.xlu0 %2579
    %v2581 = vmul.f32 %v2580, %v2512
    %v2582 = vrot.slane %v2581, 4
    %v2583 = vadd.f32 %v2581, %v2582
    %v2584 = vrot.slane %v2583, 2
    %v2585 = vadd.f32 %v2583, %v2584
    %v2586 = vrot.slane %v2585, 1
    %v2587 = vadd.f32 %v2585, %v2586
    %v2588 = vmul.f32 %v2587, %v912
    %v2589 = vsub.f32 %v1998, %v2588
    %v2590 = vmul.f32 %v2589, %v2589
    %v2591 = vsel %vm305, %v2590, 0.0
    %2592 = vadd.xlane.f32.xlu0 %v2591
    %v2593 = vpop.xlane.xlu0 %2592
    %v2594 = vmul.f32 %v2593, %v2512
    %v2595 = vrot.slane %v2594, 4
    %v2596 = vadd.f32 %v2594, %v2595
    %v2597 = vrot.slane %v2596, 2
    %v2598 = vadd.f32 %v2596, %v2597
    %v2599 = vrot.slane %v2598, 1
    %v2600 = vadd.f32 %v2598, %v2599
    %v2601 = vmul.f32 %v2600, %v912
    %v2602 = vadd.f32 %v2601, 1e-05
    %v2603 = vrsqrt.pop %v2602
    %v2604 = vmul.f32 %v2589, %v2603
    %s2605 = sld [smem:[#allocation16 + $0x2]]
    %v2606 = vstv %s2605
    %v2607 = vmul.f32 %v2604, %v2606
    %s2608 = sld [smem:[#allocation17 + $0x2]]
    %v2609 = vstv %s2608
    %v2610 = vadd.f32 %v2607, %v2609
    %v2611 = vmax.f32 %v2610, 0.0
    %v2612 = vsel %vm305, %v2100, 0.0
    %2613 = vadd.xlane.f32.xlu0 %v2612
    %v2614 = vpop.xlane.xlu0 %2613
    %v2615 = vmul.f32 %v2614, %v2512
    %v2616 = vrot.slane %v2615, 4
    %v2617 = vadd.f32 %v2615, %v2616
    %v2618 = vrot.slane %v2617, 2
    %v2619 = vadd.f32 %v2617, %v2618
    %v2620 = vrot.slane %v2619, 1
    %v2621 = vadd.f32 %v2619, %v2620
    %v2622 = vmul.f32 %v2621, %v912
    %v2623 = vsub.f32 %v2100, %v2622
    %v2624 = vmul.f32 %v2623, %v2623
    %v2625 = vsel %vm305, %v2624, 0.0
    %2626 = vadd.xlane.f32.xlu0 %v2625
    %v2627 = vpop.xlane.xlu0 %2626
    %v2628 = vmul.f32 %v2627, %v2512
    %v2629 = vrot.slane %v2628, 4
    %v2630 = vadd.f32 %v2628, %v2629
    %v2631 = vrot.slane %v2630, 2
    %v2632 = vadd.f32 %v2630, %v2631
    %v2633 = vrot.slane %v2632, 1
    %v2634 = vadd.f32 %v2632, %v2633
    %v2635 = vmul.f32 %v2634, %v912
    %v2636 = vadd.f32 %v2635, 1e-05
    %v2637 = vrsqrt.pop %v2636
    %v2638 = vmul.f32 %v2623, %v2637
    %s2639 = sld [smem:[#allocation16 + $0x3]]
    %v2640 = vstv %s2639
    %v2641 = vmul.f32 %v2638, %v2640
    %s2642 = sld [smem:[#allocation17 + $0x3]]
    %v2643 = vstv %s2642
    %v2644 = vadd.f32 %v2641, %v2643
    %v2645 = vmax.f32 %v2644, 0.0
    %v2646 = vsel %vm305, %v2202, 0.0
    %2647 = vadd.xlane.f32.xlu0 %v2646
    %v2648 = vpop.xlane.xlu0 %2647
    %v2649 = vmul.f32 %v2648, %v2512
    %v2650 = vrot.slane %v2649, 4
    %v2651 = vadd.f32 %v2649, %v2650
    %v2652 = vrot.slane %v2651, 2
    %v2653 = vadd.f32 %v2651, %v2652
    %v2654 = vrot.slane %v2653, 1
    %v2655 = vadd.f32 %v2653, %v2654
    %v2656 = vmul.f32 %v2655, %v912
    %v2657 = vsub.f32 %v2202, %v2656
    %v2658 = vmul.f32 %v2657, %v2657
    %v2659 = vsel %vm305, %v2658, 0.0
    %2660 = vadd.xlane.f32.xlu0 %v2659
    %v2661 = vpop.xlane.xlu0 %2660
    %v2662 = vmul.f32 %v2661, %v2512
    %v2663 = vrot.slane %v2662, 4
    %v2664 = vadd.f32 %v2662, %v2663
    %v2665 = vrot.slane %v2664, 2
    %v2666 = vadd.f32 %v2664, %v2665
    %v2667 = vrot.slane %v2666, 1
    %v2668 = vadd.f32 %v2666, %v2667
    %v2669 = vmul.f32 %v2668, %v912
    %v2670 = vadd.f32 %v2669, 1e-05
    %v2671 = vrsqrt.pop %v2670
    %v2672 = vmul.f32 %v2657, %v2671
    %s2673 = sld [smem:[#allocation16 + $0x4]]
    %v2674 = vstv %s2673
    %v2675 = vmul.f32 %v2672, %v2674
    %s2676 = sld [smem:[#allocation17 + $0x4]]
    %v2677 = vstv %s2676
    %v2678 = vadd.f32 %v2675, %v2677
    %v2679 = vmax.f32 %v2678, 0.0
    %v2680 = vsel %vm305, %v2304, 0.0
    %2681 = vadd.xlane.f32.xlu0 %v2680
    %v2682 = vpop.xlane.xlu0 %2681
    %v2683 = vmul.f32 %v2682, %v2512
    %v2684 = vrot.slane %v2683, 4
    %v2685 = vadd.f32 %v2683, %v2684
    %v2686 = vrot.slane %v2685, 2
    %v2687 = vadd.f32 %v2685, %v2686
    %v2688 = vrot.slane %v2687, 1
    %v2689 = vadd.f32 %v2687, %v2688
    %v2690 = vmul.f32 %v2689, %v912
    %v2691 = vsub.f32 %v2304, %v2690
    %v2692 = vmul.f32 %v2691, %v2691
    %v2693 = vsel %vm305, %v2692, 0.0
    %2694 = vadd.xlane.f32.xlu0 %v2693
    %v2695 = vpop.xlane.xlu0 %2694
    %v2696 = vmul.f32 %v2695, %v2512
    %v2697 = vrot.slane %v2696, 4
    %v2698 = vadd.f32 %v2696, %v2697
    %v2699 = vrot.slane %v2698, 2
    %v2700 = vadd.f32 %v2698, %v2699
    %v2701 = vrot.slane %v2700, 1
    %v2702 = vadd.f32 %v2700, %v2701
    %v2703 = vmul.f32 %v2702, %v912
    %v2704 = vadd.f32 %v2703, 1e-05
    %v2705 = vrsqrt.pop %v2704
    %v2706 = vmul.f32 %v2691, %v2705
    %s2707 = sld [smem:[#allocation16 + $0x5]]
    %v2708 = vstv %s2707
    %v2709 = vmul.f32 %v2706, %v2708
    %s2710 = sld [smem:[#allocation17 + $0x5]]
    %v2711 = vstv %s2710
    %v2712 = vadd.f32 %v2709, %v2711
    %v2713 = vmax.f32 %v2712, 0.0
    %v2714 = vsel %vm305, %v2406, 0.0
    %2715 = vadd.xlane.f32.xlu0 %v2714
    %v2716 = vpop.xlane.xlu0 %2715
    %v2717 = vmul.f32 %v2716, %v2512
    %v2718 = vrot.slane %v2717, 4
    %v2719 = vadd.f32 %v2717, %v2718
    %v2720 = vrot.slane %v2719, 2
    %v2721 = vadd.f32 %v2719, %v2720
    %v2722 = vrot.slane %v2721, 1
    %v2723 = vadd.f32 %v2721, %v2722
    %v2724 = vmul.f32 %v2723, %v912
    %v2725 = vsub.f32 %v2406, %v2724
    %v2726 = vmul.f32 %v2725, %v2725
    %v2727 = vsel %vm305, %v2726, 0.0
    %2728 = vadd.xlane.f32.xlu0 %v2727
    %v2729 = vpop.xlane.xlu0 %2728
    %v2730 = vmul.f32 %v2729, %v2512
    %v2731 = vrot.slane %v2730, 4
    %v2732 = vadd.f32 %v2730, %v2731
    %v2733 = vrot.slane %v2732, 2
    %v2734 = vadd.f32 %v2732, %v2733
    %v2735 = vrot.slane %v2734, 1
    %v2736 = vadd.f32 %v2734, %v2735
    %v2737 = vmul.f32 %v2736, %v912
    %v2738 = vadd.f32 %v2737, 1e-05
    %v2739 = vrsqrt.pop %v2738
    %v2740 = vmul.f32 %v2725, %v2739
    %s2741 = sld [smem:[#allocation16 + $0x6]]
    %v2742 = vstv %s2741
    %v2743 = vmul.f32 %v2740, %v2742
    %s2744 = sld [smem:[#allocation17 + $0x6]]
    %v2745 = vstv %s2744
    %v2746 = vadd.f32 %v2743, %v2745
    %v2747 = vmax.f32 %v2746, 0.0
    %v2748 = vsel %vm305, %v2508, 0.0
    %2749 = vadd.xlane.f32.xlu0 %v2748
    %v2750 = vpop.xlane.xlu0 %2749
    %v2751 = vmul.f32 %v2750, %v2512
    %v2752 = vrot.slane %v2751, 4
    %v2753 = vadd.f32 %v2751, %v2752
    %v2754 = vrot.slane %v2753, 2
    %v2755 = vadd.f32 %v2753, %v2754
    %v2756 = vrot.slane %v2755, 1
    %v2757 = vadd.f32 %v2755, %v2756
    %v2758 = vmul.f32 %v2757, %v912
    %v2759 = vsub.f32 %v2508, %v2758
    %v2760 = vmul.f32 %v2759, %v2759
    %v2761 = vsel %vm305, %v2760, 0.0
    %2762 = vadd.xlane.f32.xlu0 %v2761
    %v2763 = vpop.xlane.xlu0 %2762
    %v2764 = vmul.f32 %v2763, %v2512
    %v2765 = vrot.slane %v2764, 4
    %v2766 = vadd.f32 %v2764, %v2765
    %v2767 = vrot.slane %v2766, 2
    %v2768 = vadd.f32 %v2766, %v2767
    %v2769 = vrot.slane %v2768, 1
    %v2770 = vadd.f32 %v2768, %v2769
    %v2771 = vmul.f32 %v2770, %v912
    %v2772 = vadd.f32 %v2771, 1e-05
    %v2773 = vrsqrt.pop %v2772
    %v2774 = vmul.f32 %v2759, %v2773
    %s2775 = sld [smem:[#allocation16 + $0x7]]
    %v2776 = vstv %s2775
    %v2777 = vmul.f32 %v2774, %v2776
    %s2778 = sld [smem:[#allocation17 + $0x7]]
    %v2779 = vstv %s2778
    %v2780 = vadd.f32 %v2777, %v2779
    %v2781 = vmax.f32 %v2780, 0.0
    %2783 = vrot.lane.b32.xlu0 %v2543, 2
    %v2784 = vpop.permute.xlu0 %2783
    %vm2786 = vcmask 15360
    %v2787 = vsel %vm2786, 0.0, %v2784
    %v2788 = vsel %vm1036, %v2784, 0.0
    %2790 = vrot.lane.b32.xlu0 %v2577, 2
    %v2791 = vpop.permute.xlu0 %2790
    %v2793 = vsel %vm2786, 0.0, %v2791
    %v2794 = vsel %vm1036, %v2791, 0.0
    %2796 = vrot.lane.b32.xlu0 %v2611, 2
    %v2797 = vpop.permute.xlu0 %2796
    %v2799 = vsel %vm2786, 0.0, %v2797
    %v2800 = vsel %vm1036, %v2797, 0.0
    %2802 = vrot.lane.b32.xlu0 %v2645, 2
    %v2803 = vpop.permute.xlu0 %2802
    %v2805 = vsel %vm2786, 0.0, %v2803
    %v2806 = vsel %vm1036, %v2803, 0.0
    %2808 = vrot.lane.b32.xlu0 %v2679, 2
    %v2809 = vpop.permute.xlu0 %2808
    %v2811 = vsel %vm2786, 0.0, %v2809
    %v2812 = vsel %vm1036, %v2809, 0.0
    %2814 = vrot.lane.b32.xlu0 %v2713, 2
    %v2815 = vpop.permute.xlu0 %2814
    %v2817 = vsel %vm2786, 0.0, %v2815
    %v2818 = vsel %vm1036, %v2815, 0.0
    %2820 = vrot.lane.b32.xlu0 %v2747, 2
    %v2821 = vpop.permute.xlu0 %2820
    %v2823 = vsel %vm2786, 0.0, %v2821
    %v2824 = vsel %vm1036, %v2821, 0.0
    %2826 = vrot.lane.b32.xlu0 %v2781, 2
    %v2827 = vpop.permute.xlu0 %2826
    %v2829 = vsel %vm2786, 0.0, %v2827
    %v2830 = vsel %vm1036, %v2827, 0.0
    %s2831 = sld [smem:[#allocation19]]
    %v2832 = vstv %s2831
    %v2833 = vmul.f32 %v2832, %v2787
    %v2834 = vadd.f32 %v2833, 0.0
    %s2835 = sld [smem:[#allocation19 + $0x1]]
    %v2836 = vstv %s2835
    %v2837 = vmul.f32 %v2836, %v2787
    %v2838 = vmul.f32 %v2836, %v2788
    %2841 = vrot.lane.b32.xlu0 %v2837, 127
    %v2842 = vpop.permute.xlu0 %2841
    %2843 = vrot.lane.b32.xlu0 %v2838, 127
    %v2844 = vpop.permute.xlu0 %2843
    %v2845 = vsel %vm305, %v2842, %v2844
    %v2847 = vadd.f32 %v2834, %v2845
    %s2848 = sld [smem:[#allocation19 + $0x2]]
    %v2849 = vstv %s2848
    %v2850 = vmul.f32 %v2849, %v2787
    %v2851 = vmul.f32 %v2849, %v2788
    %2854 = vrot.lane.b32.xlu0 %v2850, 126
    %v2855 = vpop.permute.xlu0 %2854
    %2856 = vrot.lane.b32.xlu0 %v2851, 126
    %v2857 = vpop.permute.xlu0 %2856
    %v2858 = vsel %vm319, %v2855, %v2857
    %v2860 = vadd.f32 %v2847, %v2858
    %s2861 = sld [smem:[#allocation19 + $0x3]]
    %v2862 = vstv %s2861
    %v2863 = vmul.f32 %v2862, %v2793
    %v2864 = vadd.f32 %v2860, %v2863
    %s2865 = sld [smem:[#allocation19 + $0x4]]
    %v2866 = vstv %s2865
    %v2867 = vmul.f32 %v2866, %v2793
    %v2868 = vmul.f32 %v2866, %v2794
    %2871 = vrot.lane.b32.xlu0 %v2867, 127
    %v2872 = vpop.permute.xlu0 %2871
    %2873 = vrot.lane.b32.xlu0 %v2868, 127
    %v2874 = vpop.permute.xlu0 %2873
    %v2875 = vsel %vm305, %v2872, %v2874
    %v2877 = vadd.f32 %v2864, %v2875
    %s2878 = sld [smem:[#allocation19 + $0x5]]
    %v2879 = vstv %s2878
    %v2880 = vmul.f32 %v2879, %v2793
    %v2881 = vmul.f32 %v2879, %v2794
    %2884 = vrot.lane.b32.xlu0 %v2880, 126
    %v2885 = vpop.permute.xlu0 %2884
    %2886 = vrot.lane.b32.xlu0 %v2881, 126
    %v2887 = vpop.permute.xlu0 %2886
    %v2888 = vsel %vm319, %v2885, %v2887
    %v2890 = vadd.f32 %v2877, %v2888
    %s2891 = sld [smem:[#allocation19 + $0x6]]
    %v2892 = vstv %s2891
    %v2893 = vmul.f32 %v2892, %v2799
    %v2894 = vadd.f32 %v2890, %v2893
    %s2895 = sld [smem:[#allocation19 + $0x7]]
    %v2896 = vstv %s2895
    %v2897 = vmul.f32 %v2896, %v2799
    %v2898 = vmul.f32 %v2896, %v2800
    %2901 = vrot.lane.b32.xlu0 %v2897, 127
    %v2902 = vpop.permute.xlu0 %2901
    %2903 = vrot.lane.b32.xlu0 %v2898, 127
    %v2904 = vpop.permute.xlu0 %2903
    %v2905 = vsel %vm305, %v2902, %v2904
    %v2907 = vadd.f32 %v2894, %v2905
    %s2908 = sld [smem:[#allocation19 + $0x8]]
    %v2909 = vstv %s2908
    %v2910 = vmul.f32 %v2909, %v2799
    %v2911 = vmul.f32 %v2909, %v2800
    %2914 = vrot.lane.b32.xlu0 %v2910, 126
    %v2915 = vpop.permute.xlu0 %2914
    %2916 = vrot.lane.b32.xlu0 %v2911, 126
    %v2917 = vpop.permute.xlu0 %2916
    %v2918 = vsel %vm319, %v2915, %v2917
    %v2920 = vadd.f32 %v2907, %v2918
    %s2921 = sld [smem:[#allocation19 + $0x9]]
    %v2922 = vstv %s2921
    %v2923 = vmul.f32 %v2922, %v2805
    %v2924 = vadd.f32 %v2920, %v2923
    %s2925 = sld [smem:[#allocation19 + $0xa]]
    %v2926 = vstv %s2925
    %v2927 = vmul.f32 %v2926, %v2805
    %v2928 = vmul.f32 %v2926, %v2806
    %2931 = vrot.lane.b32.xlu0 %v2927, 127
    %v2932 = vpop.permute.xlu0 %2931
    %2933 = vrot.lane.b32.xlu0 %v2928, 127
    %v2934 = vpop.permute.xlu0 %2933
    %v2935 = vsel %vm305, %v2932, %v2934
    %v2937 = vadd.f32 %v2924, %v2935
    %s2938 = sld [smem:[#allocation19 + $0xb]]
    %v2939 = vstv %s2938
    %v2940 = vmul.f32 %v2939, %v2805
    %v2941 = vmul.f32 %v2939, %v2806
    %2944 = vrot.lane.b32.xlu0 %v2940, 126
    %v2945 = vpop.permute.xlu0 %2944
    %2946 = vrot.lane.b32.xlu0 %v2941, 126
    %v2947 = vpop.permute.xlu0 %2946
    %v2948 = vsel %vm319, %v2945, %v2947
    %v2950 = vadd.f32 %v2937, %v2948
    %s2951 = sld [smem:[#allocation19 + $0xc]]
    %v2952 = vstv %s2951
    %v2953 = vmul.f32 %v2952, %v2811
    %v2954 = vadd.f32 %v2950, %v2953
    %s2955 = sld [smem:[#allocation19 + $0xd]]
    %v2956 = vstv %s2955
    %v2957 = vmul.f32 %v2956, %v2811
    %v2958 = vmul.f32 %v2956, %v2812
    %2961 = vrot.lane.b32.xlu0 %v2957, 127
    %v2962 = vpop.permute.xlu0 %2961
    %2963 = vrot.lane.b32.xlu0 %v2958, 127
    %v2964 = vpop.permute.xlu0 %2963
    %v2965 = vsel %vm305, %v2962, %v2964
    %v2967 = vadd.f32 %v2954, %v2965
    %s2968 = sld [smem:[#allocation19 + $0xe]]
    %v2969 = vstv %s2968
    %v2970 = vmul.f32 %v2969, %v2811
    %v2971 = vmul.f32 %v2969, %v2812
    %2974 = vrot.lane.b32.xlu0 %v2970, 126
    %v2975 = vpop.permute.xlu0 %2974
    %2976 = vrot.lane.b32.xlu0 %v2971, 126
    %v2977 = vpop.permute.xlu0 %2976
    %v2978 = vsel %vm319, %v2975, %v2977
    %v2980 = vadd.f32 %v2967, %v2978
    %s2981 = sld [smem:[#allocation19 + $0xf]]
    %v2982 = vstv %s2981
    %v2983 = vmul.f32 %v2982, %v2817
    %v2984 = vadd.f32 %v2980, %v2983
    %s2985 = sld [smem:[#allocation19 + $0x10]]
    %v2986 = vstv %s2985
    %v2987 = vmul.f32 %v2986, %v2817
    %v2988 = vmul.f32 %v2986, %v2818
    %2991 = vrot.lane.b32.xlu0 %v2987, 127
    %v2992 = vpop.permute.xlu0 %2991
    %2993 = vrot.lane.b32.xlu0 %v2988, 127
    %v2994 = vpop.permute.xlu0 %2993
    %v2995 = vsel %vm305, %v2992, %v2994
    %v2997 = vadd.f32 %v2984, %v2995
    %s2998 = sld [smem:[#allocation19 + $0x11]]
    %v2999 = vstv %s2998
    %v3000 = vmul.f32 %v2999, %v2817
    %v3001 = vmul.f32 %v2999, %v2818
    %3004 = vrot.lane.b32.xlu0 %v3000, 126
    %v3005 = vpop.permute.xlu0 %3004
    %3006 = vrot.lane.b32.xlu0 %v3001, 126
    %v3007 = vpop.permute.xlu0 %3006
    %v3008 = vsel %vm319, %v3005, %v3007
    %v3010 = vadd.f32 %v2997, %v3008
    %s3011 = sld [smem:[#allocation19 + $0x12]]
    %v3012 = vstv %s3011
    %v3013 = vmul.f32 %v3012, %v2823
    %v3014 = vadd.f32 %v3010, %v3013
    %s3015 = sld [smem:[#allocation19 + $0x13]]
    %v3016 = vstv %s3015
    %v3017 = vmul.f32 %v3016, %v2823
    %v3018 = vmul.f32 %v3016, %v2824
    %3021 = vrot.lane.b32.xlu0 %v3017, 127
    %v3022 = vpop.permute.xlu0 %3021
    %3023 = vrot.lane.b32.xlu0 %v3018, 127
    %v3024 = vpop.permute.xlu0 %3023
    %v3025 = vsel %vm305, %v3022, %v3024
    %v3027 = vadd.f32 %v3014, %v3025
    %s3028 = sld [smem:[#allocation19 + $0x14]]
    %v3029 = vstv %s3028
    %v3030 = vmul.f32 %v3029, %v2823
    %v3031 = vmul.f32 %v3029, %v2824
    %3034 = vrot.lane.b32.xlu0 %v3030, 126
    %v3035 = vpop.permute.xlu0 %3034
    %3036 = vrot.lane.b32.xlu0 %v3031, 126
    %v3037 = vpop.permute.xlu0 %3036
    %v3038 = vsel %vm319, %v3035, %v3037
    %v3040 = vadd.f32 %v3027, %v3038
    %s3041 = sld [smem:[#allocation19 + $0x15]]
    %v3042 = vstv %s3041
    %v3043 = vmul.f32 %v3042, %v2829
    %v3044 = vadd.f32 %v3040, %v3043
    %s3045 = sld [smem:[#allocation19 + $0x16]]
    %v3046 = vstv %s3045
    %v3047 = vmul.f32 %v3046, %v2829
    %v3048 = vmul.f32 %v3046, %v2830
    %3051 = vrot.lane.b32.xlu0 %v3047, 127
    %v3052 = vpop.permute.xlu0 %3051
    %3053 = vrot.lane.b32.xlu0 %v3048, 127
    %v3054 = vpop.permute.xlu0 %3053
    %v3055 = vsel %vm305, %v3052, %v3054
    %v3057 = vadd.f32 %v3044, %v3055
    %s3058 = sld [smem:[#allocation19 + $0x17]]
    %v3059 = vstv %s3058
    %v3060 = vmul.f32 %v3059, %v2829
    %v3061 = vmul.f32 %v3059, %v2830
    %3064 = vrot.lane.b32.xlu0 %v3060, 126
    %v3065 = vpop.permute.xlu0 %3064
    %3066 = vrot.lane.b32.xlu0 %v3061, 126
    %v3067 = vpop.permute.xlu0 %3066
    %v3068 = vsel %vm319, %v3065, %v3067
    %v3070 = vadd.f32 %v3057, %v3068
    %s3071 = sld [smem:[#allocation19 + $0x18]]
    %v3072 = vstv %s3071
    %v3073 = vmul.f32 %v3072, %v2787
    %v3074 = vadd.f32 %v3073, 0.0
    %s3075 = sld [smem:[#allocation19 + $0x19]]
    %v3076 = vstv %s3075
    %v3077 = vmul.f32 %v3076, %v2787
    %v3078 = vmul.f32 %v3076, %v2788
    %3081 = vrot.lane.b32.xlu0 %v3077, 127
    %v3082 = vpop.permute.xlu0 %3081
    %3083 = vrot.lane.b32.xlu0 %v3078, 127
    %v3084 = vpop.permute.xlu0 %3083
    %v3085 = vsel %vm305, %v3082, %v3084
    %v3087 = vadd.f32 %v3074, %v3085
    %s3088 = sld [smem:[#allocation19 + $0x1a]]
    %v3089 = vstv %s3088
    %v3090 = vmul.f32 %v3089, %v2787
    %v3091 = vmul.f32 %v3089, %v2788
    %3094 = vrot.lane.b32.xlu0 %v3090, 126
    %v3095 = vpop.permute.xlu0 %3094
    %3096 = vrot.lane.b32.xlu0 %v3091, 126
    %v3097 = vpop.permute.xlu0 %3096
    %v3098 = vsel %vm319, %v3095, %v3097
    %v3100 = vadd.f32 %v3087, %v3098
    %s3101 = sld [smem:[#allocation19 + $0x1b]]
    %v3102 = vstv %s3101
    %v3103 = vmul.f32 %v3102, %v2793
    %v3104 = vadd.f32 %v3100, %v3103
    %s3105 = sld [smem:[#allocation19 + $0x1c]]
    %v3106 = vstv %s3105
    %v3107 = vmul.f32 %v3106, %v2793
    %v3108 = vmul.f32 %v3106, %v2794
    %3111 = vrot.lane.b32.xlu0 %v3107, 127
    %v3112 = vpop.permute.xlu0 %3111
    %3113 = vrot.lane.b32.xlu0 %v3108, 127
    %v3114 = vpop.permute.xlu0 %3113
    %v3115 = vsel %vm305, %v3112, %v3114
    %v3117 = vadd.f32 %v3104, %v3115
    %s3118 = sld [smem:[#allocation19 + $0x1d]]
    %v3119 = vstv %s3118
    %v3120 = vmul.f32 %v3119, %v2793
    %v3121 = vmul.f32 %v3119, %v2794
    %3124 = vrot.lane.b32.xlu0 %v3120, 126
    %v3125 = vpop.permute.xlu0 %3124
    %3126 = vrot.lane.b32.xlu0 %v3121, 126
    %v3127 = vpop.permute.xlu0 %3126
    %v3128 = vsel %vm319, %v3125, %v3127
    %v3130 = vadd.f32 %v3117, %v3128
    %s3131 = sld [smem:[#allocation19 + $0x1e]]
    %v3132 = vstv %s3131
    %v3133 = vmul.f32 %v3132, %v2799
    %v3134 = vadd.f32 %v3130, %v3133
    %s3135 = sld [smem:[#allocation19 + $0x1f]]
    %v3136 = vstv %s3135
    %v3137 = vmul.f32 %v3136, %v2799
    %v3138 = vmul.f32 %v3136, %v2800
    %3141 = vrot.lane.b32.xlu0 %v3137, 127
    %v3142 = vpop.permute.xlu0 %3141
    %3143 = vrot.lane.b32.xlu0 %v3138, 127
    %v3144 = vpop.permute.xlu0 %3143
    %v3145 = vsel %vm305, %v3142, %v3144
    %v3147 = vadd.f32 %v3134, %v3145
    %s3148 = sld [smem:[#allocation19 + $0x20]]
    %v3149 = vstv %s3148
    %v3150 = vmul.f32 %v3149, %v2799
    %v3151 = vmul.f32 %v3149, %v2800
    %3154 = vrot.lane.b32.xlu0 %v3150, 126
    %v3155 = vpop.permute.xlu0 %3154
    %3156 = vrot.lane.b32.xlu0 %v3151, 126
    %v3157 = vpop.permute.xlu0 %3156
    %v3158 = vsel %vm319, %v3155, %v3157
    %v3160 = vadd.f32 %v3147, %v3158
    %s3161 = sld [smem:[#allocation19 + $0x21]]
    %v3162 = vstv %s3161
    %v3163 = vmul.f32 %v3162, %v2805
    %v3164 = vadd.f32 %v3160, %v3163
    %s3165 = sld [smem:[#allocation19 + $0x22]]
    %v3166 = vstv %s3165
    %v3167 = vmul.f32 %v3166, %v2805
    %v3168 = vmul.f32 %v3166, %v2806
    %3171 = vrot.lane.b32.xlu0 %v3167, 127
    %v3172 = vpop.permute.xlu0 %3171
    %3173 = vrot.lane.b32.xlu0 %v3168, 127
    %v3174 = vpop.permute.xlu0 %3173
    %v3175 = vsel %vm305, %v3172, %v3174
    %v3177 = vadd.f32 %v3164, %v3175
    %s3178 = sld [smem:[#allocation19 + $0x23]]
    %v3179 = vstv %s3178
    %v3180 = vmul.f32 %v3179, %v2805
    %v3181 = vmul.f32 %v3179, %v2806
    %3184 = vrot.lane.b32.xlu0 %v3180, 126
    %v3185 = vpop.permute.xlu0 %3184
    %3186 = vrot.lane.b32.xlu0 %v3181, 126
    %v3187 = vpop.permute.xlu0 %3186
    %v3188 = vsel %vm319, %v3185, %v3187
    %v3190 = vadd.f32 %v3177, %v3188
    %s3191 = sld [smem:[#allocation19 + $0x24]]
    %v3192 = vstv %s3191
    %v3193 = vmul.f32 %v3192, %v2811
    %v3194 = vadd.f32 %v3190, %v3193
    %s3195 = sld [smem:[#allocation19 + $0x25]]
    %v3196 = vstv %s3195
    %v3197 = vmul.f32 %v3196, %v2811
    %v3198 = vmul.f32 %v3196, %v2812
    %3201 = vrot.lane.b32.xlu0 %v3197, 127
    %v3202 = vpop.permute.xlu0 %3201
    %3203 = vrot.lane.b32.xlu0 %v3198, 127
    %v3204 = vpop.permute.xlu0 %3203
    %v3205 = vsel %vm305, %v3202, %v3204
    %v3207 = vadd.f32 %v3194, %v3205
    %s3208 = sld [smem:[#allocation19 + $0x26]]
    %v3209 = vstv %s3208
    %v3210 = vmul.f32 %v3209, %v2811
    %v3211 = vmul.f32 %v3209, %v2812
    %3214 = vrot.lane.b32.xlu0 %v3210, 126
    %v3215 = vpop.permute.xlu0 %3214
    %3216 = vrot.lane.b32.xlu0 %v3211, 126
    %v3217 = vpop.permute.xlu0 %3216
    %v3218 = vsel %vm319, %v3215, %v3217
    %v3220 = vadd.f32 %v3207, %v3218
    %s3221 = sld [smem:[#allocation19 + $0x27]]
    %v3222 = vstv %s3221
    %v3223 = vmul.f32 %v3222, %v2817
    %v3224 = vadd.f32 %v3220, %v3223
    %s3225 = sld [smem:[#allocation19 + $0x28]]
    %v3226 = vstv %s3225
    %v3227 = vmul.f32 %v3226, %v2817
    %v3228 = vmul.f32 %v3226, %v2818
    %3231 = vrot.lane.b32.xlu0 %v3227, 127
    %v3232 = vpop.permute.xlu0 %3231
    %3233 = vrot.lane.b32.xlu0 %v3228, 127
    %v3234 = vpop.permute.xlu0 %3233
    %v3235 = vsel %vm305, %v3232, %v3234
    %v3237 = vadd.f32 %v3224, %v3235
    %s3238 = sld [smem:[#allocation19 + $0x29]]
    %v3239 = vstv %s3238
    %v3240 = vmul.f32 %v3239, %v2817
    %v3241 = vmul.f32 %v3239, %v2818
    %3244 = vrot.lane.b32.xlu0 %v3240, 126
    %v3245 = vpop.permute.xlu0 %3244
    %3246 = vrot.lane.b32.xlu0 %v3241, 126
    %v3247 = vpop.permute.xlu0 %3246
    %v3248 = vsel %vm319, %v3245, %v3247
    %v3250 = vadd.f32 %v3237, %v3248
    %s3251 = sld [smem:[#allocation19 + $0x2a]]
    %v3252 = vstv %s3251
    %v3253 = vmul.f32 %v3252, %v2823
    %v3254 = vadd.f32 %v3250, %v3253
    %s3255 = sld [smem:[#allocation19 + $0x2b]]
    %v3256 = vstv %s3255
    %v3257 = vmul.f32 %v3256, %v2823
    %v3258 = vmul.f32 %v3256, %v2824
    %3261 = vrot.lane.b32.xlu0 %v3257, 127
    %v3262 = vpop.permute.xlu0 %3261
    %3263 = vrot.lane.b32.xlu0 %v3258, 127
    %v3264 = vpop.permute.xlu0 %3263
    %v3265 = vsel %vm305, %v3262, %v3264
    %v3267 = vadd.f32 %v3254, %v3265
    %s3268 = sld [smem:[#allocation19 + $0x2c]]
    %v3269 = vstv %s3268
    %v3270 = vmul.f32 %v3269, %v2823
    %v3271 = vmul.f32 %v3269, %v2824
    %3274 = vrot.lane.b32.xlu0 %v3270, 126
    %v3275 = vpop.permute.xlu0 %3274
    %3276 = vrot.lane.b32.xlu0 %v3271, 126
    %v3277 = vpop.permute.xlu0 %3276
    %v3278 = vsel %vm319, %v3275, %v3277
    %v3280 = vadd.f32 %v3267, %v3278
    %s3281 = sld [smem:[#allocation19 + $0x2d]]
    %v3282 = vstv %s3281
    %v3283 = vmul.f32 %v3282, %v2829
    %v3284 = vadd.f32 %v3280, %v3283
    %s3285 = sld [smem:[#allocation19 + $0x2e]]
    %v3286 = vstv %s3285
    %v3287 = vmul.f32 %v3286, %v2829
    %v3288 = vmul.f32 %v3286, %v2830
    %3291 = vrot.lane.b32.xlu0 %v3287, 127
    %v3292 = vpop.permute.xlu0 %3291
    %3293 = vrot.lane.b32.xlu0 %v3288, 127
    %v3294 = vpop.permute.xlu0 %3293
    %v3295 = vsel %vm305, %v3292, %v3294
    %v3297 = vadd.f32 %v3284, %v3295
    %s3298 = sld [smem:[#allocation19 + $0x2f]]
    %v3299 = vstv %s3298
    %v3300 = vmul.f32 %v3299, %v2829
    %v3301 = vmul.f32 %v3299, %v2830
    %3304 = vrot.lane.b32.xlu0 %v3300, 126
    %v3305 = vpop.permute.xlu0 %3304
    %3306 = vrot.lane.b32.xlu0 %v3301, 126
    %v3307 = vpop.permute.xlu0 %3306
    %v3308 = vsel %vm319, %v3305, %v3307
    %v3310 = vadd.f32 %v3297, %v3308
    %s3311 = sld [smem:[#allocation19 + $0x30]]
    %v3312 = vstv %s3311
    %v3313 = vmul.f32 %v3312, %v2787
    %v3314 = vadd.f32 %v3313, 0.0
    %s3315 = sld [smem:[#allocation19 + $0x31]]
    %v3316 = vstv %s3315
    %v3317 = vmul.f32 %v3316, %v2787
    %v3318 = vmul.f32 %v3316, %v2788
    %3321 = vrot.lane.b32.xlu0 %v3317, 127
    %v3322 = vpop.permute.xlu0 %3321
    %3323 = vrot.lane.b32.xlu0 %v3318, 127
    %v3324 = vpop.permute.xlu0 %3323
    %v3325 = vsel %vm305, %v3322, %v3324
    %v3327 = vadd.f32 %v3314, %v3325
    %s3328 = sld [smem:[#allocation19 + $0x32]]
    %v3329 = vstv %s3328
    %v3330 = vmul.f32 %v3329, %v2787
    %v3331 = vmul.f32 %v3329, %v2788
    %3334 = vrot.lane.b32.xlu0 %v3330, 126
    %v3335 = vpop.permute.xlu0 %3334
    %3336 = vrot.lane.b32.xlu0 %v3331, 126
    %v3337 = vpop.permute.xlu0 %3336
    %v3338 = vsel %vm319, %v3335, %v3337
    %v3340 = vadd.f32 %v3327, %v3338
    %s3341 = sld [smem:[#allocation19 + $0x33]]
    %v3342 = vstv %s3341
    %v3343 = vmul.f32 %v3342, %v2793
    %v3344 = vadd.f32 %v3340, %v3343
    %s3345 = sld [smem:[#allocation19 + $0x34]]
    %v3346 = vstv %s3345
    %v3347 = vmul.f32 %v3346, %v2793
    %v3348 = vmul.f32 %v3346, %v2794
    %3351 = vrot.lane.b32.xlu0 %v3347, 127
    %v3352 = vpop.permute.xlu0 %3351
    %3353 = vrot.lane.b32.xlu0 %v3348, 127
    %v3354 = vpop.permute.xlu0 %3353
    %v3355 = vsel %vm305, %v3352, %v3354
    %v3357 = vadd.f32 %v3344, %v3355
    %s3358 = sld [smem:[#allocation19 + $0x35]]
    %v3359 = vstv %s3358
    %v3360 = vmul.f32 %v3359, %v2793
    %v3361 = vmul.f32 %v3359, %v2794
    %3364 = vrot.lane.b32.xlu0 %v3360, 126
    %v3365 = vpop.permute.xlu0 %3364
    %3366 = vrot.lane.b32.xlu0 %v3361, 126
    %v3367 = vpop.permute.xlu0 %3366
    %v3368 = vsel %vm319, %v3365, %v3367
    %v3370 = vadd.f32 %v3357, %v3368
    %s3371 = sld [smem:[#allocation19 + $0x36]]
    %v3372 = vstv %s3371
    %v3373 = vmul.f32 %v3372, %v2799
    %v3374 = vadd.f32 %v3370, %v3373
    %s3375 = sld [smem:[#allocation19 + $0x37]]
    %v3376 = vstv %s3375
    %v3377 = vmul.f32 %v3376, %v2799
    %v3378 = vmul.f32 %v3376, %v2800
    %3381 = vrot.lane.b32.xlu0 %v3377, 127
    %v3382 = vpop.permute.xlu0 %3381
    %3383 = vrot.lane.b32.xlu0 %v3378, 127
    %v3384 = vpop.permute.xlu0 %3383
    %v3385 = vsel %vm305, %v3382, %v3384
    %v3387 = vadd.f32 %v3374, %v3385
    %s3388 = sld [smem:[#allocation19 + $0x38]]
    %v3389 = vstv %s3388
    %v3390 = vmul.f32 %v3389, %v2799
    %v3391 = vmul.f32 %v3389, %v2800
    %3394 = vrot.lane.b32.xlu0 %v3390, 126
    %v3395 = vpop.permute.xlu0 %3394
    %3396 = vrot.lane.b32.xlu0 %v3391, 126
    %v3397 = vpop.permute.xlu0 %3396
    %v3398 = vsel %vm319, %v3395, %v3397
    %v3400 = vadd.f32 %v3387, %v3398
    %s3401 = sld [smem:[#allocation19 + $0x39]]
    %v3402 = vstv %s3401
    %v3403 = vmul.f32 %v3402, %v2805
    %v3404 = vadd.f32 %v3400, %v3403
    %s3405 = sld [smem:[#allocation19 + $0x3a]]
    %v3406 = vstv %s3405
    %v3407 = vmul.f32 %v3406, %v2805
    %v3408 = vmul.f32 %v3406, %v2806
    %3411 = vrot.lane.b32.xlu0 %v3407, 127
    %v3412 = vpop.permute.xlu0 %3411
    %3413 = vrot.lane.b32.xlu0 %v3408, 127
    %v3414 = vpop.permute.xlu0 %3413
    %v3415 = vsel %vm305, %v3412, %v3414
    %v3417 = vadd.f32 %v3404, %v3415
    %s3418 = sld [smem:[#allocation19 + $0x3b]]
    %v3419 = vstv %s3418
    %v3420 = vmul.f32 %v3419, %v2805
    %v3421 = vmul.f32 %v3419, %v2806
    %3424 = vrot.lane.b32.xlu0 %v3420, 126
    %v3425 = vpop.permute.xlu0 %3424
    %3426 = vrot.lane.b32.xlu0 %v3421, 126
    %v3427 = vpop.permute.xlu0 %3426
    %v3428 = vsel %vm319, %v3425, %v3427
    %v3430 = vadd.f32 %v3417, %v3428
    %s3431 = sld [smem:[#allocation19 + $0x3c]]
    %v3432 = vstv %s3431
    %v3433 = vmul.f32 %v3432, %v2811
    %v3434 = vadd.f32 %v3430, %v3433
    %s3435 = sld [smem:[#allocation19 + $0x3d]]
    %v3436 = vstv %s3435
    %v3437 = vmul.f32 %v3436, %v2811
    %v3438 = vmul.f32 %v3436, %v2812
    %3441 = vrot.lane.b32.xlu0 %v3437, 127
    %v3442 = vpop.permute.xlu0 %3441
    %3443 = vrot.lane.b32.xlu0 %v3438, 127
    %v3444 = vpop.permute.xlu0 %3443
    %v3445 = vsel %vm305, %v3442, %v3444
    %v3447 = vadd.f32 %v3434, %v3445
    %s3448 = sld [smem:[#allocation19 + $0x3e]]
    %v3449 = vstv %s3448
    %v3450 = vmul.f32 %v3449, %v2811
    %v3451 = vmul.f32 %v3449, %v2812
    %3454 = vrot.lane.b32.xlu0 %v3450, 126
    %v3455 = vpop.permute.xlu0 %3454
    %3456 = vrot.lane.b32.xlu0 %v3451, 126
    %v3457 = vpop.permute.xlu0 %3456
    %v3458 = vsel %vm319, %v3455, %v3457
    %v3460 = vadd.f32 %v3447, %v3458
    %s3461 = sld [smem:[#allocation19 + $0x3f]]
    %v3462 = vstv %s3461
    %v3463 = vmul.f32 %v3462, %v2817
    %v3464 = vadd.f32 %v3460, %v3463
    %s3465 = sld [smem:[#allocation19 + $0x40]]
    %v3466 = vstv %s3465
    %v3467 = vmul.f32 %v3466, %v2817
    %v3468 = vmul.f32 %v3466, %v2818
    %3471 = vrot.lane.b32.xlu0 %v3467, 127
    %v3472 = vpop.permute.xlu0 %3471
    %3473 = vrot.lane.b32.xlu0 %v3468, 127
    %v3474 = vpop.permute.xlu0 %3473
    %v3475 = vsel %vm305, %v3472, %v3474
    %v3477 = vadd.f32 %v3464, %v3475
    %s3478 = sld [smem:[#allocation19 + $0x41]]
    %v3479 = vstv %s3478
    %v3480 = vmul.f32 %v3479, %v2817
    %v3481 = vmul.f32 %v3479, %v2818
    %3484 = vrot.lane.b32.xlu0 %v3480, 126
    %v3485 = vpop.permute.xlu0 %3484
    %3486 = vrot.lane.b32.xlu0 %v3481, 126
    %v3487 = vpop.permute.xlu0 %3486
    %v3488 = vsel %vm319, %v3485, %v3487
    %v3490 = vadd.f32 %v3477, %v3488
    %s3491 = sld [smem:[#allocation19 + $0x42]]
    %v3492 = vstv %s3491
    %v3493 = vmul.f32 %v3492, %v2823
    %v3494 = vadd.f32 %v3490, %v3493
    %s3495 = sld [smem:[#allocation19 + $0x43]]
    %v3496 = vstv %s3495
    %v3497 = vmul.f32 %v3496, %v2823
    %v3498 = vmul.f32 %v3496, %v2824
    %3501 = vrot.lane.b32.xlu0 %v3497, 127
    %v3502 = vpop.permute.xlu0 %3501
    %3503 = vrot.lane.b32.xlu0 %v3498, 127
    %v3504 = vpop.permute.xlu0 %3503
    %v3505 = vsel %vm305, %v3502, %v3504
    %v3507 = vadd.f32 %v3494, %v3505
    %s3508 = sld [smem:[#allocation19 + $0x44]]
    %v3509 = vstv %s3508
    %v3510 = vmul.f32 %v3509, %v2823
    %v3511 = vmul.f32 %v3509, %v2824
    %3514 = vrot.lane.b32.xlu0 %v3510, 126
    %v3515 = vpop.permute.xlu0 %3514
    %3516 = vrot.lane.b32.xlu0 %v3511, 126
    %v3517 = vpop.permute.xlu0 %3516
    %v3518 = vsel %vm319, %v3515, %v3517
    %v3520 = vadd.f32 %v3507, %v3518
    %s3521 = sld [smem:[#allocation19 + $0x45]]
    %v3522 = vstv %s3521
    %v3523 = vmul.f32 %v3522, %v2829
    %v3524 = vadd.f32 %v3520, %v3523
    %s3525 = sld [smem:[#allocation19 + $0x46]]
    %v3526 = vstv %s3525
    %v3527 = vmul.f32 %v3526, %v2829
    %v3528 = vmul.f32 %v3526, %v2830
    %3531 = vrot.lane.b32.xlu0 %v3527, 127
    %v3532 = vpop.permute.xlu0 %3531
    %3533 = vrot.lane.b32.xlu0 %v3528, 127
    %v3534 = vpop.permute.xlu0 %3533
    %v3535 = vsel %vm305, %v3532, %v3534
    %v3537 = vadd.f32 %v3524, %v3535
    %s3538 = sld [smem:[#allocation19 + $0x47]]
    %v3539 = vstv %s3538
    %v3540 = vmul.f32 %v3539, %v2829
    %v3541 = vmul.f32 %v3539, %v2830
    %3544 = vrot.lane.b32.xlu0 %v3540, 126
    %v3545 = vpop.permute.xlu0 %3544
    %3546 = vrot.lane.b32.xlu0 %v3541, 126
    %v3547 = vpop.permute.xlu0 %3546
    %v3548 = vsel %vm319, %v3545, %v3547
    %v3550 = vadd.f32 %v3537, %v3548
    %s3551 = sld [smem:[#allocation19 + $0x48]]
    %v3552 = vstv %s3551
    %v3553 = vmul.f32 %v3552, %v2787
    %v3554 = vadd.f32 %v3553, 0.0
    %s3555 = sld [smem:[#allocation19 + $0x49]]
    %v3556 = vstv %s3555
    %v3557 = vmul.f32 %v3556, %v2787
    %v3558 = vmul.f32 %v3556, %v2788
    %3561 = vrot.lane.b32.xlu0 %v3557, 127
    %v3562 = vpop.permute.xlu0 %3561
    %3563 = vrot.lane.b32.xlu0 %v3558, 127
    %v3564 = vpop.permute.xlu0 %3563
    %v3565 = vsel %vm305, %v3562, %v3564
    %v3567 = vadd.f32 %v3554, %v3565
    %s3568 = sld [smem:[#allocation19 + $0x4a]]
    %v3569 = vstv %s3568
    %v3570 = vmul.f32 %v3569, %v2787
    %v3571 = vmul.f32 %v3569, %v2788
    %3574 = vrot.lane.b32.xlu0 %v3570, 126
    %v3575 = vpop.permute.xlu0 %3574
    %3576 = vrot.lane.b32.xlu0 %v3571, 126
    %v3577 = vpop.permute.xlu0 %3576
    %v3578 = vsel %vm319, %v3575, %v3577
    %v3580 = vadd.f32 %v3567, %v3578
    %s3581 = sld [smem:[#allocation19 + $0x4b]]
    %v3582 = vstv %s3581
    %v3583 = vmul.f32 %v3582, %v2793
    %v3584 = vadd.f32 %v3580, %v3583
    %s3585 = sld [smem:[#allocation19 + $0x4c]]
    %v3586 = vstv %s3585
    %v3587 = vmul.f32 %v3586, %v2793
    %v3588 = vmul.f32 %v3586, %v2794
    %3591 = vrot.lane.b32.xlu0 %v3587, 127
    %v3592 = vpop.permute.xlu0 %3591
    %3593 = vrot.lane.b32.xlu0 %v3588, 127
    %v3594 = vpop.permute.xlu0 %3593
    %v3595 = vsel %vm305, %v3592, %v3594
    %v3597 = vadd.f32 %v3584, %v3595
    %s3598 = sld [smem:[#allocation19 + $0x4d]]
    %v3599 = vstv %s3598
    %v3600 = vmul.f32 %v3599, %v2793
    %v3601 = vmul.f32 %v3599, %v2794
    %3604 = vrot.lane.b32.xlu0 %v3600, 126
    %v3605 = vpop.permute.xlu0 %3604
    %3606 = vrot.lane.b32.xlu0 %v3601, 126
    %v3607 = vpop.permute.xlu0 %3606
    %v3608 = vsel %vm319, %v3605, %v3607
    %v3610 = vadd.f32 %v3597, %v3608
    %s3611 = sld [smem:[#allocation19 + $0x4e]]
    %v3612 = vstv %s3611
    %v3613 = vmul.f32 %v3612, %v2799
    %v3614 = vadd.f32 %v3610, %v3613
    %s3615 = sld [smem:[#allocation19 + $0x4f]]
    %v3616 = vstv %s3615
    %v3617 = vmul.f32 %v3616, %v2799
    %v3618 = vmul.f32 %v3616, %v2800
    %3621 = vrot.lane.b32.xlu0 %v3617, 127
    %v3622 = vpop.permute.xlu0 %3621
    %3623 = vrot.lane.b32.xlu0 %v3618, 127
    %v3624 = vpop.permute.xlu0 %3623
    %v3625 = vsel %vm305, %v3622, %v3624
    %v3627 = vadd.f32 %v3614, %v3625
    %s3628 = sld [smem:[#allocation19 + $0x50]]
    %v3629 = vstv %s3628
    %v3630 = vmul.f32 %v3629, %v2799
    %v3631 = vmul.f32 %v3629, %v2800
    %3634 = vrot.lane.b32.xlu0 %v3630, 126
    %v3635 = vpop.permute.xlu0 %3634
    %3636 = vrot.lane.b32.xlu0 %v3631, 126
    %v3637 = vpop.permute.xlu0 %3636
    %v3638 = vsel %vm319, %v3635, %v3637
    %v3640 = vadd.f32 %v3627, %v3638
    %s3641 = sld [smem:[#allocation19 + $0x51]]
    %v3642 = vstv %s3641
    %v3643 = vmul.f32 %v3642, %v2805
    %v3644 = vadd.f32 %v3640, %v3643
    %s3645 = sld [smem:[#allocation19 + $0x52]]
    %v3646 = vstv %s3645
    %v3647 = vmul.f32 %v3646, %v2805
    %v3648 = vmul.f32 %v3646, %v2806
    %3651 = vrot.lane.b32.xlu0 %v3647, 127
    %v3652 = vpop.permute.xlu0 %3651
    %3653 = vrot.lane.b32.xlu0 %v3648, 127
    %v3654 = vpop.permute.xlu0 %3653
    %v3655 = vsel %vm305, %v3652, %v3654
    %v3657 = vadd.f32 %v3644, %v3655
    %s3658 = sld [smem:[#allocation19 + $0x53]]
    %v3659 = vstv %s3658
    %v3660 = vmul.f32 %v3659, %v2805
    %v3661 = vmul.f32 %v3659, %v2806
    %3664 = vrot.lane.b32.xlu0 %v3660, 126
    %v3665 = vpop.permute.xlu0 %3664
    %3666 = vrot.lane.b32.xlu0 %v3661, 126
    %v3667 = vpop.permute.xlu0 %3666
    %v3668 = vsel %vm319, %v3665, %v3667
    %v3670 = vadd.f32 %v3657, %v3668
    %s3671 = sld [smem:[#allocation19 + $0x54]]
    %v3672 = vstv %s3671
    %v3673 = vmul.f32 %v3672, %v2811
    %v3674 = vadd.f32 %v3670, %v3673
    %s3675 = sld [smem:[#allocation19 + $0x55]]
    %v3676 = vstv %s3675
    %v3677 = vmul.f32 %v3676, %v2811
    %v3678 = vmul.f32 %v3676, %v2812
    %3681 = vrot.lane.b32.xlu0 %v3677, 127
    %v3682 = vpop.permute.xlu0 %3681
    %3683 = vrot.lane.b32.xlu0 %v3678, 127
    %v3684 = vpop.permute.xlu0 %3683
    %v3685 = vsel %vm305, %v3682, %v3684
    %v3687 = vadd.f32 %v3674, %v3685
    %s3688 = sld [smem:[#allocation19 + $0x56]]
    %v3689 = vstv %s3688
    %v3690 = vmul.f32 %v3689, %v2811
    %v3691 = vmul.f32 %v3689, %v2812
    %3694 = vrot.lane.b32.xlu0 %v3690, 126
    %v3695 = vpop.permute.xlu0 %3694
    %3696 = vrot.lane.b32.xlu0 %v3691, 126
    %v3697 = vpop.permute.xlu0 %3696
    %v3698 = vsel %vm319, %v3695, %v3697
    %v3700 = vadd.f32 %v3687, %v3698
    %s3701 = sld [smem:[#allocation19 + $0x57]]
    %v3702 = vstv %s3701
    %v3703 = vmul.f32 %v3702, %v2817
    %v3704 = vadd.f32 %v3700, %v3703
    %s3705 = sld [smem:[#allocation19 + $0x58]]
    %v3706 = vstv %s3705
    %v3707 = vmul.f32 %v3706, %v2817
    %v3708 = vmul.f32 %v3706, %v2818
    %3711 = vrot.lane.b32.xlu0 %v3707, 127
    %v3712 = vpop.permute.xlu0 %3711
    %3713 = vrot.lane.b32.xlu0 %v3708, 127
    %v3714 = vpop.permute.xlu0 %3713
    %v3715 = vsel %vm305, %v3712, %v3714
    %v3717 = vadd.f32 %v3704, %v3715
    %s3718 = sld [smem:[#allocation19 + $0x59]]
    %v3719 = vstv %s3718
    %v3720 = vmul.f32 %v3719, %v2817
    %v3721 = vmul.f32 %v3719, %v2818
    %3724 = vrot.lane.b32.xlu0 %v3720, 126
    %v3725 = vpop.permute.xlu0 %3724
    %3726 = vrot.lane.b32.xlu0 %v3721, 126
    %v3727 = vpop.permute.xlu0 %3726
    %v3728 = vsel %vm319, %v3725, %v3727
    %v3730 = vadd.f32 %v3717, %v3728
    %s3731 = sld [smem:[#allocation19 + $0x5a]]
    %v3732 = vstv %s3731
    %v3733 = vmul.f32 %v3732, %v2823
    %v3734 = vadd.f32 %v3730, %v3733
    %s3735 = sld [smem:[#allocation19 + $0x5b]]
    %v3736 = vstv %s3735
    %v3737 = vmul.f32 %v3736, %v2823
    %v3738 = vmul.f32 %v3736, %v2824
    %3741 = vrot.lane.b32.xlu0 %v3737, 127
    %v3742 = vpop.permute.xlu0 %3741
    %3743 = vrot.lane.b32.xlu0 %v3738, 127
    %v3744 = vpop.permute.xlu0 %3743
    %v3745 = vsel %vm305, %v3742, %v3744
    %v3747 = vadd.f32 %v3734, %v3745
    %s3748 = sld [smem:[#allocation19 + $0x5c]]
    %v3749 = vstv %s3748
    %v3750 = vmul.f32 %v3749, %v2823
    %v3751 = vmul.f32 %v3749, %v2824
    %3754 = vrot.lane.b32.xlu0 %v3750, 126
    %v3755 = vpop.permute.xlu0 %3754
    %3756 = vrot.lane.b32.xlu0 %v3751, 126
    %v3757 = vpop.permute.xlu0 %3756
    %v3758 = vsel %vm319, %v3755, %v3757
    %v3760 = vadd.f32 %v3747, %v3758
    %s3761 = sld [smem:[#allocation19 + $0x5d]]
    %v3762 = vstv %s3761
    %v3763 = vmul.f32 %v3762, %v2829
    %v3764 = vadd.f32 %v3760, %v3763
    %s3765 = sld [smem:[#allocation19 + $0x5e]]
    %v3766 = vstv %s3765
    %v3767 = vmul.f32 %v3766, %v2829
    %v3768 = vmul.f32 %v3766, %v2830
    %3771 = vrot.lane.b32.xlu0 %v3767, 127
    %v3772 = vpop.permute.xlu0 %3771
    %3773 = vrot.lane.b32.xlu0 %v3768, 127
    %v3774 = vpop.permute.xlu0 %3773
    %v3775 = vsel %vm305, %v3772, %v3774
    %v3777 = vadd.f32 %v3764, %v3775
    %s3778 = sld [smem:[#allocation19 + $0x5f]]
    %v3779 = vstv %s3778
    %v3780 = vmul.f32 %v3779, %v2829
    %v3781 = vmul.f32 %v3779, %v2830
    %3784 = vrot.lane.b32.xlu0 %v3780, 126
    %v3785 = vpop.permute.xlu0 %3784
    %3786 = vrot.lane.b32.xlu0 %v3781, 126
    %v3787 = vpop.permute.xlu0 %3786
    %v3788 = vsel %vm319, %v3785, %v3787
    %v3790 = vadd.f32 %v3777, %v3788
    %v3791 = vlaneseq
    %v3792 = vshrl.u32 %v3791, 7
    %v3793 = vadd.s32 %v3792, 8
    %v3794 = vadd.s32 %v3792, 16
    %v3795 = vadd.s32 %v3792, 24
    %v3796 = vadd.s32 %v3792, 32
    %v3797 = vadd.s32 %v3792, 40
    %v3798 = vadd.s32 %v3792, 48
    %v3799 = vadd.s32 %v3792, 56
    %v3800 = vadd.s32 %v3792, 64
    %v3801 = vadd.s32 %v3792, 72
    %v3802 = vadd.s32 %v3792, 80
    %v3803 = vadd.s32 %v3792, 88
    %v3804 = vadd.s32 %v3792, 96
    %v3805 = vadd.s32 %v3792, 104
    %v3806 = vadd.s32 %v3792, 112
    %v3807 = vadd.s32 %v3792, 120
    %v3808 = vlaneseq
    %v3809 = vand.u32 %v3808, 127
    %v3810 = vmul.u32 %v3809, 2
    %vm3811 = vcmp.eq.s32.totalorder %v3792, %v3810
    %vm3812 = vcmp.eq.s32.totalorder %v3793, %v3810
    %vm3813 = vcmp.eq.s32.totalorder %v3794, %v3810
    %vm3814 = vcmp.eq.s32.totalorder %v3795, %v3810
    %vm3815 = vcmp.eq.s32.totalorder %v3796, %v3810
    %vm3816 = vcmp.eq.s32.totalorder %v3797, %v3810
    %vm3817 = vcmp.eq.s32.totalorder %v3798, %v3810
    %vm3818 = vcmp.eq.s32.totalorder %v3799, %v3810
    %vm3819 = vcmp.eq.s32.totalorder %v3800, %v3810
    %vm3820 = vcmp.eq.s32.totalorder %v3801, %v3810
    %vm3821 = vcmp.eq.s32.totalorder %v3802, %v3810
    %vm3822 = vcmp.eq.s32.totalorder %v3803, %v3810
    %vm3823 = vcmp.eq.s32.totalorder %v3804, %v3810
    %vm3824 = vcmp.eq.s32.totalorder %v3805, %v3810
    %vm3825 = vcmp.eq.s32.totalorder %v3806, %v3810
    %vm3826 = vcmp.eq.s32.totalorder %v3807, %v3810
    %v3827 = vsel %vm3811, 1, 0
    %v3828 = vsel %vm3812, 1, 0
    %v3829 = vsel %vm3813, 1, 0
    %v3830 = vsel %vm3814, 1, 0
    %v3831 = vsel %vm3815, 1, 0
    %v3832 = vsel %vm3816, 1, 0
    %v3833 = vsel %vm3817, 1, 0
    %v3834 = vsel %vm3818, 1, 0
    %v3835 = vsel %vm3819, 1, 0
    %v3836 = vsel %vm3820, 1, 0
    %v3837 = vsel %vm3821, 1, 0
    %v3838 = vsel %vm3822, 1, 0
    %v3839 = vsel %vm3823, 1, 0
    %v3840 = vsel %vm3824, 1, 0
    %v3841 = vsel %vm3825, 1, 0
    %v3842 = vsel %vm3826, 1, 0
    %v3843 = vcvt.s32.f32 %v3827
    %v3844 = vcvt.s32.f32 %v3828
    %v3845 = vcvt.s32.f32 %v3829
    %v3846 = vcvt.s32.f32 %v3830
    %v3847 = vcvt.s32.f32 %v3831
    %v3848 = vcvt.s32.f32 %v3832
    %v3849 = vcvt.s32.f32 %v3833
    %v3850 = vcvt.s32.f32 %v3834
    %v3851 = vcvt.s32.f32 %v3835
    %v3852 = vcvt.s32.f32 %v3836
    %v3853 = vcvt.s32.f32 %v3837
    %v3854 = vcvt.s32.f32 %v3838
    %v3855 = vcvt.s32.f32 %v3839
    %v3856 = vcvt.s32.f32 %v3840
    %v3857 = vcvt.s32.f32 %v3841
    %v3858 = vcvt.s32.f32 %v3842
    %v3859 = vadd.s32 %v3810, 1
    %vm3860 = vcmp.eq.s32.totalorder %v3792, %v3859
    %vm3861 = vcmp.eq.s32.totalorder %v3793, %v3859
    %vm3862 = vcmp.eq.s32.totalorder %v3794, %v3859
    %vm3863 = vcmp.eq.s32.totalorder %v3795, %v3859
    %vm3864 = vcmp.eq.s32.totalorder %v3796, %v3859
    %vm3865 = vcmp.eq.s32.totalorder %v3797, %v3859
    %vm3866 = vcmp.eq.s32.totalorder %v3798, %v3859
    %vm3867 = vcmp.eq.s32.totalorder %v3799, %v3859
    %vm3868 = vcmp.eq.s32.totalorder %v3800, %v3859
    %vm3869 = vcmp.eq.s32.totalorder %v3801, %v3859
    %vm3870 = vcmp.eq.s32.totalorder %v3802, %v3859
    %vm3871 = vcmp.eq.s32.totalorder %v3803, %v3859
    %vm3872 = vcmp.eq.s32.totalorder %v3804, %v3859
    %vm3873 = vcmp.eq.s32.totalorder %v3805, %v3859
    %vm3874 = vcmp.eq.s32.totalorder %v3806, %v3859
    %vm3875 = vcmp.eq.s32.totalorder %v3807, %v3859
    %v3876 = vsel %vm3860, 1, 0
    %v3877 = vsel %vm3861, 1, 0
    %v3878 = vsel %vm3862, 1, 0
    %v3879 = vsel %vm3863, 1, 0
    %v3880 = vsel %vm3864, 1, 0
    %v3881 = vsel %vm3865, 1, 0
    %v3882 = vsel %vm3866, 1, 0
    %v3883 = vsel %vm3867, 1, 0
    %v3884 = vsel %vm3868, 1, 0
    %v3885 = vsel %vm3869, 1, 0
    %v3886 = vsel %vm3870, 1, 0
    %v3887 = vsel %vm3871, 1, 0
    %v3888 = vsel %vm3872, 1, 0
    %v3889 = vsel %vm3873, 1, 0
    %v3890 = vsel %vm3874, 1, 0
    %v3891 = vsel %vm3875, 1, 0
    %v3892 = vcvt.s32.f32 %v3876
    %v3893 = vcvt.s32.f32 %v3877
    %v3894 = vcvt.s32.f32 %v3878
    %v3895 = vcvt.s32.f32 %v3879
    %v3896 = vcvt.s32.f32 %v3880
    %v3897 = vcvt.s32.f32 %v3881
    %v3898 = vcvt.s32.f32 %v3882
    %v3899 = vcvt.s32.f32 %v3883
    %v3900 = vcvt.s32.f32 %v3884
    %v3901 = vcvt.s32.f32 %v3885
    %v3902 = vcvt.s32.f32 %v3886
    %v3903 = vcvt.s32.f32 %v3887
    %v3904 = vcvt.s32.f32 %v3888
    %v3905 = vcvt.s32.f32 %v3889
    %v3906 = vcvt.s32.f32 %v3890
    %v3907 = vcvt.s32.f32 %v3891
    %3908 = vmatprep.subr.mxu0 0.0
    %3909 = vmatpush1.msra.mxu0 %v3858
    %3910 = vmatprep.subr.mxu0 0.0
    %3911 = vmatpush1.msra.mxu0 %v3857
    %3912 = vmatprep.subr.mxu0 0.0
    %3913 = vmatpush1.msra.mxu0 %v3856
    %3914 = vmatprep.subr.mxu0 0.0
    %3915 = vmatpush1.msra.mxu0 %v3855
    %3916 = vmatprep.subr.mxu0 0.0
    %3917 = vmatpush1.msra.mxu0 %v3854
    %3918 = vmatprep.subr.mxu0 0.0
    %3919 = vmatpush1.msra.mxu0 %v3853
    %3920 = vmatprep.subr.mxu0 0.0
    %3921 = vmatpush1.msra.mxu0 %v3852
    %3922 = vmatprep.subr.mxu0 0.0
    %3923 = vmatpush1.msra.mxu0 %v3851
    %3924 = vmatprep.subr.mxu0 0.0
    %3925 = vmatpush1.msra.mxu0 %v3850
    %3926 = vmatprep.subr.mxu0 0.0
    %3927 = vmatpush1.msra.mxu0 %v3849
    %3928 = vmatprep.subr.mxu0 0.0
    %3929 = vmatpush1.msra.mxu0 %v3848
    %3930 = vmatprep.subr.mxu0 0.0
    %3931 = vmatpush1.msra.mxu0 %v3847
    %3932 = vmatprep.subr.mxu0 0.0
    %3933 = vmatpush1.msra.mxu0 %v3846
    %3934 = vmatprep.subr.mxu0 0.0
    %3935 = vmatpush1.msra.mxu0 %v3845
    %3936 = vmatprep.subr.mxu0 0.0
    %3937 = vmatpush1.msra.mxu0 %v3844
    %3938 = vmatprep.subr.mxu0 0.0
    %3939 = vmatpush1.msra.mxu0 %v3843
    %3940 = vmatprep.subr.mxu0 0.0
    %3941 = vmatpush2.msra.mxu0 0.0
    %3942 = vmatprep.subr.mxu0 0.0
    %3943 = vmatpush2.msra.mxu0 0.0
    %3944 = vmatprep.subr.mxu0 0.0
    %3945 = vmatpush2.msra.mxu0 0.0
    %3946 = vmatprep.subr.mxu0 0.0
    %3947 = vmatpush2.msra.mxu0 0.0
    %3948 = vmatprep.subr.mxu0 0.0
    %3949 = vmatpush2.msra.mxu0 0.0
    %3950 = vmatprep.subr.mxu0 0.0
    %3951 = vmatpush2.msra.mxu0 0.0
    %3952 = vmatprep.subr.mxu0 0.0
    %3953 = vmatpush2.msra.mxu0 0.0
    %3954 = vmatprep.subr.mxu0 0.0
    %3955 = vmatpush2.msra.mxu0 0.0
    %3956 = vmatprep.subr.mxu0 0.0
    %3957 = vmatpush2.msra.mxu0 0.0
    %3958 = vmatprep.subr.mxu0 0.0
    %3959 = vmatpush2.msra.mxu0 0.0
    %3960 = vmatprep.subr.mxu0 0.0
    %3961 = vmatpush2.msra.mxu0 0.0
    %3962 = vmatprep.subr.mxu0 0.0
    %3963 = vmatpush2.msra.mxu0 0.0
    %3964 = vmatprep.subr.mxu0 0.0
    %3965 = vmatpush2.msra.mxu0 0.0
    %3966 = vmatprep.subr.mxu0 0.0
    %3967 = vmatpush2.msra.mxu0 0.0
    %3968 = vmatprep.subr.mxu0 0.0
    %3969 = vmatpush2.msra.mxu0 0.0
    %3970 = vmatprep.subr.mxu0 0.0
    %3971 = vmatpush2.msra.mxu0 0.0
    %3972 = vmatprep.mubr.f32.mxu0 0.0
    %3973 = vmatmul.mubr.f32.gmra.mxu0 %v3070
    %v3974 = vpop.f32.mrf.mxu0
    %v3975 = vadd.f32 0.0, %v3974
    %v3976 = vpop.f32.mrf.mxu0
    %3977 = vdwg.mxu0
    %3978 = vmatprep.subr.mxu0 0.0
    %3979 = vmatpush1.msra.mxu0 %v3907
    %3980 = vmatprep.subr.mxu0 0.0
    %3981 = vmatpush1.msra.mxu0 %v3906
    %3982 = vmatprep.subr.mxu0 0.0
    %3983 = vmatpush1.msra.mxu0 %v3905
    %3984 = vmatprep.subr.mxu0 0.0
    %3985 = vmatpush1.msra.mxu0 %v3904
    %3986 = vmatprep.subr.mxu0 0.0
    %3987 = vmatpush1.msra.mxu0 %v3903
    %3988 = vmatprep.subr.mxu0 0.0
    %3989 = vmatpush1.msra.mxu0 %v3902
    %3990 = vmatprep.subr.mxu0 0.0
    %3991 = vmatpush1.msra.mxu0 %v3901
    %3992 = vmatprep.subr.mxu0 0.0
    %3993 = vmatpush1.msra.mxu0 %v3900
    %3994 = vmatprep.subr.mxu0 0.0
    %3995 = vmatpush1.msra.mxu0 %v3899
    %3996 = vmatprep.subr.mxu0 0.0
    %3997 = vmatpush1.msra.mxu0 %v3898
    %3998 = vmatprep.subr.mxu0 0.0
    %3999 = vmatpush1.msra.mxu0 %v3897
    %4000 = vmatprep.subr.mxu0 0.0
    %4001 = vmatpush1.msra.mxu0 %v3896
    %4002 = vmatprep.subr.mxu0 0.0
    %4003 = vmatpush1.msra.mxu0 %v3895
    %4004 = vmatprep.subr.mxu0 0.0
    %4005 = vmatpush1.msra.mxu0 %v3894
    %4006 = vmatprep.subr.mxu0 0.0
    %4007 = vmatpush1.msra.mxu0 %v3893
    %4008 = vmatprep.subr.mxu0 0.0
    %4009 = vmatpush1.msra.mxu0 %v3892
    %4010 = vmatprep.subr.mxu0 0.0
    %4011 = vmatpush2.msra.mxu0 0.0
    %4012 = vmatprep.subr.mxu0 0.0
    %4013 = vmatpush2.msra.mxu0 0.0
    %4014 = vmatprep.subr.mxu0 0.0
    %4015 = vmatpush2.msra.mxu0 0.0
    %4016 = vmatprep.subr.mxu0 0.0
    %4017 = vmatpush2.msra.mxu0 0.0
    %4018 = vmatprep.subr.mxu0 0.0
    %4019 = vmatpush2.msra.mxu0 0.0
    %4020 = vmatprep.subr.mxu0 0.0
    %4021 = vmatpush2.msra.mxu0 0.0
    %4022 = vmatprep.subr.mxu0 0.0
    %4023 = vmatpush2.msra.mxu0 0.0
    %4024 = vmatprep.subr.mxu0 0.0
    %4025 = vmatpush2.msra.mxu0 0.0
    %4026 = vmatprep.subr.mxu0 0.0
    %4027 = vmatpush2.msra.mxu0 0.0
    %4028 = vmatprep.subr.mxu0 0.0
    %4029 = vmatpush2.msra.mxu0 0.0
    %4030 = vmatprep.subr.mxu0 0.0
    %4031 = vmatpush2.msra.mxu0 0.0
    %4032 = vmatprep.subr.mxu0 0.0
    %4033 = vmatpush2.msra.mxu0 0.0
    %4034 = vmatprep.subr.mxu0 0.0
    %4035 = vmatpush2.msra.mxu0 0.0
    %4036 = vmatprep.subr.mxu0 0.0
    %4037 = vmatpush2.msra.mxu0 0.0
    %4038 = vmatprep.subr.mxu0 0.0
    %4039 = vmatpush2.msra.mxu0 0.0
    %4040 = vmatprep.subr.mxu0 0.0
    %4041 = vmatpush2.msra.mxu0 0.0
    %4042 = vmatprep.mubr.f32.mxu0 0.0
    %4043 = vmatmul.mubr.f32.gmra.mxu0 %v3070
    %v4044 = vpop.f32.mrf.mxu0
    %v4045 = vadd.f32 0.0, %v4044
    %v4046 = vpop.f32.mrf.mxu0
    %4047 = vdwg.mxu0
    %vm4048 = vcmp.ge.f32.partialorder %v3975, %v4045
    %v4049 = vsel %vm4048, %v3975, %v4045
    %v4050 = vsel %vm4048, %v3810, %v3859
    %v4051 = vcombine.high %v4050, %v4050
    %v4053 = vunpack.c.l.s4 1966171168
    %v4054 = vunpack.c.0.s8 %v4053
    %v4055 = vlaneseq
    %v4056 = vshrl.u32 %v4055, 7
    %v4057 = vsub.s32 %v4054, %v4056
    %v4058 = vrot.slane %v4050, %v4057
    %v4060 = vunpack.c.l.s4 1966171168
    %v4061 = vunpack.c.0.s8 %v4060
    %v4062 = vlaneseq
    %v4063 = vshrl.u32 %v4062, 7
    %v4064 = vsub.s32 %v4061, %v4063
    %v4065 = vrot.slane %v4051, %v4064
    %v4066 = vcombine.high %v4058, %v4058
    %v4067 = vcombine.high %v4065, %v4065
    %v4069 = vunpack.c.l.s4 1966171168
    %v4070 = vunpack.c.0.s8 %v4069
    %v4071 = vlaneseq
    %v4072 = vshrl.u32 %v4071, 7
    %v4073 = vsub.s32 %v4070, %v4072
    %v4074 = vrot.slane %v4058, %v4073
    %v4076 = vunpack.c.l.s4 1966171168
    %v4077 = vunpack.c.0.s8 %v4076
    %v4078 = vlaneseq
    %v4079 = vshrl.u32 %v4078, 7
    %v4080 = vsub.s32 %v4077, %v4079
    %v4081 = vrot.slane %v4065, %v4080
    %v4083 = vunpack.c.l.s4 1966171168
    %v4084 = vunpack.c.0.s8 %v4083
    %v4085 = vlaneseq
    %v4086 = vshrl.u32 %v4085, 7
    %v4087 = vsub.s32 %v4084, %v4086
    %v4088 = vrot.slane %v4066, %v4087
    %v4090 = vunpack.c.l.s4 1966171168
    %v4091 = vunpack.c.0.s8 %v4090
    %v4092 = vlaneseq
    %v4093 = vshrl.u32 %v4092, 7
    %v4094 = vsub.s32 %v4091, %v4093
    %v4095 = vrot.slane %v4067, %v4094
    %v4096 = vcombine.high %v4074, %v4074
    %v4097 = vcombine.high %v4081, %v4081
    %v4098 = vcombine.high %v4088, %v4088
    %v4099 = vcombine.high %v4095, %v4095
    %vm4100 = vcmask 516096
    %4101 = vst.msk [vmem:[#allocation24] sm:$0x1] %vm4100, %v4074
    %4102 = vst.msk [vmem:[#allocation24 + $0x4] sm:$0x1] %vm4100, %v4088
    %4103 = vst.msk [vmem:[#allocation24 + $0x8] sm:$0x1] %vm4100, %v4096
    %4104 = vst.msk [vmem:[#allocation24 + $0xc] sm:$0x1] %vm4100, %v4098
    %4105 = vst.msk [vmem:[#allocation24 + $0x10] sm:$0x1] %vm4100, %v4081
    %4106 = vst.msk [vmem:[#allocation24 + $0x14] sm:$0x1] %vm4100, %v4095
    %4107 = vst.msk [vmem:[#allocation24 + $0x18] sm:$0x1] %vm4100, %v4097
    %4108 = vst.msk [vmem:[#allocation24 + $0x1c] sm:$0x1] %vm4100, %v4099
    %4109 = vmatprep.subr.mxu0 0.0
    %4110 = vmatpush1.msra.mxu0 %v3858
    %4111 = vmatprep.subr.mxu0 0.0
    %4112 = vmatpush1.msra.mxu0 %v3857
    %4113 = vmatprep.subr.mxu0 0.0
    %4114 = vmatpush1.msra.mxu0 %v3856
    %4115 = vmatprep.subr.mxu0 0.0
    %4116 = vmatpush1.msra.mxu0 %v3855
    %4117 = vmatprep.subr.mxu0 0.0
    %4118 = vmatpush1.msra.mxu0 %v3854
    %4119 = vmatprep.subr.mxu0 0.0
    %4120 = vmatpush1.msra.mxu0 %v3853
    %4121 = vmatprep.subr.mxu0 0.0
    %4122 = vmatpush1.msra.mxu0 %v3852
    %4123 = vmatprep.subr.mxu0 0.0
    %4124 = vmatpush1.msra.mxu0 %v3851
    %4125 = vmatprep.subr.mxu0 0.0
    %4126 = vmatpush1.msra.mxu0 %v3850
    %4127 = vmatprep.subr.mxu0 0.0
    %4128 = vmatpush1.msra.mxu0 %v3849
    %4129 = vmatprep.subr.mxu0 0.0
    %4130 = vmatpush1.msra.mxu0 %v3848
    %4131 = vmatprep.subr.mxu0 0.0
    %4132 = vmatpush1.msra.mxu0 %v3847
    %4133 = vmatprep.subr.mxu0 0.0
    %4134 = vmatpush1.msra.mxu0 %v3846
    %4135 = vmatprep.subr.mxu0 0.0
    %4136 = vmatpush1.msra.mxu0 %v3845
    %4137 = vmatprep.subr.mxu0 0.0
    %4138 = vmatpush1.msra.mxu0 %v3844
    %4139 = vmatprep.subr.mxu0 0.0
    %4140 = vmatpush1.msra.mxu0 %v3843
    %4141 = vmatprep.subr.mxu0 0.0
    %4142 = vmatpush2.msra.mxu0 0.0
    %4143 = vmatprep.subr.mxu0 0.0
    %4144 = vmatpush2.msra.mxu0 0.0
    %4145 = vmatprep.subr.mxu0 0.0
    %4146 = vmatpush2.msra.mxu0 0.0
    %4147 = vmatprep.subr.mxu0 0.0
    %4148 = vmatpush2.msra.mxu0 0.0
    %4149 = vmatprep.subr.mxu0 0.0
    %4150 = vmatpush2.msra.mxu0 0.0
    %4151 = vmatprep.subr.mxu0 0.0
    %4152 = vmatpush2.msra.mxu0 0.0
    %4153 = vmatprep.subr.mxu0 0.0
    %4154 = vmatpush2.msra.mxu0 0.0
    %4155 = vmatprep.subr.mxu0 0.0
    %4156 = vmatpush2.msra.mxu0 0.0
    %4157 = vmatprep.subr.mxu0 0.0
    %4158 = vmatpush2.msra.mxu0 0.0
    %4159 = vmatprep.subr.mxu0 0.0
    %4160 = vmatpush2.msra.mxu0 0.0
    %4161 = vmatprep.subr.mxu0 0.0
    %4162 = vmatpush2.msra.mxu0 0.0
    %4163 = vmatprep.subr.mxu0 0.0
    %4164 = vmatpush2.msra.mxu0 0.0
    %4165 = vmatprep.subr.mxu0 0.0
    %4166 = vmatpush2.msra.mxu0 0.0
    %4167 = vmatprep.subr.mxu0 0.0
    %4168 = vmatpush2.msra.mxu0 0.0
    %4169 = vmatprep.subr.mxu0 0.0
    %4170 = vmatpush2.msra.mxu0 0.0
    %4171 = vmatprep.subr.mxu0 0.0
    %4172 = vmatpush2.msra.mxu0 0.0
    %4173 = vmatprep.mubr.f32.mxu0 0.0
    %4174 = vmatmul.mubr.f32.gmra.mxu0 %v3310
    %v4175 = vpop.f32.mrf.mxu0
    %v4176 = vadd.f32 0.0, %v4175
    %v4177 = vpop.f32.mrf.mxu0
    %4178 = vdwg.mxu0
    %4179 = vmatprep.subr.mxu0 0.0
    %4180 = vmatpush1.msra.mxu0 %v3907
    %4181 = vmatprep.subr.mxu0 0.0
    %4182 = vmatpush1.msra.mxu0 %v3906
    %4183 = vmatprep.subr.mxu0 0.0
    %4184 = vmatpush1.msra.mxu0 %v3905
    %4185 = vmatprep.subr.mxu0 0.0
    %4186 = vmatpush1.msra.mxu0 %v3904
    %4187 = vmatprep.subr.mxu0 0.0
    %4188 = vmatpush1.msra.mxu0 %v3903
    %4189 = vmatprep.subr.mxu0 0.0
    %4190 = vmatpush1.msra.mxu0 %v3902
    %4191 = vmatprep.subr.mxu0 0.0
    %4192 = vmatpush1.msra.mxu0 %v3901
    %4193 = vmatprep.subr.mxu0 0.0
    %4194 = vmatpush1.msra.mxu0 %v3900
    %4195 = vmatprep.subr.mxu0 0.0
    %4196 = vmatpush1.msra.mxu0 %v3899
    %4197 = vmatprep.subr.mxu0 0.0
    %4198 = vmatpush1.msra.mxu0 %v3898
    %4199 = vmatprep.subr.mxu0 0.0
    %4200 = vmatpush1.msra.mxu0 %v3897
    %4201 = vmatprep.subr.mxu0 0.0
    %4202 = vmatpush1.msra.mxu0 %v3896
    %4203 = vmatprep.subr.mxu0 0.0
    %4204 = vmatpush1.msra.mxu0 %v3895
    %4205 = vmatprep.subr.mxu0 0.0
    %4206 = vmatpush1.msra.mxu0 %v3894
    %4207 = vmatprep.subr.mxu0 0.0
    %4208 = vmatpush1.msra.mxu0 %v3893
    %4209 = vmatprep.subr.mxu0 0.0
    %4210 = vmatpush1.msra.mxu0 %v3892
    %4211 = vmatprep.subr.mxu0 0.0
    %4212 = vmatpush2.msra.mxu0 0.0
    %4213 = vmatprep.subr.mxu0 0.0
    %4214 = vmatpush2.msra.mxu0 0.0
    %4215 = vmatprep.subr.mxu0 0.0
    %4216 = vmatpush2.msra.mxu0 0.0
    %4217 = vmatprep.subr.mxu0 0.0
    %4218 = vmatpush2.msra.mxu0 0.0
    %4219 = vmatprep.subr.mxu0 0.0
    %4220 = vmatpush2.msra.mxu0 0.0
    %4221 = vmatprep.subr.mxu0 0.0
    %4222 = vmatpush2.msra.mxu0 0.0
    %4223 = vmatprep.subr.mxu0 0.0
    %4224 = vmatpush2.msra.mxu0 0.0
    %4225 = vmatprep.subr.mxu0 0.0
    %4226 = vmatpush2.msra.mxu0 0.0
    %4227 = vmatprep.subr.mxu0 0.0
    %4228 = vmatpush2.msra.mxu0 0.0
    %4229 = vmatprep.subr.mxu0 0.0
    %4230 = vmatpush2.msra.mxu0 0.0
    %4231 = vmatprep.subr.mxu0 0.0
    %4232 = vmatpush2.msra.mxu0 0.0
    %4233 = vmatprep.subr.mxu0 0.0
    %4234 = vmatpush2.msra.mxu0 0.0
    %4235 = vmatprep.subr.mxu0 0.0
    %4236 = vmatpush2.msra.mxu0 0.0
    %4237 = vmatprep.subr.mxu0 0.0
    %4238 = vmatpush2.msra.mxu0 0.0
    %4239 = vmatprep.subr.mxu0 0.0
    %4240 = vmatpush2.msra.mxu0 0.0
    %4241 = vmatprep.subr.mxu0 0.0
    %4242 = vmatpush2.msra.mxu0 0.0
    %4243 = vmatprep.mubr.f32.mxu0 0.0
    %4244 = vmatmul.mubr.f32.gmra.mxu0 %v3310
    %v4245 = vpop.f32.mrf.mxu0
    %v4246 = vadd.f32 0.0, %v4245
    %v4247 = vpop.f32.mrf.mxu0
    %4248 = vdwg.mxu0
    %vm4249 = vcmp.ge.f32.partialorder %v4176, %v4246
    %v4250 = vsel %vm4249, %v4176, %v4246
    %v4251 = vsel %vm4249, %v3810, %v3859
    %v4252 = vcombine.high %v4251, %v4251
    %v4254 = vunpack.c.l.s4 1966171168
    %v4255 = vunpack.c.0.s8 %v4254
    %v4256 = vlaneseq
    %v4257 = vshrl.u32 %v4256, 7
    %v4258 = vsub.s32 %v4255, %v4257
    %v4259 = vrot.slane %v4251, %v4258
    %v4261 = vunpack.c.l.s4 1966171168
    %v4262 = vunpack.c.0.s8 %v4261
    %v4263 = vlaneseq
    %v4264 = vshrl.u32 %v4263, 7
    %v4265 = vsub.s32 %v4262, %v4264
    %v4266 = vrot.slane %v4252, %v4265
    %v4267 = vcombine.high %v4259, %v4259
    %v4268 = vcombine.high %v4266, %v4266
    %v4270 = vunpack.c.l.s4 1966171168
    %v4271 = vunpack.c.0.s8 %v4270
    %v4272 = vlaneseq
    %v4273 = vshrl.u32 %v4272, 7
    %v4274 = vsub.s32 %v4271, %v4273
    %v4275 = vrot.slane %v4259, %v4274
    %v4277 = vunpack.c.l.s4 1966171168
    %v4278 = vunpack.c.0.s8 %v4277
    %v4279 = vlaneseq
    %v4280 = vshrl.u32 %v4279, 7
    %v4281 = vsub.s32 %v4278, %v4280
    %v4282 = vrot.slane %v4266, %v4281
    %v4284 = vunpack.c.l.s4 1966171168
    %v4285 = vunpack.c.0.s8 %v4284
    %v4286 = vlaneseq
    %v4287 = vshrl.u32 %v4286, 7
    %v4288 = vsub.s32 %v4285, %v4287
    %v4289 = vrot.slane %v4267, %v4288
    %v4291 = vunpack.c.l.s4 1966171168
    %v4292 = vunpack.c.0.s8 %v4291
    %v4293 = vlaneseq
    %v4294 = vshrl.u32 %v4293, 7
    %v4295 = vsub.s32 %v4292, %v4294
    %v4296 = vrot.slane %v4268, %v4295
    %v4297 = vcombine.high %v4275, %v4275
    %v4298 = vcombine.high %v4282, %v4282
    %v4299 = vcombine.high %v4289, %v4289
    %v4300 = vcombine.high %v4296, %v4296
    %4301 = vst.msk [vmem:[#allocation24 + $0x1] sm:$0x1] %vm4100, %v4275
    %4302 = vst.msk [vmem:[#allocation24 + $0x5] sm:$0x1] %vm4100, %v4289
    %4303 = vst.msk [vmem:[#allocation24 + $0x9] sm:$0x1] %vm4100, %v4297
    %4304 = vst.msk [vmem:[#allocation24 + $0xd] sm:$0x1] %vm4100, %v4299
    %4305 = vst.msk [vmem:[#allocation24 + $0x11] sm:$0x1] %vm4100, %v4282
    %4306 = vst.msk [vmem:[#allocation24 + $0x15] sm:$0x1] %vm4100, %v4296
    %4307 = vst.msk [vmem:[#allocation24 + $0x19] sm:$0x1] %vm4100, %v4298
    %4308 = vst.msk [vmem:[#allocation24 + $0x1d] sm:$0x1] %vm4100, %v4300
    %4309 = vmatprep.subr.mxu0 0.0
    %4310 = vmatpush1.msra.mxu0 %v3858
    %4311 = vmatprep.subr.mxu0 0.0
    %4312 = vmatpush1.msra.mxu0 %v3857
    %4313 = vmatprep.subr.mxu0 0.0
    %4314 = vmatpush1.msra.mxu0 %v3856
    %4315 = vmatprep.subr.mxu0 0.0
    %4316 = vmatpush1.msra.mxu0 %v3855
    %4317 = vmatprep.subr.mxu0 0.0
    %4318 = vmatpush1.msra.mxu0 %v3854
    %4319 = vmatprep.subr.mxu0 0.0
    %4320 = vmatpush1.msra.mxu0 %v3853
    %4321 = vmatprep.subr.mxu0 0.0
    %4322 = vmatpush1.msra.mxu0 %v3852
    %4323 = vmatprep.subr.mxu0 0.0
    %4324 = vmatpush1.msra.mxu0 %v3851
    %4325 = vmatprep.subr.mxu0 0.0
    %4326 = vmatpush1.msra.mxu0 %v3850
    %4327 = vmatprep.subr.mxu0 0.0
    %4328 = vmatpush1.msra.mxu0 %v3849
    %4329 = vmatprep.subr.mxu0 0.0
    %4330 = vmatpush1.msra.mxu0 %v3848
    %4331 = vmatprep.subr.mxu0 0.0
    %4332 = vmatpush1.msra.mxu0 %v3847
    %4333 = vmatprep.subr.mxu0 0.0
    %4334 = vmatpush1.msra.mxu0 %v3846
    %4335 = vmatprep.subr.mxu0 0.0
    %4336 = vmatpush1.msra.mxu0 %v3845
    %4337 = vmatprep.subr.mxu0 0.0
    %4338 = vmatpush1.msra.mxu0 %v3844
    %4339 = vmatprep.subr.mxu0 0.0
    %4340 = vmatpush1.msra.mxu0 %v3843
    %4341 = vmatprep.subr.mxu0 0.0
    %4342 = vmatpush2.msra.mxu0 0.0
    %4343 = vmatprep.subr.mxu0 0.0
    %4344 = vmatpush2.msra.mxu0 0.0
    %4345 = vmatprep.subr.mxu0 0.0
    %4346 = vmatpush2.msra.mxu0 0.0
    %4347 = vmatprep.subr.mxu0 0.0
    %4348 = vmatpush2.msra.mxu0 0.0
    %4349 = vmatprep.subr.mxu0 0.0
    %4350 = vmatpush2.msra.mxu0 0.0
    %4351 = vmatprep.subr.mxu0 0.0
    %4352 = vmatpush2.msra.mxu0 0.0
    %4353 = vmatprep.subr.mxu0 0.0
    %4354 = vmatpush2.msra.mxu0 0.0
    %4355 = vmatprep.subr.mxu0 0.0
    %4356 = vmatpush2.msra.mxu0 0.0
    %4357 = vmatprep.subr.mxu0 0.0
    %4358 = vmatpush2.msra.mxu0 0.0
    %4359 = vmatprep.subr.mxu0 0.0
    %4360 = vmatpush2.msra.mxu0 0.0
    %4361 = vmatprep.subr.mxu0 0.0
    %4362 = vmatpush2.msra.mxu0 0.0
    %4363 = vmatprep.subr.mxu0 0.0
    %4364 = vmatpush2.msra.mxu0 0.0
    %4365 = vmatprep.subr.mxu0 0.0
    %4366 = vmatpush2.msra.mxu0 0.0
    %4367 = vmatprep.subr.mxu0 0.0
    %4368 = vmatpush2.msra.mxu0 0.0
    %4369 = vmatprep.subr.mxu0 0.0
    %4370 = vmatpush2.msra.mxu0 0.0
    %4371 = vmatprep.subr.mxu0 0.0
    %4372 = vmatpush2.msra.mxu0 0.0
    %4373 = vmatprep.mubr.f32.mxu0 0.0
    %4374 = vmatmul.mubr.f32.gmra.mxu0 %v3550
    %v4375 = vpop.f32.mrf.mxu0
    %v4376 = vadd.f32 0.0, %v4375
    %v4377 = vpop.f32.mrf.mxu0
    %4378 = vdwg.mxu0
    %4379 = vmatprep.subr.mxu0 0.0
    %4380 = vmatpush1.msra.mxu0 %v3907
    %4381 = vmatprep.subr.mxu0 0.0
    %4382 = vmatpush1.msra.mxu0 %v3906
    %4383 = vmatprep.subr.mxu0 0.0
    %4384 = vmatpush1.msra.mxu0 %v3905
    %4385 = vmatprep.subr.mxu0 0.0
    %4386 = vmatpush1.msra.mxu0 %v3904
    %4387 = vmatprep.subr.mxu0 0.0
    %4388 = vmatpush1.msra.mxu0 %v3903
    %4389 = vmatprep.subr.mxu0 0.0
    %4390 = vmatpush1.msra.mxu0 %v3902
    %4391 = vmatprep.subr.mxu0 0.0
    %4392 = vmatpush1.msra.mxu0 %v3901
    %4393 = vmatprep.subr.mxu0 0.0
    %4394 = vmatpush1.msra.mxu0 %v3900
    %4395 = vmatprep.subr.mxu0 0.0
    %4396 = vmatpush1.msra.mxu0 %v3899
    %4397 = vmatprep.subr.mxu0 0.0
    %4398 = vmatpush1.msra.mxu0 %v3898
    %4399 = vmatprep.subr.mxu0 0.0
    %4400 = vmatpush1.msra.mxu0 %v3897
    %4401 = vmatprep.subr.mxu0 0.0
    %4402 = vmatpush1.msra.mxu0 %v3896
    %4403 = vmatprep.subr.mxu0 0.0
    %4404 = vmatpush1.msra.mxu0 %v3895
    %4405 = vmatprep.subr.mxu0 0.0
    %4406 = vmatpush1.msra.mxu0 %v3894
    %4407 = vmatprep.subr.mxu0 0.0
    %4408 = vmatpush1.msra.mxu0 %v3893
    %4409 = vmatprep.subr.mxu0 0.0
    %4410 = vmatpush1.msra.mxu0 %v3892
    %4411 = vmatprep.subr.mxu0 0.0
    %4412 = vmatpush2.msra.mxu0 0.0
    %4413 = vmatprep.subr.mxu0 0.0
    %4414 = vmatpush2.msra.mxu0 0.0
    %4415 = vmatprep.subr.mxu0 0.0
    %4416 = vmatpush2.msra.mxu0 0.0
    %4417 = vmatprep.subr.mxu0 0.0
    %4418 = vmatpush2.msra.mxu0 0.0
    %4419 = vmatprep.subr.mxu0 0.0
    %4420 = vmatpush2.msra.mxu0 0.0
    %4421 = vmatprep.subr.mxu0 0.0
    %4422 = vmatpush2.msra.mxu0 0.0
    %4423 = vmatprep.subr.mxu0 0.0
    %4424 = vmatpush2.msra.mxu0 0.0
    %4425 = vmatprep.subr.mxu0 0.0
    %4426 = vmatpush2.msra.mxu0 0.0
    %4427 = vmatprep.subr.mxu0 0.0
    %4428 = vmatpush2.msra.mxu0 0.0
    %4429 = vmatprep.subr.mxu0 0.0
    %4430 = vmatpush2.msra.mxu0 0.0
    %4431 = vmatprep.subr.mxu0 0.0
    %4432 = vmatpush2.msra.mxu0 0.0
    %4433 = vmatprep.subr.mxu0 0.0
    %4434 = vmatpush2.msra.mxu0 0.0
    %4435 = vmatprep.subr.mxu0 0.0
    %4436 = vmatpush2.msra.mxu0 0.0
    %4437 = vmatprep.subr.mxu0 0.0
    %4438 = vmatpush2.msra.mxu0 0.0
    %4439 = vmatprep.subr.mxu0 0.0
    %4440 = vmatpush2.msra.mxu0 0.0
    %4441 = vmatprep.subr.mxu0 0.0
    %4442 = vmatpush2.msra.mxu0 0.0
    %4443 = vmatprep.mubr.f32.mxu0 0.0
    %4444 = vmatmul.mubr.f32.gmra.mxu0 %v3550
    %v4445 = vpop.f32.mrf.mxu0
    %v4446 = vadd.f32 0.0, %v4445
    %v4447 = vpop.f32.mrf.mxu0
    %4448 = vdwg.mxu0
    %vm4449 = vcmp.ge.f32.partialorder %v4376, %v4446
    %v4450 = vsel %vm4449, %v4376, %v4446
    %v4451 = vsel %vm4449, %v3810, %v3859
    %v4452 = vcombine.high %v4451, %v4451
    %v4454 = vunpack.c.l.s4 1966171168
    %v4455 = vunpack.c.0.s8 %v4454
    %v4456 = vlaneseq
    %v4457 = vshrl.u32 %v4456, 7
    %v4458 = vsub.s32 %v4455, %v4457
    %v4459 = vrot.slane %v4451, %v4458
    %v4461 = vunpack.c.l.s4 1966171168
    %v4462 = vunpack.c.0.s8 %v4461
    %v4463 = vlaneseq
    %v4464 = vshrl.u32 %v4463, 7
    %v4465 = vsub.s32 %v4462, %v4464
    %v4466 = vrot.slane %v4452, %v4465
    %v4467 = vcombine.high %v4459, %v4459
    %v4468 = vcombine.high %v4466, %v4466
    %v4470 = vunpack.c.l.s4 1966171168
    %v4471 = vunpack.c.0.s8 %v4470
    %v4472 = vlaneseq
    %v4473 = vshrl.u32 %v4472, 7
    %v4474 = vsub.s32 %v4471, %v4473
    %v4475 = vrot.slane %v4459, %v4474
    %v4477 = vunpack.c.l.s4 1966171168
    %v4478 = vunpack.c.0.s8 %v4477
    %v4479 = vlaneseq
    %v4480 = vshrl.u32 %v4479, 7
    %v4481 = vsub.s32 %v4478, %v4480
    %v4482 = vrot.slane %v4466, %v4481
    %v4484 = vunpack.c.l.s4 1966171168
    %v4485 = vunpack.c.0.s8 %v4484
    %v4486 = vlaneseq
    %v4487 = vshrl.u32 %v4486, 7
    %v4488 = vsub.s32 %v4485, %v4487
    %v4489 = vrot.slane %v4467, %v4488
    %v4491 = vunpack.c.l.s4 1966171168
    %v4492 = vunpack.c.0.s8 %v4491
    %v4493 = vlaneseq
    %v4494 = vshrl.u32 %v4493, 7
    %v4495 = vsub.s32 %v4492, %v4494
    %v4496 = vrot.slane %v4468, %v4495
    %v4497 = vcombine.high %v4475, %v4475
    %v4498 = vcombine.high %v4482, %v4482
    %v4499 = vcombine.high %v4489, %v4489
    %v4500 = vcombine.high %v4496, %v4496
    %4501 = vst.msk [vmem:[#allocation24 + $0x2] sm:$0x1] %vm4100, %v4475
    %4502 = vst.msk [vmem:[#allocation24 + $0x6] sm:$0x1] %vm4100, %v4489
    %4503 = vst.msk [vmem:[#allocation24 + $0xa] sm:$0x1] %vm4100, %v4497
    %4504 = vst.msk [vmem:[#allocation24 + $0xe] sm:$0x1] %vm4100, %v4499
    %4505 = vst.msk [vmem:[#allocation24 + $0x12] sm:$0x1] %vm4100, %v4482
    %4506 = vst.msk [vmem:[#allocation24 + $0x16] sm:$0x1] %vm4100, %v4496
    %4507 = vst.msk [vmem:[#allocation24 + $0x1a] sm:$0x1] %vm4100, %v4498
    %4508 = vst.msk [vmem:[#allocation24 + $0x1e] sm:$0x1] %vm4100, %v4500
    %4509 = vmatprep.subr.mxu0 0.0
    %4510 = vmatpush1.msra.mxu0 %v3858
    %4511 = vmatprep.subr.mxu0 0.0
    %4512 = vmatpush1.msra.mxu0 %v3857
    %4513 = vmatprep.subr.mxu0 0.0
    %4514 = vmatpush1.msra.mxu0 %v3856
    %4515 = vmatprep.subr.mxu0 0.0
    %4516 = vmatpush1.msra.mxu0 %v3855
    %4517 = vmatprep.subr.mxu0 0.0
    %4518 = vmatpush1.msra.mxu0 %v3854
    %4519 = vmatprep.subr.mxu0 0.0
    %4520 = vmatpush1.msra.mxu0 %v3853
    %4521 = vmatprep.subr.mxu0 0.0
    %4522 = vmatpush1.msra.mxu0 %v3852
    %4523 = vmatprep.subr.mxu0 0.0
    %4524 = vmatpush1.msra.mxu0 %v3851
    %4525 = vmatprep.subr.mxu0 0.0
    %4526 = vmatpush1.msra.mxu0 %v3850
    %4527 = vmatprep.subr.mxu0 0.0
    %4528 = vmatpush1.msra.mxu0 %v3849
    %4529 = vmatprep.subr.mxu0 0.0
    %4530 = vmatpush1.msra.mxu0 %v3848
    %4531 = vmatprep.subr.mxu0 0.0
    %4532 = vmatpush1.msra.mxu0 %v3847
    %4533 = vmatprep.subr.mxu0 0.0
    %4534 = vmatpush1.msra.mxu0 %v3846
    %4535 = vmatprep.subr.mxu0 0.0
    %4536 = vmatpush1.msra.mxu0 %v3845
    %4537 = vmatprep.subr.mxu0 0.0
    %4538 = vmatpush1.msra.mxu0 %v3844
    %4539 = vmatprep.subr.mxu0 0.0
    %4540 = vmatpush1.msra.mxu0 %v3843
    %4541 = vmatprep.subr.mxu0 0.0
    %4542 = vmatpush2.msra.mxu0 0.0
    %4543 = vmatprep.subr.mxu0 0.0
    %4544 = vmatpush2.msra.mxu0 0.0
    %4545 = vmatprep.subr.mxu0 0.0
    %4546 = vmatpush2.msra.mxu0 0.0
    %4547 = vmatprep.subr.mxu0 0.0
    %4548 = vmatpush2.msra.mxu0 0.0
    %4549 = vmatprep.subr.mxu0 0.0
    %4550 = vmatpush2.msra.mxu0 0.0
    %4551 = vmatprep.subr.mxu0 0.0
    %4552 = vmatpush2.msra.mxu0 0.0
    %4553 = vmatprep.subr.mxu0 0.0
    %4554 = vmatpush2.msra.mxu0 0.0
    %4555 = vmatprep.subr.mxu0 0.0
    %4556 = vmatpush2.msra.mxu0 0.0
    %4557 = vmatprep.subr.mxu0 0.0
    %4558 = vmatpush2.msra.mxu0 0.0
    %4559 = vmatprep.subr.mxu0 0.0
    %4560 = vmatpush2.msra.mxu0 0.0
    %4561 = vmatprep.subr.mxu0 0.0
    %4562 = vmatpush2.msra.mxu0 0.0
    %4563 = vmatprep.subr.mxu0 0.0
    %4564 = vmatpush2.msra.mxu0 0.0
    %4565 = vmatprep.subr.mxu0 0.0
    %4566 = vmatpush2.msra.mxu0 0.0
    %4567 = vmatprep.subr.mxu0 0.0
    %4568 = vmatpush2.msra.mxu0 0.0
    %4569 = vmatprep.subr.mxu0 0.0
    %4570 = vmatpush2.msra.mxu0 0.0
    %4571 = vmatprep.subr.mxu0 0.0
    %4572 = vmatpush2.msra.mxu0 0.0
    %4573 = vmatprep.mubr.f32.mxu0 0.0
    %4574 = vmatmul.mubr.f32.gmra.mxu0 %v3790
    %v4575 = vpop.f32.mrf.mxu0
    %v4576 = vadd.f32 0.0, %v4575
    %v4577 = vpop.f32.mrf.mxu0
    %4578 = vdwg.mxu0
    %4579 = vmatprep.subr.mxu0 0.0
    %4580 = vmatpush1.msra.mxu0 %v3907
    %4581 = vmatprep.subr.mxu0 0.0
    %4582 = vmatpush1.msra.mxu0 %v3906
    %4583 = vmatprep.subr.mxu0 0.0
    %4584 = vmatpush1.msra.mxu0 %v3905
    %4585 = vmatprep.subr.mxu0 0.0
    %4586 = vmatpush1.msra.mxu0 %v3904
    %4587 = vmatprep.subr.mxu0 0.0
    %4588 = vmatpush1.msra.mxu0 %v3903
    %4589 = vmatprep.subr.mxu0 0.0
    %4590 = vmatpush1.msra.mxu0 %v3902
    %4591 = vmatprep.subr.mxu0 0.0
    %4592 = vmatpush1.msra.mxu0 %v3901
    %4593 = vmatprep.subr.mxu0 0.0
    %4594 = vmatpush1.msra.mxu0 %v3900
    %4595 = vmatprep.subr.mxu0 0.0
    %4596 = vmatpush1.msra.mxu0 %v3899
    %4597 = vmatprep.subr.mxu0 0.0
    %4598 = vmatpush1.msra.mxu0 %v3898
    %4599 = vmatprep.subr.mxu0 0.0
    %4600 = vmatpush1.msra.mxu0 %v3897
    %4601 = vmatprep.subr.mxu0 0.0
    %4602 = vmatpush1.msra.mxu0 %v3896
    %4603 = vmatprep.subr.mxu0 0.0
    %4604 = vmatpush1.msra.mxu0 %v3895
    %4605 = vmatprep.subr.mxu0 0.0
    %4606 = vmatpush1.msra.mxu0 %v3894
    %4607 = vmatprep.subr.mxu0 0.0
    %4608 = vmatpush1.msra.mxu0 %v3893
    %4609 = vmatprep.subr.mxu0 0.0
    %4610 = vmatpush1.msra.mxu0 %v3892
    %4611 = vmatprep.subr.mxu0 0.0
    %4612 = vmatpush2.msra.mxu0 0.0
    %4613 = vmatprep.subr.mxu0 0.0
    %4614 = vmatpush2.msra.mxu0 0.0
    %4615 = vmatprep.subr.mxu0 0.0
    %4616 = vmatpush2.msra.mxu0 0.0
    %4617 = vmatprep.subr.mxu0 0.0
    %4618 = vmatpush2.msra.mxu0 0.0
    %4619 = vmatprep.subr.mxu0 0.0
    %4620 = vmatpush2.msra.mxu0 0.0
    %4621 = vmatprep.subr.mxu0 0.0
    %4622 = vmatpush2.msra.mxu0 0.0
    %4623 = vmatprep.subr.mxu0 0.0
    %4624 = vmatpush2.msra.mxu0 0.0
    %4625 = vmatprep.subr.mxu0 0.0
    %4626 = vmatpush2.msra.mxu0 0.0
    %4627 = vmatprep.subr.mxu0 0.0
    %4628 = vmatpush2.msra.mxu0 0.0
    %4629 = vmatprep.subr.mxu0 0.0
    %4630 = vmatpush2.msra.mxu0 0.0
    %4631 = vmatprep.subr.mxu0 0.0
    %4632 = vmatpush2.msra.mxu0 0.0
    %4633 = vmatprep.subr.mxu0 0.0
    %4634 = vmatpush2.msra.mxu0 0.0
    %4635 = vmatprep.subr.mxu0 0.0
    %4636 = vmatpush2.msra.mxu0 0.0
    %4637 = vmatprep.subr.mxu0 0.0
    %4638 = vmatpush2.msra.mxu0 0.0
    %4639 = vmatprep.subr.mxu0 0.0
    %4640 = vmatpush2.msra.mxu0 0.0
    %4641 = vmatprep.subr.mxu0 0.0
    %4642 = vmatpush2.msra.mxu0 0.0
    %4643 = vmatprep.mubr.f32.mxu0 0.0
    %4644 = vmatmul.mubr.f32.gmra.mxu0 %v3790
    %v4645 = vpop.f32.mrf.mxu0
    %v4646 = vadd.f32 0.0, %v4645
    %v4647 = vpop.f32.mrf.mxu0
    %4648 = vdwg.mxu0
    %vm4649 = vcmp.ge.f32.partialorder %v4576, %v4646
    %v4650 = vsel %vm4649, %v4576, %v4646
    %v4651 = vsel %vm4649, %v3810, %v3859
    %v4652 = vcombine.high %v4651, %v4651
    %v4654 = vunpack.c.l.s4 1966171168
    %v4655 = vunpack.c.0.s8 %v4654
    %v4656 = vlaneseq
    %v4657 = vshrl.u32 %v4656, 7
    %v4658 = vsub.s32 %v4655, %v4657
    %v4659 = vrot.slane %v4651, %v4658
    %v4661 = vunpack.c.l.s4 1966171168
    %v4662 = vunpack.c.0.s8 %v4661
    %v4663 = vlaneseq
    %v4664 = vshrl.u32 %v4663, 7
    %v4665 = vsub.s32 %v4662, %v4664
    %v4666 = vrot.slane %v4652, %v4665
    %v4667 = vcombine.high %v4659, %v4659
    %v4668 = vcombine.high %v4666, %v4666
    %v4670 = vunpack.c.l.s4 1966171168
    %v4671 = vunpack.c.0.s8 %v4670
    %v4672 = vlaneseq
    %v4673 = vshrl.u32 %v4672, 7
    %v4674 = vsub.s32 %v4671, %v4673
    %v4675 = vrot.slane %v4659, %v4674
    %v4677 = vunpack.c.l.s4 1966171168
    %v4678 = vunpack.c.0.s8 %v4677
    %v4679 = vlaneseq
    %v4680 = vshrl.u32 %v4679, 7
    %v4681 = vsub.s32 %v4678, %v4680
    %v4682 = vrot.slane %v4666, %v4681
    %v4684 = vunpack.c.l.s4 1966171168
    %v4685 = vunpack.c.0.s8 %v4684
    %v4686 = vlaneseq
    %v4687 = vshrl.u32 %v4686, 7
    %v4688 = vsub.s32 %v4685, %v4687
    %v4689 = vrot.slane %v4667, %v4688
    %v4691 = vunpack.c.l.s4 1966171168
    %v4692 = vunpack.c.0.s8 %v4691
    %v4693 = vlaneseq
    %v4694 = vshrl.u32 %v4693, 7
    %v4695 = vsub.s32 %v4692, %v4694
    %v4696 = vrot.slane %v4668, %v4695
    %v4697 = vcombine.high %v4675, %v4675
    %v4698 = vcombine.high %v4682, %v4682
    %v4699 = vcombine.high %v4689, %v4689
    %v4700 = vcombine.high %v4696, %v4696
    %4701 = vst.msk [vmem:[#allocation24 + $0x3] sm:$0x1] %vm4100, %v4675
    %4702 = vst.msk [vmem:[#allocation24 + $0x7] sm:$0x1] %vm4100, %v4689
    %4703 = vst.msk [vmem:[#allocation24 + $0xb] sm:$0x1] %vm4100, %v4697
    %4704 = vst.msk [vmem:[#allocation24 + $0xf] sm:$0x1] %vm4100, %v4699
    %4705 = vst.msk [vmem:[#allocation24 + $0x13] sm:$0x1] %vm4100, %v4682
    %4706 = vst.msk [vmem:[#allocation24 + $0x17] sm:$0x1] %vm4100, %v4696
    %4707 = vst.msk [vmem:[#allocation24 + $0x1b] sm:$0x1] %vm4100, %v4698
    %4708 = vst.msk [vmem:[#allocation24 + $0x1f] sm:$0x1] %vm4100, %v4700
    %vm4709 = vcmask 523264
    %v4710 = vsel %vm4709, %v4049, 0.0
    %4711 = vadd.xlane.f32.xlu0 %v4710
    %v4712 = vpop.xlane.xlu0 %4711
    %v4713 = vrcp.pop 64.0
    %v4714 = vmul.f32 %v4712, %v4713
    %v4715 = vrot.slane %v4714, 4
    %v4716 = vadd.f32 %v4714, %v4715
    %v4717 = vrot.slane %v4716, 2
    %v4718 = vadd.f32 %v4716, %v4717
    %v4719 = vrot.slane %v4718, 1
    %v4720 = vadd.f32 %v4718, %v4719
    %v4721 = vmul.f32 %v4720, %v912
    %v4722 = vsub.f32 %v4049, %v4721
    %v4723 = vmul.f32 %v4722, %v4722
    %v4724 = vsel %vm4709, %v4723, 0.0
    %4725 = vadd.xlane.f32.xlu0 %v4724
    %v4726 = vpop.xlane.xlu0 %4725
    %v4727 = vmul.f32 %v4726, %v4713
    %v4728 = vrot.slane %v4727, 4
    %v4729 = vadd.f32 %v4727, %v4728
    %v4730 = vrot.slane %v4729, 2
    %v4731 = vadd.f32 %v4729, %v4730
    %v4732 = vrot.slane %v4731, 1
    %v4733 = vadd.f32 %v4731, %v4732
    %v4734 = vmul.f32 %v4733, %v912
    %v4735 = vadd.f32 %v4734, 1e-05
    %v4736 = vrsqrt.pop %v4735
    %v4737 = vmul.f32 %v4722, %v4736
    %s4738 = sld [smem:[#allocation20]]
    %v4739 = vstv %s4738
    %v4740 = vmul.f32 %v4737, %v4739
    %s4741 = sld [smem:[#allocation22]]
    %v4742 = vstv %s4741
    %v4743 = vadd.f32 %v4740, %v4742
    %v4744 = vtanh.pop %v4743
    %v4745 = vsel %vm4709, %v4250, 0.0
    %4746 = vadd.xlane.f32.xlu0 %v4745
    %v4747 = vpop.xlane.xlu0 %4746
    %v4748 = vmul.f32 %v4747, %v4713
    %v4749 = vrot.slane %v4748, 4
    %v4750 = vadd.f32 %v4748, %v4749
    %v4751 = vrot.slane %v4750, 2
    %v4752 = vadd.f32 %v4750, %v4751
    %v4753 = vrot.slane %v4752, 1
    %v4754 = vadd.f32 %v4752, %v4753
    %v4755 = vmul.f32 %v4754, %v912
    %v4756 = vsub.f32 %v4250, %v4755
    %v4757 = vmul.f32 %v4756, %v4756
    %v4758 = vsel %vm4709, %v4757, 0.0
    %4759 = vadd.xlane.f32.xlu0 %v4758
    %v4760 = vpop.xlane.xlu0 %4759
    %v4761 = vmul.f32 %v4760, %v4713
    %v4762 = vrot.slane %v4761, 4
    %v4763 = vadd.f32 %v4761, %v4762
    %v4764 = vrot.slane %v4763, 2
    %v4765 = vadd.f32 %v4763, %v4764
    %v4766 = vrot.slane %v4765, 1
    %v4767 = vadd.f32 %v4765, %v4766
    %v4768 = vmul.f32 %v4767, %v912
    %v4769 = vadd.f32 %v4768, 1e-05
    %v4770 = vrsqrt.pop %v4769
    %v4771 = vmul.f32 %v4756, %v4770
    %s4772 = sld [smem:[#allocation20 + $0x1]]
    %v4773 = vstv %s4772
    %v4774 = vmul.f32 %v4771, %v4773
    %s4775 = sld [smem:[#allocation22 + $0x1]]
    %v4776 = vstv %s4775
    %v4777 = vadd.f32 %v4774, %v4776
    %v4778 = vtanh.pop %v4777
    %v4779 = vsel %vm4709, %v4450, 0.0
    %4780 = vadd.xlane.f32.xlu0 %v4779
    %v4781 = vpop.xlane.xlu0 %4780
    %v4782 = vmul.f32 %v4781, %v4713
    %v4783 = vrot.slane %v4782, 4
    %v4784 = vadd.f32 %v4782, %v4783
    %v4785 = vrot.slane %v4784, 2
    %v4786 = vadd.f32 %v4784, %v4785
    %v4787 = vrot.slane %v4786, 1
    %v4788 = vadd.f32 %v4786, %v4787
    %v4789 = vmul.f32 %v4788, %v912
    %v4790 = vsub.f32 %v4450, %v4789
    %v4791 = vmul.f32 %v4790, %v4790
    %v4792 = vsel %vm4709, %v4791, 0.0
    %4793 = vadd.xlane.f32.xlu0 %v4792
    %v4794 = vpop.xlane.xlu0 %4793
    %v4795 = vmul.f32 %v4794, %v4713
    %v4796 = vrot.slane %v4795, 4
    %v4797 = vadd.f32 %v4795, %v4796
    %v4798 = vrot.slane %v4797, 2
    %v4799 = vadd.f32 %v4797, %v4798
    %v4800 = vrot.slane %v4799, 1
    %v4801 = vadd.f32 %v4799, %v4800
    %v4802 = vmul.f32 %v4801, %v912
    %v4803 = vadd.f32 %v4802, 1e-05
    %v4804 = vrsqrt.pop %v4803
    %v4805 = vmul.f32 %v4790, %v4804
    %s4806 = sld [smem:[#allocation20 + $0x2]]
    %v4807 = vstv %s4806
    %v4808 = vmul.f32 %v4805, %v4807
    %s4809 = sld [smem:[#allocation22 + $0x2]]
    %v4810 = vstv %s4809
    %v4811 = vadd.f32 %v4808, %v4810
    %v4812 = vtanh.pop %v4811
    %v4813 = vsel %vm4709, %v4650, 0.0
    %4814 = vadd.xlane.f32.xlu0 %v4813
    %v4815 = vpop.xlane.xlu0 %4814
    %v4816 = vmul.f32 %v4815, %v4713
    %v4817 = vrot.slane %v4816, 4
    %v4818 = vadd.f32 %v4816, %v4817
    %v4819 = vrot.slane %v4818, 2
    %v4820 = vadd.f32 %v4818, %v4819
    %v4821 = vrot.slane %v4820, 1
    %v4822 = vadd.f32 %v4820, %v4821
    %v4823 = vmul.f32 %v4822, %v912
    %v4824 = vsub.f32 %v4650, %v4823
    %v4825 = vmul.f32 %v4824, %v4824
    %v4826 = vsel %vm4709, %v4825, 0.0
    %4827 = vadd.xlane.f32.xlu0 %v4826
    %v4828 = vpop.xlane.xlu0 %4827
    %v4829 = vmul.f32 %v4828, %v4713
    %v4830 = vrot.slane %v4829, 4
    %v4831 = vadd.f32 %v4829, %v4830
    %v4832 = vrot.slane %v4831, 2
    %v4833 = vadd.f32 %v4831, %v4832
    %v4834 = vrot.slane %v4833, 1
    %v4835 = vadd.f32 %v4833, %v4834
    %v4836 = vmul.f32 %v4835, %v912
    %v4837 = vadd.f32 %v4836, 1e-05
    %v4838 = vrsqrt.pop %v4837
    %v4839 = vmul.f32 %v4824, %v4838
    %s4840 = sld [smem:[#allocation20 + $0x3]]
    %v4841 = vstv %s4840
    %v4842 = vmul.f32 %v4839, %v4841
    %s4843 = sld [smem:[#allocation22 + $0x3]]
    %v4844 = vstv %s4843
    %v4845 = vadd.f32 %v4842, %v4844
    %v4846 = vtanh.pop %v4845
    %v4847 = vld [vmem:[%s14] sm:$0xff]
    %v4848 = vld [vmem:[%s14 + $0x8] sm:$0xff]
    %v4849 = vld [vmem:[%s14 + $0x10] sm:$0xff]
    %v4850 = vld [vmem:[%s14 + $0x18] sm:$0xff]
    %v4851 = vld [vmem:[%s14 + $0x20] sm:$0xff]
    %v4852 = vld [vmem:[%s14 + $0x28] sm:$0xff]
    %v4853 = vld [vmem:[%s14 + $0x30] sm:$0xff]
    %v4854 = vld [vmem:[%s14 + $0x38] sm:$0xff]
    %s4855 = scalar_lea.vmem %s14, 64
    %v4856 = vld [vmem:[%s4855] sm:$0xff]
    %v4857 = vld [vmem:[%s4855 + $0x8] sm:$0xff]
    %v4858 = vld [vmem:[%s4855 + $0x10] sm:$0xff]
    %v4859 = vld [vmem:[%s4855 + $0x18] sm:$0xff]
    %v4860 = vld [vmem:[%s4855 + $0x20] sm:$0xff]
    %v4861 = vld [vmem:[%s4855 + $0x28] sm:$0xff]
    %v4862 = vld [vmem:[%s4855 + $0x30] sm:$0xff]
    %v4863 = vld [vmem:[%s4855 + $0x38] sm:$0xff]
    %v4865 = vsel %vm4709, %v4778, 0
    %4867 = vmatprep.subr.mxu0 0.0
    %4868 = vmatpush1.msra.mxu0 0.0
    %4869 = vmatprep.subr.mxu0 0.0
    %4870 = vmatpush1.msra.mxu0 0.0
    %4871 = vmatprep.subr.mxu0 0.0
    %4872 = vmatpush1.msra.mxu0 0.0
    %4873 = vmatprep.subr.mxu0 0.0
    %4874 = vmatpush1.msra.mxu0 0.0
    %4875 = vmatprep.subr.mxu0 0.0
    %4876 = vmatpush1.msra.mxu0 0.0
    %4877 = vmatprep.subr.mxu0 0.0
    %4878 = vmatpush1.msra.mxu0 0.0
    %4879 = vmatprep.subr.mxu0 0.0
    %4880 = vmatpush1.msra.mxu0 0.0
    %4881 = vmatprep.subr.mxu0 0.0
    %4882 = vmatpush1.msra.mxu0 0.0
    %4883 = vmatprep.subr.mxu0 0.0
    %4884 = vmatpush1.msra.mxu0 %v4863
    %4885 = vmatprep.subr.mxu0 0.0
    %4886 = vmatpush1.msra.mxu0 %v4862
    %4887 = vmatprep.subr.mxu0 0.0
    %4888 = vmatpush1.msra.mxu0 %v4861
    %4889 = vmatprep.subr.mxu0 0.0
    %4890 = vmatpush1.msra.mxu0 %v4860
    %4891 = vmatprep.subr.mxu0 0.0
    %4892 = vmatpush1.msra.mxu0 %v4859
    %4893 = vmatprep.subr.mxu0 0.0
    %4894 = vmatpush1.msra.mxu0 %v4858
    %4895 = vmatprep.subr.mxu0 0.0
    %4896 = vmatpush1.msra.mxu0 %v4857
    %4897 = vmatprep.subr.mxu0 0.0
    %4898 = vmatpush1.msra.mxu0 %v4856
    %4899 = vmatprep.subr.mxu0 0.0
    %4900 = vmatpush2.msra.mxu0 0.0
    %4901 = vmatprep.subr.mxu0 0.0
    %4902 = vmatpush2.msra.mxu0 0.0
    %4903 = vmatprep.subr.mxu0 0.0
    %4904 = vmatpush2.msra.mxu0 0.0
    %4905 = vmatprep.subr.mxu0 0.0
    %4906 = vmatpush2.msra.mxu0 0.0
    %4907 = vmatprep.subr.mxu0 0.0
    %4908 = vmatpush2.msra.mxu0 0.0
    %4909 = vmatprep.subr.mxu0 0.0
    %4910 = vmatpush2.msra.mxu0 0.0
    %4911 = vmatprep.subr.mxu0 0.0
    %4912 = vmatpush2.msra.mxu0 0.0
    %4913 = vmatprep.subr.mxu0 0.0
    %4914 = vmatpush2.msra.mxu0 0.0
    %4915 = vmatprep.subr.mxu0 0.0
    %4916 = vmatpush2.msra.mxu0 0.0
    %4917 = vmatprep.subr.mxu0 0.0
    %4918 = vmatpush2.msra.mxu0 0.0
    %4919 = vmatprep.subr.mxu0 0.0
    %4920 = vmatpush2.msra.mxu0 0.0
    %4921 = vmatprep.subr.mxu0 0.0
    %4922 = vmatpush2.msra.mxu0 0.0
    %4923 = vmatprep.subr.mxu0 0.0
    %4924 = vmatpush2.msra.mxu0 0.0
    %4925 = vmatprep.subr.mxu0 0.0
    %4926 = vmatpush2.msra.mxu0 0.0
    %4927 = vmatprep.subr.mxu0 0.0
    %4928 = vmatpush2.msra.mxu0 0.0
    %4929 = vmatprep.subr.mxu0 0.0
    %4930 = vmatpush2.msra.mxu0 0.0
    %4931 = vmatprep.mubr.f32.mxu0 0.0
    %4932 = vmatmul.mubr.f32.gmra.mxu0 %v4865
    %v4933 = vpop.f32.mrf.mxu0
    %v4934 = vadd.f32 0.0, %v4933
    %v4935 = vpop.f32.mrf.mxu0
    %4936 = vdwg.mxu0
    %v4938 = vsel %vm4709, %v4744, 0
    %4940 = vmatprep.subr.mxu0 0.0
    %4941 = vmatpush1.msra.mxu0 0.0
    %4942 = vmatprep.subr.mxu0 0.0
    %4943 = vmatpush1.msra.mxu0 0.0
    %4944 = vmatprep.subr.mxu0 0.0
    %4945 = vmatpush1.msra.mxu0 0.0
    %4946 = vmatprep.subr.mxu0 0.0
    %4947 = vmatpush1.msra.mxu0 0.0
    %4948 = vmatprep.subr.mxu0 0.0
    %4949 = vmatpush1.msra.mxu0 0.0
    %4950 = vmatprep.subr.mxu0 0.0
    %4951 = vmatpush1.msra.mxu0 0.0
    %4952 = vmatprep.subr.mxu0 0.0
    %4953 = vmatpush1.msra.mxu0 0.0
    %4954 = vmatprep.subr.mxu0 0.0
    %4955 = vmatpush1.msra.mxu0 0.0
    %4956 = vmatprep.subr.mxu0 0.0
    %4957 = vmatpush1.msra.mxu0 %v4854
    %4958 = vmatprep.subr.mxu0 0.0
    %4959 = vmatpush1.msra.mxu0 %v4853
    %4960 = vmatprep.subr.mxu0 0.0
    %4961 = vmatpush1.msra.mxu0 %v4852
    %4962 = vmatprep.subr.mxu0 0.0
    %4963 = vmatpush1.msra.mxu0 %v4851
    %4964 = vmatprep.subr.mxu0 0.0
    %4965 = vmatpush1.msra.mxu0 %v4850
    %4966 = vmatprep.subr.mxu0 0.0
    %4967 = vmatpush1.msra.mxu0 %v4849
    %4968 = vmatprep.subr.mxu0 0.0
    %4969 = vmatpush1.msra.mxu0 %v4848
    %4970 = vmatprep.subr.mxu0 0.0
    %4971 = vmatpush1.msra.mxu0 %v4847
    %4972 = vmatprep.subr.mxu0 0.0
    %4973 = vmatpush2.msra.mxu0 0.0
    %4974 = vmatprep.subr.mxu0 0.0
    %4975 = vmatpush2.msra.mxu0 0.0
    %4976 = vmatprep.subr.mxu0 0.0
    %4977 = vmatpush2.msra.mxu0 0.0
    %4978 = vmatprep.subr.mxu0 0.0
    %4979 = vmatpush2.msra.mxu0 0.0
    %4980 = vmatprep.subr.mxu0 0.0
    %4981 = vmatpush2.msra.mxu0 0.0
    %4982 = vmatprep.subr.mxu0 0.0
    %4983 = vmatpush2.msra.mxu0 0.0
    %4984 = vmatprep.subr.mxu0 0.0
    %4985 = vmatpush2.msra.mxu0 0.0
    %4986 = vmatprep.subr.mxu0 0.0
    %4987 = vmatpush2.msra.mxu0 0.0
    %4988 = vmatprep.subr.mxu0 0.0
    %4989 = vmatpush2.msra.mxu0 0.0
    %4990 = vmatprep.subr.mxu0 0.0
    %4991 = vmatpush2.msra.mxu0 0.0
    %4992 = vmatprep.subr.mxu0 0.0
    %4993 = vmatpush2.msra.mxu0 0.0
    %4994 = vmatprep.subr.mxu0 0.0
    %4995 = vmatpush2.msra.mxu0 0.0
    %4996 = vmatprep.subr.mxu0 0.0
    %4997 = vmatpush2.msra.mxu0 0.0
    %4998 = vmatprep.subr.mxu0 0.0
    %4999 = vmatpush2.msra.mxu0 0.0
    %5000 = vmatprep.subr.mxu0 0.0
    %5001 = vmatpush2.msra.mxu0 0.0
    %5002 = vmatprep.subr.mxu0 0.0
    %5003 = vmatpush2.msra.mxu0 0.0
    %5004 = vmatprep.mubr.f32.mxu0 0.0
    %5005 = vmatmul.mubr.f32.gmra.mxu0 %v4938
    %v5006 = vpop.f32.mrf.mxu0
    %v5007 = vadd.f32 %v4934, %v5006
    %v5008 = vpop.f32.mrf.mxu0
    %5009 = vdwg.mxu0
    %s5010 = scalar_lea.vmem %s14, 128
    %v5011 = vld [vmem:[%s5010] sm:$0xff]
    %v5012 = vld [vmem:[%s5010 + $0x8] sm:$0xff]
    %v5013 = vld [vmem:[%s5010 + $0x10] sm:$0xff]
    %v5014 = vld [vmem:[%s5010 + $0x18] sm:$0xff]
    %v5015 = vld [vmem:[%s5010 + $0x20] sm:$0xff]
    %v5016 = vld [vmem:[%s5010 + $0x28] sm:$0xff]
    %v5017 = vld [vmem:[%s5010 + $0x30] sm:$0xff]
    %v5018 = vld [vmem:[%s5010 + $0x38] sm:$0xff]
    %v5020 = vsel %vm4709, %v4812, 0
    %5022 = vmatprep.subr.mxu0 0.0
    %5023 = vmatpush1.msra.mxu0 0.0
    %5024 = vmatprep.subr.mxu0 0.0
    %5025 = vmatpush1.msra.mxu0 0.0
    %5026 = vmatprep.subr.mxu0 0.0
    %5027 = vmatpush1.msra.mxu0 0.0
    %5028 = vmatprep.subr.mxu0 0.0
    %5029 = vmatpush1.msra.mxu0 0.0
    %5030 = vmatprep.subr.mxu0 0.0
    %5031 = vmatpush1.msra.mxu0 0.0
    %5032 = vmatprep.subr.mxu0 0.0
    %5033 = vmatpush1.msra.mxu0 0.0
    %5034 = vmatprep.subr.mxu0 0.0
    %5035 = vmatpush1.msra.mxu0 0.0
    %5036 = vmatprep.subr.mxu0 0.0
    %5037 = vmatpush1.msra.mxu0 0.0
    %5038 = vmatprep.subr.mxu0 0.0
    %5039 = vmatpush1.msra.mxu0 %v5018
    %5040 = vmatprep.subr.mxu0 0.0
    %5041 = vmatpush1.msra.mxu0 %v5017
    %5042 = vmatprep.subr.mxu0 0.0
    %5043 = vmatpush1.msra.mxu0 %v5016
    %5044 = vmatprep.subr.mxu0 0.0
    %5045 = vmatpush1.msra.mxu0 %v5015
    %5046 = vmatprep.subr.mxu0 0.0
    %5047 = vmatpush1.msra.mxu0 %v5014
    %5048 = vmatprep.subr.mxu0 0.0
    %5049 = vmatpush1.msra.mxu0 %v5013
    %5050 = vmatprep.subr.mxu0 0.0
    %5051 = vmatpush1.msra.mxu0 %v5012
    %5052 = vmatprep.subr.mxu0 0.0
    %5053 = vmatpush1.msra.mxu0 %v5011
    %5054 = vmatprep.subr.mxu0 0.0
    %5055 = vmatpush2.msra.mxu0 0.0
    %5056 = vmatprep.subr.mxu0 0.0
    %5057 = vmatpush2.msra.mxu0 0.0
    %5058 = vmatprep.subr.mxu0 0.0
    %5059 = vmatpush2.msra.mxu0 0.0
    %5060 = vmatprep.subr.mxu0 0.0
    %5061 = vmatpush2.msra.mxu0 0.0
    %5062 = vmatprep.subr.mxu0 0.0
    %5063 = vmatpush2.msra.mxu0 0.0
    %5064 = vmatprep.subr.mxu0 0.0
    %5065 = vmatpush2.msra.mxu0 0.0
    %5066 = vmatprep.subr.mxu0 0.0
    %5067 = vmatpush2.msra.mxu0 0.0
    %5068 = vmatprep.subr.mxu0 0.0
    %5069 = vmatpush2.msra.mxu0 0.0
    %5070 = vmatprep.subr.mxu0 0.0
    %5071 = vmatpush2.msra.mxu0 0.0
    %5072 = vmatprep.subr.mxu0 0.0
    %5073 = vmatpush2.msra.mxu0 0.0
    %5074 = vmatprep.subr.mxu0 0.0
    %5075 = vmatpush2.msra.mxu0 0.0
    %5076 = vmatprep.subr.mxu0 0.0
    %5077 = vmatpush2.msra.mxu0 0.0
    %5078 = vmatprep.subr.mxu0 0.0
    %5079 = vmatpush2.msra.mxu0 0.0
    %5080 = vmatprep.subr.mxu0 0.0
    %5081 = vmatpush2.msra.mxu0 0.0
    %5082 = vmatprep.subr.mxu0 0.0
    %5083 = vmatpush2.msra.mxu0 0.0
    %5084 = vmatprep.subr.mxu0 0.0
    %5085 = vmatpush2.msra.mxu0 0.0
    %5086 = vmatprep.mubr.f32.mxu0 0.0
    %5087 = vmatmul.mubr.f32.gmra.mxu0 %v5020
    %v5088 = vpop.f32.mrf.mxu0
    %v5089 = vadd.f32 0.0, %v5088
    %v5090 = vpop.f32.mrf.mxu0
    %5091 = vdwg.mxu0
    %v5092 = vadd.f32 %v5007, %v5089
    %s5093 = scalar_lea.vmem %s14, 192
    %v5094 = vld [vmem:[%s5093] sm:$0xff]
    %v5095 = vld [vmem:[%s5093 + $0x8] sm:$0xff]
    %v5096 = vld [vmem:[%s5093 + $0x10] sm:$0xff]
    %v5097 = vld [vmem:[%s5093 + $0x18] sm:$0xff]
    %v5098 = vld [vmem:[%s5093 + $0x20] sm:$0xff]
    %v5099 = vld [vmem:[%s5093 + $0x28] sm:$0xff]
    %v5100 = vld [vmem:[%s5093 + $0x30] sm:$0xff]
    %v5101 = vld [vmem:[%s5093 + $0x38] sm:$0xff]
    %v5103 = vsel %vm4709, %v4846, 0
    %5105 = vmatprep.subr.mxu0 0.0
    %5106 = vmatpush1.msra.mxu0 0.0
    %5107 = vmatprep.subr.mxu0 0.0
    %5108 = vmatpush1.msra.mxu0 0.0
    %5109 = vmatprep.subr.mxu0 0.0
    %5110 = vmatpush1.msra.mxu0 0.0
    %5111 = vmatprep.subr.mxu0 0.0
    %5112 = vmatpush1.msra.mxu0 0.0
    %5113 = vmatprep.subr.mxu0 0.0
    %5114 = vmatpush1.msra.mxu0 0.0
    %5115 = vmatprep.subr.mxu0 0.0
    %5116 = vmatpush1.msra.mxu0 0.0
    %5117 = vmatprep.subr.mxu0 0.0
    %5118 = vmatpush1.msra.mxu0 0.0
    %5119 = vmatprep.subr.mxu0 0.0
    %5120 = vmatpush1.msra.mxu0 0.0
    %5121 = vmatprep.subr.mxu0 0.0
    %5122 = vmatpush1.msra.mxu0 %v5101
    %5123 = vmatprep.subr.mxu0 0.0
    %5124 = vmatpush1.msra.mxu0 %v5100
    %5125 = vmatprep.subr.mxu0 0.0
    %5126 = vmatpush1.msra.mxu0 %v5099
    %5127 = vmatprep.subr.mxu0 0.0
    %5128 = vmatpush1.msra.mxu0 %v5098
    %5129 = vmatprep.subr.mxu0 0.0
    %5130 = vmatpush1.msra.mxu0 %v5097
    %5131 = vmatprep.subr.mxu0 0.0
    %5132 = vmatpush1.msra.mxu0 %v5096
    %5133 = vmatprep.subr.mxu0 0.0
    %5134 = vmatpush1.msra.mxu0 %v5095
    %5135 = vmatprep.subr.mxu0 0.0
    %5136 = vmatpush1.msra.mxu0 %v5094
    %5137 = vmatprep.subr.mxu0 0.0
    %5138 = vmatpush2.msra.mxu0 0.0
    %5139 = vmatprep.subr.mxu0 0.0
    %5140 = vmatpush2.msra.mxu0 0.0
    %5141 = vmatprep.subr.mxu0 0.0
    %5142 = vmatpush2.msra.mxu0 0.0
    %5143 = vmatprep.subr.mxu0 0.0
    %5144 = vmatpush2.msra.mxu0 0.0
    %5145 = vmatprep.subr.mxu0 0.0
    %5146 = vmatpush2.msra.mxu0 0.0
    %5147 = vmatprep.subr.mxu0 0.0
    %5148 = vmatpush2.msra.mxu0 0.0
    %5149 = vmatprep.subr.mxu0 0.0
    %5150 = vmatpush2.msra.mxu0 0.0
    %5151 = vmatprep.subr.mxu0 0.0
    %5152 = vmatpush2.msra.mxu0 0.0
    %5153 = vmatprep.subr.mxu0 0.0
    %5154 = vmatpush2.msra.mxu0 0.0
    %5155 = vmatprep.subr.mxu0 0.0
    %5156 = vmatpush2.msra.mxu0 0.0
    %5157 = vmatprep.subr.mxu0 0.0
    %5158 = vmatpush2.msra.mxu0 0.0
    %5159 = vmatprep.subr.mxu0 0.0
    %5160 = vmatpush2.msra.mxu0 0.0
    %5161 = vmatprep.subr.mxu0 0.0
    %5162 = vmatpush2.msra.mxu0 0.0
    %5163 = vmatprep.subr.mxu0 0.0
    %5164 = vmatpush2.msra.mxu0 0.0
    %5165 = vmatprep.subr.mxu0 0.0
    %5166 = vmatpush2.msra.mxu0 0.0
    %5167 = vmatprep.subr.mxu0 0.0
    %5168 = vmatpush2.msra.mxu0 0.0
    %5169 = vmatprep.mubr.f32.mxu0 0.0
    %5170 = vmatmul.mubr.f32.gmra.mxu0 %v5103
    %v5171 = vpop.f32.mrf.mxu0
    %v5172 = vadd.f32 0.0, %v5171
    %v5173 = vpop.f32.mrf.mxu0
    %5174 = vdwg.mxu0
    %v5175 = vadd.f32 %v5092, %v5172
    %v5176 = vld [vmem:[%s15] sm:$0x1]
    %v5178 = vlaneseq
    %v5179 = vshrl.u32 %v5178, 7
    %v5180 = vsub.s32 0, %v5179
    %v5181 = vrot.slane %v5176, %v5180
    %v5183 = vadd.f32 %v5175, %v5181
    %v5184 = vmax.f32 %v5183, 0.0
    %v5185 = vld [vmem:[%s16] sm:$0xff]
    %v5186 = vld [vmem:[%s16 + $0x8] sm:$0xff]
    %v5187 = vld [vmem:[%s16 + $0x10] sm:$0xff]
    %v5188 = vld [vmem:[%s16 + $0x18] sm:$0xff]
    %v5189 = vld [vmem:[%s17] sm:$0x1]
    %v5191 = vlaneseq
    %v5192 = vshrl.u32 %v5191, 7
    %v5193 = vsub.s32 0, %v5192
    %v5194 = vrot.slane %v5189, %v5193
    %vm5196 = vcmask 261120
    %v5198 = vsel %vm5196, %v5184, 0
    %5200 = vmatprep.subr.mxu0 0.0
    %5201 = vmatpush1.msra.mxu0 0.0
    %5202 = vmatprep.subr.mxu0 0.0
    %5203 = vmatpush1.msra.mxu0 0.0
    %5204 = vmatprep.subr.mxu0 0.0
    %5205 = vmatpush1.msra.mxu0 0.0
    %5206 = vmatprep.subr.mxu0 0.0
    %5207 = vmatpush1.msra.mxu0 0.0
    %5208 = vmatprep.subr.mxu0 0.0
    %5209 = vmatpush1.msra.mxu0 0.0
    %5210 = vmatprep.subr.mxu0 0.0
    %5211 = vmatpush1.msra.mxu0 0.0
    %5212 = vmatprep.subr.mxu0 0.0
    %5213 = vmatpush1.msra.mxu0 0.0
    %5214 = vmatprep.subr.mxu0 0.0
    %5215 = vmatpush1.msra.mxu0 0.0
    %5216 = vmatprep.subr.mxu0 0.0
    %5217 = vmatpush1.msra.mxu0 0.0
    %5218 = vmatprep.subr.mxu0 0.0
    %5219 = vmatpush1.msra.mxu0 0.0
    %5220 = vmatprep.subr.mxu0 0.0
    %5221 = vmatpush1.msra.mxu0 0.0
    %5222 = vmatprep.subr.mxu0 0.0
    %5223 = vmatpush1.msra.mxu0 0.0
    %5224 = vmatprep.subr.mxu0 0.0
    %5225 = vmatpush1.msra.mxu0 %v5188
    %5226 = vmatprep.subr.mxu0 0.0
    %5227 = vmatpush1.msra.mxu0 %v5187
    %5228 = vmatprep.subr.mxu0 0.0
    %5229 = vmatpush1.msra.mxu0 %v5186
    %5230 = vmatprep.subr.mxu0 0.0
    %5231 = vmatpush1.msra.mxu0 %v5185
    %5232 = vmatprep.subr.mxu0 0.0
    %5233 = vmatpush2.msra.mxu0 0.0
    %5234 = vmatprep.subr.mxu0 0.0
    %5235 = vmatpush2.msra.mxu0 0.0
    %5236 = vmatprep.subr.mxu0 0.0
    %5237 = vmatpush2.msra.mxu0 0.0
    %5238 = vmatprep.subr.mxu0 0.0
    %5239 = vmatpush2.msra.mxu0 0.0
    %5240 = vmatprep.subr.mxu0 0.0
    %5241 = vmatpush2.msra.mxu0 0.0
    %5242 = vmatprep.subr.mxu0 0.0
    %5243 = vmatpush2.msra.mxu0 0.0
    %5244 = vmatprep.subr.mxu0 0.0
    %5245 = vmatpush2.msra.mxu0 0.0
    %5246 = vmatprep.subr.mxu0 0.0
    %5247 = vmatpush2.msra.mxu0 0.0
    %5248 = vmatprep.subr.mxu0 0.0
    %5249 = vmatpush2.msra.mxu0 0.0
    %5250 = vmatprep.subr.mxu0 0.0
    %5251 = vmatpush2.msra.mxu0 0.0
    %5252 = vmatprep.subr.mxu0 0.0
    %5253 = vmatpush2.msra.mxu0 0.0
    %5254 = vmatprep.subr.mxu0 0.0
    %5255 = vmatpush2.msra.mxu0 0.0
    %5256 = vmatprep.subr.mxu0 0.0
    %5257 = vmatpush2.msra.mxu0 0.0
    %5258 = vmatprep.subr.mxu0 0.0
    %5259 = vmatpush2.msra.mxu0 0.0
    %5260 = vmatprep.subr.mxu0 0.0
    %5261 = vmatpush2.msra.mxu0 0.0
    %5262 = vmatprep.subr.mxu0 0.0
    %5263 = vmatpush2.msra.mxu0 0.0
    %5264 = vmatprep.mubr.f32.mxu0 0.0
    %5265 = vmatmul.mubr.f32.gmra.mxu0 %v5198
    %v5266 = vpop.f32.mrf.mxu0
    %v5267 = vadd.f32 %v5194, %v5266
    %v5268 = vpop.f32.mrf.mxu0
    %5269 = vdwg.mxu0
    %v5270 = vmax.f32 %v5267, 0.0
    %v5271 = vld [vmem:[%s18] sm:$0xff]
    %v5272 = vld [vmem:[%s18 + $0x8] sm:$0xff]
    %v5273 = vld [vmem:[%s18 + $0x10] sm:$0xff]
    %v5274 = vld [vmem:[%s19] sm:$0x1]
    %v5276 = vlaneseq
    %v5277 = vshrl.u32 %v5276, 7
    %v5278 = vsub.s32 0, %v5277
    %v5279 = vrot.slane %v5274, %v5278
    %vm5281 = vcmask 195584
    %v5283 = vsel %vm5281, %v5270, 0
    %5285 = vmatprep.subr.mxu0 0.0
    %5286 = vmatpush1.msra.mxu0 0.0
    %5287 = vmatprep.subr.mxu0 0.0
    %5288 = vmatpush1.msra.mxu0 0.0
    %5289 = vmatprep.subr.mxu0 0.0
    %5290 = vmatpush1.msra.mxu0 0.0
    %5291 = vmatprep.subr.mxu0 0.0
    %5292 = vmatpush1.msra.mxu0 0.0
    %5293 = vmatprep.subr.mxu0 0.0
    %5294 = vmatpush1.msra.mxu0 0.0
    %5295 = vmatprep.subr.mxu0 0.0
    %5296 = vmatpush1.msra.mxu0 0.0
    %5297 = vmatprep.subr.mxu0 0.0
    %5298 = vmatpush1.msra.mxu0 0.0
    %5299 = vmatprep.subr.mxu0 0.0
    %5300 = vmatpush1.msra.mxu0 0.0
    %5301 = vmatprep.subr.mxu0 0.0
    %5302 = vmatpush1.msra.mxu0 0.0
    %5303 = vmatprep.subr.mxu0 0.0
    %5304 = vmatpush1.msra.mxu0 0.0
    %5305 = vmatprep.subr.mxu0 0.0
    %5306 = vmatpush1.msra.mxu0 0.0
    %5307 = vmatprep.subr.mxu0 0.0
    %5308 = vmatpush1.msra.mxu0 0.0
    %5309 = vmatprep.subr.mxu0 0.0
    %5310 = vmatpush1.msra.mxu0 0.0
    %5311 = vmatprep.subr.mxu0 0.0
    %5312 = vmatpush1.msra.mxu0 %v5273
    %5313 = vmatprep.subr.mxu0 0.0
    %5314 = vmatpush1.msra.mxu0 %v5272
    %5315 = vmatprep.subr.mxu0 0.0
    %5316 = vmatpush1.msra.mxu0 %v5271
    %5317 = vmatprep.subr.mxu0 0.0
    %5318 = vmatpush2.msra.mxu0 0.0
    %5319 = vmatprep.subr.mxu0 0.0
    %5320 = vmatpush2.msra.mxu0 0.0
    %5321 = vmatprep.subr.mxu0 0.0
    %5322 = vmatpush2.msra.mxu0 0.0
    %5323 = vmatprep.subr.mxu0 0.0
    %5324 = vmatpush2.msra.mxu0 0.0
    %5325 = vmatprep.subr.mxu0 0.0
    %5326 = vmatpush2.msra.mxu0 0.0
    %5327 = vmatprep.subr.mxu0 0.0
    %5328 = vmatpush2.msra.mxu0 0.0
    %5329 = vmatprep.subr.mxu0 0.0
    %5330 = vmatpush2.msra.mxu0 0.0
    %5331 = vmatprep.subr.mxu0 0.0
    %5332 = vmatpush2.msra.mxu0 0.0
    %5333 = vmatprep.subr.mxu0 0.0
    %5334 = vmatpush2.msra.mxu0 0.0
    %5335 = vmatprep.subr.mxu0 0.0
    %5336 = vmatpush2.msra.mxu0 0.0
    %5337 = vmatprep.subr.mxu0 0.0
    %5338 = vmatpush2.msra.mxu0 0.0
    %5339 = vmatprep.subr.mxu0 0.0
    %5340 = vmatpush2.msra.mxu0 0.0
    %5341 = vmatprep.subr.mxu0 0.0
    %5342 = vmatpush2.msra.mxu0 0.0
    %5343 = vmatprep.subr.mxu0 0.0
    %5344 = vmatpush2.msra.mxu0 0.0
    %5345 = vmatprep.subr.mxu0 0.0
    %5346 = vmatpush2.msra.mxu0 0.0
    %5347 = vmatprep.subr.mxu0 0.0
    %5348 = vmatpush2.msra.mxu0 0.0
    %5349 = vmatprep.mubr.f32.mxu0 0.0
    %5350 = vmatmul.mubr.f32.gmra.mxu0 %v5283
    %v5351 = vpop.f32.mrf.mxu0
    %v5352 = vadd.f32 %v5279, %v5351
    %v5353 = vpop.f32.mrf.mxu0
    %5354 = vdwg.mxu0
    %vm5355 = vcmask 130048
    %5356 = vst.msk [vmem:[#allocation23] sm:$0xff] %vm5355, %v5352
    // Predicated region
    $region134: #{tpu_custom_call.1} parent=1 // pred_check
      _
    $region135: #{tpu_custom_call.1} parent=1 // pred_check_branch
      %5358 = sbr.rel (0) target = $region137
    $region136: #{tpu_custom_call.1} parent=1 // pred_region
      %s5360 = ssub.s32 128, 128
      %5361 = vsyncadd [#allocation3], %s5360
      %s5363 = sshll.u32 [#allocation23], 4
      %s5364 = int_to_ptr.vmem [resolvable:$true] %s5363
      %5366 = dma.vmem_to_hbm [thread:$0]  %s5364, 128, %s20, [#allocation3]
    $region137: #{tpu_custom_call.1} parent=1 // pred_fallthru
      _
    // Predicated region
    $region138: #{tpu_custom_call.1} parent=1 // pred_check
      _
    $region139: #{tpu_custom_call.1} parent=1 // pred_check_branch
      %5368 = sbr.rel (0) target = $region141
    $region140: #{tpu_custom_call.1} parent=1 // pred_region
      %s5370 = ssub.s32 512, 512
      %5371 = vsyncadd [#allocation25], %s5370
      %s5372 = sshll.u32 [#allocation24], 4
      %s5373 = int_to_ptr.vmem [resolvable:$true] %s5372
      %5378 = dma.vmem_to_hbm [thread:$0]  %s5373, 512, %s21, [#allocation25], 64, 64, 4
    $region141: #{tpu_custom_call.1} parent=1 // pred_fallthru
      _
    // Predicated region
    $region142: #{tpu_custom_call.1} parent=1 // pred_check
      _
    $region143: #{tpu_custom_call.1} parent=1 // pred_check_branch
      %5380 = sbr.rel (0) target = $region145
    $region144: #{tpu_custom_call.1} parent=1 // pred_region
      %5381 = dma.done [#allocation3], 128
    $region145: #{tpu_custom_call.1} parent=1 // pred_fallthru
      _
    // Predicated region
    $region146: #{tpu_custom_call.1} parent=1 // pred_check
      _
    $region147: #{tpu_custom_call.1} parent=1 // pred_check_branch
      %5383 = sbr.rel (0) target = $region149
    $region148: #{tpu_custom_call.1} parent=1 // pred_region
      %5384 = dma.done [#allocation25], 512
    $region149: #{tpu_custom_call.1} parent=1 // pred_fallthru
      _
    %5385 = vsyncpa [#allocation3], 1
    %5386 = vsyncpa [#allocation25], 1
    %5387 = vsyncpa [#allocation4], 1
    %5388 = vsyncpa [#allocation6], 1
    %5389 = vsyncpa [#allocation9], 1
    %5390 = vsyncpa [#allocation12], 1
    %5391 = vsyncpa [#allocation15], 1
    %5392 = vsyncpa [#allocation18], 1
    %5393 = vsyncpa [#allocation21], 1

</llo_original>
